<compile_context>
chip_gen: v6e
topology: v6e:2x2x1
jax: 0.10.0
libtpu: 0.0.40
codegen_flags: <defaults>
</compile_context>

<pallas_src>
import math

import jax
import jax.numpy as jnp
from jax.experimental import pallas as pl
from jax.experimental.pallas import tpu as pltpu

FC_IN = 1543
FC_IN_PAD = 1664        # next multiple of 128 (zero-padded contraction dim, result unchanged)
FC_HIDDEN = 1024
FC_OUT = 512

# log_prior tiling: 2 cores x 2 steps over 4 row tiles of each weight matrix.
LP_CORES = 2
LP_TILES_PER_CORE = 2
LP_W1_TILE = FC_HIDDEN // (LP_CORES * LP_TILES_PER_CORE)   # 256
LP_W2_TILE = FC_OUT // (LP_CORES * LP_TILES_PER_CORE)      # 128

_HALF_LOG_2PI = 0.5 * math.log(2.0 * math.pi)

VMEM = pl.BlockSpec(memory_space=pltpu.MemorySpace.VMEM)
SMEM = pl.BlockSpec(memory_space=pltpu.MemorySpace.SMEM)

# 48 MiB: within v7x's 64 MiB physical VMEM, generous headroom on v5e/v6e (128 MiB).
_VMEM_LIMIT = 48 * 1024 * 1024
_CPARAMS = pltpu.CompilerParams(vmem_limit_bytes=_VMEM_LIMIT)


# --------------------------------------------------------------------------
# Pallas kernels
# --------------------------------------------------------------------------
def _fc_rbf_kernel(x_ref, w1_ref, b1_ref, w2_ref, b2_ref, gp_ref, o_ref):
    """Fused fc (Linear -> ReLU -> Dropout(identity) -> Linear) + symmetric scaled RBF.

    Outputs K = outputscale * exp(-0.5 * ||z_i/ls - z_j/ls||^2) directly; z never leaves VMEM.
    x / w1 / w2 are bf16 (MXU native); accumulation and elementwise math in f32.
    """
    h = jnp.dot(x_ref[...], w1_ref[...], preferred_element_type=jnp.float32)
    h = jnp.maximum(h + b1_ref[...], 0.0)
    # TODO(synk): nn.Dropout(0.1) under torch training mode uses torch RNG; treated as
    # identity here (exactly matches eval-mode semantics used by the inference path).
    z = jnp.dot(h.astype(jnp.bfloat16), w2_ref[...], preferred_element_type=jnp.float32)
    z = z + b2_ref[...]

    inv_ls = 1.0 / gp_ref[0]
    outputscale = gp_ref[1]
    xs = z * inv_ls
    dn = (((1,), (1,)), ((), ()))
    cross = jax.lax.dot_general(xs, xs, dn, preferred_element_type=jnp.float32)  # (n, n)
    # Column vector of squared norms: direct lane reduce (no mask / extra Gram pass).
    sq_col = jnp.sum(xs * xs, axis=-1, keepdims=True)                            # (n, 1)
    # Row vector: extracted from the Gram diagonal (a (n,1)->(1,n) transpose at these tiny,
    # non-tile-aligned shapes is a Mosaic relayout risk; this path is known-good and hidden).
    n = cross.shape[0]
    rows = jax.lax.broadcasted_iota(jnp.int32, (n, n), 0)
    cols = jax.lax.broadcasted_iota(jnp.int32, (n, n), 1)
    sq_row = jnp.sum(jnp.where(rows == cols, cross, 0.0), axis=0, keepdims=True)  # (1, n)
    d2 = jnp.maximum(sq_col - 2.0 * cross + sq_row, 0.0)
    o_ref[...] = outputscale * jnp.exp(-0.5 * d2)
    # TODO(synk): if n grows into the hundreds, pad the last dim to a multiple of 128
    # (lane-dense stores) and slice in the wrapper.


def _logprior_kernel(w1v_ref, w1m_ref, w1s_ref, w2v_ref, w2m_ref, w2s_ref,
                     b1v_ref, b1m_ref, b1s_ref, b2v_ref, b2m_ref, b2s_ref, o_ref):
    """Fused Gaussian log-prior over all fc parameters.

    Grid = (core, row-tile): the leading "parallel" axis splits the weight-row stream across
    the two v7x TensorCores; each core accumulates its partial into its own (1,8,128) output
    block (scalar broadcast -> lane-dense, unmasked stores).  The wrapper sums the partials.
    """

    def gsum(v, mu, ls):
        # -(v-mu)^2 / (2*exp(ls)^2) - ls - 0.5*log(2*pi), with a single multiply.
        return jnp.sum(-(v - mu) ** 2 * (0.5 * jnp.exp(-2.0 * ls)) - ls - _HALF_LOG_2PI)

    core = pl.program_id(0)
    step = pl.program_id(1)

    @pl.when(step == 0)
    def _init():
        # Biases are tiny and resident (constant index map): add them exactly once (core 0
        # only, so the wrapper-side sum of the two per-core partials does not double count).
        bias_sum = (gsum(b1v_ref[...], b1m_ref[...], b1s_ref[...]) +
                    gsum(b2v_ref[...], b2m_ref[...], b2s_ref[...]))
        o_ref[...] = jnp.zeros_like(o_ref) + jnp.where(core == 0, bias_sum, 0.0)

    o_ref[...] += (gsum(w1v_ref[...], w1m_ref[...], w1s_ref[...]) +
                   gsum(w2v_ref[...], w2m_ref[...], w2s_ref[...]))


# --------------------------------------------------------------------------
# Kernel wrappers
# --------------------------------------------------------------------------
def prepare_fc_params(params):
    """Hoisted, one-time weight prep: transpose to (in, out), zero-pad contraction, bf16 cast."""
    pad = FC_IN_PAD - FC_IN
    return {
        "w1_t_pad": jnp.pad(params["w1"].T, ((0, pad), (0, 0))).astype(jnp.bfloat16),
        "w2_t": params["w2"].T.astype(jnp.bfloat16),
        "b1": params["b1"].reshape(1, -1).astype(jnp.float32),
        "b2": params["b2"].reshape(1, -1).astype(jnp.float32),
    }


def fc_rbf_cov(prepared, x, lengthscale, outputscale):
    """k(fc(X), fc(X)) for a (n, 1543) batch, fused in one pallas_call."""
    n = x.shape[0]
    pad = FC_IN_PAD - FC_IN
    x_p = jnp.pad(x.astype(jnp.float32), ((0, 0), (0, pad))).astype(jnp.bfloat16)
    gp = jnp.stack([jnp.asarray(lengthscale, jnp.float32),
                    jnp.asarray(outputscale, jnp.float32)])
    return pl.pallas_call(
        _fc_rbf_kernel,
        out_shape=jax.ShapeDtypeStruct((n, n), jnp.float32),
        in_specs=[VMEM, VMEM, VMEM, VMEM, VMEM, SMEM],
        out_specs=VMEM,
        compiler_params=_CPARAMS,
    )(x_p, prepared["w1_t_pad"], prepared["b1"], prepared["w2_t"], prepared["b2"], gp)


def log_prior(params):
    """Single fused, pipelined pallas_call over all four (value, mu, logsigma) groups,
    with the weight-row stream split across two cores (parallel axis) on v7x."""
    w1_spec = pl.BlockSpec((LP_W1_TILE, FC_IN),
                           lambda c, i: (c * LP_TILES_PER_CORE + i, 0))
    w2_spec = pl.BlockSpec((LP_W2_TILE, FC_HIDDEN),
                           lambda c, i: (c * LP_TILES_PER_CORE + i, 0))
    b1_spec = pl.BlockSpec((1, FC_HIDDEN), lambda c, i: (0, 0))   # full array, resident
    b2_spec = pl.BlockSpec((1, FC_OUT), lambda c, i: (0, 0))      # full array, resident
    out_spec = pl.BlockSpec((1, 8, 128), lambda c, i: (c, 0, 0))  # per-core partial block

    b1_args = (params["b1"].reshape(1, -1), params["b1_mu_nn"].reshape(1, -1),
               params["b1_logsigma_nn"].reshape(1, -1))
    b2_args = (params["b2"].reshape(1, -1), params["b2_mu_nn"].reshape(1, -1),
               params["b2_logsigma_nn"].reshape(1, -1))

    out = pl.pallas_call(
        _logprior_kernel,
        out_shape=jax.ShapeDtypeStruct((LP_CORES, 8, 128), jnp.float32),
        grid_spec=pltpu.PrefetchScalarGridSpec(
            num_scalar_prefetch=0,
            grid=(LP_CORES, LP_TILES_PER_CORE),
            in_specs=[w1_spec] * 3 + [w2_spec] * 3 + [b1_spec] * 3 + [b2_spec] * 3,
            out_specs=out_spec,
        ),
        compiler_params=pltpu.CompilerParams(
            # Core split is independent ("parallel"); row-tile axis is a scalar reduction
            # into a revisited output block ("arbitrary").
            dimension_semantics=("parallel", "arbitrary"),
            vmem_limit_bytes=_VMEM_LIMIT),
    )(params["w1"], params["w1_mu_nn"], params["w1_logsigma_nn"],
      params["w2"], params["w2_mu_nn"], params["w2_logsigma_nn"],
      *b1_args, *b2_args)
    return out[0, 0, 0] + out[1, 0, 0]


# --------------------------------------------------------------------------
# Model glue (plain JAX)
# --------------------------------------------------------------------------
def init_params(key):
    """Deterministic synthetic parameter init mirroring the module's __init__ shapes."""
    k = jax.random.split(key, 6)
    bound1 = 1.0 / math.sqrt(FC_IN)
    bound2 = 1.0 / math.sqrt(FC_HIDDEN)
    xav1 = math.sqrt(6.0 / (FC_IN + FC_HIDDEN))
    xav2 = math.sqrt(6.0 / (FC_HIDDEN + FC_OUT))
    p = {
        # feature extractor params (torch Linear layout: weight (out, in), bias (out,))
        "w1": jax.random.uniform(k[0], (FC_HIDDEN, FC_IN), jnp.float32, -bound1, bound1),
        "b1": jax.random.uniform(k[1], (FC_HIDDEN,), jnp.float32, -bound1, bound1),
        "w2": jax.random.uniform(k[2], (FC_OUT, FC_HIDDEN), jnp.float32, -bound2, bound2),
        "b2": jax.random.uniform(k[3], (FC_OUT,), jnp.float32, -bound2, bound2),
        # prior params *_mu_nn / *_logsigma_nn
        "w1_mu_nn": jax.random.uniform(k[4], (FC_HIDDEN, FC_IN), jnp.float32, -xav1, xav1),
        "w1_logsigma_nn": jnp.full((FC_HIDDEN, FC_IN), math.log(0.01), jnp.float32),
        "b1_mu_nn": jnp.zeros((FC_HIDDEN,), jnp.float32),
        "b1_logsigma_nn": jnp.full((FC_HIDDEN,), math.log(0.01), jnp.float32),
        "w2_mu_nn": jax.random.uniform(k[5], (FC_OUT, FC_HIDDEN), jnp.float32, -xav2, xav2),
        "w2_logsigma_nn": jnp.full((FC_OUT, FC_HIDDEN), math.log(0.01), jnp.float32),
        "b2_mu_nn": jnp.zeros((FC_OUT,), jnp.float32),
        "b2_logsigma_nn": jnp.full((FC_OUT,), math.log(0.01), jnp.float32),
        # GP hyperparameters (gpytorch defaults + lengthscale prior mean)
        "gp_lengthscale": jnp.float32(math.exp(0.0 + 0.25 ** 2 / 2.0)),  # LogNormal(0,0.25) mean
        "gp_outputscale": jnp.float32(math.log1p(math.exp(0.0))),        # softplus(0)
        "gp_noise": jnp.float32(math.log1p(math.exp(0.0))),              # softplus(0)
        "gp_mean_const": jnp.float32(0.0),
    }
    return p


# TODO(synk): Cholesky factorization / triangular solves (gpytorch's exact-GP linear algebra)
# have no clean Pallas equivalent; done with jax.numpy / jax.scipy on the tiny (N_support) side.
def _chol_and_alpha(k_ss, y, mean_c):
    chol = jnp.linalg.cholesky(k_ss)
    diff = y - mean_c
    alpha = jax.scipy.linalg.cho_solve((chol, True), diff)
    return chol, diff, alpha


def gp_marginal_log_likelihood(k_ss_raw, ys, params):
    """ExactMarginalLogLikelihood(gp_model(zs), ys)  (divided by n, as gpytorch does)."""
    n = k_ss_raw.shape[0]
    k_ss = k_ss_raw + params["gp_noise"] * jnp.eye(n, dtype=jnp.float32)
    chol, diff, alpha = _chol_and_alpha(k_ss, ys, params["gp_mean_const"])
    logdet = 2.0 * jnp.sum(jnp.log(jnp.diag(chol)))
    logprob = -0.5 * jnp.dot(diff, alpha) - 0.5 * logdet - 0.5 * n * math.log(2.0 * math.pi)
    return logprob / n


def gp_predictive_from_joint(k_all, n_s, ys, params):
    """gp_likelihood(gp_model(zq)) with train data (zs, ys), using one joint kernel matrix."""
    noise, mean_c = params["gp_noise"], params["gp_mean_const"]
    n_q = k_all.shape[0] - n_s
    k_ss = k_all[:n_s, :n_s] + noise * jnp.eye(n_s, dtype=jnp.float32)
    k_qs = k_all[n_s:, :n_s]
    k_qq = k_all[n_s:, n_s:]
    chol, _, alpha = _chol_and_alpha(k_ss, ys, mean_c)
    pred_mean = mean_c + k_qs @ alpha
    v = jax.scipy.linalg.solve_triangular(chol, k_qs.T, lower=True)
    pred_cov = k_qq - v.T @ v + noise * jnp.eye(n_q, dtype=jnp.float32)  # likelihood adds noise
    return pred_mean, pred_cov


# --------------------------------------------------------------------------
# Forward-pass branches of ADKFPriorMetaModel.forward
# --------------------------------------------------------------------------
def forward_eval(params, prepared, support_features, support_labels, query_features):
    """self.training == False: predictive distribution of query labels.

    Support + query rows go through ONE fused fc+RBF kernel call (weights are the dominant
    traffic; z stays in VMEM).
    """
    n_s = support_features.shape[0]
    x_all = jnp.concatenate([support_features, query_features], axis=0)
    k_all = fc_rbf_cov(prepared, x_all, params["gp_lengthscale"], params["gp_outputscale"])
    return gp_predictive_from_joint(k_all, n_s, support_labels, params)


def forward_train_functional(params, prepared, support_features, support_labels):
    """training, train_loss=True, is_functional_call=True: -mll(...) - log_prior()."""
    k_ss = fc_rbf_cov(prepared, support_features,
                      params["gp_lengthscale"], params["gp_outputscale"])
    mll = gp_marginal_log_likelihood(k_ss, support_labels, params)
    return -mll - log_prior(params)


# --------------------------------------------------------------------------
if __name__ == "__main__":
    key = jax.random.PRNGKey(0)
    ks = jax.random.split(key, 5)

    n_support, n_query = 16, 8
    support_features = jax.random.normal(ks[0], (n_support, FC_IN), jnp.float32)
    support_labels = jax.random.normal(ks[1], (n_support,), jnp.float32)
    query_features = jax.random.normal(ks[2], (n_query, FC_IN), jnp.float32)
    query_labels = jax.random.normal(ks[3], (n_query,), jnp.float32)   # unused in eval branch

    params = init_params(ks[4])
    prepared = prepare_fc_params(params)   # one-time transpose / pad / bf16 cast

    pred_mean, pred_cov = forward_eval(params, prepared, support_features,
                                       support_labels, query_features)
    train_loss = forward_train_functional(params, prepared, support_features, support_labels)

    jax.block_until_ready((pred_mean, pred_cov, train_loss))
    assert pred_mean.shape == (n_query,)
    assert pred_cov.shape == (n_query, n_query)
    assert train_loss.shape == ()
    assert bool(jnp.isfinite(train_loss))
    print("KERNEL_OK")
</pallas_src>

<mosaic_0001>
module attributes {stable_mosaic.version = 11 : i64} {
  func.func @_fc_rbf_kernel(%arg0: memref<24x1664xbf16, #tpu.memory_space<vmem>>, %arg1: memref<1664x1024xbf16, #tpu.memory_space<vmem>>, %arg2: memref<1x1024xf32, #tpu.memory_space<vmem>>, %arg3: memref<1024x512xbf16, #tpu.memory_space<vmem>>, %arg4: memref<1x512xf32, #tpu.memory_space<vmem>>, %arg5: memref<2xf32, #tpu.memory_space<smem>>, %arg6: memref<24x24xf32, #tpu.memory_space<vmem>>) attributes {dimension_semantics = [], scalar_prefetch = 0 : i64, scratch_operands = 0 : i64, tpu.core_type = #tpu.core_type<tc>} {
    %c0 = arith.constant 0 : index
    %c0_0 = arith.constant 0 : index
    %0 = vector.load %arg0[%c0, %c0_0] : memref<24x1664xbf16, #tpu.memory_space<vmem>>, vector<24x1664xbf16>
    %c0_1 = arith.constant 0 : index
    %c0_2 = arith.constant 0 : index
    %1 = vector.load %arg1[%c0_1, %c0_2] : memref<1664x1024xbf16, #tpu.memory_space<vmem>>, vector<1664x1024xbf16>
    %cst = arith.constant dense<0.000000e+00> : vector<24x1024xf32>
    %2 = tpu.matmul %0, %1, %cst {dimension_numbers = #tpu.dot_dimension_numbers<[1], [0], [0], [1], [0, 0, 1, 1], [], []>} : vector<24x1664xbf16>, vector<1664x1024xbf16>, vector<24x1024xf32> -> vector<24x1024xf32>
    %c0_3 = arith.constant 0 : index
    %c0_4 = arith.constant 0 : index
    %3 = vector.load %arg2[%c0_3, %c0_4] : memref<1x1024xf32, #tpu.memory_space<vmem>>, vector<1x1024xf32>
    %4 = vector.broadcast %3 : vector<1x1024xf32> to vector<24x1024xf32>
    %5 = arith.addf %2, %4 : vector<24x1024xf32>
    %cst_5 = arith.constant 0.000000e+00 : f32
    %6 = vector.broadcast %cst_5 : f32 to vector<24x1024xf32>
    %7 = arith.maximumf %5, %6 : vector<24x1024xf32>
    %8 = arith.truncf %7 : vector<24x1024xf32> to vector<24x1024xbf16>
    %c0_6 = arith.constant 0 : index
    %c0_7 = arith.constant 0 : index
    %9 = vector.load %arg3[%c0_6, %c0_7] : memref<1024x512xbf16, #tpu.memory_space<vmem>>, vector<1024x512xbf16>
    %cst_8 = arith.constant dense<0.000000e+00> : vector<24x512xf32>
    %10 = tpu.matmul %8, %9, %cst_8 {dimension_numbers = #tpu.dot_dimension_numbers<[1], [0], [0], [1], [0, 0, 1, 1], [], []>} : vector<24x1024xbf16>, vector<1024x512xbf16>, vector<24x512xf32> -> vector<24x512xf32>
    %c0_9 = arith.constant 0 : index
    %c0_10 = arith.constant 0 : index
    %11 = vector.load %arg4[%c0_9, %c0_10] : memref<1x512xf32, #tpu.memory_space<vmem>>, vector<1x512xf32>
    %12 = vector.broadcast %11 : vector<1x512xf32> to vector<24x512xf32>
    %13 = arith.addf %10, %12 : vector<24x512xf32>
    %c0_11 = arith.constant 0 : index
    %14 = memref.load %arg5[%c0_11] : memref<2xf32, #tpu.memory_space<smem>>
    %cst_12 = arith.constant 1.000000e+00 : f32
    %15 = arith.divf %cst_12, %14 : f32
    %c1 = arith.constant 1 : index
    %16 = memref.load %arg5[%c1] : memref<2xf32, #tpu.memory_space<smem>>
    %17 = vector.broadcast %15 : f32 to vector<24x512xf32>
    %18 = arith.mulf %13, %17 : vector<24x512xf32>
    %cst_13 = arith.constant dense<0.000000e+00> : vector<24x24xf32>
    %19 = tpu.matmul %18, %18, %cst_13 {dimension_numbers = #tpu.dot_dimension_numbers<[1], [1], [0], [0], [0, 0, 1, 0], [], []>} : vector<24x512xf32>, vector<24x512xf32>, vector<24x24xf32> -> vector<24x24xf32>
    %20 = arith.mulf %18, %18 : vector<24x512xf32>
    %cst_14 = arith.constant dense<0.000000e+00> : vector<24xf32>
    %21 = vector.multi_reduction <add>, %20, %cst_14 [1] : vector<24x512xf32> to vector<24xf32>
    %22 = vector.shape_cast %21 : vector<24xf32> to vector<24x1xf32>
    %23 = tpu.iota {dimensions = array<i32: 0>} : vector<24x24xi32>
    %24 = tpu.iota {dimensions = array<i32: 1>} : vector<24x24xi32>
    %25 = arith.cmpi eq, %23, %24 : vector<24x24xi32>
    %cst_15 = arith.constant 0.000000e+00 : f32
    %26 = vector.broadcast %cst_15 : f32 to vector<24x24xf32>
    %27 = arith.select %25, %19, %26 : vector<24x24xi1>, vector<24x24xf32>
    %cst_16 = arith.constant dense<0.000000e+00> : vector<24xf32>
    %28 = vector.multi_reduction <add>, %27, %cst_16 [0] : vector<24x24xf32> to vector<24xf32>
    %29 = vector.shape_cast %28 : vector<24xf32> to vector<1x24xf32>
    %cst_17 = arith.constant 2.000000e+00 : f32
    %30 = vector.broadcast %cst_17 : f32 to vector<24x24xf32>
    %31 = arith.mulf %30, %19 : vector<24x24xf32>
    %32 = vector.broadcast %22 : vector<24x1xf32> to vector<24x24xf32>
    %33 = arith.subf %32, %31 : vector<24x24xf32>
    %34 = vector.broadcast %29 : vector<1x24xf32> to vector<24x24xf32>
    %35 = arith.addf %33, %34 : vector<24x24xf32>
    %cst_18 = arith.constant 0.000000e+00 : f32
    %36 = vector.broadcast %cst_18 : f32 to vector<24x24xf32>
    %37 = arith.maximumf %35, %36 : vector<24x24xf32>
    %cst_19 = arith.constant -5.000000e-01 : f32
    %38 = vector.broadcast %cst_19 : f32 to vector<24x24xf32>
    %39 = arith.mulf %38, %37 : vector<24x24xf32>
    %40 = math.exp %39 : vector<24x24xf32>
    %41 = vector.broadcast %16 : f32 to vector<24x24xf32>
    %42 = arith.mulf %41, %40 : vector<24x24xf32>
    %c0_20 = arith.constant 0 : index
    %c0_21 = arith.constant 0 : index
    %43 = vector.load %arg6[%c0_20, %c0_21] : memref<24x24xf32, #tpu.memory_space<vmem>>, vector<24x24xf32>
    tpu.vector_store %arg6[%c0_20, %c0_21], %42 {strides = array<i32>} : memref<24x24xf32, #tpu.memory_space<vmem>>, vector<24x24xf32>,
    return
  }
}

</mosaic_0001>

<llo_original>
// kernel: tpu_custom_call.1
$region0: #{tpu_custom_call.1}
  #allocation0 [shape = 'u32[]', space=smem, size = 0x4, offset = 0x4, fixed_abs, tag = 'smem constant byte address 0x4 - core index']
  #allocation1 [shape = 'u32[144,128]{1,0:T(1,128)}', space=vmem, size = 0x12000, scoped, tag = 'internal scratch']
  %s0 = inlined_call_operand.hbm [shape: bf16[24,1664], index: 0, kind: input, shape index: {}]
  %s1 = inlined_call_operand.hbm [shape: bf16[1664,1024], index: 1, kind: input, shape index: {}]
  %s2 = inlined_call_operand.hbm [shape: f32[1,1024], index: 2, kind: input, shape index: {}]
  %s3 = inlined_call_operand.hbm [shape: bf16[1024,512], index: 3, kind: input, shape index: {}]
  %s4 = inlined_call_operand.hbm [shape: f32[1,512], index: 4, kind: input, shape index: {}]
  %s5 = inlined_call_operand.hbm [shape: f32[2], index: 5, kind: input, shape index: {}]
  %s6 = inlined_call_operand.hbm [shape: f32[24,24], index: 6, kind: output, shape index: {}]
  %s7 = sld [smem:[#allocation0]]
  $region58: #{tpu_custom_call.1} parent=0
    _
  %s9 = ssub.s32 1, %s7
  %s10 = scalar_select 0, %s9, %s7
  $region1: #{tpu_custom_call.1} parent=0
    #allocation2 [shape = 'u8[79872]{0}', space=vmem, size = 0x13800, scoped, tag = 'input window, operand 0, single buffered']
    #allocation3 [shape = 's32[1]{0}', space=sflag, size = 0x4, scoped, tag = 'scoped memory for tpu_custom_call.1']
    #allocation4 [shape = 's32[1]{0}', space=sflag, size = 0x4, scoped, tag = 'scoped memory for tpu_custom_call.1']
    #allocation5 [shape = 's32[1]{0}', space=sflag, size = 0x4, scoped, tag = 'scoped memory for tpu_custom_call.1']
    #allocation6 [shape = 'u8[3407872]{0}', space=vmem, size = 0x340000, scoped, tag = 'input window, operand 1, single buffered']
    #allocation7 [shape = 's32[1]{0}', space=sflag, size = 0x4, scoped, tag = 'scoped memory for tpu_custom_call.1']
    #allocation8 [shape = 'u8[4096]{0}', space=vmem, size = 0x1000, scoped, tag = 'input window, operand 2, single buffered']
    #allocation9 [shape = 'u8[1048576]{0}', space=vmem, size = 0x100000, scoped, tag = 'input window, operand 3, single buffered']
    #allocation10 [shape = 's32[1]{0}', space=sflag, size = 0x4, scoped, tag = 'scoped memory for tpu_custom_call.1']
    #allocation11 [shape = 'u8[2048]{0}', space=vmem, size = 0x800, scoped, tag = 'input window, operand 4, single buffered']
    #allocation12 [shape = 'u8[512]{0}', space=smem, size = 0x200, scoped, tag = 'input window, operand 5, single buffered']
    #allocation13 [shape = 'u8[12288]{0}', space=vmem, size = 0x3000, scoped, tag = 'output window, operand 0, single buffered']
    %11 = vsyncpa [#allocation3], 0
    %12 = vsyncpa [#allocation7], 0
    %13 = vsyncpa [#allocation10], 0
    %14 = vsyncpa [#allocation5], 0
    %15 = vsyncpa [#allocation4], 0
    // Predicated region
    $region2: #{tpu_custom_call.1} parent=1 // pred_check
      _
    $region3: #{tpu_custom_call.1} parent=1 // pred_check_branch
      %17 = sbr.rel (0) target = $region5
    $region4: #{tpu_custom_call.1} parent=1 // pred_region
      %s19 = ssub.s32 2496, 2496
      %20 = vsyncadd [#allocation3], %s19
      %s21 = sshll.u32 [#allocation2], 4
      %s22 = int_to_ptr.vmem [resolvable:$true] %s21
      %27 = dma.hbm_to_vmem [thread:$0]  %s0, 2496, %s22, [#allocation3], 832, 832, 52
    $region5: #{tpu_custom_call.1} parent=1 // pred_fallthru
      _
    // Predicated region
    $region6: #{tpu_custom_call.1} parent=1 // pred_check
      _
    $region7: #{tpu_custom_call.1} parent=1 // pred_check_branch
      %29 = sbr.rel (0) target = $region9
    $region8: #{tpu_custom_call.1} parent=1 // pred_region
      %s31 = ssub.s32 106496, 106496
      %32 = vsyncadd [#allocation7], %s31
      %s33 = sshll.u32 [#allocation6], 4
      %s34 = int_to_ptr.vmem [resolvable:$true] %s33
      %39 = dma.hbm_to_vmem [thread:$0]  %s1, 106496, %s34, [#allocation7], 512, 512, 32
    $region9: #{tpu_custom_call.1} parent=1 // pred_fallthru
      _
    // Predicated region
    $region10: #{tpu_custom_call.1} parent=1 // pred_check
      _
    $region11: #{tpu_custom_call.1} parent=1 // pred_check_branch
      %41 = sbr.rel (0) target = $region13
    $region12: #{tpu_custom_call.1} parent=1 // pred_region
      %s43 = ssub.s32 128, 128
      %44 = vsyncadd [#allocation7], %s43
      %s46 = sshll.u32 [#allocation8], 4
      %s47 = int_to_ptr.vmem [resolvable:$true] %s46
      %49 = dma.hbm_to_vmem [thread:$0]  %s2, 128, %s47, [#allocation7]
    $region13: #{tpu_custom_call.1} parent=1 // pred_fallthru
      _
    // Predicated region
    $region14: #{tpu_custom_call.1} parent=1 // pred_check
      _
    $region15: #{tpu_custom_call.1} parent=1 // pred_check_branch
      %51 = sbr.rel (0) target = $region17
    $region16: #{tpu_custom_call.1} parent=1 // pred_region
      %s53 = ssub.s32 32768, 32768
      %54 = vsyncadd [#allocation10], %s53
      %s55 = sshll.u32 [#allocation9], 4
      %s56 = int_to_ptr.vmem [resolvable:$true] %s55
      %61 = dma.hbm_to_vmem [thread:$0]  %s3, 32768, %s56, [#allocation10], 256, 256, 16
    $region17: #{tpu_custom_call.1} parent=1 // pred_fallthru
      _
    // Predicated region
    $region18: #{tpu_custom_call.1} parent=1 // pred_check
      _
    $region19: #{tpu_custom_call.1} parent=1 // pred_check_branch
      %63 = sbr.rel (0) target = $region21
    $region20: #{tpu_custom_call.1} parent=1 // pred_region
      %s65 = ssub.s32 64, 64
      %66 = vsyncadd [#allocation10], %s65
      %s68 = sshll.u32 [#allocation11], 4
      %s69 = int_to_ptr.vmem [resolvable:$true] %s68
      %71 = dma.hbm_to_vmem [thread:$0]  %s4, 64, %s69, [#allocation10]
    $region21: #{tpu_custom_call.1} parent=1 // pred_fallthru
      _
    // Predicated region
    $region22: #{tpu_custom_call.1} parent=1 // pred_check
      _
    $region23: #{tpu_custom_call.1} parent=1 // pred_check_branch
      %73 = sbr.rel (0) target = $region25
    $region24: #{tpu_custom_call.1} parent=1 // pred_region
      %s75 = ssub.s32 16, 16
      %76 = vsyncadd [#allocation5], %s75
      %79 = dma.hbm_to_smem %s5, 16, [#allocation12], [#allocation5]
    $region25: #{tpu_custom_call.1} parent=1 // pred_fallthru
      _
    // Predicated region
    $region26: #{tpu_custom_call.1} parent=1 // pred_check
      _
    $region27: #{tpu_custom_call.1} parent=1 // pred_check_branch
      %81 = sbr.rel (0) target = $region29
    $region28: #{tpu_custom_call.1} parent=1 // pred_region
      %82 = dma.done [#allocation3], 2496
    $region29: #{tpu_custom_call.1} parent=1 // pred_fallthru
      _
    // Predicated region
    $region30: #{tpu_custom_call.1} parent=1 // pred_check
      _
    $region31: #{tpu_custom_call.1} parent=1 // pred_check_branch
      %84 = sbr.rel (0) target = $region33
    $region32: #{tpu_custom_call.1} parent=1 // pred_region
      %85 = dma.done [#allocation7], 106496
    $region33: #{tpu_custom_call.1} parent=1 // pred_fallthru
      _
    // Predicated region
    $region34: #{tpu_custom_call.1} parent=1 // pred_check
      _
    $region35: #{tpu_custom_call.1} parent=1 // pred_check_branch
      %87 = sbr.rel (0) target = $region37
    $region36: #{tpu_custom_call.1} parent=1 // pred_region
      %88 = dma.done [#allocation7], 128
    $region37: #{tpu_custom_call.1} parent=1 // pred_fallthru
      _
    // Predicated region
    $region38: #{tpu_custom_call.1} parent=1 // pred_check
      _
    $region39: #{tpu_custom_call.1} parent=1 // pred_check_branch
      %90 = sbr.rel (0) target = $region41
    $region40: #{tpu_custom_call.1} parent=1 // pred_region
      %91 = dma.done [#allocation10], 32768
    $region41: #{tpu_custom_call.1} parent=1 // pred_fallthru
      _
    // Predicated region
    $region42: #{tpu_custom_call.1} parent=1 // pred_check
      _
    $region43: #{tpu_custom_call.1} parent=1 // pred_check_branch
      %93 = sbr.rel (0) target = $region45
    $region44: #{tpu_custom_call.1} parent=1 // pred_region
      %94 = dma.done [#allocation10], 64
    $region45: #{tpu_custom_call.1} parent=1 // pred_fallthru
      _
    // Predicated region
    $region46: #{tpu_custom_call.1} parent=1 // pred_check
      _
    $region47: #{tpu_custom_call.1} parent=1 // pred_check_branch
      %96 = sbr.rel (0) target = $region49
    $region48: #{tpu_custom_call.1} parent=1 // pred_region
      %97 = dma.done [#allocation5], 16
    $region49: #{tpu_custom_call.1} parent=1 // pred_fallthru
      _
    %98 = sfence
    %v100 = vld [vmem:[#allocation2] sm:$0xff]
    %v101 = vld [vmem:[#allocation2 + $0x8] sm:$0xff]
    %v102 = vld [vmem:[#allocation2 + $0x10] sm:$0xff]
    %v103 = vld [vmem:[#allocation2 + $0x18] sm:$0xff]
    %v104 = vld [vmem:[#allocation2 + $0x20] sm:$0xff]
    %v105 = vld [vmem:[#allocation2 + $0x28] sm:$0xff]
    %v106 = vld [vmem:[#allocation2 + $0x30] sm:$0xf]
    %v107 = vld [vmem:[#allocation2 + $0x34] sm:$0xff]
    %v108 = vld [vmem:[#allocation2 + $0x3c] sm:$0xff]
    %v109 = vld [vmem:[#allocation2 + $0x44] sm:$0xff]
    %v110 = vld [vmem:[#allocation2 + $0x4c] sm:$0xff]
    %v111 = vld [vmem:[#allocation2 + $0x54] sm:$0xff]
    %v112 = vld [vmem:[#allocation2 + $0x5c] sm:$0xff]
    %v113 = vld [vmem:[#allocation2 + $0x64] sm:$0xf]
    %v114 = vld [vmem:[#allocation2 + $0x68] sm:$0xff]
    %v115 = vld [vmem:[#allocation2 + $0x70] sm:$0xff]
    %v116 = vld [vmem:[#allocation2 + $0x78] sm:$0xff]
    %v117 = vld [vmem:[#allocation2 + $0x80] sm:$0xff]
    %v118 = vld [vmem:[#allocation2 + $0x88] sm:$0xff]
    %v119 = vld [vmem:[#allocation2 + $0x90] sm:$0xff]
    %v120 = vld [vmem:[#allocation2 + $0x98] sm:$0xf]
    %v121 = vld [vmem:[#allocation6] sm:$0xff]
    %v122 = vld [vmem:[#allocation6 + $0x8] sm:$0xff]
    %v123 = vld [vmem:[#allocation6 + $0x10] sm:$0xff]
    %v124 = vld [vmem:[#allocation6 + $0x18] sm:$0xff]
    %v125 = vld [vmem:[#allocation6 + $0x20] sm:$0xff]
    %v126 = vld [vmem:[#allocation6 + $0x28] sm:$0xff]
    %v127 = vld [vmem:[#allocation6 + $0x30] sm:$0xff]
    %v128 = vld [vmem:[#allocation6 + $0x38] sm:$0xff]
    %v129 = vld [vmem:[#allocation6 + $0x40] sm:$0xff]
    %v130 = vld [vmem:[#allocation6 + $0x48] sm:$0xff]
    %v131 = vld [vmem:[#allocation6 + $0x50] sm:$0xff]
    %v132 = vld [vmem:[#allocation6 + $0x58] sm:$0xff]
    %v133 = vld [vmem:[#allocation6 + $0x60] sm:$0xff]
    %v134 = vld [vmem:[#allocation6 + $0x68] sm:$0xff]
    %v135 = vld [vmem:[#allocation6 + $0x70] sm:$0xff]
    %v136 = vld [vmem:[#allocation6 + $0x78] sm:$0xff]
    %v137 = vld [vmem:[#allocation6 + $0x80] sm:$0xff]
    %v138 = vld [vmem:[#allocation6 + $0x88] sm:$0xff]
    %v139 = vld [vmem:[#allocation6 + $0x90] sm:$0xff]
    %v140 = vld [vmem:[#allocation6 + $0x98] sm:$0xff]
    %v141 = vld [vmem:[#allocation6 + $0xa0] sm:$0xff]
    %v142 = vld [vmem:[#allocation6 + $0xa8] sm:$0xff]
    %v143 = vld [vmem:[#allocation6 + $0xb0] sm:$0xff]
    %v144 = vld [vmem:[#allocation6 + $0xb8] sm:$0xff]
    %v145 = vld [vmem:[#allocation6 + $0xc0] sm:$0xff]
    %v146 = vld [vmem:[#allocation6 + $0xc8] sm:$0xff]
    %v147 = vld [vmem:[#allocation6 + $0xd0] sm:$0xff]
    %v148 = vld [vmem:[#allocation6 + $0xd8] sm:$0xff]
    %v149 = vld [vmem:[#allocation6 + $0xe0] sm:$0xff]
    %v150 = vld [vmem:[#allocation6 + $0xe8] sm:$0xff]
    %v151 = vld [vmem:[#allocation6 + $0xf0] sm:$0xff]
    %v152 = vld [vmem:[#allocation6 + $0xf8] sm:$0xff]
    %v153 = vld [vmem:[#allocation6 + $0x100] sm:$0xff]
    %v154 = vld [vmem:[#allocation6 + $0x108] sm:$0xff]
    %v155 = vld [vmem:[#allocation6 + $0x110] sm:$0xff]
    %v156 = vld [vmem:[#allocation6 + $0x118] sm:$0xff]
    %v157 = vld [vmem:[#allocation6 + $0x120] sm:$0xff]
    %v158 = vld [vmem:[#allocation6 + $0x128] sm:$0xff]
    %v159 = vld [vmem:[#allocation6 + $0x130] sm:$0xff]
    %v160 = vld [vmem:[#allocation6 + $0x138] sm:$0xff]
    %v161 = vld [vmem:[#allocation6 + $0x140] sm:$0xff]
    %v162 = vld [vmem:[#allocation6 + $0x148] sm:$0xff]
    %v163 = vld [vmem:[#allocation6 + $0x150] sm:$0xff]
    %v164 = vld [vmem:[#allocation6 + $0x158] sm:$0xff]
    %v165 = vld [vmem:[#allocation6 + $0x160] sm:$0xff]
    %v166 = vld [vmem:[#allocation6 + $0x168] sm:$0xff]
    %v167 = vld [vmem:[#allocation6 + $0x170] sm:$0xff]
    %v168 = vld [vmem:[#allocation6 + $0x178] sm:$0xff]
    %v169 = vld [vmem:[#allocation6 + $0x180] sm:$0xff]
    %v170 = vld [vmem:[#allocation6 + $0x188] sm:$0xff]
    %v171 = vld [vmem:[#allocation6 + $0x190] sm:$0xff]
    %v172 = vld [vmem:[#allocation6 + $0x198] sm:$0xff]
    %v173 = vld [vmem:[#allocation6 + $0x1a0] sm:$0xff]
    %v174 = vld [vmem:[#allocation6 + $0x1a8] sm:$0xff]
    %v175 = vld [vmem:[#allocation6 + $0x1b0] sm:$0xff]
    %v176 = vld [vmem:[#allocation6 + $0x1b8] sm:$0xff]
    %v177 = vld [vmem:[#allocation6 + $0x1c0] sm:$0xff]
    %v178 = vld [vmem:[#allocation6 + $0x1c8] sm:$0xff]
    %v179 = vld [vmem:[#allocation6 + $0x1d0] sm:$0xff]
    %v180 = vld [vmem:[#allocation6 + $0x1d8] sm:$0xff]
    %v181 = vld [vmem:[#allocation6 + $0x1e0] sm:$0xff]
    %v182 = vld [vmem:[#allocation6 + $0x1e8] sm:$0xff]
    %v183 = vld [vmem:[#allocation6 + $0x1f0] sm:$0xff]
    %v184 = vld [vmem:[#allocation6 + $0x1f8] sm:$0xff]
    %v185 = vld [vmem:[#allocation6 + $0x200] sm:$0xff]
    %v186 = vld [vmem:[#allocation6 + $0x208] sm:$0xff]
    %v187 = vld [vmem:[#allocation6 + $0x210] sm:$0xff]
    %v188 = vld [vmem:[#allocation6 + $0x218] sm:$0xff]
    %v189 = vld [vmem:[#allocation6 + $0x220] sm:$0xff]
    %v190 = vld [vmem:[#allocation6 + $0x228] sm:$0xff]
    %v191 = vld [vmem:[#allocation6 + $0x230] sm:$0xff]
    %v192 = vld [vmem:[#allocation6 + $0x238] sm:$0xff]
    %v193 = vld [vmem:[#allocation6 + $0x240] sm:$0xff]
    %v194 = vld [vmem:[#allocation6 + $0x248] sm:$0xff]
    %v195 = vld [vmem:[#allocation6 + $0x250] sm:$0xff]
    %v196 = vld [vmem:[#allocation6 + $0x258] sm:$0xff]
    %v197 = vld [vmem:[#allocation6 + $0x260] sm:$0xff]
    %v198 = vld [vmem:[#allocation6 + $0x268] sm:$0xff]
    %v199 = vld [vmem:[#allocation6 + $0x270] sm:$0xff]
    %v200 = vld [vmem:[#allocation6 + $0x278] sm:$0xff]
    %v201 = vld [vmem:[#allocation6 + $0x280] sm:$0xff]
    %v202 = vld [vmem:[#allocation6 + $0x288] sm:$0xff]
    %v203 = vld [vmem:[#allocation6 + $0x290] sm:$0xff]
    %v204 = vld [vmem:[#allocation6 + $0x298] sm:$0xff]
    %v205 = vld [vmem:[#allocation6 + $0x2a0] sm:$0xff]
    %v206 = vld [vmem:[#allocation6 + $0x2a8] sm:$0xff]
    %v207 = vld [vmem:[#allocation6 + $0x2b0] sm:$0xff]
    %v208 = vld [vmem:[#allocation6 + $0x2b8] sm:$0xff]
    %v209 = vld [vmem:[#allocation6 + $0x2c0] sm:$0xff]
    %v210 = vld [vmem:[#allocation6 + $0x2c8] sm:$0xff]
    %v211 = vld [vmem:[#allocation6 + $0x2d0] sm:$0xff]
    %v212 = vld [vmem:[#allocation6 + $0x2d8] sm:$0xff]
    %v213 = vld [vmem:[#allocation6 + $0x2e0] sm:$0xff]
    %v214 = vld [vmem:[#allocation6 + $0x2e8] sm:$0xff]
    %v215 = vld [vmem:[#allocation6 + $0x2f0] sm:$0xff]
    %v216 = vld [vmem:[#allocation6 + $0x2f8] sm:$0xff]
    %v217 = vld [vmem:[#allocation6 + $0x300] sm:$0xff]
    %v218 = vld [vmem:[#allocation6 + $0x308] sm:$0xff]
    %v219 = vld [vmem:[#allocation6 + $0x310] sm:$0xff]
    %v220 = vld [vmem:[#allocation6 + $0x318] sm:$0xff]
    %v221 = vld [vmem:[#allocation6 + $0x320] sm:$0xff]
    %v222 = vld [vmem:[#allocation6 + $0x328] sm:$0xff]
    %v223 = vld [vmem:[#allocation6 + $0x330] sm:$0xff]
    %v224 = vld [vmem:[#allocation6 + $0x338] sm:$0xff]
    %v225 = vld [vmem:[#allocation6 + $0x340] sm:$0xff]
    %v226 = vld [vmem:[#allocation6 + $0x348] sm:$0xff]
    %v227 = vld [vmem:[#allocation6 + $0x350] sm:$0xff]
    %v228 = vld [vmem:[#allocation6 + $0x358] sm:$0xff]
    %v229 = vld [vmem:[#allocation6 + $0x360] sm:$0xff]
    %v230 = vld [vmem:[#allocation6 + $0x368] sm:$0xff]
    %v231 = vld [vmem:[#allocation6 + $0x370] sm:$0xff]
    %v232 = vld [vmem:[#allocation6 + $0x378] sm:$0xff]
    %v233 = vld [vmem:[#allocation6 + $0x380] sm:$0xff]
    %v234 = vld [vmem:[#allocation6 + $0x388] sm:$0xff]
    %v235 = vld [vmem:[#allocation6 + $0x390] sm:$0xff]
    %v236 = vld [vmem:[#allocation6 + $0x398] sm:$0xff]
    %v237 = vld [vmem:[#allocation6 + $0x3a0] sm:$0xff]
    %v238 = vld [vmem:[#allocation6 + $0x3a8] sm:$0xff]
    %v239 = vld [vmem:[#allocation6 + $0x3b0] sm:$0xff]
    %v240 = vld [vmem:[#allocation6 + $0x3b8] sm:$0xff]
    %v241 = vld [vmem:[#allocation6 + $0x3c0] sm:$0xff]
    %v242 = vld [vmem:[#allocation6 + $0x3c8] sm:$0xff]
    %v243 = vld [vmem:[#allocation6 + $0x3d0] sm:$0xff]
    %v244 = vld [vmem:[#allocation6 + $0x3d8] sm:$0xff]
    %v245 = vld [vmem:[#allocation6 + $0x3e0] sm:$0xff]
    %v246 = vld [vmem:[#allocation6 + $0x3e8] sm:$0xff]
    %v247 = vld [vmem:[#allocation6 + $0x3f0] sm:$0xff]
    %v248 = vld [vmem:[#allocation6 + $0x3f8] sm:$0xff]
    %v249 = vld [vmem:[#allocation6 + $0x400] sm:$0xff]
    %v250 = vld [vmem:[#allocation6 + $0x408] sm:$0xff]
    %v251 = vld [vmem:[#allocation6 + $0x410] sm:$0xff]
    %v252 = vld [vmem:[#allocation6 + $0x418] sm:$0xff]
    %v253 = vld [vmem:[#allocation6 + $0x420] sm:$0xff]
    %v254 = vld [vmem:[#allocation6 + $0x428] sm:$0xff]
    %v255 = vld [vmem:[#allocation6 + $0x430] sm:$0xff]
    %v256 = vld [vmem:[#allocation6 + $0x438] sm:$0xff]
    %v257 = vld [vmem:[#allocation6 + $0x440] sm:$0xff]
    %v258 = vld [vmem:[#allocation6 + $0x448] sm:$0xff]
    %v259 = vld [vmem:[#allocation6 + $0x450] sm:$0xff]
    %v260 = vld [vmem:[#allocation6 + $0x458] sm:$0xff]
    %v261 = vld [vmem:[#allocation6 + $0x460] sm:$0xff]
    %v262 = vld [vmem:[#allocation6 + $0x468] sm:$0xff]
    %v263 = vld [vmem:[#allocation6 + $0x470] sm:$0xff]
    %v264 = vld [vmem:[#allocation6 + $0x478] sm:$0xff]
    %v265 = vld [vmem:[#allocation6 + $0x480] sm:$0xff]
    %v266 = vld [vmem:[#allocation6 + $0x488] sm:$0xff]
    %v267 = vld [vmem:[#allocation6 + $0x490] sm:$0xff]
    %v268 = vld [vmem:[#allocation6 + $0x498] sm:$0xff]
    %v269 = vld [vmem:[#allocation6 + $0x4a0] sm:$0xff]
    %v270 = vld [vmem:[#allocation6 + $0x4a8] sm:$0xff]
    %v271 = vld [vmem:[#allocation6 + $0x4b0] sm:$0xff]
    %v272 = vld [vmem:[#allocation6 + $0x4b8] sm:$0xff]
    %v273 = vld [vmem:[#allocation6 + $0x4c0] sm:$0xff]
    %v274 = vld [vmem:[#allocation6 + $0x4c8] sm:$0xff]
    %v275 = vld [vmem:[#allocation6 + $0x4d0] sm:$0xff]
    %v276 = vld [vmem:[#allocation6 + $0x4d8] sm:$0xff]
    %v277 = vld [vmem:[#allocation6 + $0x4e0] sm:$0xff]
    %v278 = vld [vmem:[#allocation6 + $0x4e8] sm:$0xff]
    %v279 = vld [vmem:[#allocation6 + $0x4f0] sm:$0xff]
    %v280 = vld [vmem:[#allocation6 + $0x4f8] sm:$0xff]
    %v281 = vld [vmem:[#allocation6 + $0x500] sm:$0xff]
    %v282 = vld [vmem:[#allocation6 + $0x508] sm:$0xff]
    %v283 = vld [vmem:[#allocation6 + $0x510] sm:$0xff]
    %v284 = vld [vmem:[#allocation6 + $0x518] sm:$0xff]
    %v285 = vld [vmem:[#allocation6 + $0x520] sm:$0xff]
    %v286 = vld [vmem:[#allocation6 + $0x528] sm:$0xff]
    %v287 = vld [vmem:[#allocation6 + $0x530] sm:$0xff]
    %v288 = vld [vmem:[#allocation6 + $0x538] sm:$0xff]
    %v289 = vld [vmem:[#allocation6 + $0x540] sm:$0xff]
    %v290 = vld [vmem:[#allocation6 + $0x548] sm:$0xff]
    %v291 = vld [vmem:[#allocation6 + $0x550] sm:$0xff]
    %v292 = vld [vmem:[#allocation6 + $0x558] sm:$0xff]
    %v293 = vld [vmem:[#allocation6 + $0x560] sm:$0xff]
    %v294 = vld [vmem:[#allocation6 + $0x568] sm:$0xff]
    %v295 = vld [vmem:[#allocation6 + $0x570] sm:$0xff]
    %v296 = vld [vmem:[#allocation6 + $0x578] sm:$0xff]
    %v297 = vld [vmem:[#allocation6 + $0x580] sm:$0xff]
    %v298 = vld [vmem:[#allocation6 + $0x588] sm:$0xff]
    %v299 = vld [vmem:[#allocation6 + $0x590] sm:$0xff]
    %v300 = vld [vmem:[#allocation6 + $0x598] sm:$0xff]
    %v301 = vld [vmem:[#allocation6 + $0x5a0] sm:$0xff]
    %v302 = vld [vmem:[#allocation6 + $0x5a8] sm:$0xff]
    %v303 = vld [vmem:[#allocation6 + $0x5b0] sm:$0xff]
    %v304 = vld [vmem:[#allocation6 + $0x5b8] sm:$0xff]
    %v305 = vld [vmem:[#allocation6 + $0x5c0] sm:$0xff]
    %v306 = vld [vmem:[#allocation6 + $0x5c8] sm:$0xff]
    %v307 = vld [vmem:[#allocation6 + $0x5d0] sm:$0xff]
    %v308 = vld [vmem:[#allocation6 + $0x5d8] sm:$0xff]
    %v309 = vld [vmem:[#allocation6 + $0x5e0] sm:$0xff]
    %v310 = vld [vmem:[#allocation6 + $0x5e8] sm:$0xff]
    %v311 = vld [vmem:[#allocation6 + $0x5f0] sm:$0xff]
    %v312 = vld [vmem:[#allocation6 + $0x5f8] sm:$0xff]
    %v313 = vld [vmem:[#allocation6 + $0x600] sm:$0xff]
    %v314 = vld [vmem:[#allocation6 + $0x608] sm:$0xff]
    %v315 = vld [vmem:[#allocation6 + $0x610] sm:$0xff]
    %v316 = vld [vmem:[#allocation6 + $0x618] sm:$0xff]
    %v317 = vld [vmem:[#allocation6 + $0x620] sm:$0xff]
    %v318 = vld [vmem:[#allocation6 + $0x628] sm:$0xff]
    %v319 = vld [vmem:[#allocation6 + $0x630] sm:$0xff]
    %v320 = vld [vmem:[#allocation6 + $0x638] sm:$0xff]
    %v321 = vld [vmem:[#allocation6 + $0x640] sm:$0xff]
    %v322 = vld [vmem:[#allocation6 + $0x648] sm:$0xff]
    %v323 = vld [vmem:[#allocation6 + $0x650] sm:$0xff]
    %v324 = vld [vmem:[#allocation6 + $0x658] sm:$0xff]
    %v325 = vld [vmem:[#allocation6 + $0x660] sm:$0xff]
    %v326 = vld [vmem:[#allocation6 + $0x668] sm:$0xff]
    %v327 = vld [vmem:[#allocation6 + $0x670] sm:$0xff]
    %v328 = vld [vmem:[#allocation6 + $0x678] sm:$0xff]
    %v329 = vld [vmem:[#allocation6 + $0x680] sm:$0xff]
    %v330 = vld [vmem:[#allocation6 + $0x688] sm:$0xff]
    %v331 = vld [vmem:[#allocation6 + $0x690] sm:$0xff]
    %v332 = vld [vmem:[#allocation6 + $0x698] sm:$0xff]
    %v333 = vld [vmem:[#allocation6 + $0x6a0] sm:$0xff]
    %v334 = vld [vmem:[#allocation6 + $0x6a8] sm:$0xff]
    %v335 = vld [vmem:[#allocation6 + $0x6b0] sm:$0xff]
    %v336 = vld [vmem:[#allocation6 + $0x6b8] sm:$0xff]
    %v337 = vld [vmem:[#allocation6 + $0x6c0] sm:$0xff]
    %v338 = vld [vmem:[#allocation6 + $0x6c8] sm:$0xff]
    %v339 = vld [vmem:[#allocation6 + $0x6d0] sm:$0xff]
    %v340 = vld [vmem:[#allocation6 + $0x6d8] sm:$0xff]
    %v341 = vld [vmem:[#allocation6 + $0x6e0] sm:$0xff]
    %v342 = vld [vmem:[#allocation6 + $0x6e8] sm:$0xff]
    %v343 = vld [vmem:[#allocation6 + $0x6f0] sm:$0xff]
    %v344 = vld [vmem:[#allocation6 + $0x6f8] sm:$0xff]
    %v345 = vld [vmem:[#allocation6 + $0x700] sm:$0xff]
    %v346 = vld [vmem:[#allocation6 + $0x708] sm:$0xff]
    %v347 = vld [vmem:[#allocation6 + $0x710] sm:$0xff]
    %v348 = vld [vmem:[#allocation6 + $0x718] sm:$0xff]
    %v349 = vld [vmem:[#allocation6 + $0x720] sm:$0xff]
    %v350 = vld [vmem:[#allocation6 + $0x728] sm:$0xff]
    %v351 = vld [vmem:[#allocation6 + $0x730] sm:$0xff]
    %v352 = vld [vmem:[#allocation6 + $0x738] sm:$0xff]
    %v353 = vld [vmem:[#allocation6 + $0x740] sm:$0xff]
    %v354 = vld [vmem:[#allocation6 + $0x748] sm:$0xff]
    %v355 = vld [vmem:[#allocation6 + $0x750] sm:$0xff]
    %v356 = vld [vmem:[#allocation6 + $0x758] sm:$0xff]
    %v357 = vld [vmem:[#allocation6 + $0x760] sm:$0xff]
    %v358 = vld [vmem:[#allocation6 + $0x768] sm:$0xff]
    %v359 = vld [vmem:[#allocation6 + $0x770] sm:$0xff]
    %v360 = vld [vmem:[#allocation6 + $0x778] sm:$0xff]
    %v361 = vld [vmem:[#allocation6 + $0x780] sm:$0xff]
    %v362 = vld [vmem:[#allocation6 + $0x788] sm:$0xff]
    %v363 = vld [vmem:[#allocation6 + $0x790] sm:$0xff]
    %v364 = vld [vmem:[#allocation6 + $0x798] sm:$0xff]
    %v365 = vld [vmem:[#allocation6 + $0x7a0] sm:$0xff]
    %v366 = vld [vmem:[#allocation6 + $0x7a8] sm:$0xff]
    %v367 = vld [vmem:[#allocation6 + $0x7b0] sm:$0xff]
    %v368 = vld [vmem:[#allocation6 + $0x7b8] sm:$0xff]
    %v369 = vld [vmem:[#allocation6 + $0x7c0] sm:$0xff]
    %v370 = vld [vmem:[#allocation6 + $0x7c8] sm:$0xff]
    %v371 = vld [vmem:[#allocation6 + $0x7d0] sm:$0xff]
    %v372 = vld [vmem:[#allocation6 + $0x7d8] sm:$0xff]
    %v373 = vld [vmem:[#allocation6 + $0x7e0] sm:$0xff]
    %v374 = vld [vmem:[#allocation6 + $0x7e8] sm:$0xff]
    %v375 = vld [vmem:[#allocation6 + $0x7f0] sm:$0xff]
    %v376 = vld [vmem:[#allocation6 + $0x7f8] sm:$0xff]
    %v377 = vld [vmem:[#allocation6 + $0x800] sm:$0xff]
    %v378 = vld [vmem:[#allocation6 + $0x808] sm:$0xff]
    %v379 = vld [vmem:[#allocation6 + $0x810] sm:$0xff]
    %v380 = vld [vmem:[#allocation6 + $0x818] sm:$0xff]
    %v381 = vld [vmem:[#allocation6 + $0x820] sm:$0xff]
    %v382 = vld [vmem:[#allocation6 + $0x828] sm:$0xff]
    %v383 = vld [vmem:[#allocation6 + $0x830] sm:$0xff]
    %v384 = vld [vmem:[#allocation6 + $0x838] sm:$0xff]
    %v385 = vld [vmem:[#allocation6 + $0x840] sm:$0xff]
    %v386 = vld [vmem:[#allocation6 + $0x848] sm:$0xff]
    %v387 = vld [vmem:[#allocation6 + $0x850] sm:$0xff]
    %v388 = vld [vmem:[#allocation6 + $0x858] sm:$0xff]
    %v389 = vld [vmem:[#allocation6 + $0x860] sm:$0xff]
    %v390 = vld [vmem:[#allocation6 + $0x868] sm:$0xff]
    %v391 = vld [vmem:[#allocation6 + $0x870] sm:$0xff]
    %v392 = vld [vmem:[#allocation6 + $0x878] sm:$0xff]
    %v393 = vld [vmem:[#allocation6 + $0x880] sm:$0xff]
    %v394 = vld [vmem:[#allocation6 + $0x888] sm:$0xff]
    %v395 = vld [vmem:[#allocation6 + $0x890] sm:$0xff]
    %v396 = vld [vmem:[#allocation6 + $0x898] sm:$0xff]
    %v397 = vld [vmem:[#allocation6 + $0x8a0] sm:$0xff]
    %v398 = vld [vmem:[#allocation6 + $0x8a8] sm:$0xff]
    %v399 = vld [vmem:[#allocation6 + $0x8b0] sm:$0xff]
    %v400 = vld [vmem:[#allocation6 + $0x8b8] sm:$0xff]
    %v401 = vld [vmem:[#allocation6 + $0x8c0] sm:$0xff]
    %v402 = vld [vmem:[#allocation6 + $0x8c8] sm:$0xff]
    %v403 = vld [vmem:[#allocation6 + $0x8d0] sm:$0xff]
    %v404 = vld [vmem:[#allocation6 + $0x8d8] sm:$0xff]
    %v405 = vld [vmem:[#allocation6 + $0x8e0] sm:$0xff]
    %v406 = vld [vmem:[#allocation6 + $0x8e8] sm:$0xff]
    %v407 = vld [vmem:[#allocation6 + $0x8f0] sm:$0xff]
    %v408 = vld [vmem:[#allocation6 + $0x8f8] sm:$0xff]
    %v409 = vld [vmem:[#allocation6 + $0x900] sm:$0xff]
    %v410 = vld [vmem:[#allocation6 + $0x908] sm:$0xff]
    %v411 = vld [vmem:[#allocation6 + $0x910] sm:$0xff]
    %v412 = vld [vmem:[#allocation6 + $0x918] sm:$0xff]
    %v413 = vld [vmem:[#allocation6 + $0x920] sm:$0xff]
    %v414 = vld [vmem:[#allocation6 + $0x928] sm:$0xff]
    %v415 = vld [vmem:[#allocation6 + $0x930] sm:$0xff]
    %v416 = vld [vmem:[#allocation6 + $0x938] sm:$0xff]
    %v417 = vld [vmem:[#allocation6 + $0x940] sm:$0xff]
    %v418 = vld [vmem:[#allocation6 + $0x948] sm:$0xff]
    %v419 = vld [vmem:[#allocation6 + $0x950] sm:$0xff]
    %v420 = vld [vmem:[#allocation6 + $0x958] sm:$0xff]
    %v421 = vld [vmem:[#allocation6 + $0x960] sm:$0xff]
    %v422 = vld [vmem:[#allocation6 + $0x968] sm:$0xff]
    %v423 = vld [vmem:[#allocation6 + $0x970] sm:$0xff]
    %v424 = vld [vmem:[#allocation6 + $0x978] sm:$0xff]
    %v425 = vld [vmem:[#allocation6 + $0x980] sm:$0xff]
    %v426 = vld [vmem:[#allocation6 + $0x988] sm:$0xff]
    %v427 = vld [vmem:[#allocation6 + $0x990] sm:$0xff]
    %v428 = vld [vmem:[#allocation6 + $0x998] sm:$0xff]
    %v429 = vld [vmem:[#allocation6 + $0x9a0] sm:$0xff]
    %v430 = vld [vmem:[#allocation6 + $0x9a8] sm:$0xff]
    %v431 = vld [vmem:[#allocation6 + $0x9b0] sm:$0xff]
    %v432 = vld [vmem:[#allocation6 + $0x9b8] sm:$0xff]
    %v433 = vld [vmem:[#allocation6 + $0x9c0] sm:$0xff]
    %v434 = vld [vmem:[#allocation6 + $0x9c8] sm:$0xff]
    %v435 = vld [vmem:[#allocation6 + $0x9d0] sm:$0xff]
    %v436 = vld [vmem:[#allocation6 + $0x9d8] sm:$0xff]
    %v437 = vld [vmem:[#allocation6 + $0x9e0] sm:$0xff]
    %v438 = vld [vmem:[#allocation6 + $0x9e8] sm:$0xff]
    %v439 = vld [vmem:[#allocation6 + $0x9f0] sm:$0xff]
    %v440 = vld [vmem:[#allocation6 + $0x9f8] sm:$0xff]
    %v441 = vld [vmem:[#allocation6 + $0xa00] sm:$0xff]
    %v442 = vld [vmem:[#allocation6 + $0xa08] sm:$0xff]
    %v443 = vld [vmem:[#allocation6 + $0xa10] sm:$0xff]
    %v444 = vld [vmem:[#allocation6 + $0xa18] sm:$0xff]
    %v445 = vld [vmem:[#allocation6 + $0xa20] sm:$0xff]
    %v446 = vld [vmem:[#allocation6 + $0xa28] sm:$0xff]
    %v447 = vld [vmem:[#allocation6 + $0xa30] sm:$0xff]
    %v448 = vld [vmem:[#allocation6 + $0xa38] sm:$0xff]
    %v449 = vld [vmem:[#allocation6 + $0xa40] sm:$0xff]
    %v450 = vld [vmem:[#allocation6 + $0xa48] sm:$0xff]
    %v451 = vld [vmem:[#allocation6 + $0xa50] sm:$0xff]
    %v452 = vld [vmem:[#allocation6 + $0xa58] sm:$0xff]
    %v453 = vld [vmem:[#allocation6 + $0xa60] sm:$0xff]
    %v454 = vld [vmem:[#allocation6 + $0xa68] sm:$0xff]
    %v455 = vld [vmem:[#allocation6 + $0xa70] sm:$0xff]
    %v456 = vld [vmem:[#allocation6 + $0xa78] sm:$0xff]
    %v457 = vld [vmem:[#allocation6 + $0xa80] sm:$0xff]
    %v458 = vld [vmem:[#allocation6 + $0xa88] sm:$0xff]
    %v459 = vld [vmem:[#allocation6 + $0xa90] sm:$0xff]
    %v460 = vld [vmem:[#allocation6 + $0xa98] sm:$0xff]
    %v461 = vld [vmem:[#allocation6 + $0xaa0] sm:$0xff]
    %v462 = vld [vmem:[#allocation6 + $0xaa8] sm:$0xff]
    %v463 = vld [vmem:[#allocation6 + $0xab0] sm:$0xff]
    %v464 = vld [vmem:[#allocation6 + $0xab8] sm:$0xff]
    %v465 = vld [vmem:[#allocation6 + $0xac0] sm:$0xff]
    %v466 = vld [vmem:[#allocation6 + $0xac8] sm:$0xff]
    %v467 = vld [vmem:[#allocation6 + $0xad0] sm:$0xff]
    %v468 = vld [vmem:[#allocation6 + $0xad8] sm:$0xff]
    %v469 = vld [vmem:[#allocation6 + $0xae0] sm:$0xff]
    %v470 = vld [vmem:[#allocation6 + $0xae8] sm:$0xff]
    %v471 = vld [vmem:[#allocation6 + $0xaf0] sm:$0xff]
    %v472 = vld [vmem:[#allocation6 + $0xaf8] sm:$0xff]
    %v473 = vld [vmem:[#allocation6 + $0xb00] sm:$0xff]
    %v474 = vld [vmem:[#allocation6 + $0xb08] sm:$0xff]
    %v475 = vld [vmem:[#allocation6 + $0xb10] sm:$0xff]
    %v476 = vld [vmem:[#allocation6 + $0xb18] sm:$0xff]
    %v477 = vld [vmem:[#allocation6 + $0xb20] sm:$0xff]
    %v478 = vld [vmem:[#allocation6 + $0xb28] sm:$0xff]
    %v479 = vld [vmem:[#allocation6 + $0xb30] sm:$0xff]
    %v480 = vld [vmem:[#allocation6 + $0xb38] sm:$0xff]
    %v481 = vld [vmem:[#allocation6 + $0xb40] sm:$0xff]
    %v482 = vld [vmem:[#allocation6 + $0xb48] sm:$0xff]
    %v483 = vld [vmem:[#allocation6 + $0xb50] sm:$0xff]
    %v484 = vld [vmem:[#allocation6 + $0xb58] sm:$0xff]
    %v485 = vld [vmem:[#allocation6 + $0xb60] sm:$0xff]
    %v486 = vld [vmem:[#allocation6 + $0xb68] sm:$0xff]
    %v487 = vld [vmem:[#allocation6 + $0xb70] sm:$0xff]
    %v488 = vld [vmem:[#allocation6 + $0xb78] sm:$0xff]
    %v489 = vld [vmem:[#allocation6 + $0xb80] sm:$0xff]
    %v490 = vld [vmem:[#allocation6 + $0xb88] sm:$0xff]
    %v491 = vld [vmem:[#allocation6 + $0xb90] sm:$0xff]
    %v492 = vld [vmem:[#allocation6 + $0xb98] sm:$0xff]
    %v493 = vld [vmem:[#allocation6 + $0xba0] sm:$0xff]
    %v494 = vld [vmem:[#allocation6 + $0xba8] sm:$0xff]
    %v495 = vld [vmem:[#allocation6 + $0xbb0] sm:$0xff]
    %v496 = vld [vmem:[#allocation6 + $0xbb8] sm:$0xff]
    %v497 = vld [vmem:[#allocation6 + $0xbc0] sm:$0xff]
    %v498 = vld [vmem:[#allocation6 + $0xbc8] sm:$0xff]
    %v499 = vld [vmem:[#allocation6 + $0xbd0] sm:$0xff]
    %v500 = vld [vmem:[#allocation6 + $0xbd8] sm:$0xff]
    %v501 = vld [vmem:[#allocation6 + $0xbe0] sm:$0xff]
    %v502 = vld [vmem:[#allocation6 + $0xbe8] sm:$0xff]
    %v503 = vld [vmem:[#allocation6 + $0xbf0] sm:$0xff]
    %v504 = vld [vmem:[#allocation6 + $0xbf8] sm:$0xff]
    %v505 = vld [vmem:[#allocation6 + $0xc00] sm:$0xff]
    %v506 = vld [vmem:[#allocation6 + $0xc08] sm:$0xff]
    %v507 = vld [vmem:[#allocation6 + $0xc10] sm:$0xff]
    %v508 = vld [vmem:[#allocation6 + $0xc18] sm:$0xff]
    %v509 = vld [vmem:[#allocation6 + $0xc20] sm:$0xff]
    %v510 = vld [vmem:[#allocation6 + $0xc28] sm:$0xff]
    %v511 = vld [vmem:[#allocation6 + $0xc30] sm:$0xff]
    %v512 = vld [vmem:[#allocation6 + $0xc38] sm:$0xff]
    %v513 = vld [vmem:[#allocation6 + $0xc40] sm:$0xff]
    %v514 = vld [vmem:[#allocation6 + $0xc48] sm:$0xff]
    %v515 = vld [vmem:[#allocation6 + $0xc50] sm:$0xff]
    %v516 = vld [vmem:[#allocation6 + $0xc58] sm:$0xff]
    %v517 = vld [vmem:[#allocation6 + $0xc60] sm:$0xff]
    %v518 = vld [vmem:[#allocation6 + $0xc68] sm:$0xff]
    %v519 = vld [vmem:[#allocation6 + $0xc70] sm:$0xff]
    %v520 = vld [vmem:[#allocation6 + $0xc78] sm:$0xff]
    %v521 = vld [vmem:[#allocation6 + $0xc80] sm:$0xff]
    %v522 = vld [vmem:[#allocation6 + $0xc88] sm:$0xff]
    %v523 = vld [vmem:[#allocation6 + $0xc90] sm:$0xff]
    %v524 = vld [vmem:[#allocation6 + $0xc98] sm:$0xff]
    %v525 = vld [vmem:[#allocation6 + $0xca0] sm:$0xff]
    %v526 = vld [vmem:[#allocation6 + $0xca8] sm:$0xff]
    %v527 = vld [vmem:[#allocation6 + $0xcb0] sm:$0xff]
    %v528 = vld [vmem:[#allocation6 + $0xcb8] sm:$0xff]
    %v529 = vld [vmem:[#allocation6 + $0xcc0] sm:$0xff]
    %v530 = vld [vmem:[#allocation6 + $0xcc8] sm:$0xff]
    %v531 = vld [vmem:[#allocation6 + $0xcd0] sm:$0xff]
    %v532 = vld [vmem:[#allocation6 + $0xcd8] sm:$0xff]
    %v533 = vld [vmem:[#allocation6 + $0xce0] sm:$0xff]
    %v534 = vld [vmem:[#allocation6 + $0xce8] sm:$0xff]
    %v535 = vld [vmem:[#allocation6 + $0xcf0] sm:$0xff]
    %v536 = vld [vmem:[#allocation6 + $0xcf8] sm:$0xff]
    %v537 = vld [vmem:[#allocation6 + $0xd00] sm:$0xff]
    %v538 = vld [vmem:[#allocation6 + $0xd08] sm:$0xff]
    %v539 = vld [vmem:[#allocation6 + $0xd10] sm:$0xff]
    %v540 = vld [vmem:[#allocation6 + $0xd18] sm:$0xff]
    %v541 = vld [vmem:[#allocation6 + $0xd20] sm:$0xff]
    %v542 = vld [vmem:[#allocation6 + $0xd28] sm:$0xff]
    %v543 = vld [vmem:[#allocation6 + $0xd30] sm:$0xff]
    %v544 = vld [vmem:[#allocation6 + $0xd38] sm:$0xff]
    %v545 = vld [vmem:[#allocation6 + $0xd40] sm:$0xff]
    %v546 = vld [vmem:[#allocation6 + $0xd48] sm:$0xff]
    %v547 = vld [vmem:[#allocation6 + $0xd50] sm:$0xff]
    %v548 = vld [vmem:[#allocation6 + $0xd58] sm:$0xff]
    %v549 = vld [vmem:[#allocation6 + $0xd60] sm:$0xff]
    %v550 = vld [vmem:[#allocation6 + $0xd68] sm:$0xff]
    %v551 = vld [vmem:[#allocation6 + $0xd70] sm:$0xff]
    %v552 = vld [vmem:[#allocation6 + $0xd78] sm:$0xff]
    %v553 = vld [vmem:[#allocation6 + $0xd80] sm:$0xff]
    %v554 = vld [vmem:[#allocation6 + $0xd88] sm:$0xff]
    %v555 = vld [vmem:[#allocation6 + $0xd90] sm:$0xff]
    %v556 = vld [vmem:[#allocation6 + $0xd98] sm:$0xff]
    %v557 = vld [vmem:[#allocation6 + $0xda0] sm:$0xff]
    %v558 = vld [vmem:[#allocation6 + $0xda8] sm:$0xff]
    %v559 = vld [vmem:[#allocation6 + $0xdb0] sm:$0xff]
    %v560 = vld [vmem:[#allocation6 + $0xdb8] sm:$0xff]
    %v561 = vld [vmem:[#allocation6 + $0xdc0] sm:$0xff]
    %v562 = vld [vmem:[#allocation6 + $0xdc8] sm:$0xff]
    %v563 = vld [vmem:[#allocation6 + $0xdd0] sm:$0xff]
    %v564 = vld [vmem:[#allocation6 + $0xdd8] sm:$0xff]
    %v565 = vld [vmem:[#allocation6 + $0xde0] sm:$0xff]
    %v566 = vld [vmem:[#allocation6 + $0xde8] sm:$0xff]
    %v567 = vld [vmem:[#allocation6 + $0xdf0] sm:$0xff]
    %v568 = vld [vmem:[#allocation6 + $0xdf8] sm:$0xff]
    %v569 = vld [vmem:[#allocation6 + $0xe00] sm:$0xff]
    %v570 = vld [vmem:[#allocation6 + $0xe08] sm:$0xff]
    %v571 = vld [vmem:[#allocation6 + $0xe10] sm:$0xff]
    %v572 = vld [vmem:[#allocation6 + $0xe18] sm:$0xff]
    %v573 = vld [vmem:[#allocation6 + $0xe20] sm:$0xff]
    %v574 = vld [vmem:[#allocation6 + $0xe28] sm:$0xff]
    %v575 = vld [vmem:[#allocation6 + $0xe30] sm:$0xff]
    %v576 = vld [vmem:[#allocation6 + $0xe38] sm:$0xff]
    %v577 = vld [vmem:[#allocation6 + $0xe40] sm:$0xff]
    %v578 = vld [vmem:[#allocation6 + $0xe48] sm:$0xff]
    %v579 = vld [vmem:[#allocation6 + $0xe50] sm:$0xff]
    %v580 = vld [vmem:[#allocation6 + $0xe58] sm:$0xff]
    %v581 = vld [vmem:[#allocation6 + $0xe60] sm:$0xff]
    %v582 = vld [vmem:[#allocation6 + $0xe68] sm:$0xff]
    %v583 = vld [vmem:[#allocation6 + $0xe70] sm:$0xff]
    %v584 = vld [vmem:[#allocation6 + $0xe78] sm:$0xff]
    %v585 = vld [vmem:[#allocation6 + $0xe80] sm:$0xff]
    %v586 = vld [vmem:[#allocation6 + $0xe88] sm:$0xff]
    %v587 = vld [vmem:[#allocation6 + $0xe90] sm:$0xff]
    %v588 = vld [vmem:[#allocation6 + $0xe98] sm:$0xff]
    %v589 = vld [vmem:[#allocation6 + $0xea0] sm:$0xff]
    %v590 = vld [vmem:[#allocation6 + $0xea8] sm:$0xff]
    %v591 = vld [vmem:[#allocation6 + $0xeb0] sm:$0xff]
    %v592 = vld [vmem:[#allocation6 + $0xeb8] sm:$0xff]
    %v593 = vld [vmem:[#allocation6 + $0xec0] sm:$0xff]
    %v594 = vld [vmem:[#allocation6 + $0xec8] sm:$0xff]
    %v595 = vld [vmem:[#allocation6 + $0xed0] sm:$0xff]
    %v596 = vld [vmem:[#allocation6 + $0xed8] sm:$0xff]
    %v597 = vld [vmem:[#allocation6 + $0xee0] sm:$0xff]
    %v598 = vld [vmem:[#allocation6 + $0xee8] sm:$0xff]
    %v599 = vld [vmem:[#allocation6 + $0xef0] sm:$0xff]
    %v600 = vld [vmem:[#allocation6 + $0xef8] sm:$0xff]
    %v601 = vld [vmem:[#allocation6 + $0xf00] sm:$0xff]
    %v602 = vld [vmem:[#allocation6 + $0xf08] sm:$0xff]
    %v603 = vld [vmem:[#allocation6 + $0xf10] sm:$0xff]
    %v604 = vld [vmem:[#allocation6 + $0xf18] sm:$0xff]
    %v605 = vld [vmem:[#allocation6 + $0xf20] sm:$0xff]
    %v606 = vld [vmem:[#allocation6 + $0xf28] sm:$0xff]
    %v607 = vld [vmem:[#allocation6 + $0xf30] sm:$0xff]
    %v608 = vld [vmem:[#allocation6 + $0xf38] sm:$0xff]
    %v609 = vld [vmem:[#allocation6 + $0xf40] sm:$0xff]
    %v610 = vld [vmem:[#allocation6 + $0xf48] sm:$0xff]
    %v611 = vld [vmem:[#allocation6 + $0xf50] sm:$0xff]
    %v612 = vld [vmem:[#allocation6 + $0xf58] sm:$0xff]
    %v613 = vld [vmem:[#allocation6 + $0xf60] sm:$0xff]
    %v614 = vld [vmem:[#allocation6 + $0xf68] sm:$0xff]
    %v615 = vld [vmem:[#allocation6 + $0xf70] sm:$0xff]
    %v616 = vld [vmem:[#allocation6 + $0xf78] sm:$0xff]
    %v617 = vld [vmem:[#allocation6 + $0xf80] sm:$0xff]
    %v618 = vld [vmem:[#allocation6 + $0xf88] sm:$0xff]
    %v619 = vld [vmem:[#allocation6 + $0xf90] sm:$0xff]
    %v620 = vld [vmem:[#allocation6 + $0xf98] sm:$0xff]
    %v621 = vld [vmem:[#allocation6 + $0xfa0] sm:$0xff]
    %v622 = vld [vmem:[#allocation6 + $0xfa8] sm:$0xff]
    %v623 = vld [vmem:[#allocation6 + $0xfb0] sm:$0xff]
    %v624 = vld [vmem:[#allocation6 + $0xfb8] sm:$0xff]
    %v625 = vld [vmem:[#allocation6 + $0xfc0] sm:$0xff]
    %v626 = vld [vmem:[#allocation6 + $0xfc8] sm:$0xff]
    %v627 = vld [vmem:[#allocation6 + $0xfd0] sm:$0xff]
    %v628 = vld [vmem:[#allocation6 + $0xfd8] sm:$0xff]
    %v629 = vld [vmem:[#allocation6 + $0xfe0] sm:$0xff]
    %v630 = vld [vmem:[#allocation6 + $0xfe8] sm:$0xff]
    %v631 = vld [vmem:[#allocation6 + $0xff0] sm:$0xff]
    %v632 = vld [vmem:[#allocation6 + $0xff8] sm:$0xff]
    %v633 = vld [vmem:[#allocation6 + $0x1000] sm:$0xff]
    %v634 = vld [vmem:[#allocation6 + $0x1008] sm:$0xff]
    %v635 = vld [vmem:[#allocation6 + $0x1010] sm:$0xff]
    %v636 = vld [vmem:[#allocation6 + $0x1018] sm:$0xff]
    %v637 = vld [vmem:[#allocation6 + $0x1020] sm:$0xff]
    %v638 = vld [vmem:[#allocation6 + $0x1028] sm:$0xff]
    %v639 = vld [vmem:[#allocation6 + $0x1030] sm:$0xff]
    %v640 = vld [vmem:[#allocation6 + $0x1038] sm:$0xff]
    %v641 = vld [vmem:[#allocation6 + $0x1040] sm:$0xff]
    %v642 = vld [vmem:[#allocation6 + $0x1048] sm:$0xff]
    %v643 = vld [vmem:[#allocation6 + $0x1050] sm:$0xff]
    %v644 = vld [vmem:[#allocation6 + $0x1058] sm:$0xff]
    %v645 = vld [vmem:[#allocation6 + $0x1060] sm:$0xff]
    %v646 = vld [vmem:[#allocation6 + $0x1068] sm:$0xff]
    %v647 = vld [vmem:[#allocation6 + $0x1070] sm:$0xff]
    %v648 = vld [vmem:[#allocation6 + $0x1078] sm:$0xff]
    %v649 = vld [vmem:[#allocation6 + $0x1080] sm:$0xff]
    %v650 = vld [vmem:[#allocation6 + $0x1088] sm:$0xff]
    %v651 = vld [vmem:[#allocation6 + $0x1090] sm:$0xff]
    %v652 = vld [vmem:[#allocation6 + $0x1098] sm:$0xff]
    %v653 = vld [vmem:[#allocation6 + $0x10a0] sm:$0xff]
    %v654 = vld [vmem:[#allocation6 + $0x10a8] sm:$0xff]
    %v655 = vld [vmem:[#allocation6 + $0x10b0] sm:$0xff]
    %v656 = vld [vmem:[#allocation6 + $0x10b8] sm:$0xff]
    %v657 = vld [vmem:[#allocation6 + $0x10c0] sm:$0xff]
    %v658 = vld [vmem:[#allocation6 + $0x10c8] sm:$0xff]
    %v659 = vld [vmem:[#allocation6 + $0x10d0] sm:$0xff]
    %v660 = vld [vmem:[#allocation6 + $0x10d8] sm:$0xff]
    %v661 = vld [vmem:[#allocation6 + $0x10e0] sm:$0xff]
    %v662 = vld [vmem:[#allocation6 + $0x10e8] sm:$0xff]
    %v663 = vld [vmem:[#allocation6 + $0x10f0] sm:$0xff]
    %v664 = vld [vmem:[#allocation6 + $0x10f8] sm:$0xff]
    %v665 = vld [vmem:[#allocation6 + $0x1100] sm:$0xff]
    %v666 = vld [vmem:[#allocation6 + $0x1108] sm:$0xff]
    %v667 = vld [vmem:[#allocation6 + $0x1110] sm:$0xff]
    %v668 = vld [vmem:[#allocation6 + $0x1118] sm:$0xff]
    %v669 = vld [vmem:[#allocation6 + $0x1120] sm:$0xff]
    %v670 = vld [vmem:[#allocation6 + $0x1128] sm:$0xff]
    %v671 = vld [vmem:[#allocation6 + $0x1130] sm:$0xff]
    %v672 = vld [vmem:[#allocation6 + $0x1138] sm:$0xff]
    %v673 = vld [vmem:[#allocation6 + $0x1140] sm:$0xff]
    %v674 = vld [vmem:[#allocation6 + $0x1148] sm:$0xff]
    %v675 = vld [vmem:[#allocation6 + $0x1150] sm:$0xff]
    %v676 = vld [vmem:[#allocation6 + $0x1158] sm:$0xff]
    %v677 = vld [vmem:[#allocation6 + $0x1160] sm:$0xff]
    %v678 = vld [vmem:[#allocation6 + $0x1168] sm:$0xff]
    %v679 = vld [vmem:[#allocation6 + $0x1170] sm:$0xff]
    %v680 = vld [vmem:[#allocation6 + $0x1178] sm:$0xff]
    %v681 = vld [vmem:[#allocation6 + $0x1180] sm:$0xff]
    %v682 = vld [vmem:[#allocation6 + $0x1188] sm:$0xff]
    %v683 = vld [vmem:[#allocation6 + $0x1190] sm:$0xff]
    %v684 = vld [vmem:[#allocation6 + $0x1198] sm:$0xff]
    %v685 = vld [vmem:[#allocation6 + $0x11a0] sm:$0xff]
    %v686 = vld [vmem:[#allocation6 + $0x11a8] sm:$0xff]
    %v687 = vld [vmem:[#allocation6 + $0x11b0] sm:$0xff]
    %v688 = vld [vmem:[#allocation6 + $0x11b8] sm:$0xff]
    %v689 = vld [vmem:[#allocation6 + $0x11c0] sm:$0xff]
    %v690 = vld [vmem:[#allocation6 + $0x11c8] sm:$0xff]
    %v691 = vld [vmem:[#allocation6 + $0x11d0] sm:$0xff]
    %v692 = vld [vmem:[#allocation6 + $0x11d8] sm:$0xff]
    %v693 = vld [vmem:[#allocation6 + $0x11e0] sm:$0xff]
    %v694 = vld [vmem:[#allocation6 + $0x11e8] sm:$0xff]
    %v695 = vld [vmem:[#allocation6 + $0x11f0] sm:$0xff]
    %v696 = vld [vmem:[#allocation6 + $0x11f8] sm:$0xff]
    %v697 = vld [vmem:[#allocation6 + $0x1200] sm:$0xff]
    %v698 = vld [vmem:[#allocation6 + $0x1208] sm:$0xff]
    %v699 = vld [vmem:[#allocation6 + $0x1210] sm:$0xff]
    %v700 = vld [vmem:[#allocation6 + $0x1218] sm:$0xff]
    %v701 = vld [vmem:[#allocation6 + $0x1220] sm:$0xff]
    %v702 = vld [vmem:[#allocation6 + $0x1228] sm:$0xff]
    %v703 = vld [vmem:[#allocation6 + $0x1230] sm:$0xff]
    %v704 = vld [vmem:[#allocation6 + $0x1238] sm:$0xff]
    %v705 = vld [vmem:[#allocation6 + $0x1240] sm:$0xff]
    %v706 = vld [vmem:[#allocation6 + $0x1248] sm:$0xff]
    %v707 = vld [vmem:[#allocation6 + $0x1250] sm:$0xff]
    %v708 = vld [vmem:[#allocation6 + $0x1258] sm:$0xff]
    %v709 = vld [vmem:[#allocation6 + $0x1260] sm:$0xff]
    %v710 = vld [vmem:[#allocation6 + $0x1268] sm:$0xff]
    %v711 = vld [vmem:[#allocation6 + $0x1270] sm:$0xff]
    %v712 = vld [vmem:[#allocation6 + $0x1278] sm:$0xff]
    %v713 = vld [vmem:[#allocation6 + $0x1280] sm:$0xff]
    %v714 = vld [vmem:[#allocation6 + $0x1288] sm:$0xff]
    %v715 = vld [vmem:[#allocation6 + $0x1290] sm:$0xff]
    %v716 = vld [vmem:[#allocation6 + $0x1298] sm:$0xff]
    %v717 = vld [vmem:[#allocation6 + $0x12a0] sm:$0xff]
    %v718 = vld [vmem:[#allocation6 + $0x12a8] sm:$0xff]
    %v719 = vld [vmem:[#allocation6 + $0x12b0] sm:$0xff]
    %v720 = vld [vmem:[#allocation6 + $0x12b8] sm:$0xff]
    %v721 = vld [vmem:[#allocation6 + $0x12c0] sm:$0xff]
    %v722 = vld [vmem:[#allocation6 + $0x12c8] sm:$0xff]
    %v723 = vld [vmem:[#allocation6 + $0x12d0] sm:$0xff]
    %v724 = vld [vmem:[#allocation6 + $0x12d8] sm:$0xff]
    %v725 = vld [vmem:[#allocation6 + $0x12e0] sm:$0xff]
    %v726 = vld [vmem:[#allocation6 + $0x12e8] sm:$0xff]
    %v727 = vld [vmem:[#allocation6 + $0x12f0] sm:$0xff]
    %v728 = vld [vmem:[#allocation6 + $0x12f8] sm:$0xff]
    %v729 = vld [vmem:[#allocation6 + $0x1300] sm:$0xff]
    %v730 = vld [vmem:[#allocation6 + $0x1308] sm:$0xff]
    %v731 = vld [vmem:[#allocation6 + $0x1310] sm:$0xff]
    %v732 = vld [vmem:[#allocation6 + $0x1318] sm:$0xff]
    %v733 = vld [vmem:[#allocation6 + $0x1320] sm:$0xff]
    %v734 = vld [vmem:[#allocation6 + $0x1328] sm:$0xff]
    %v735 = vld [vmem:[#allocation6 + $0x1330] sm:$0xff]
    %v736 = vld [vmem:[#allocation6 + $0x1338] sm:$0xff]
    %v737 = vld [vmem:[#allocation6 + $0x1340] sm:$0xff]
    %v738 = vld [vmem:[#allocation6 + $0x1348] sm:$0xff]
    %v739 = vld [vmem:[#allocation6 + $0x1350] sm:$0xff]
    %v740 = vld [vmem:[#allocation6 + $0x1358] sm:$0xff]
    %v741 = vld [vmem:[#allocation6 + $0x1360] sm:$0xff]
    %v742 = vld [vmem:[#allocation6 + $0x1368] sm:$0xff]
    %v743 = vld [vmem:[#allocation6 + $0x1370] sm:$0xff]
    %v744 = vld [vmem:[#allocation6 + $0x1378] sm:$0xff]
    %v745 = vld [vmem:[#allocation6 + $0x1380] sm:$0xff]
    %v746 = vld [vmem:[#allocation6 + $0x1388] sm:$0xff]
    %v747 = vld [vmem:[#allocation6 + $0x1390] sm:$0xff]
    %v748 = vld [vmem:[#allocation6 + $0x1398] sm:$0xff]
    %v749 = vld [vmem:[#allocation6 + $0x13a0] sm:$0xff]
    %v750 = vld [vmem:[#allocation6 + $0x13a8] sm:$0xff]
    %v751 = vld [vmem:[#allocation6 + $0x13b0] sm:$0xff]
    %v752 = vld [vmem:[#allocation6 + $0x13b8] sm:$0xff]
    %v753 = vld [vmem:[#allocation6 + $0x13c0] sm:$0xff]
    %v754 = vld [vmem:[#allocation6 + $0x13c8] sm:$0xff]
    %v755 = vld [vmem:[#allocation6 + $0x13d0] sm:$0xff]
    %v756 = vld [vmem:[#allocation6 + $0x13d8] sm:$0xff]
    %v757 = vld [vmem:[#allocation6 + $0x13e0] sm:$0xff]
    %v758 = vld [vmem:[#allocation6 + $0x13e8] sm:$0xff]
    %v759 = vld [vmem:[#allocation6 + $0x13f0] sm:$0xff]
    %v760 = vld [vmem:[#allocation6 + $0x13f8] sm:$0xff]
    %v761 = vld [vmem:[#allocation6 + $0x1400] sm:$0xff]
    %v762 = vld [vmem:[#allocation6 + $0x1408] sm:$0xff]
    %v763 = vld [vmem:[#allocation6 + $0x1410] sm:$0xff]
    %v764 = vld [vmem:[#allocation6 + $0x1418] sm:$0xff]
    %v765 = vld [vmem:[#allocation6 + $0x1420] sm:$0xff]
    %v766 = vld [vmem:[#allocation6 + $0x1428] sm:$0xff]
    %v767 = vld [vmem:[#allocation6 + $0x1430] sm:$0xff]
    %v768 = vld [vmem:[#allocation6 + $0x1438] sm:$0xff]
    %v769 = vld [vmem:[#allocation6 + $0x1440] sm:$0xff]
    %v770 = vld [vmem:[#allocation6 + $0x1448] sm:$0xff]
    %v771 = vld [vmem:[#allocation6 + $0x1450] sm:$0xff]
    %v772 = vld [vmem:[#allocation6 + $0x1458] sm:$0xff]
    %v773 = vld [vmem:[#allocation6 + $0x1460] sm:$0xff]
    %v774 = vld [vmem:[#allocation6 + $0x1468] sm:$0xff]
    %v775 = vld [vmem:[#allocation6 + $0x1470] sm:$0xff]
    %v776 = vld [vmem:[#allocation6 + $0x1478] sm:$0xff]
    %v777 = vld [vmem:[#allocation6 + $0x1480] sm:$0xff]
    %v778 = vld [vmem:[#allocation6 + $0x1488] sm:$0xff]
    %v779 = vld [vmem:[#allocation6 + $0x1490] sm:$0xff]
    %v780 = vld [vmem:[#allocation6 + $0x1498] sm:$0xff]
    %v781 = vld [vmem:[#allocation6 + $0x14a0] sm:$0xff]
    %v782 = vld [vmem:[#allocation6 + $0x14a8] sm:$0xff]
    %v783 = vld [vmem:[#allocation6 + $0x14b0] sm:$0xff]
    %v784 = vld [vmem:[#allocation6 + $0x14b8] sm:$0xff]
    %v785 = vld [vmem:[#allocation6 + $0x14c0] sm:$0xff]
    %v786 = vld [vmem:[#allocation6 + $0x14c8] sm:$0xff]
    %v787 = vld [vmem:[#allocation6 + $0x14d0] sm:$0xff]
    %v788 = vld [vmem:[#allocation6 + $0x14d8] sm:$0xff]
    %v789 = vld [vmem:[#allocation6 + $0x14e0] sm:$0xff]
    %v790 = vld [vmem:[#allocation6 + $0x14e8] sm:$0xff]
    %v791 = vld [vmem:[#allocation6 + $0x14f0] sm:$0xff]
    %v792 = vld [vmem:[#allocation6 + $0x14f8] sm:$0xff]
    %v793 = vld [vmem:[#allocation6 + $0x1500] sm:$0xff]
    %v794 = vld [vmem:[#allocation6 + $0x1508] sm:$0xff]
    %v795 = vld [vmem:[#allocation6 + $0x1510] sm:$0xff]
    %v796 = vld [vmem:[#allocation6 + $0x1518] sm:$0xff]
    %v797 = vld [vmem:[#allocation6 + $0x1520] sm:$0xff]
    %v798 = vld [vmem:[#allocation6 + $0x1528] sm:$0xff]
    %v799 = vld [vmem:[#allocation6 + $0x1530] sm:$0xff]
    %v800 = vld [vmem:[#allocation6 + $0x1538] sm:$0xff]
    %v801 = vld [vmem:[#allocation6 + $0x1540] sm:$0xff]
    %v802 = vld [vmem:[#allocation6 + $0x1548] sm:$0xff]
    %v803 = vld [vmem:[#allocation6 + $0x1550] sm:$0xff]
    %v804 = vld [vmem:[#allocation6 + $0x1558] sm:$0xff]
    %v805 = vld [vmem:[#allocation6 + $0x1560] sm:$0xff]
    %v806 = vld [vmem:[#allocation6 + $0x1568] sm:$0xff]
    %v807 = vld [vmem:[#allocation6 + $0x1570] sm:$0xff]
    %v808 = vld [vmem:[#allocation6 + $0x1578] sm:$0xff]
    %v809 = vld [vmem:[#allocation6 + $0x1580] sm:$0xff]
    %v810 = vld [vmem:[#allocation6 + $0x1588] sm:$0xff]
    %v811 = vld [vmem:[#allocation6 + $0x1590] sm:$0xff]
    %v812 = vld [vmem:[#allocation6 + $0x1598] sm:$0xff]
    %v813 = vld [vmem:[#allocation6 + $0x15a0] sm:$0xff]
    %v814 = vld [vmem:[#allocation6 + $0x15a8] sm:$0xff]
    %v815 = vld [vmem:[#allocation6 + $0x15b0] sm:$0xff]
    %v816 = vld [vmem:[#allocation6 + $0x15b8] sm:$0xff]
    %v817 = vld [vmem:[#allocation6 + $0x15c0] sm:$0xff]
    %v818 = vld [vmem:[#allocation6 + $0x15c8] sm:$0xff]
    %v819 = vld [vmem:[#allocation6 + $0x15d0] sm:$0xff]
    %v820 = vld [vmem:[#allocation6 + $0x15d8] sm:$0xff]
    %v821 = vld [vmem:[#allocation6 + $0x15e0] sm:$0xff]
    %v822 = vld [vmem:[#allocation6 + $0x15e8] sm:$0xff]
    %v823 = vld [vmem:[#allocation6 + $0x15f0] sm:$0xff]
    %v824 = vld [vmem:[#allocation6 + $0x15f8] sm:$0xff]
    %v825 = vld [vmem:[#allocation6 + $0x1600] sm:$0xff]
    %v826 = vld [vmem:[#allocation6 + $0x1608] sm:$0xff]
    %v827 = vld [vmem:[#allocation6 + $0x1610] sm:$0xff]
    %v828 = vld [vmem:[#allocation6 + $0x1618] sm:$0xff]
    %v829 = vld [vmem:[#allocation6 + $0x1620] sm:$0xff]
    %v830 = vld [vmem:[#allocation6 + $0x1628] sm:$0xff]
    %v831 = vld [vmem:[#allocation6 + $0x1630] sm:$0xff]
    %v832 = vld [vmem:[#allocation6 + $0x1638] sm:$0xff]
    %v833 = vld [vmem:[#allocation6 + $0x1640] sm:$0xff]
    %v834 = vld [vmem:[#allocation6 + $0x1648] sm:$0xff]
    %v835 = vld [vmem:[#allocation6 + $0x1650] sm:$0xff]
    %v836 = vld [vmem:[#allocation6 + $0x1658] sm:$0xff]
    %v837 = vld [vmem:[#allocation6 + $0x1660] sm:$0xff]
    %v838 = vld [vmem:[#allocation6 + $0x1668] sm:$0xff]
    %v839 = vld [vmem:[#allocation6 + $0x1670] sm:$0xff]
    %v840 = vld [vmem:[#allocation6 + $0x1678] sm:$0xff]
    %v841 = vld [vmem:[#allocation6 + $0x1680] sm:$0xff]
    %v842 = vld [vmem:[#allocation6 + $0x1688] sm:$0xff]
    %v843 = vld [vmem:[#allocation6 + $0x1690] sm:$0xff]
    %v844 = vld [vmem:[#allocation6 + $0x1698] sm:$0xff]
    %v845 = vld [vmem:[#allocation6 + $0x16a0] sm:$0xff]
    %v846 = vld [vmem:[#allocation6 + $0x16a8] sm:$0xff]
    %v847 = vld [vmem:[#allocation6 + $0x16b0] sm:$0xff]
    %v848 = vld [vmem:[#allocation6 + $0x16b8] sm:$0xff]
    %v849 = vld [vmem:[#allocation6 + $0x16c0] sm:$0xff]
    %v850 = vld [vmem:[#allocation6 + $0x16c8] sm:$0xff]
    %v851 = vld [vmem:[#allocation6 + $0x16d0] sm:$0xff]
    %v852 = vld [vmem:[#allocation6 + $0x16d8] sm:$0xff]
    %v853 = vld [vmem:[#allocation6 + $0x16e0] sm:$0xff]
    %v854 = vld [vmem:[#allocation6 + $0x16e8] sm:$0xff]
    %v855 = vld [vmem:[#allocation6 + $0x16f0] sm:$0xff]
    %v856 = vld [vmem:[#allocation6 + $0x16f8] sm:$0xff]
    %v857 = vld [vmem:[#allocation6 + $0x1700] sm:$0xff]
    %v858 = vld [vmem:[#allocation6 + $0x1708] sm:$0xff]
    %v859 = vld [vmem:[#allocation6 + $0x1710] sm:$0xff]
    %v860 = vld [vmem:[#allocation6 + $0x1718] sm:$0xff]
    %v861 = vld [vmem:[#allocation6 + $0x1720] sm:$0xff]
    %v862 = vld [vmem:[#allocation6 + $0x1728] sm:$0xff]
    %v863 = vld [vmem:[#allocation6 + $0x1730] sm:$0xff]
    %v864 = vld [vmem:[#allocation6 + $0x1738] sm:$0xff]
    %v865 = vld [vmem:[#allocation6 + $0x1740] sm:$0xff]
    %v866 = vld [vmem:[#allocation6 + $0x1748] sm:$0xff]
    %v867 = vld [vmem:[#allocation6 + $0x1750] sm:$0xff]
    %v868 = vld [vmem:[#allocation6 + $0x1758] sm:$0xff]
    %v869 = vld [vmem:[#allocation6 + $0x1760] sm:$0xff]
    %v870 = vld [vmem:[#allocation6 + $0x1768] sm:$0xff]
    %v871 = vld [vmem:[#allocation6 + $0x1770] sm:$0xff]
    %v872 = vld [vmem:[#allocation6 + $0x1778] sm:$0xff]
    %v873 = vld [vmem:[#allocation6 + $0x1780] sm:$0xff]
    %v874 = vld [vmem:[#allocation6 + $0x1788] sm:$0xff]
    %v875 = vld [vmem:[#allocation6 + $0x1790] sm:$0xff]
    %v876 = vld [vmem:[#allocation6 + $0x1798] sm:$0xff]
    %v877 = vld [vmem:[#allocation6 + $0x17a0] sm:$0xff]
    %v878 = vld [vmem:[#allocation6 + $0x17a8] sm:$0xff]
    %v879 = vld [vmem:[#allocation6 + $0x17b0] sm:$0xff]
    %v880 = vld [vmem:[#allocation6 + $0x17b8] sm:$0xff]
    %v881 = vld [vmem:[#allocation6 + $0x17c0] sm:$0xff]
    %v882 = vld [vmem:[#allocation6 + $0x17c8] sm:$0xff]
    %v883 = vld [vmem:[#allocation6 + $0x17d0] sm:$0xff]
    %v884 = vld [vmem:[#allocation6 + $0x17d8] sm:$0xff]
    %v885 = vld [vmem:[#allocation6 + $0x17e0] sm:$0xff]
    %v886 = vld [vmem:[#allocation6 + $0x17e8] sm:$0xff]
    %v887 = vld [vmem:[#allocation6 + $0x17f0] sm:$0xff]
    %v888 = vld [vmem:[#allocation6 + $0x17f8] sm:$0xff]
    %v889 = vld [vmem:[#allocation6 + $0x1800] sm:$0xff]
    %v890 = vld [vmem:[#allocation6 + $0x1808] sm:$0xff]
    %v891 = vld [vmem:[#allocation6 + $0x1810] sm:$0xff]
    %v892 = vld [vmem:[#allocation6 + $0x1818] sm:$0xff]
    %v893 = vld [vmem:[#allocation6 + $0x1820] sm:$0xff]
    %v894 = vld [vmem:[#allocation6 + $0x1828] sm:$0xff]
    %v895 = vld [vmem:[#allocation6 + $0x1830] sm:$0xff]
    %v896 = vld [vmem:[#allocation6 + $0x1838] sm:$0xff]
    %v897 = vld [vmem:[#allocation6 + $0x1840] sm:$0xff]
    %v898 = vld [vmem:[#allocation6 + $0x1848] sm:$0xff]
    %v899 = vld [vmem:[#allocation6 + $0x1850] sm:$0xff]
    %v900 = vld [vmem:[#allocation6 + $0x1858] sm:$0xff]
    %v901 = vld [vmem:[#allocation6 + $0x1860] sm:$0xff]
    %v902 = vld [vmem:[#allocation6 + $0x1868] sm:$0xff]
    %v903 = vld [vmem:[#allocation6 + $0x1870] sm:$0xff]
    %v904 = vld [vmem:[#allocation6 + $0x1878] sm:$0xff]
    %v905 = vld [vmem:[#allocation6 + $0x1880] sm:$0xff]
    %v906 = vld [vmem:[#allocation6 + $0x1888] sm:$0xff]
    %v907 = vld [vmem:[#allocation6 + $0x1890] sm:$0xff]
    %v908 = vld [vmem:[#allocation6 + $0x1898] sm:$0xff]
    %v909 = vld [vmem:[#allocation6 + $0x18a0] sm:$0xff]
    %v910 = vld [vmem:[#allocation6 + $0x18a8] sm:$0xff]
    %v911 = vld [vmem:[#allocation6 + $0x18b0] sm:$0xff]
    %v912 = vld [vmem:[#allocation6 + $0x18b8] sm:$0xff]
    %v913 = vld [vmem:[#allocation6 + $0x18c0] sm:$0xff]
    %v914 = vld [vmem:[#allocation6 + $0x18c8] sm:$0xff]
    %v915 = vld [vmem:[#allocation6 + $0x18d0] sm:$0xff]
    %v916 = vld [vmem:[#allocation6 + $0x18d8] sm:$0xff]
    %v917 = vld [vmem:[#allocation6 + $0x18e0] sm:$0xff]
    %v918 = vld [vmem:[#allocation6 + $0x18e8] sm:$0xff]
    %v919 = vld [vmem:[#allocation6 + $0x18f0] sm:$0xff]
    %v920 = vld [vmem:[#allocation6 + $0x18f8] sm:$0xff]
    %v921 = vld [vmem:[#allocation6 + $0x1900] sm:$0xff]
    %v922 = vld [vmem:[#allocation6 + $0x1908] sm:$0xff]
    %v923 = vld [vmem:[#allocation6 + $0x1910] sm:$0xff]
    %v924 = vld [vmem:[#allocation6 + $0x1918] sm:$0xff]
    %v925 = vld [vmem:[#allocation6 + $0x1920] sm:$0xff]
    %v926 = vld [vmem:[#allocation6 + $0x1928] sm:$0xff]
    %v927 = vld [vmem:[#allocation6 + $0x1930] sm:$0xff]
    %v928 = vld [vmem:[#allocation6 + $0x1938] sm:$0xff]
    %v929 = vld [vmem:[#allocation6 + $0x1940] sm:$0xff]
    %v930 = vld [vmem:[#allocation6 + $0x1948] sm:$0xff]
    %v931 = vld [vmem:[#allocation6 + $0x1950] sm:$0xff]
    %v932 = vld [vmem:[#allocation6 + $0x1958] sm:$0xff]
    %v933 = vld [vmem:[#allocation6 + $0x1960] sm:$0xff]
    %v934 = vld [vmem:[#allocation6 + $0x1968] sm:$0xff]
    %v935 = vld [vmem:[#allocation6 + $0x1970] sm:$0xff]
    %v936 = vld [vmem:[#allocation6 + $0x1978] sm:$0xff]
    %v937 = vld [vmem:[#allocation6 + $0x1980] sm:$0xff]
    %v938 = vld [vmem:[#allocation6 + $0x1988] sm:$0xff]
    %v939 = vld [vmem:[#allocation6 + $0x1990] sm:$0xff]
    %v940 = vld [vmem:[#allocation6 + $0x1998] sm:$0xff]
    %v941 = vld [vmem:[#allocation6 + $0x19a0] sm:$0xff]
    %v942 = vld [vmem:[#allocation6 + $0x19a8] sm:$0xff]
    %v943 = vld [vmem:[#allocation6 + $0x19b0] sm:$0xff]
    %v944 = vld [vmem:[#allocation6 + $0x19b8] sm:$0xff]
    %v945 = vld [vmem:[#allocation6 + $0x19c0] sm:$0xff]
    %v946 = vld [vmem:[#allocation6 + $0x19c8] sm:$0xff]
    %v947 = vld [vmem:[#allocation6 + $0x19d0] sm:$0xff]
    %v948 = vld [vmem:[#allocation6 + $0x19d8] sm:$0xff]
    %v949 = vld [vmem:[#allocation6 + $0x19e0] sm:$0xff]
    %v950 = vld [vmem:[#allocation6 + $0x19e8] sm:$0xff]
    %v951 = vld [vmem:[#allocation6 + $0x19f0] sm:$0xff]
    %v952 = vld [vmem:[#allocation6 + $0x19f8] sm:$0xff]
    %v953 = vld [vmem:[#allocation8] sm:$0xff]
    %v955 = vlaneseq
    %v956 = vshrl.u32 %v955, 7
    %v957 = vsub.s32 0, %v956
    %v958 = vrot.slane %v953, %v957
    %v959 = vlaneseq
    %v960 = vshrl.u32 %v959, 7
    %v961 = vsub.s32 1, %v960
    %v962 = vrot.slane %v953, %v961
    %v963 = vlaneseq
    %v964 = vshrl.u32 %v963, 7
    %v965 = vsub.s32 2, %v964
    %v966 = vrot.slane %v953, %v965
    %v967 = vlaneseq
    %v968 = vshrl.u32 %v967, 7
    %v969 = vsub.s32 3, %v968
    %v970 = vrot.slane %v953, %v969
    %v971 = vlaneseq
    %v972 = vshrl.u32 %v971, 7
    %v973 = vsub.s32 4, %v972
    %v974 = vrot.slane %v953, %v973
    %v975 = vlaneseq
    %v976 = vshrl.u32 %v975, 7
    %v977 = vsub.s32 5, %v976
    %v978 = vrot.slane %v953, %v977
    %v979 = vlaneseq
    %v980 = vshrl.u32 %v979, 7
    %v981 = vsub.s32 6, %v980
    %v982 = vrot.slane %v953, %v981
    %v983 = vlaneseq
    %v984 = vshrl.u32 %v983, 7
    %v985 = vsub.s32 7, %v984
    %v986 = vrot.slane %v953, %v985
    %v1016 = vunpack.c.l.b16 %v100
    %v1017 = vunpack.c.h.b16 %v100
    %v1018 = vunpack.c.l.b16 %v101
    %v1019 = vunpack.c.h.b16 %v101
    %v1020 = vunpack.c.l.b16 %v102
    %v1021 = vunpack.c.h.b16 %v102
    %v1022 = vunpack.c.l.b16 %v103
    %v1023 = vunpack.c.h.b16 %v103
    %v1024 = vunpack.c.l.b16 %v104
    %v1025 = vunpack.c.h.b16 %v104
    %v1026 = vunpack.c.l.b16 %v105
    %v1027 = vunpack.c.h.b16 %v105
    %v1028 = vunpack.c.l.b16 %v106
    %v1029 = vunpack.c.l.b16 %v107
    %v1030 = vunpack.c.h.b16 %v107
    %v1031 = vunpack.c.l.b16 %v108
    %v1032 = vunpack.c.h.b16 %v108
    %v1033 = vunpack.c.l.b16 %v109
    %v1034 = vunpack.c.h.b16 %v109
    %v1035 = vunpack.c.l.b16 %v110
    %v1036 = vunpack.c.h.b16 %v110
    %v1037 = vunpack.c.l.b16 %v111
    %v1038 = vunpack.c.h.b16 %v111
    %v1039 = vunpack.c.l.b16 %v112
    %v1040 = vunpack.c.h.b16 %v112
    %v1041 = vunpack.c.l.b16 %v113
    %v1042 = vunpack.c.l.b16 %v114
    %v1043 = vunpack.c.h.b16 %v114
    %v1044 = vunpack.c.l.b16 %v115
    %v1045 = vunpack.c.h.b16 %v115
    %v1046 = vunpack.c.l.b16 %v116
    %v1047 = vunpack.c.h.b16 %v116
    %v1048 = vunpack.c.l.b16 %v117
    %v1049 = vunpack.c.h.b16 %v117
    %v1050 = vunpack.c.l.b16 %v118
    %v1051 = vunpack.c.h.b16 %v118
    %v1052 = vunpack.c.l.b16 %v119
    %v1053 = vunpack.c.h.b16 %v119
    %v1054 = vunpack.c.l.b16 %v120
    %v1055 = vpack.c.b16 %v1029, %v1016
    %v1056 = vpack.c.b16 %v1030, %v1017
    %v1057 = vpack.c.b16 %v1031, %v1018
    %v1058 = vpack.c.b16 %v1032, %v1019
    %v1059 = vpack.c.b16 %v1033, %v1020
    %v1060 = vpack.c.b16 %v1034, %v1021
    %v1061 = vpack.c.b16 %v1035, %v1022
    %v1062 = vpack.c.b16 %v1036, %v1023
    %v1063 = vpack.c.b16 %v1037, %v1024
    %v1064 = vpack.c.b16 %v1038, %v1025
    %v1065 = vpack.c.b16 %v1039, %v1026
    %v1066 = vpack.c.b16 %v1040, %v1027
    %v1067 = vpack.c.b16 %v1041, %v1028
    %v1068 = vpack.c.b16 %v1042, %v1042
    %v1069 = vpack.c.b16 %v1043, %v1043
    %v1070 = vpack.c.b16 %v1044, %v1044
    %v1071 = vpack.c.b16 %v1045, %v1045
    %v1072 = vpack.c.b16 %v1046, %v1046
    %v1073 = vpack.c.b16 %v1047, %v1047
    %v1074 = vpack.c.b16 %v1048, %v1048
    %v1075 = vpack.c.b16 %v1049, %v1049
    %v1076 = vpack.c.b16 %v1050, %v1050
    %v1077 = vpack.c.b16 %v1051, %v1051
    %v1078 = vpack.c.b16 %v1052, %v1052
    %v1079 = vpack.c.b16 %v1053, %v1053
    %v1080 = vpack.c.b16 %v1054, %v1054
    %v1939 = vunpack.c.l.b16 %v121
    %v1940 = vunpack.c.h.b16 %v121
    %v1941 = vunpack.c.l.b16 %v122
    %v1942 = vunpack.c.h.b16 %v122
    %v1943 = vunpack.c.l.b16 %v123
    %v1944 = vunpack.c.h.b16 %v123
    %v1945 = vunpack.c.l.b16 %v124
    %v1946 = vunpack.c.h.b16 %v124
    %v1947 = vunpack.c.l.b16 %v125
    %v1948 = vunpack.c.h.b16 %v125
    %v1949 = vunpack.c.l.b16 %v126
    %v1950 = vunpack.c.h.b16 %v126
    %v1951 = vunpack.c.l.b16 %v127
    %v1952 = vunpack.c.h.b16 %v127
    %v1953 = vunpack.c.l.b16 %v128
    %v1954 = vunpack.c.h.b16 %v128
    %v1955 = vunpack.c.l.b16 %v129
    %v1956 = vunpack.c.h.b16 %v129
    %v1957 = vunpack.c.l.b16 %v130
    %v1958 = vunpack.c.h.b16 %v130
    %v1959 = vunpack.c.l.b16 %v131
    %v1960 = vunpack.c.h.b16 %v131
    %v1961 = vunpack.c.l.b16 %v132
    %v1962 = vunpack.c.h.b16 %v132
    %v1963 = vunpack.c.l.b16 %v133
    %v1964 = vunpack.c.h.b16 %v133
    %v1965 = vunpack.c.l.b16 %v134
    %v1966 = vunpack.c.h.b16 %v134
    %v1967 = vunpack.c.l.b16 %v135
    %v1968 = vunpack.c.h.b16 %v135
    %v1969 = vunpack.c.l.b16 %v136
    %v1970 = vunpack.c.h.b16 %v136
    %v1971 = vunpack.c.l.b16 %v137
    %v1972 = vunpack.c.h.b16 %v137
    %v1973 = vunpack.c.l.b16 %v138
    %v1974 = vunpack.c.h.b16 %v138
    %v1975 = vunpack.c.l.b16 %v139
    %v1976 = vunpack.c.h.b16 %v139
    %v1977 = vunpack.c.l.b16 %v140
    %v1978 = vunpack.c.h.b16 %v140
    %v1979 = vunpack.c.l.b16 %v141
    %v1980 = vunpack.c.h.b16 %v141
    %v1981 = vunpack.c.l.b16 %v142
    %v1982 = vunpack.c.h.b16 %v142
    %v1983 = vunpack.c.l.b16 %v143
    %v1984 = vunpack.c.h.b16 %v143
    %v1985 = vunpack.c.l.b16 %v144
    %v1986 = vunpack.c.h.b16 %v144
    %v1987 = vunpack.c.l.b16 %v145
    %v1988 = vunpack.c.h.b16 %v145
    %v1989 = vunpack.c.l.b16 %v146
    %v1990 = vunpack.c.h.b16 %v146
    %v1991 = vunpack.c.l.b16 %v147
    %v1992 = vunpack.c.h.b16 %v147
    %v1993 = vunpack.c.l.b16 %v148
    %v1994 = vunpack.c.h.b16 %v148
    %v1995 = vunpack.c.l.b16 %v149
    %v1996 = vunpack.c.h.b16 %v149
    %v1997 = vunpack.c.l.b16 %v150
    %v1998 = vunpack.c.h.b16 %v150
    %v1999 = vunpack.c.l.b16 %v151
    %v2000 = vunpack.c.h.b16 %v151
    %v2001 = vunpack.c.l.b16 %v152
    %v2002 = vunpack.c.h.b16 %v152
    %v2003 = vunpack.c.l.b16 %v153
    %v2004 = vunpack.c.h.b16 %v153
    %v2005 = vunpack.c.l.b16 %v154
    %v2006 = vunpack.c.h.b16 %v154
    %v2007 = vunpack.c.l.b16 %v155
    %v2008 = vunpack.c.h.b16 %v155
    %v2009 = vunpack.c.l.b16 %v156
    %v2010 = vunpack.c.h.b16 %v156
    %v2011 = vunpack.c.l.b16 %v157
    %v2012 = vunpack.c.h.b16 %v157
    %v2013 = vunpack.c.l.b16 %v158
    %v2014 = vunpack.c.h.b16 %v158
    %v2015 = vunpack.c.l.b16 %v159
    %v2016 = vunpack.c.h.b16 %v159
    %v2017 = vunpack.c.l.b16 %v160
    %v2018 = vunpack.c.h.b16 %v160
    %v2019 = vunpack.c.l.b16 %v161
    %v2020 = vunpack.c.h.b16 %v161
    %v2021 = vunpack.c.l.b16 %v162
    %v2022 = vunpack.c.h.b16 %v162
    %v2023 = vunpack.c.l.b16 %v163
    %v2024 = vunpack.c.h.b16 %v163
    %v2025 = vunpack.c.l.b16 %v164
    %v2026 = vunpack.c.h.b16 %v164
    %v2027 = vunpack.c.l.b16 %v165
    %v2028 = vunpack.c.h.b16 %v165
    %v2029 = vunpack.c.l.b16 %v166
    %v2030 = vunpack.c.h.b16 %v166
    %v2031 = vunpack.c.l.b16 %v167
    %v2032 = vunpack.c.h.b16 %v167
    %v2033 = vunpack.c.l.b16 %v168
    %v2034 = vunpack.c.h.b16 %v168
    %v2035 = vunpack.c.l.b16 %v169
    %v2036 = vunpack.c.h.b16 %v169
    %v2037 = vunpack.c.l.b16 %v170
    %v2038 = vunpack.c.h.b16 %v170
    %v2039 = vunpack.c.l.b16 %v171
    %v2040 = vunpack.c.h.b16 %v171
    %v2041 = vunpack.c.l.b16 %v172
    %v2042 = vunpack.c.h.b16 %v172
    %v2043 = vunpack.c.l.b16 %v173
    %v2044 = vunpack.c.h.b16 %v173
    %v2045 = vunpack.c.l.b16 %v174
    %v2046 = vunpack.c.h.b16 %v174
    %v2047 = vunpack.c.l.b16 %v175
    %v2048 = vunpack.c.h.b16 %v175
    %v2049 = vunpack.c.l.b16 %v176
    %v2050 = vunpack.c.h.b16 %v176
    %v2051 = vunpack.c.l.b16 %v177
    %v2052 = vunpack.c.h.b16 %v177
    %v2053 = vunpack.c.l.b16 %v178
    %v2054 = vunpack.c.h.b16 %v178
    %v2055 = vunpack.c.l.b16 %v179
    %v2056 = vunpack.c.h.b16 %v179
    %v2057 = vunpack.c.l.b16 %v180
    %v2058 = vunpack.c.h.b16 %v180
    %v2059 = vunpack.c.l.b16 %v181
    %v2060 = vunpack.c.h.b16 %v181
    %v2061 = vunpack.c.l.b16 %v182
    %v2062 = vunpack.c.h.b16 %v182
    %v2063 = vunpack.c.l.b16 %v183
    %v2064 = vunpack.c.h.b16 %v183
    %v2065 = vunpack.c.l.b16 %v184
    %v2066 = vunpack.c.h.b16 %v184
    %v2067 = vunpack.c.l.b16 %v185
    %v2068 = vunpack.c.h.b16 %v185
    %v2069 = vunpack.c.l.b16 %v186
    %v2070 = vunpack.c.h.b16 %v186
    %v2071 = vunpack.c.l.b16 %v187
    %v2072 = vunpack.c.h.b16 %v187
    %v2073 = vunpack.c.l.b16 %v188
    %v2074 = vunpack.c.h.b16 %v188
    %v2075 = vunpack.c.l.b16 %v189
    %v2076 = vunpack.c.h.b16 %v189
    %v2077 = vunpack.c.l.b16 %v190
    %v2078 = vunpack.c.h.b16 %v190
    %v2079 = vunpack.c.l.b16 %v191
    %v2080 = vunpack.c.h.b16 %v191
    %v2081 = vunpack.c.l.b16 %v192
    %v2082 = vunpack.c.h.b16 %v192
    %v2083 = vunpack.c.l.b16 %v193
    %v2084 = vunpack.c.h.b16 %v193
    %v2085 = vunpack.c.l.b16 %v194
    %v2086 = vunpack.c.h.b16 %v194
    %v2087 = vunpack.c.l.b16 %v195
    %v2088 = vunpack.c.h.b16 %v195
    %v2089 = vunpack.c.l.b16 %v196
    %v2090 = vunpack.c.h.b16 %v196
    %v2091 = vunpack.c.l.b16 %v197
    %v2092 = vunpack.c.h.b16 %v197
    %v2093 = vunpack.c.l.b16 %v198
    %v2094 = vunpack.c.h.b16 %v198
    %v2095 = vunpack.c.l.b16 %v199
    %v2096 = vunpack.c.h.b16 %v199
    %v2097 = vunpack.c.l.b16 %v200
    %v2098 = vunpack.c.h.b16 %v200
    %v2099 = vunpack.c.l.b16 %v201
    %v2100 = vunpack.c.h.b16 %v201
    %v2101 = vunpack.c.l.b16 %v202
    %v2102 = vunpack.c.h.b16 %v202
    %v2103 = vunpack.c.l.b16 %v203
    %v2104 = vunpack.c.h.b16 %v203
    %v2105 = vunpack.c.l.b16 %v204
    %v2106 = vunpack.c.h.b16 %v204
    %v2107 = vunpack.c.l.b16 %v205
    %v2108 = vunpack.c.h.b16 %v205
    %v2109 = vunpack.c.l.b16 %v206
    %v2110 = vunpack.c.h.b16 %v206
    %v2111 = vunpack.c.l.b16 %v207
    %v2112 = vunpack.c.h.b16 %v207
    %v2113 = vunpack.c.l.b16 %v208
    %v2114 = vunpack.c.h.b16 %v208
    %v2115 = vunpack.c.l.b16 %v209
    %v2116 = vunpack.c.h.b16 %v209
    %v2117 = vunpack.c.l.b16 %v210
    %v2118 = vunpack.c.h.b16 %v210
    %v2119 = vunpack.c.l.b16 %v211
    %v2120 = vunpack.c.h.b16 %v211
    %v2121 = vunpack.c.l.b16 %v212
    %v2122 = vunpack.c.h.b16 %v212
    %v2123 = vunpack.c.l.b16 %v213
    %v2124 = vunpack.c.h.b16 %v213
    %v2125 = vunpack.c.l.b16 %v214
    %v2126 = vunpack.c.h.b16 %v214
    %v2127 = vunpack.c.l.b16 %v215
    %v2128 = vunpack.c.h.b16 %v215
    %v2129 = vunpack.c.l.b16 %v216
    %v2130 = vunpack.c.h.b16 %v216
    %v2131 = vunpack.c.l.b16 %v217
    %v2132 = vunpack.c.h.b16 %v217
    %v2133 = vunpack.c.l.b16 %v218
    %v2134 = vunpack.c.h.b16 %v218
    %v2135 = vunpack.c.l.b16 %v219
    %v2136 = vunpack.c.h.b16 %v219
    %v2137 = vunpack.c.l.b16 %v220
    %v2138 = vunpack.c.h.b16 %v220
    %v2139 = vunpack.c.l.b16 %v221
    %v2140 = vunpack.c.h.b16 %v221
    %v2141 = vunpack.c.l.b16 %v222
    %v2142 = vunpack.c.h.b16 %v222
    %v2143 = vunpack.c.l.b16 %v223
    %v2144 = vunpack.c.h.b16 %v223
    %v2145 = vunpack.c.l.b16 %v224
    %v2146 = vunpack.c.h.b16 %v224
    %v2147 = vunpack.c.l.b16 %v225
    %v2148 = vunpack.c.h.b16 %v225
    %v2149 = vunpack.c.l.b16 %v226
    %v2150 = vunpack.c.h.b16 %v226
    %v2151 = vunpack.c.l.b16 %v227
    %v2152 = vunpack.c.h.b16 %v227
    %v2153 = vunpack.c.l.b16 %v228
    %v2154 = vunpack.c.h.b16 %v228
    %v2155 = vunpack.c.l.b16 %v229
    %v2156 = vunpack.c.h.b16 %v229
    %v2157 = vunpack.c.l.b16 %v230
    %v2158 = vunpack.c.h.b16 %v230
    %v2159 = vunpack.c.l.b16 %v231
    %v2160 = vunpack.c.h.b16 %v231
    %v2161 = vunpack.c.l.b16 %v232
    %v2162 = vunpack.c.h.b16 %v232
    %v2163 = vunpack.c.l.b16 %v233
    %v2164 = vunpack.c.h.b16 %v233
    %v2165 = vunpack.c.l.b16 %v234
    %v2166 = vunpack.c.h.b16 %v234
    %v2167 = vunpack.c.l.b16 %v235
    %v2168 = vunpack.c.h.b16 %v235
    %v2169 = vunpack.c.l.b16 %v236
    %v2170 = vunpack.c.h.b16 %v236
    %v2171 = vunpack.c.l.b16 %v237
    %v2172 = vunpack.c.h.b16 %v237
    %v2173 = vunpack.c.l.b16 %v238
    %v2174 = vunpack.c.h.b16 %v238
    %v2175 = vunpack.c.l.b16 %v239
    %v2176 = vunpack.c.h.b16 %v239
    %v2177 = vunpack.c.l.b16 %v240
    %v2178 = vunpack.c.h.b16 %v240
    %v2179 = vunpack.c.l.b16 %v241
    %v2180 = vunpack.c.h.b16 %v241
    %v2181 = vunpack.c.l.b16 %v242
    %v2182 = vunpack.c.h.b16 %v242
    %v2183 = vunpack.c.l.b16 %v243
    %v2184 = vunpack.c.h.b16 %v243
    %v2185 = vunpack.c.l.b16 %v244
    %v2186 = vunpack.c.h.b16 %v244
    %v2187 = vunpack.c.l.b16 %v245
    %v2188 = vunpack.c.h.b16 %v245
    %v2189 = vunpack.c.l.b16 %v246
    %v2190 = vunpack.c.h.b16 %v246
    %v2191 = vunpack.c.l.b16 %v247
    %v2192 = vunpack.c.h.b16 %v247
    %v2193 = vunpack.c.l.b16 %v248
    %v2194 = vunpack.c.h.b16 %v248
    %v2195 = vunpack.c.l.b16 %v249
    %v2196 = vunpack.c.h.b16 %v249
    %v2197 = vunpack.c.l.b16 %v250
    %v2198 = vunpack.c.h.b16 %v250
    %v2199 = vunpack.c.l.b16 %v251
    %v2200 = vunpack.c.h.b16 %v251
    %v2201 = vunpack.c.l.b16 %v252
    %v2202 = vunpack.c.h.b16 %v252
    %v2203 = vunpack.c.l.b16 %v253
    %v2204 = vunpack.c.h.b16 %v253
    %v2205 = vunpack.c.l.b16 %v254
    %v2206 = vunpack.c.h.b16 %v254
    %v2207 = vunpack.c.l.b16 %v255
    %v2208 = vunpack.c.h.b16 %v255
    %v2209 = vunpack.c.l.b16 %v256
    %v2210 = vunpack.c.h.b16 %v256
    %v2211 = vunpack.c.l.b16 %v257
    %v2212 = vunpack.c.h.b16 %v257
    %v2213 = vunpack.c.l.b16 %v258
    %v2214 = vunpack.c.h.b16 %v258
    %v2215 = vunpack.c.l.b16 %v259
    %v2216 = vunpack.c.h.b16 %v259
    %v2217 = vunpack.c.l.b16 %v260
    %v2218 = vunpack.c.h.b16 %v260
    %v2219 = vunpack.c.l.b16 %v261
    %v2220 = vunpack.c.h.b16 %v261
    %v2221 = vunpack.c.l.b16 %v262
    %v2222 = vunpack.c.h.b16 %v262
    %v2223 = vunpack.c.l.b16 %v263
    %v2224 = vunpack.c.h.b16 %v263
    %v2225 = vunpack.c.l.b16 %v264
    %v2226 = vunpack.c.h.b16 %v264
    %v2227 = vunpack.c.l.b16 %v265
    %v2228 = vunpack.c.h.b16 %v265
    %v2229 = vunpack.c.l.b16 %v266
    %v2230 = vunpack.c.h.b16 %v266
    %v2231 = vunpack.c.l.b16 %v267
    %v2232 = vunpack.c.h.b16 %v267
    %v2233 = vunpack.c.l.b16 %v268
    %v2234 = vunpack.c.h.b16 %v268
    %v2235 = vunpack.c.l.b16 %v269
    %v2236 = vunpack.c.h.b16 %v269
    %v2237 = vunpack.c.l.b16 %v270
    %v2238 = vunpack.c.h.b16 %v270
    %v2239 = vunpack.c.l.b16 %v271
    %v2240 = vunpack.c.h.b16 %v271
    %v2241 = vunpack.c.l.b16 %v272
    %v2242 = vunpack.c.h.b16 %v272
    %v2243 = vunpack.c.l.b16 %v273
    %v2244 = vunpack.c.h.b16 %v273
    %v2245 = vunpack.c.l.b16 %v274
    %v2246 = vunpack.c.h.b16 %v274
    %v2247 = vunpack.c.l.b16 %v275
    %v2248 = vunpack.c.h.b16 %v275
    %v2249 = vunpack.c.l.b16 %v276
    %v2250 = vunpack.c.h.b16 %v276
    %v2251 = vunpack.c.l.b16 %v277
    %v2252 = vunpack.c.h.b16 %v277
    %v2253 = vunpack.c.l.b16 %v278
    %v2254 = vunpack.c.h.b16 %v278
    %v2255 = vunpack.c.l.b16 %v279
    %v2256 = vunpack.c.h.b16 %v279
    %v2257 = vunpack.c.l.b16 %v280
    %v2258 = vunpack.c.h.b16 %v280
    %v2259 = vunpack.c.l.b16 %v281
    %v2260 = vunpack.c.h.b16 %v281
    %v2261 = vunpack.c.l.b16 %v282
    %v2262 = vunpack.c.h.b16 %v282
    %v2263 = vunpack.c.l.b16 %v283
    %v2264 = vunpack.c.h.b16 %v283
    %v2265 = vunpack.c.l.b16 %v284
    %v2266 = vunpack.c.h.b16 %v284
    %v2267 = vunpack.c.l.b16 %v285
    %v2268 = vunpack.c.h.b16 %v285
    %v2269 = vunpack.c.l.b16 %v286
    %v2270 = vunpack.c.h.b16 %v286
    %v2271 = vunpack.c.l.b16 %v287
    %v2272 = vunpack.c.h.b16 %v287
    %v2273 = vunpack.c.l.b16 %v288
    %v2274 = vunpack.c.h.b16 %v288
    %v2275 = vunpack.c.l.b16 %v289
    %v2276 = vunpack.c.h.b16 %v289
    %v2277 = vunpack.c.l.b16 %v290
    %v2278 = vunpack.c.h.b16 %v290
    %v2279 = vunpack.c.l.b16 %v291
    %v2280 = vunpack.c.h.b16 %v291
    %v2281 = vunpack.c.l.b16 %v292
    %v2282 = vunpack.c.h.b16 %v292
    %v2283 = vunpack.c.l.b16 %v293
    %v2284 = vunpack.c.h.b16 %v293
    %v2285 = vunpack.c.l.b16 %v294
    %v2286 = vunpack.c.h.b16 %v294
    %v2287 = vunpack.c.l.b16 %v295
    %v2288 = vunpack.c.h.b16 %v295
    %v2289 = vunpack.c.l.b16 %v296
    %v2290 = vunpack.c.h.b16 %v296
    %v2291 = vunpack.c.l.b16 %v297
    %v2292 = vunpack.c.h.b16 %v297
    %v2293 = vunpack.c.l.b16 %v298
    %v2294 = vunpack.c.h.b16 %v298
    %v2295 = vunpack.c.l.b16 %v299
    %v2296 = vunpack.c.h.b16 %v299
    %v2297 = vunpack.c.l.b16 %v300
    %v2298 = vunpack.c.h.b16 %v300
    %v2299 = vunpack.c.l.b16 %v301
    %v2300 = vunpack.c.h.b16 %v301
    %v2301 = vunpack.c.l.b16 %v302
    %v2302 = vunpack.c.h.b16 %v302
    %v2303 = vunpack.c.l.b16 %v303
    %v2304 = vunpack.c.h.b16 %v303
    %v2305 = vunpack.c.l.b16 %v304
    %v2306 = vunpack.c.h.b16 %v304
    %v2307 = vunpack.c.l.b16 %v305
    %v2308 = vunpack.c.h.b16 %v305
    %v2309 = vunpack.c.l.b16 %v306
    %v2310 = vunpack.c.h.b16 %v306
    %v2311 = vunpack.c.l.b16 %v307
    %v2312 = vunpack.c.h.b16 %v307
    %v2313 = vunpack.c.l.b16 %v308
    %v2314 = vunpack.c.h.b16 %v308
    %v2315 = vunpack.c.l.b16 %v309
    %v2316 = vunpack.c.h.b16 %v309
    %v2317 = vunpack.c.l.b16 %v310
    %v2318 = vunpack.c.h.b16 %v310
    %v2319 = vunpack.c.l.b16 %v311
    %v2320 = vunpack.c.h.b16 %v311
    %v2321 = vunpack.c.l.b16 %v312
    %v2322 = vunpack.c.h.b16 %v312
    %v2323 = vunpack.c.l.b16 %v313
    %v2324 = vunpack.c.h.b16 %v313
    %v2325 = vunpack.c.l.b16 %v314
    %v2326 = vunpack.c.h.b16 %v314
    %v2327 = vunpack.c.l.b16 %v315
    %v2328 = vunpack.c.h.b16 %v315
    %v2329 = vunpack.c.l.b16 %v316
    %v2330 = vunpack.c.h.b16 %v316
    %v2331 = vunpack.c.l.b16 %v317
    %v2332 = vunpack.c.h.b16 %v317
    %v2333 = vunpack.c.l.b16 %v318
    %v2334 = vunpack.c.h.b16 %v318
    %v2335 = vunpack.c.l.b16 %v319
    %v2336 = vunpack.c.h.b16 %v319
    %v2337 = vunpack.c.l.b16 %v320
    %v2338 = vunpack.c.h.b16 %v320
    %v2339 = vunpack.c.l.b16 %v321
    %v2340 = vunpack.c.h.b16 %v321
    %v2341 = vunpack.c.l.b16 %v322
    %v2342 = vunpack.c.h.b16 %v322
    %v2343 = vunpack.c.l.b16 %v323
    %v2344 = vunpack.c.h.b16 %v323
    %v2345 = vunpack.c.l.b16 %v324
    %v2346 = vunpack.c.h.b16 %v324
    %v2347 = vunpack.c.l.b16 %v325
    %v2348 = vunpack.c.h.b16 %v325
    %v2349 = vunpack.c.l.b16 %v326
    %v2350 = vunpack.c.h.b16 %v326
    %v2351 = vunpack.c.l.b16 %v327
    %v2352 = vunpack.c.h.b16 %v327
    %v2353 = vunpack.c.l.b16 %v328
    %v2354 = vunpack.c.h.b16 %v328
    %v2355 = vunpack.c.l.b16 %v329
    %v2356 = vunpack.c.h.b16 %v329
    %v2357 = vunpack.c.l.b16 %v330
    %v2358 = vunpack.c.h.b16 %v330
    %v2359 = vunpack.c.l.b16 %v331
    %v2360 = vunpack.c.h.b16 %v331
    %v2361 = vunpack.c.l.b16 %v332
    %v2362 = vunpack.c.h.b16 %v332
    %v2363 = vunpack.c.l.b16 %v333
    %v2364 = vunpack.c.h.b16 %v333
    %v2365 = vunpack.c.l.b16 %v334
    %v2366 = vunpack.c.h.b16 %v334
    %v2367 = vunpack.c.l.b16 %v335
    %v2368 = vunpack.c.h.b16 %v335
    %v2369 = vunpack.c.l.b16 %v336
    %v2370 = vunpack.c.h.b16 %v336
    %v2371 = vunpack.c.l.b16 %v337
    %v2372 = vunpack.c.h.b16 %v337
    %v2373 = vunpack.c.l.b16 %v338
    %v2374 = vunpack.c.h.b16 %v338
    %v2375 = vunpack.c.l.b16 %v339
    %v2376 = vunpack.c.h.b16 %v339
    %v2377 = vunpack.c.l.b16 %v340
    %v2378 = vunpack.c.h.b16 %v340
    %v2379 = vunpack.c.l.b16 %v341
    %v2380 = vunpack.c.h.b16 %v341
    %v2381 = vunpack.c.l.b16 %v342
    %v2382 = vunpack.c.h.b16 %v342
    %v2383 = vunpack.c.l.b16 %v343
    %v2384 = vunpack.c.h.b16 %v343
    %v2385 = vunpack.c.l.b16 %v344
    %v2386 = vunpack.c.h.b16 %v344
    %v2387 = vunpack.c.l.b16 %v345
    %v2388 = vunpack.c.h.b16 %v345
    %v2389 = vunpack.c.l.b16 %v346
    %v2390 = vunpack.c.h.b16 %v346
    %v2391 = vunpack.c.l.b16 %v347
    %v2392 = vunpack.c.h.b16 %v347
    %v2393 = vunpack.c.l.b16 %v348
    %v2394 = vunpack.c.h.b16 %v348
    %v2395 = vunpack.c.l.b16 %v349
    %v2396 = vunpack.c.h.b16 %v349
    %v2397 = vunpack.c.l.b16 %v350
    %v2398 = vunpack.c.h.b16 %v350
    %v2399 = vunpack.c.l.b16 %v351
    %v2400 = vunpack.c.h.b16 %v351
    %v2401 = vunpack.c.l.b16 %v352
    %v2402 = vunpack.c.h.b16 %v352
    %v2403 = vunpack.c.l.b16 %v353
    %v2404 = vunpack.c.h.b16 %v353
    %v2405 = vunpack.c.l.b16 %v354
    %v2406 = vunpack.c.h.b16 %v354
    %v2407 = vunpack.c.l.b16 %v355
    %v2408 = vunpack.c.h.b16 %v355
    %v2409 = vunpack.c.l.b16 %v356
    %v2410 = vunpack.c.h.b16 %v356
    %v2411 = vunpack.c.l.b16 %v357
    %v2412 = vunpack.c.h.b16 %v357
    %v2413 = vunpack.c.l.b16 %v358
    %v2414 = vunpack.c.h.b16 %v358
    %v2415 = vunpack.c.l.b16 %v359
    %v2416 = vunpack.c.h.b16 %v359
    %v2417 = vunpack.c.l.b16 %v360
    %v2418 = vunpack.c.h.b16 %v360
    %v2419 = vunpack.c.l.b16 %v361
    %v2420 = vunpack.c.h.b16 %v361
    %v2421 = vunpack.c.l.b16 %v362
    %v2422 = vunpack.c.h.b16 %v362
    %v2423 = vunpack.c.l.b16 %v363
    %v2424 = vunpack.c.h.b16 %v363
    %v2425 = vunpack.c.l.b16 %v364
    %v2426 = vunpack.c.h.b16 %v364
    %v2427 = vunpack.c.l.b16 %v365
    %v2428 = vunpack.c.h.b16 %v365
    %v2429 = vunpack.c.l.b16 %v366
    %v2430 = vunpack.c.h.b16 %v366
    %v2431 = vunpack.c.l.b16 %v367
    %v2432 = vunpack.c.h.b16 %v367
    %v2433 = vunpack.c.l.b16 %v368
    %v2434 = vunpack.c.h.b16 %v368
    %v2435 = vunpack.c.l.b16 %v369
    %v2436 = vunpack.c.h.b16 %v369
    %v2437 = vunpack.c.l.b16 %v370
    %v2438 = vunpack.c.h.b16 %v370
    %v2439 = vunpack.c.l.b16 %v371
    %v2440 = vunpack.c.h.b16 %v371
    %v2441 = vunpack.c.l.b16 %v372
    %v2442 = vunpack.c.h.b16 %v372
    %v2443 = vunpack.c.l.b16 %v373
    %v2444 = vunpack.c.h.b16 %v373
    %v2445 = vunpack.c.l.b16 %v374
    %v2446 = vunpack.c.h.b16 %v374
    %v2447 = vunpack.c.l.b16 %v375
    %v2448 = vunpack.c.h.b16 %v375
    %v2449 = vunpack.c.l.b16 %v376
    %v2450 = vunpack.c.h.b16 %v376
    %v2451 = vunpack.c.l.b16 %v377
    %v2452 = vunpack.c.h.b16 %v377
    %v2453 = vunpack.c.l.b16 %v378
    %v2454 = vunpack.c.h.b16 %v378
    %v2455 = vunpack.c.l.b16 %v379
    %v2456 = vunpack.c.h.b16 %v379
    %v2457 = vunpack.c.l.b16 %v380
    %v2458 = vunpack.c.h.b16 %v380
    %v2459 = vunpack.c.l.b16 %v381
    %v2460 = vunpack.c.h.b16 %v381
    %v2461 = vunpack.c.l.b16 %v382
    %v2462 = vunpack.c.h.b16 %v382
    %v2463 = vunpack.c.l.b16 %v383
    %v2464 = vunpack.c.h.b16 %v383
    %v2465 = vunpack.c.l.b16 %v384
    %v2466 = vunpack.c.h.b16 %v384
    %v2467 = vunpack.c.l.b16 %v385
    %v2468 = vunpack.c.h.b16 %v385
    %v2469 = vunpack.c.l.b16 %v386
    %v2470 = vunpack.c.h.b16 %v386
    %v2471 = vunpack.c.l.b16 %v387
    %v2472 = vunpack.c.h.b16 %v387
    %v2473 = vunpack.c.l.b16 %v388
    %v2474 = vunpack.c.h.b16 %v388
    %v2475 = vunpack.c.l.b16 %v389
    %v2476 = vunpack.c.h.b16 %v389
    %v2477 = vunpack.c.l.b16 %v390
    %v2478 = vunpack.c.h.b16 %v390
    %v2479 = vunpack.c.l.b16 %v391
    %v2480 = vunpack.c.h.b16 %v391
    %v2481 = vunpack.c.l.b16 %v392
    %v2482 = vunpack.c.h.b16 %v392
    %v2483 = vunpack.c.l.b16 %v393
    %v2484 = vunpack.c.h.b16 %v393
    %v2485 = vunpack.c.l.b16 %v394
    %v2486 = vunpack.c.h.b16 %v394
    %v2487 = vunpack.c.l.b16 %v395
    %v2488 = vunpack.c.h.b16 %v395
    %v2489 = vunpack.c.l.b16 %v396
    %v2490 = vunpack.c.h.b16 %v396
    %v2491 = vunpack.c.l.b16 %v397
    %v2492 = vunpack.c.h.b16 %v397
    %v2493 = vunpack.c.l.b16 %v398
    %v2494 = vunpack.c.h.b16 %v398
    %v2495 = vunpack.c.l.b16 %v399
    %v2496 = vunpack.c.h.b16 %v399
    %v2497 = vunpack.c.l.b16 %v400
    %v2498 = vunpack.c.h.b16 %v400
    %v2499 = vunpack.c.l.b16 %v401
    %v2500 = vunpack.c.h.b16 %v401
    %v2501 = vunpack.c.l.b16 %v402
    %v2502 = vunpack.c.h.b16 %v402
    %v2503 = vunpack.c.l.b16 %v403
    %v2504 = vunpack.c.h.b16 %v403
    %v2505 = vunpack.c.l.b16 %v404
    %v2506 = vunpack.c.h.b16 %v404
    %v2507 = vunpack.c.l.b16 %v405
    %v2508 = vunpack.c.h.b16 %v405
    %v2509 = vunpack.c.l.b16 %v406
    %v2510 = vunpack.c.h.b16 %v406
    %v2511 = vunpack.c.l.b16 %v407
    %v2512 = vunpack.c.h.b16 %v407
    %v2513 = vunpack.c.l.b16 %v408
    %v2514 = vunpack.c.h.b16 %v408
    %v2515 = vunpack.c.l.b16 %v409
    %v2516 = vunpack.c.h.b16 %v409
    %v2517 = vunpack.c.l.b16 %v410
    %v2518 = vunpack.c.h.b16 %v410
    %v2519 = vunpack.c.l.b16 %v411
    %v2520 = vunpack.c.h.b16 %v411
    %v2521 = vunpack.c.l.b16 %v412
    %v2522 = vunpack.c.h.b16 %v412
    %v2523 = vunpack.c.l.b16 %v413
    %v2524 = vunpack.c.h.b16 %v413
    %v2525 = vunpack.c.l.b16 %v414
    %v2526 = vunpack.c.h.b16 %v414
    %v2527 = vunpack.c.l.b16 %v415
    %v2528 = vunpack.c.h.b16 %v415
    %v2529 = vunpack.c.l.b16 %v416
    %v2530 = vunpack.c.h.b16 %v416
    %v2531 = vunpack.c.l.b16 %v417
    %v2532 = vunpack.c.h.b16 %v417
    %v2533 = vunpack.c.l.b16 %v418
    %v2534 = vunpack.c.h.b16 %v418
    %v2535 = vunpack.c.l.b16 %v419
    %v2536 = vunpack.c.h.b16 %v419
    %v2537 = vunpack.c.l.b16 %v420
    %v2538 = vunpack.c.h.b16 %v420
    %v2539 = vunpack.c.l.b16 %v421
    %v2540 = vunpack.c.h.b16 %v421
    %v2541 = vunpack.c.l.b16 %v422
    %v2542 = vunpack.c.h.b16 %v422
    %v2543 = vunpack.c.l.b16 %v423
    %v2544 = vunpack.c.h.b16 %v423
    %v2545 = vunpack.c.l.b16 %v424
    %v2546 = vunpack.c.h.b16 %v424
    %v2547 = vunpack.c.l.b16 %v425
    %v2548 = vunpack.c.h.b16 %v425
    %v2549 = vunpack.c.l.b16 %v426
    %v2550 = vunpack.c.h.b16 %v426
    %v2551 = vunpack.c.l.b16 %v427
    %v2552 = vunpack.c.h.b16 %v427
    %v2553 = vunpack.c.l.b16 %v428
    %v2554 = vunpack.c.h.b16 %v428
    %v2555 = vunpack.c.l.b16 %v429
    %v2556 = vunpack.c.h.b16 %v429
    %v2557 = vunpack.c.l.b16 %v430
    %v2558 = vunpack.c.h.b16 %v430
    %v2559 = vunpack.c.l.b16 %v431
    %v2560 = vunpack.c.h.b16 %v431
    %v2561 = vunpack.c.l.b16 %v432
    %v2562 = vunpack.c.h.b16 %v432
    %v2563 = vunpack.c.l.b16 %v433
    %v2564 = vunpack.c.h.b16 %v433
    %v2565 = vunpack.c.l.b16 %v434
    %v2566 = vunpack.c.h.b16 %v434
    %v2567 = vunpack.c.l.b16 %v435
    %v2568 = vunpack.c.h.b16 %v435
    %v2569 = vunpack.c.l.b16 %v436
    %v2570 = vunpack.c.h.b16 %v436
    %v2571 = vunpack.c.l.b16 %v437
    %v2572 = vunpack.c.h.b16 %v437
    %v2573 = vunpack.c.l.b16 %v438
    %v2574 = vunpack.c.h.b16 %v438
    %v2575 = vunpack.c.l.b16 %v439
    %v2576 = vunpack.c.h.b16 %v439
    %v2577 = vunpack.c.l.b16 %v440
    %v2578 = vunpack.c.h.b16 %v440
    %v2579 = vunpack.c.l.b16 %v441
    %v2580 = vunpack.c.h.b16 %v441
    %v2581 = vunpack.c.l.b16 %v442
    %v2582 = vunpack.c.h.b16 %v442
    %v2583 = vunpack.c.l.b16 %v443
    %v2584 = vunpack.c.h.b16 %v443
    %v2585 = vunpack.c.l.b16 %v444
    %v2586 = vunpack.c.h.b16 %v444
    %v2587 = vunpack.c.l.b16 %v445
    %v2588 = vunpack.c.h.b16 %v445
    %v2589 = vunpack.c.l.b16 %v446
    %v2590 = vunpack.c.h.b16 %v446
    %v2591 = vunpack.c.l.b16 %v447
    %v2592 = vunpack.c.h.b16 %v447
    %v2593 = vunpack.c.l.b16 %v448
    %v2594 = vunpack.c.h.b16 %v448
    %v2595 = vunpack.c.l.b16 %v449
    %v2596 = vunpack.c.h.b16 %v449
    %v2597 = vunpack.c.l.b16 %v450
    %v2598 = vunpack.c.h.b16 %v450
    %v2599 = vunpack.c.l.b16 %v451
    %v2600 = vunpack.c.h.b16 %v451
    %v2601 = vunpack.c.l.b16 %v452
    %v2602 = vunpack.c.h.b16 %v452
    %v2603 = vunpack.c.l.b16 %v453
    %v2604 = vunpack.c.h.b16 %v453
    %v2605 = vunpack.c.l.b16 %v454
    %v2606 = vunpack.c.h.b16 %v454
    %v2607 = vunpack.c.l.b16 %v455
    %v2608 = vunpack.c.h.b16 %v455
    %v2609 = vunpack.c.l.b16 %v456
    %v2610 = vunpack.c.h.b16 %v456
    %v2611 = vunpack.c.l.b16 %v457
    %v2612 = vunpack.c.h.b16 %v457
    %v2613 = vunpack.c.l.b16 %v458
    %v2614 = vunpack.c.h.b16 %v458
    %v2615 = vunpack.c.l.b16 %v459
    %v2616 = vunpack.c.h.b16 %v459
    %v2617 = vunpack.c.l.b16 %v460
    %v2618 = vunpack.c.h.b16 %v460
    %v2619 = vunpack.c.l.b16 %v461
    %v2620 = vunpack.c.h.b16 %v461
    %v2621 = vunpack.c.l.b16 %v462
    %v2622 = vunpack.c.h.b16 %v462
    %v2623 = vunpack.c.l.b16 %v463
    %v2624 = vunpack.c.h.b16 %v463
    %v2625 = vunpack.c.l.b16 %v464
    %v2626 = vunpack.c.h.b16 %v464
    %v2627 = vunpack.c.l.b16 %v465
    %v2628 = vunpack.c.h.b16 %v465
    %v2629 = vunpack.c.l.b16 %v466
    %v2630 = vunpack.c.h.b16 %v466
    %v2631 = vunpack.c.l.b16 %v467
    %v2632 = vunpack.c.h.b16 %v467
    %v2633 = vunpack.c.l.b16 %v468
    %v2634 = vunpack.c.h.b16 %v468
    %v2635 = vunpack.c.l.b16 %v469
    %v2636 = vunpack.c.h.b16 %v469
    %v2637 = vunpack.c.l.b16 %v470
    %v2638 = vunpack.c.h.b16 %v470
    %v2639 = vunpack.c.l.b16 %v471
    %v2640 = vunpack.c.h.b16 %v471
    %v2641 = vunpack.c.l.b16 %v472
    %v2642 = vunpack.c.h.b16 %v472
    %v2643 = vunpack.c.l.b16 %v473
    %v2644 = vunpack.c.h.b16 %v473
    %v2645 = vunpack.c.l.b16 %v474
    %v2646 = vunpack.c.h.b16 %v474
    %v2647 = vunpack.c.l.b16 %v475
    %v2648 = vunpack.c.h.b16 %v475
    %v2649 = vunpack.c.l.b16 %v476
    %v2650 = vunpack.c.h.b16 %v476
    %v2651 = vunpack.c.l.b16 %v477
    %v2652 = vunpack.c.h.b16 %v477
    %v2653 = vunpack.c.l.b16 %v478
    %v2654 = vunpack.c.h.b16 %v478
    %v2655 = vunpack.c.l.b16 %v479
    %v2656 = vunpack.c.h.b16 %v479
    %v2657 = vunpack.c.l.b16 %v480
    %v2658 = vunpack.c.h.b16 %v480
    %v2659 = vunpack.c.l.b16 %v481
    %v2660 = vunpack.c.h.b16 %v481
    %v2661 = vunpack.c.l.b16 %v482
    %v2662 = vunpack.c.h.b16 %v482
    %v2663 = vunpack.c.l.b16 %v483
    %v2664 = vunpack.c.h.b16 %v483
    %v2665 = vunpack.c.l.b16 %v484
    %v2666 = vunpack.c.h.b16 %v484
    %v2667 = vunpack.c.l.b16 %v485
    %v2668 = vunpack.c.h.b16 %v485
    %v2669 = vunpack.c.l.b16 %v486
    %v2670 = vunpack.c.h.b16 %v486
    %v2671 = vunpack.c.l.b16 %v487
    %v2672 = vunpack.c.h.b16 %v487
    %v2673 = vunpack.c.l.b16 %v488
    %v2674 = vunpack.c.h.b16 %v488
    %v2675 = vunpack.c.l.b16 %v489
    %v2676 = vunpack.c.h.b16 %v489
    %v2677 = vunpack.c.l.b16 %v490
    %v2678 = vunpack.c.h.b16 %v490
    %v2679 = vunpack.c.l.b16 %v491
    %v2680 = vunpack.c.h.b16 %v491
    %v2681 = vunpack.c.l.b16 %v492
    %v2682 = vunpack.c.h.b16 %v492
    %v2683 = vunpack.c.l.b16 %v493
    %v2684 = vunpack.c.h.b16 %v493
    %v2685 = vunpack.c.l.b16 %v494
    %v2686 = vunpack.c.h.b16 %v494
    %v2687 = vunpack.c.l.b16 %v495
    %v2688 = vunpack.c.h.b16 %v495
    %v2689 = vunpack.c.l.b16 %v496
    %v2690 = vunpack.c.h.b16 %v496
    %v2691 = vunpack.c.l.b16 %v497
    %v2692 = vunpack.c.h.b16 %v497
    %v2693 = vunpack.c.l.b16 %v498
    %v2694 = vunpack.c.h.b16 %v498
    %v2695 = vunpack.c.l.b16 %v499
    %v2696 = vunpack.c.h.b16 %v499
    %v2697 = vunpack.c.l.b16 %v500
    %v2698 = vunpack.c.h.b16 %v500
    %v2699 = vunpack.c.l.b16 %v501
    %v2700 = vunpack.c.h.b16 %v501
    %v2701 = vunpack.c.l.b16 %v502
    %v2702 = vunpack.c.h.b16 %v502
    %v2703 = vunpack.c.l.b16 %v503
    %v2704 = vunpack.c.h.b16 %v503
    %v2705 = vunpack.c.l.b16 %v504
    %v2706 = vunpack.c.h.b16 %v504
    %v2707 = vunpack.c.l.b16 %v505
    %v2708 = vunpack.c.h.b16 %v505
    %v2709 = vunpack.c.l.b16 %v506
    %v2710 = vunpack.c.h.b16 %v506
    %v2711 = vunpack.c.l.b16 %v507
    %v2712 = vunpack.c.h.b16 %v507
    %v2713 = vunpack.c.l.b16 %v508
    %v2714 = vunpack.c.h.b16 %v508
    %v2715 = vunpack.c.l.b16 %v509
    %v2716 = vunpack.c.h.b16 %v509
    %v2717 = vunpack.c.l.b16 %v510
    %v2718 = vunpack.c.h.b16 %v510
    %v2719 = vunpack.c.l.b16 %v511
    %v2720 = vunpack.c.h.b16 %v511
    %v2721 = vunpack.c.l.b16 %v512
    %v2722 = vunpack.c.h.b16 %v512
    %v2723 = vunpack.c.l.b16 %v513
    %v2724 = vunpack.c.h.b16 %v513
    %v2725 = vunpack.c.l.b16 %v514
    %v2726 = vunpack.c.h.b16 %v514
    %v2727 = vunpack.c.l.b16 %v515
    %v2728 = vunpack.c.h.b16 %v515
    %v2729 = vunpack.c.l.b16 %v516
    %v2730 = vunpack.c.h.b16 %v516
    %v2731 = vunpack.c.l.b16 %v517
    %v2732 = vunpack.c.h.b16 %v517
    %v2733 = vunpack.c.l.b16 %v518
    %v2734 = vunpack.c.h.b16 %v518
    %v2735 = vunpack.c.l.b16 %v519
    %v2736 = vunpack.c.h.b16 %v519
    %v2737 = vunpack.c.l.b16 %v520
    %v2738 = vunpack.c.h.b16 %v520
    %v2739 = vunpack.c.l.b16 %v521
    %v2740 = vunpack.c.h.b16 %v521
    %v2741 = vunpack.c.l.b16 %v522
    %v2742 = vunpack.c.h.b16 %v522
    %v2743 = vunpack.c.l.b16 %v523
    %v2744 = vunpack.c.h.b16 %v523
    %v2745 = vunpack.c.l.b16 %v524
    %v2746 = vunpack.c.h.b16 %v524
    %v2747 = vunpack.c.l.b16 %v525
    %v2748 = vunpack.c.h.b16 %v525
    %v2749 = vunpack.c.l.b16 %v526
    %v2750 = vunpack.c.h.b16 %v526
    %v2751 = vunpack.c.l.b16 %v527
    %v2752 = vunpack.c.h.b16 %v527
    %v2753 = vunpack.c.l.b16 %v528
    %v2754 = vunpack.c.h.b16 %v528
    %v2755 = vunpack.c.l.b16 %v529
    %v2756 = vunpack.c.h.b16 %v529
    %v2757 = vunpack.c.l.b16 %v530
    %v2758 = vunpack.c.h.b16 %v530
    %v2759 = vunpack.c.l.b16 %v531
    %v2760 = vunpack.c.h.b16 %v531
    %v2761 = vunpack.c.l.b16 %v532
    %v2762 = vunpack.c.h.b16 %v532
    %v2763 = vunpack.c.l.b16 %v533
    %v2764 = vunpack.c.h.b16 %v533
    %v2765 = vunpack.c.l.b16 %v534
    %v2766 = vunpack.c.h.b16 %v534
    %v2767 = vunpack.c.l.b16 %v535
    %v2768 = vunpack.c.h.b16 %v535
    %v2769 = vunpack.c.l.b16 %v536
    %v2770 = vunpack.c.h.b16 %v536
    %v2771 = vunpack.c.l.b16 %v537
    %v2772 = vunpack.c.h.b16 %v537
    %v2773 = vunpack.c.l.b16 %v538
    %v2774 = vunpack.c.h.b16 %v538
    %v2775 = vunpack.c.l.b16 %v539
    %v2776 = vunpack.c.h.b16 %v539
    %v2777 = vunpack.c.l.b16 %v540
    %v2778 = vunpack.c.h.b16 %v540
    %v2779 = vunpack.c.l.b16 %v541
    %v2780 = vunpack.c.h.b16 %v541
    %v2781 = vunpack.c.l.b16 %v542
    %v2782 = vunpack.c.h.b16 %v542
    %v2783 = vunpack.c.l.b16 %v543
    %v2784 = vunpack.c.h.b16 %v543
    %v2785 = vunpack.c.l.b16 %v544
    %v2786 = vunpack.c.h.b16 %v544
    %v2787 = vunpack.c.l.b16 %v545
    %v2788 = vunpack.c.h.b16 %v545
    %v2789 = vunpack.c.l.b16 %v546
    %v2790 = vunpack.c.h.b16 %v546
    %v2791 = vunpack.c.l.b16 %v547
    %v2792 = vunpack.c.h.b16 %v547
    %v2793 = vunpack.c.l.b16 %v548
    %v2794 = vunpack.c.h.b16 %v548
    %v2795 = vunpack.c.l.b16 %v549
    %v2796 = vunpack.c.h.b16 %v549
    %v2797 = vunpack.c.l.b16 %v550
    %v2798 = vunpack.c.h.b16 %v550
    %v2799 = vunpack.c.l.b16 %v551
    %v2800 = vunpack.c.h.b16 %v551
    %v2801 = vunpack.c.l.b16 %v552
    %v2802 = vunpack.c.h.b16 %v552
    %v2803 = vunpack.c.l.b16 %v553
    %v2804 = vunpack.c.h.b16 %v553
    %v2805 = vunpack.c.l.b16 %v554
    %v2806 = vunpack.c.h.b16 %v554
    %v2807 = vunpack.c.l.b16 %v555
    %v2808 = vunpack.c.h.b16 %v555
    %v2809 = vunpack.c.l.b16 %v556
    %v2810 = vunpack.c.h.b16 %v556
    %v2811 = vunpack.c.l.b16 %v557
    %v2812 = vunpack.c.h.b16 %v557
    %v2813 = vunpack.c.l.b16 %v558
    %v2814 = vunpack.c.h.b16 %v558
    %v2815 = vunpack.c.l.b16 %v559
    %v2816 = vunpack.c.h.b16 %v559
    %v2817 = vunpack.c.l.b16 %v560
    %v2818 = vunpack.c.h.b16 %v560
    %v2819 = vunpack.c.l.b16 %v561
    %v2820 = vunpack.c.h.b16 %v561
    %v2821 = vunpack.c.l.b16 %v562
    %v2822 = vunpack.c.h.b16 %v562
    %v2823 = vunpack.c.l.b16 %v563
    %v2824 = vunpack.c.h.b16 %v563
    %v2825 = vunpack.c.l.b16 %v564
    %v2826 = vunpack.c.h.b16 %v564
    %v2827 = vunpack.c.l.b16 %v565
    %v2828 = vunpack.c.h.b16 %v565
    %v2829 = vunpack.c.l.b16 %v566
    %v2830 = vunpack.c.h.b16 %v566
    %v2831 = vunpack.c.l.b16 %v567
    %v2832 = vunpack.c.h.b16 %v567
    %v2833 = vunpack.c.l.b16 %v568
    %v2834 = vunpack.c.h.b16 %v568
    %v2835 = vunpack.c.l.b16 %v569
    %v2836 = vunpack.c.h.b16 %v569
    %v2837 = vunpack.c.l.b16 %v570
    %v2838 = vunpack.c.h.b16 %v570
    %v2839 = vunpack.c.l.b16 %v571
    %v2840 = vunpack.c.h.b16 %v571
    %v2841 = vunpack.c.l.b16 %v572
    %v2842 = vunpack.c.h.b16 %v572
    %v2843 = vunpack.c.l.b16 %v573
    %v2844 = vunpack.c.h.b16 %v573
    %v2845 = vunpack.c.l.b16 %v574
    %v2846 = vunpack.c.h.b16 %v574
    %v2847 = vunpack.c.l.b16 %v575
    %v2848 = vunpack.c.h.b16 %v575
    %v2849 = vunpack.c.l.b16 %v576
    %v2850 = vunpack.c.h.b16 %v576
    %v2851 = vunpack.c.l.b16 %v577
    %v2852 = vunpack.c.h.b16 %v577
    %v2853 = vunpack.c.l.b16 %v578
    %v2854 = vunpack.c.h.b16 %v578
    %v2855 = vunpack.c.l.b16 %v579
    %v2856 = vunpack.c.h.b16 %v579
    %v2857 = vunpack.c.l.b16 %v580
    %v2858 = vunpack.c.h.b16 %v580
    %v2859 = vunpack.c.l.b16 %v581
    %v2860 = vunpack.c.h.b16 %v581
    %v2861 = vunpack.c.l.b16 %v582
    %v2862 = vunpack.c.h.b16 %v582
    %v2863 = vunpack.c.l.b16 %v583
    %v2864 = vunpack.c.h.b16 %v583
    %v2865 = vunpack.c.l.b16 %v584
    %v2866 = vunpack.c.h.b16 %v584
    %v2867 = vunpack.c.l.b16 %v585
    %v2868 = vunpack.c.h.b16 %v585
    %v2869 = vunpack.c.l.b16 %v586
    %v2870 = vunpack.c.h.b16 %v586
    %v2871 = vunpack.c.l.b16 %v587
    %v2872 = vunpack.c.h.b16 %v587
    %v2873 = vunpack.c.l.b16 %v588
    %v2874 = vunpack.c.h.b16 %v588
    %v2875 = vunpack.c.l.b16 %v589
    %v2876 = vunpack.c.h.b16 %v589
    %v2877 = vunpack.c.l.b16 %v590
    %v2878 = vunpack.c.h.b16 %v590
    %v2879 = vunpack.c.l.b16 %v591
    %v2880 = vunpack.c.h.b16 %v591
    %v2881 = vunpack.c.l.b16 %v592
    %v2882 = vunpack.c.h.b16 %v592
    %v2883 = vunpack.c.l.b16 %v593
    %v2884 = vunpack.c.h.b16 %v593
    %v2885 = vunpack.c.l.b16 %v594
    %v2886 = vunpack.c.h.b16 %v594
    %v2887 = vunpack.c.l.b16 %v595
    %v2888 = vunpack.c.h.b16 %v595
    %v2889 = vunpack.c.l.b16 %v596
    %v2890 = vunpack.c.h.b16 %v596
    %v2891 = vunpack.c.l.b16 %v597
    %v2892 = vunpack.c.h.b16 %v597
    %v2893 = vunpack.c.l.b16 %v598
    %v2894 = vunpack.c.h.b16 %v598
    %v2895 = vunpack.c.l.b16 %v599
    %v2896 = vunpack.c.h.b16 %v599
    %v2897 = vunpack.c.l.b16 %v600
    %v2898 = vunpack.c.h.b16 %v600
    %v2899 = vunpack.c.l.b16 %v601
    %v2900 = vunpack.c.h.b16 %v601
    %v2901 = vunpack.c.l.b16 %v602
    %v2902 = vunpack.c.h.b16 %v602
    %v2903 = vunpack.c.l.b16 %v603
    %v2904 = vunpack.c.h.b16 %v603
    %v2905 = vunpack.c.l.b16 %v604
    %v2906 = vunpack.c.h.b16 %v604
    %v2907 = vunpack.c.l.b16 %v605
    %v2908 = vunpack.c.h.b16 %v605
    %v2909 = vunpack.c.l.b16 %v606
    %v2910 = vunpack.c.h.b16 %v606
    %v2911 = vunpack.c.l.b16 %v607
    %v2912 = vunpack.c.h.b16 %v607
    %v2913 = vunpack.c.l.b16 %v608
    %v2914 = vunpack.c.h.b16 %v608
    %v2915 = vunpack.c.l.b16 %v609
    %v2916 = vunpack.c.h.b16 %v609
    %v2917 = vunpack.c.l.b16 %v610
    %v2918 = vunpack.c.h.b16 %v610
    %v2919 = vunpack.c.l.b16 %v611
    %v2920 = vunpack.c.h.b16 %v611
    %v2921 = vunpack.c.l.b16 %v612
    %v2922 = vunpack.c.h.b16 %v612
    %v2923 = vunpack.c.l.b16 %v613
    %v2924 = vunpack.c.h.b16 %v613
    %v2925 = vunpack.c.l.b16 %v614
    %v2926 = vunpack.c.h.b16 %v614
    %v2927 = vunpack.c.l.b16 %v615
    %v2928 = vunpack.c.h.b16 %v615
    %v2929 = vunpack.c.l.b16 %v616
    %v2930 = vunpack.c.h.b16 %v616
    %v2931 = vunpack.c.l.b16 %v617
    %v2932 = vunpack.c.h.b16 %v617
    %v2933 = vunpack.c.l.b16 %v618
    %v2934 = vunpack.c.h.b16 %v618
    %v2935 = vunpack.c.l.b16 %v619
    %v2936 = vunpack.c.h.b16 %v619
    %v2937 = vunpack.c.l.b16 %v620
    %v2938 = vunpack.c.h.b16 %v620
    %v2939 = vunpack.c.l.b16 %v621
    %v2940 = vunpack.c.h.b16 %v621
    %v2941 = vunpack.c.l.b16 %v622
    %v2942 = vunpack.c.h.b16 %v622
    %v2943 = vunpack.c.l.b16 %v623
    %v2944 = vunpack.c.h.b16 %v623
    %v2945 = vunpack.c.l.b16 %v624
    %v2946 = vunpack.c.h.b16 %v624
    %v2947 = vunpack.c.l.b16 %v625
    %v2948 = vunpack.c.h.b16 %v625
    %v2949 = vunpack.c.l.b16 %v626
    %v2950 = vunpack.c.h.b16 %v626
    %v2951 = vunpack.c.l.b16 %v627
    %v2952 = vunpack.c.h.b16 %v627
    %v2953 = vunpack.c.l.b16 %v628
    %v2954 = vunpack.c.h.b16 %v628
    %v2955 = vunpack.c.l.b16 %v629
    %v2956 = vunpack.c.h.b16 %v629
    %v2957 = vunpack.c.l.b16 %v630
    %v2958 = vunpack.c.h.b16 %v630
    %v2959 = vunpack.c.l.b16 %v631
    %v2960 = vunpack.c.h.b16 %v631
    %v2961 = vunpack.c.l.b16 %v632
    %v2962 = vunpack.c.h.b16 %v632
    %v2963 = vunpack.c.l.b16 %v633
    %v2964 = vunpack.c.h.b16 %v633
    %v2965 = vunpack.c.l.b16 %v634
    %v2966 = vunpack.c.h.b16 %v634
    %v2967 = vunpack.c.l.b16 %v635
    %v2968 = vunpack.c.h.b16 %v635
    %v2969 = vunpack.c.l.b16 %v636
    %v2970 = vunpack.c.h.b16 %v636
    %v2971 = vunpack.c.l.b16 %v637
    %v2972 = vunpack.c.h.b16 %v637
    %v2973 = vunpack.c.l.b16 %v638
    %v2974 = vunpack.c.h.b16 %v638
    %v2975 = vunpack.c.l.b16 %v639
    %v2976 = vunpack.c.h.b16 %v639
    %v2977 = vunpack.c.l.b16 %v640
    %v2978 = vunpack.c.h.b16 %v640
    %v2979 = vunpack.c.l.b16 %v641
    %v2980 = vunpack.c.h.b16 %v641
    %v2981 = vunpack.c.l.b16 %v642
    %v2982 = vunpack.c.h.b16 %v642
    %v2983 = vunpack.c.l.b16 %v643
    %v2984 = vunpack.c.h.b16 %v643
    %v2985 = vunpack.c.l.b16 %v644
    %v2986 = vunpack.c.h.b16 %v644
    %v2987 = vunpack.c.l.b16 %v645
    %v2988 = vunpack.c.h.b16 %v645
    %v2989 = vunpack.c.l.b16 %v646
    %v2990 = vunpack.c.h.b16 %v646
    %v2991 = vunpack.c.l.b16 %v647
    %v2992 = vunpack.c.h.b16 %v647
    %v2993 = vunpack.c.l.b16 %v648
    %v2994 = vunpack.c.h.b16 %v648
    %v2995 = vunpack.c.l.b16 %v649
    %v2996 = vunpack.c.h.b16 %v649
    %v2997 = vunpack.c.l.b16 %v650
    %v2998 = vunpack.c.h.b16 %v650
    %v2999 = vunpack.c.l.b16 %v651
    %v3000 = vunpack.c.h.b16 %v651
    %v3001 = vunpack.c.l.b16 %v652
    %v3002 = vunpack.c.h.b16 %v652
    %v3003 = vunpack.c.l.b16 %v653
    %v3004 = vunpack.c.h.b16 %v653
    %v3005 = vunpack.c.l.b16 %v654
    %v3006 = vunpack.c.h.b16 %v654
    %v3007 = vunpack.c.l.b16 %v655
    %v3008 = vunpack.c.h.b16 %v655
    %v3009 = vunpack.c.l.b16 %v656
    %v3010 = vunpack.c.h.b16 %v656
    %v3011 = vunpack.c.l.b16 %v657
    %v3012 = vunpack.c.h.b16 %v657
    %v3013 = vunpack.c.l.b16 %v658
    %v3014 = vunpack.c.h.b16 %v658
    %v3015 = vunpack.c.l.b16 %v659
    %v3016 = vunpack.c.h.b16 %v659
    %v3017 = vunpack.c.l.b16 %v660
    %v3018 = vunpack.c.h.b16 %v660
    %v3019 = vunpack.c.l.b16 %v661
    %v3020 = vunpack.c.h.b16 %v661
    %v3021 = vunpack.c.l.b16 %v662
    %v3022 = vunpack.c.h.b16 %v662
    %v3023 = vunpack.c.l.b16 %v663
    %v3024 = vunpack.c.h.b16 %v663
    %v3025 = vunpack.c.l.b16 %v664
    %v3026 = vunpack.c.h.b16 %v664
    %v3027 = vunpack.c.l.b16 %v665
    %v3028 = vunpack.c.h.b16 %v665
    %v3029 = vunpack.c.l.b16 %v666
    %v3030 = vunpack.c.h.b16 %v666
    %v3031 = vunpack.c.l.b16 %v667
    %v3032 = vunpack.c.h.b16 %v667
    %v3033 = vunpack.c.l.b16 %v668
    %v3034 = vunpack.c.h.b16 %v668
    %v3035 = vunpack.c.l.b16 %v669
    %v3036 = vunpack.c.h.b16 %v669
    %v3037 = vunpack.c.l.b16 %v670
    %v3038 = vunpack.c.h.b16 %v670
    %v3039 = vunpack.c.l.b16 %v671
    %v3040 = vunpack.c.h.b16 %v671
    %v3041 = vunpack.c.l.b16 %v672
    %v3042 = vunpack.c.h.b16 %v672
    %v3043 = vunpack.c.l.b16 %v673
    %v3044 = vunpack.c.h.b16 %v673
    %v3045 = vunpack.c.l.b16 %v674
    %v3046 = vunpack.c.h.b16 %v674
    %v3047 = vunpack.c.l.b16 %v675
    %v3048 = vunpack.c.h.b16 %v675
    %v3049 = vunpack.c.l.b16 %v676
    %v3050 = vunpack.c.h.b16 %v676
    %v3051 = vunpack.c.l.b16 %v677
    %v3052 = vunpack.c.h.b16 %v677
    %v3053 = vunpack.c.l.b16 %v678
    %v3054 = vunpack.c.h.b16 %v678
    %v3055 = vunpack.c.l.b16 %v679
    %v3056 = vunpack.c.h.b16 %v679
    %v3057 = vunpack.c.l.b16 %v680
    %v3058 = vunpack.c.h.b16 %v680
    %v3059 = vunpack.c.l.b16 %v681
    %v3060 = vunpack.c.h.b16 %v681
    %v3061 = vunpack.c.l.b16 %v682
    %v3062 = vunpack.c.h.b16 %v682
    %v3063 = vunpack.c.l.b16 %v683
    %v3064 = vunpack.c.h.b16 %v683
    %v3065 = vunpack.c.l.b16 %v684
    %v3066 = vunpack.c.h.b16 %v684
    %v3067 = vunpack.c.l.b16 %v685
    %v3068 = vunpack.c.h.b16 %v685
    %v3069 = vunpack.c.l.b16 %v686
    %v3070 = vunpack.c.h.b16 %v686
    %v3071 = vunpack.c.l.b16 %v687
    %v3072 = vunpack.c.h.b16 %v687
    %v3073 = vunpack.c.l.b16 %v688
    %v3074 = vunpack.c.h.b16 %v688
    %v3075 = vunpack.c.l.b16 %v689
    %v3076 = vunpack.c.h.b16 %v689
    %v3077 = vunpack.c.l.b16 %v690
    %v3078 = vunpack.c.h.b16 %v690
    %v3079 = vunpack.c.l.b16 %v691
    %v3080 = vunpack.c.h.b16 %v691
    %v3081 = vunpack.c.l.b16 %v692
    %v3082 = vunpack.c.h.b16 %v692
    %v3083 = vunpack.c.l.b16 %v693
    %v3084 = vunpack.c.h.b16 %v693
    %v3085 = vunpack.c.l.b16 %v694
    %v3086 = vunpack.c.h.b16 %v694
    %v3087 = vunpack.c.l.b16 %v695
    %v3088 = vunpack.c.h.b16 %v695
    %v3089 = vunpack.c.l.b16 %v696
    %v3090 = vunpack.c.h.b16 %v696
    %v3091 = vunpack.c.l.b16 %v697
    %v3092 = vunpack.c.h.b16 %v697
    %v3093 = vunpack.c.l.b16 %v698
    %v3094 = vunpack.c.h.b16 %v698
    %v3095 = vunpack.c.l.b16 %v699
    %v3096 = vunpack.c.h.b16 %v699
    %v3097 = vunpack.c.l.b16 %v700
    %v3098 = vunpack.c.h.b16 %v700
    %v3099 = vunpack.c.l.b16 %v701
    %v3100 = vunpack.c.h.b16 %v701
    %v3101 = vunpack.c.l.b16 %v702
    %v3102 = vunpack.c.h.b16 %v702
    %v3103 = vunpack.c.l.b16 %v703
    %v3104 = vunpack.c.h.b16 %v703
    %v3105 = vunpack.c.l.b16 %v704
    %v3106 = vunpack.c.h.b16 %v704
    %v3107 = vunpack.c.l.b16 %v705
    %v3108 = vunpack.c.h.b16 %v705
    %v3109 = vunpack.c.l.b16 %v706
    %v3110 = vunpack.c.h.b16 %v706
    %v3111 = vunpack.c.l.b16 %v707
    %v3112 = vunpack.c.h.b16 %v707
    %v3113 = vunpack.c.l.b16 %v708
    %v3114 = vunpack.c.h.b16 %v708
    %v3115 = vunpack.c.l.b16 %v709
    %v3116 = vunpack.c.h.b16 %v709
    %v3117 = vunpack.c.l.b16 %v710
    %v3118 = vunpack.c.h.b16 %v710
    %v3119 = vunpack.c.l.b16 %v711
    %v3120 = vunpack.c.h.b16 %v711
    %v3121 = vunpack.c.l.b16 %v712
    %v3122 = vunpack.c.h.b16 %v712
    %v3123 = vunpack.c.l.b16 %v713
    %v3124 = vunpack.c.h.b16 %v713
    %v3125 = vunpack.c.l.b16 %v714
    %v3126 = vunpack.c.h.b16 %v714
    %v3127 = vunpack.c.l.b16 %v715
    %v3128 = vunpack.c.h.b16 %v715
    %v3129 = vunpack.c.l.b16 %v716
    %v3130 = vunpack.c.h.b16 %v716
    %v3131 = vunpack.c.l.b16 %v717
    %v3132 = vunpack.c.h.b16 %v717
    %v3133 = vunpack.c.l.b16 %v718
    %v3134 = vunpack.c.h.b16 %v718
    %v3135 = vunpack.c.l.b16 %v719
    %v3136 = vunpack.c.h.b16 %v719
    %v3137 = vunpack.c.l.b16 %v720
    %v3138 = vunpack.c.h.b16 %v720
    %v3139 = vunpack.c.l.b16 %v721
    %v3140 = vunpack.c.h.b16 %v721
    %v3141 = vunpack.c.l.b16 %v722
    %v3142 = vunpack.c.h.b16 %v722
    %v3143 = vunpack.c.l.b16 %v723
    %v3144 = vunpack.c.h.b16 %v723
    %v3145 = vunpack.c.l.b16 %v724
    %v3146 = vunpack.c.h.b16 %v724
    %v3147 = vunpack.c.l.b16 %v725
    %v3148 = vunpack.c.h.b16 %v725
    %v3149 = vunpack.c.l.b16 %v726
    %v3150 = vunpack.c.h.b16 %v726
    %v3151 = vunpack.c.l.b16 %v727
    %v3152 = vunpack.c.h.b16 %v727
    %v3153 = vunpack.c.l.b16 %v728
    %v3154 = vunpack.c.h.b16 %v728
    %v3155 = vunpack.c.l.b16 %v729
    %v3156 = vunpack.c.h.b16 %v729
    %v3157 = vunpack.c.l.b16 %v730
    %v3158 = vunpack.c.h.b16 %v730
    %v3159 = vunpack.c.l.b16 %v731
    %v3160 = vunpack.c.h.b16 %v731
    %v3161 = vunpack.c.l.b16 %v732
    %v3162 = vunpack.c.h.b16 %v732
    %v3163 = vunpack.c.l.b16 %v733
    %v3164 = vunpack.c.h.b16 %v733
    %v3165 = vunpack.c.l.b16 %v734
    %v3166 = vunpack.c.h.b16 %v734
    %v3167 = vunpack.c.l.b16 %v735
    %v3168 = vunpack.c.h.b16 %v735
    %v3169 = vunpack.c.l.b16 %v736
    %v3170 = vunpack.c.h.b16 %v736
    %v3171 = vunpack.c.l.b16 %v737
    %v3172 = vunpack.c.h.b16 %v737
    %v3173 = vunpack.c.l.b16 %v738
    %v3174 = vunpack.c.h.b16 %v738
    %v3175 = vunpack.c.l.b16 %v739
    %v3176 = vunpack.c.h.b16 %v739
    %v3177 = vunpack.c.l.b16 %v740
    %v3178 = vunpack.c.h.b16 %v740
    %v3179 = vunpack.c.l.b16 %v741
    %v3180 = vunpack.c.h.b16 %v741
    %v3181 = vunpack.c.l.b16 %v742
    %v3182 = vunpack.c.h.b16 %v742
    %v3183 = vunpack.c.l.b16 %v743
    %v3184 = vunpack.c.h.b16 %v743
    %v3185 = vunpack.c.l.b16 %v744
    %v3186 = vunpack.c.h.b16 %v744
    %v3187 = vunpack.c.l.b16 %v745
    %v3188 = vunpack.c.h.b16 %v745
    %v3189 = vunpack.c.l.b16 %v746
    %v3190 = vunpack.c.h.b16 %v746
    %v3191 = vunpack.c.l.b16 %v747
    %v3192 = vunpack.c.h.b16 %v747
    %v3193 = vunpack.c.l.b16 %v748
    %v3194 = vunpack.c.h.b16 %v748
    %v3195 = vunpack.c.l.b16 %v749
    %v3196 = vunpack.c.h.b16 %v749
    %v3197 = vunpack.c.l.b16 %v750
    %v3198 = vunpack.c.h.b16 %v750
    %v3199 = vunpack.c.l.b16 %v751
    %v3200 = vunpack.c.h.b16 %v751
    %v3201 = vunpack.c.l.b16 %v752
    %v3202 = vunpack.c.h.b16 %v752
    %v3203 = vunpack.c.l.b16 %v753
    %v3204 = vunpack.c.h.b16 %v753
    %v3205 = vunpack.c.l.b16 %v754
    %v3206 = vunpack.c.h.b16 %v754
    %v3207 = vunpack.c.l.b16 %v755
    %v3208 = vunpack.c.h.b16 %v755
    %v3209 = vunpack.c.l.b16 %v756
    %v3210 = vunpack.c.h.b16 %v756
    %v3211 = vunpack.c.l.b16 %v757
    %v3212 = vunpack.c.h.b16 %v757
    %v3213 = vunpack.c.l.b16 %v758
    %v3214 = vunpack.c.h.b16 %v758
    %v3215 = vunpack.c.l.b16 %v759
    %v3216 = vunpack.c.h.b16 %v759
    %v3217 = vunpack.c.l.b16 %v760
    %v3218 = vunpack.c.h.b16 %v760
    %v3219 = vunpack.c.l.b16 %v761
    %v3220 = vunpack.c.h.b16 %v761
    %v3221 = vunpack.c.l.b16 %v762
    %v3222 = vunpack.c.h.b16 %v762
    %v3223 = vunpack.c.l.b16 %v763
    %v3224 = vunpack.c.h.b16 %v763
    %v3225 = vunpack.c.l.b16 %v764
    %v3226 = vunpack.c.h.b16 %v764
    %v3227 = vunpack.c.l.b16 %v765
    %v3228 = vunpack.c.h.b16 %v765
    %v3229 = vunpack.c.l.b16 %v766
    %v3230 = vunpack.c.h.b16 %v766
    %v3231 = vunpack.c.l.b16 %v767
    %v3232 = vunpack.c.h.b16 %v767
    %v3233 = vunpack.c.l.b16 %v768
    %v3234 = vunpack.c.h.b16 %v768
    %v3235 = vunpack.c.l.b16 %v769
    %v3236 = vunpack.c.h.b16 %v769
    %v3237 = vunpack.c.l.b16 %v770
    %v3238 = vunpack.c.h.b16 %v770
    %v3239 = vunpack.c.l.b16 %v771
    %v3240 = vunpack.c.h.b16 %v771
    %v3241 = vunpack.c.l.b16 %v772
    %v3242 = vunpack.c.h.b16 %v772
    %v3243 = vunpack.c.l.b16 %v773
    %v3244 = vunpack.c.h.b16 %v773
    %v3245 = vunpack.c.l.b16 %v774
    %v3246 = vunpack.c.h.b16 %v774
    %v3247 = vunpack.c.l.b16 %v775
    %v3248 = vunpack.c.h.b16 %v775
    %v3249 = vunpack.c.l.b16 %v776
    %v3250 = vunpack.c.h.b16 %v776
    %v3251 = vunpack.c.l.b16 %v777
    %v3252 = vunpack.c.h.b16 %v777
    %v3253 = vunpack.c.l.b16 %v778
    %v3254 = vunpack.c.h.b16 %v778
    %v3255 = vunpack.c.l.b16 %v779
    %v3256 = vunpack.c.h.b16 %v779
    %v3257 = vunpack.c.l.b16 %v780
    %v3258 = vunpack.c.h.b16 %v780
    %v3259 = vunpack.c.l.b16 %v781
    %v3260 = vunpack.c.h.b16 %v781
    %v3261 = vunpack.c.l.b16 %v782
    %v3262 = vunpack.c.h.b16 %v782
    %v3263 = vunpack.c.l.b16 %v783
    %v3264 = vunpack.c.h.b16 %v783
    %v3265 = vunpack.c.l.b16 %v784
    %v3266 = vunpack.c.h.b16 %v784
    %v3267 = vunpack.c.l.b16 %v785
    %v3268 = vunpack.c.h.b16 %v785
    %v3269 = vunpack.c.l.b16 %v786
    %v3270 = vunpack.c.h.b16 %v786
    %v3271 = vunpack.c.l.b16 %v787
    %v3272 = vunpack.c.h.b16 %v787
    %v3273 = vunpack.c.l.b16 %v788
    %v3274 = vunpack.c.h.b16 %v788
    %v3275 = vunpack.c.l.b16 %v789
    %v3276 = vunpack.c.h.b16 %v789
    %v3277 = vunpack.c.l.b16 %v790
    %v3278 = vunpack.c.h.b16 %v790
    %v3279 = vunpack.c.l.b16 %v791
    %v3280 = vunpack.c.h.b16 %v791
    %v3281 = vunpack.c.l.b16 %v792
    %v3282 = vunpack.c.h.b16 %v792
    %v3283 = vunpack.c.l.b16 %v793
    %v3284 = vunpack.c.h.b16 %v793
    %v3285 = vunpack.c.l.b16 %v794
    %v3286 = vunpack.c.h.b16 %v794
    %v3287 = vunpack.c.l.b16 %v795
    %v3288 = vunpack.c.h.b16 %v795
    %v3289 = vunpack.c.l.b16 %v796
    %v3290 = vunpack.c.h.b16 %v796
    %v3291 = vunpack.c.l.b16 %v797
    %v3292 = vunpack.c.h.b16 %v797
    %v3293 = vunpack.c.l.b16 %v798
    %v3294 = vunpack.c.h.b16 %v798
    %v3295 = vunpack.c.l.b16 %v799
    %v3296 = vunpack.c.h.b16 %v799
    %v3297 = vunpack.c.l.b16 %v800
    %v3298 = vunpack.c.h.b16 %v800
    %v3299 = vunpack.c.l.b16 %v801
    %v3300 = vunpack.c.h.b16 %v801
    %v3301 = vunpack.c.l.b16 %v802
    %v3302 = vunpack.c.h.b16 %v802
    %v3303 = vunpack.c.l.b16 %v803
    %v3304 = vunpack.c.h.b16 %v803
    %v3305 = vunpack.c.l.b16 %v804
    %v3306 = vunpack.c.h.b16 %v804
    %v3307 = vunpack.c.l.b16 %v805
    %v3308 = vunpack.c.h.b16 %v805
    %v3309 = vunpack.c.l.b16 %v806
    %v3310 = vunpack.c.h.b16 %v806
    %v3311 = vunpack.c.l.b16 %v807
    %v3312 = vunpack.c.h.b16 %v807
    %v3313 = vunpack.c.l.b16 %v808
    %v3314 = vunpack.c.h.b16 %v808
    %v3315 = vunpack.c.l.b16 %v809
    %v3316 = vunpack.c.h.b16 %v809
    %v3317 = vunpack.c.l.b16 %v810
    %v3318 = vunpack.c.h.b16 %v810
    %v3319 = vunpack.c.l.b16 %v811
    %v3320 = vunpack.c.h.b16 %v811
    %v3321 = vunpack.c.l.b16 %v812
    %v3322 = vunpack.c.h.b16 %v812
    %v3323 = vunpack.c.l.b16 %v813
    %v3324 = vunpack.c.h.b16 %v813
    %v3325 = vunpack.c.l.b16 %v814
    %v3326 = vunpack.c.h.b16 %v814
    %v3327 = vunpack.c.l.b16 %v815
    %v3328 = vunpack.c.h.b16 %v815
    %v3329 = vunpack.c.l.b16 %v816
    %v3330 = vunpack.c.h.b16 %v816
    %v3331 = vunpack.c.l.b16 %v817
    %v3332 = vunpack.c.h.b16 %v817
    %v3333 = vunpack.c.l.b16 %v818
    %v3334 = vunpack.c.h.b16 %v818
    %v3335 = vunpack.c.l.b16 %v819
    %v3336 = vunpack.c.h.b16 %v819
    %v3337 = vunpack.c.l.b16 %v820
    %v3338 = vunpack.c.h.b16 %v820
    %v3339 = vunpack.c.l.b16 %v821
    %v3340 = vunpack.c.h.b16 %v821
    %v3341 = vunpack.c.l.b16 %v822
    %v3342 = vunpack.c.h.b16 %v822
    %v3343 = vunpack.c.l.b16 %v823
    %v3344 = vunpack.c.h.b16 %v823
    %v3345 = vunpack.c.l.b16 %v824
    %v3346 = vunpack.c.h.b16 %v824
    %v3347 = vunpack.c.l.b16 %v825
    %v3348 = vunpack.c.h.b16 %v825
    %v3349 = vunpack.c.l.b16 %v826
    %v3350 = vunpack.c.h.b16 %v826
    %v3351 = vunpack.c.l.b16 %v827
    %v3352 = vunpack.c.h.b16 %v827
    %v3353 = vunpack.c.l.b16 %v828
    %v3354 = vunpack.c.h.b16 %v828
    %v3355 = vunpack.c.l.b16 %v829
    %v3356 = vunpack.c.h.b16 %v829
    %v3357 = vunpack.c.l.b16 %v830
    %v3358 = vunpack.c.h.b16 %v830
    %v3359 = vunpack.c.l.b16 %v831
    %v3360 = vunpack.c.h.b16 %v831
    %v3361 = vunpack.c.l.b16 %v832
    %v3362 = vunpack.c.h.b16 %v832
    %v3363 = vunpack.c.l.b16 %v833
    %v3364 = vunpack.c.h.b16 %v833
    %v3365 = vunpack.c.l.b16 %v834
    %v3366 = vunpack.c.h.b16 %v834
    %v3367 = vunpack.c.l.b16 %v835
    %v3368 = vunpack.c.h.b16 %v835
    %v3369 = vunpack.c.l.b16 %v836
    %v3370 = vunpack.c.h.b16 %v836
    %v3371 = vunpack.c.l.b16 %v837
    %v3372 = vunpack.c.h.b16 %v837
    %v3373 = vunpack.c.l.b16 %v838
    %v3374 = vunpack.c.h.b16 %v838
    %v3375 = vunpack.c.l.b16 %v839
    %v3376 = vunpack.c.h.b16 %v839
    %v3377 = vunpack.c.l.b16 %v840
    %v3378 = vunpack.c.h.b16 %v840
    %v3379 = vunpack.c.l.b16 %v841
    %v3380 = vunpack.c.h.b16 %v841
    %v3381 = vunpack.c.l.b16 %v842
    %v3382 = vunpack.c.h.b16 %v842
    %v3383 = vunpack.c.l.b16 %v843
    %v3384 = vunpack.c.h.b16 %v843
    %v3385 = vunpack.c.l.b16 %v844
    %v3386 = vunpack.c.h.b16 %v844
    %v3387 = vunpack.c.l.b16 %v845
    %v3388 = vunpack.c.h.b16 %v845
    %v3389 = vunpack.c.l.b16 %v846
    %v3390 = vunpack.c.h.b16 %v846
    %v3391 = vunpack.c.l.b16 %v847
    %v3392 = vunpack.c.h.b16 %v847
    %v3393 = vunpack.c.l.b16 %v848
    %v3394 = vunpack.c.h.b16 %v848
    %v3395 = vunpack.c.l.b16 %v849
    %v3396 = vunpack.c.h.b16 %v849
    %v3397 = vunpack.c.l.b16 %v850
    %v3398 = vunpack.c.h.b16 %v850
    %v3399 = vunpack.c.l.b16 %v851
    %v3400 = vunpack.c.h.b16 %v851
    %v3401 = vunpack.c.l.b16 %v852
    %v3402 = vunpack.c.h.b16 %v852
    %v3403 = vunpack.c.l.b16 %v853
    %v3404 = vunpack.c.h.b16 %v853
    %v3405 = vunpack.c.l.b16 %v854
    %v3406 = vunpack.c.h.b16 %v854
    %v3407 = vunpack.c.l.b16 %v855
    %v3408 = vunpack.c.h.b16 %v855
    %v3409 = vunpack.c.l.b16 %v856
    %v3410 = vunpack.c.h.b16 %v856
    %v3411 = vunpack.c.l.b16 %v857
    %v3412 = vunpack.c.h.b16 %v857
    %v3413 = vunpack.c.l.b16 %v858
    %v3414 = vunpack.c.h.b16 %v858
    %v3415 = vunpack.c.l.b16 %v859
    %v3416 = vunpack.c.h.b16 %v859
    %v3417 = vunpack.c.l.b16 %v860
    %v3418 = vunpack.c.h.b16 %v860
    %v3419 = vunpack.c.l.b16 %v861
    %v3420 = vunpack.c.h.b16 %v861
    %v3421 = vunpack.c.l.b16 %v862
    %v3422 = vunpack.c.h.b16 %v862
    %v3423 = vunpack.c.l.b16 %v863
    %v3424 = vunpack.c.h.b16 %v863
    %v3425 = vunpack.c.l.b16 %v864
    %v3426 = vunpack.c.h.b16 %v864
    %v3427 = vunpack.c.l.b16 %v865
    %v3428 = vunpack.c.h.b16 %v865
    %v3429 = vunpack.c.l.b16 %v866
    %v3430 = vunpack.c.h.b16 %v866
    %v3431 = vunpack.c.l.b16 %v867
    %v3432 = vunpack.c.h.b16 %v867
    %v3433 = vunpack.c.l.b16 %v868
    %v3434 = vunpack.c.h.b16 %v868
    %v3435 = vunpack.c.l.b16 %v869
    %v3436 = vunpack.c.h.b16 %v869
    %v3437 = vunpack.c.l.b16 %v870
    %v3438 = vunpack.c.h.b16 %v870
    %v3439 = vunpack.c.l.b16 %v871
    %v3440 = vunpack.c.h.b16 %v871
    %v3441 = vunpack.c.l.b16 %v872
    %v3442 = vunpack.c.h.b16 %v872
    %v3443 = vunpack.c.l.b16 %v873
    %v3444 = vunpack.c.h.b16 %v873
    %v3445 = vunpack.c.l.b16 %v874
    %v3446 = vunpack.c.h.b16 %v874
    %v3447 = vunpack.c.l.b16 %v875
    %v3448 = vunpack.c.h.b16 %v875
    %v3449 = vunpack.c.l.b16 %v876
    %v3450 = vunpack.c.h.b16 %v876
    %v3451 = vunpack.c.l.b16 %v877
    %v3452 = vunpack.c.h.b16 %v877
    %v3453 = vunpack.c.l.b16 %v878
    %v3454 = vunpack.c.h.b16 %v878
    %v3455 = vunpack.c.l.b16 %v879
    %v3456 = vunpack.c.h.b16 %v879
    %v3457 = vunpack.c.l.b16 %v880
    %v3458 = vunpack.c.h.b16 %v880
    %v3459 = vunpack.c.l.b16 %v881
    %v3460 = vunpack.c.h.b16 %v881
    %v3461 = vunpack.c.l.b16 %v882
    %v3462 = vunpack.c.h.b16 %v882
    %v3463 = vunpack.c.l.b16 %v883
    %v3464 = vunpack.c.h.b16 %v883
    %v3465 = vunpack.c.l.b16 %v884
    %v3466 = vunpack.c.h.b16 %v884
    %v3467 = vunpack.c.l.b16 %v885
    %v3468 = vunpack.c.h.b16 %v885
    %v3469 = vunpack.c.l.b16 %v886
    %v3470 = vunpack.c.h.b16 %v886
    %v3471 = vunpack.c.l.b16 %v887
    %v3472 = vunpack.c.h.b16 %v887
    %v3473 = vunpack.c.l.b16 %v888
    %v3474 = vunpack.c.h.b16 %v888
    %v3475 = vunpack.c.l.b16 %v889
    %v3476 = vunpack.c.h.b16 %v889
    %v3477 = vunpack.c.l.b16 %v890
    %v3478 = vunpack.c.h.b16 %v890
    %v3479 = vunpack.c.l.b16 %v891
    %v3480 = vunpack.c.h.b16 %v891
    %v3481 = vunpack.c.l.b16 %v892
    %v3482 = vunpack.c.h.b16 %v892
    %v3483 = vunpack.c.l.b16 %v893
    %v3484 = vunpack.c.h.b16 %v893
    %v3485 = vunpack.c.l.b16 %v894
    %v3486 = vunpack.c.h.b16 %v894
    %v3487 = vunpack.c.l.b16 %v895
    %v3488 = vunpack.c.h.b16 %v895
    %v3489 = vunpack.c.l.b16 %v896
    %v3490 = vunpack.c.h.b16 %v896
    %v3491 = vunpack.c.l.b16 %v897
    %v3492 = vunpack.c.h.b16 %v897
    %v3493 = vunpack.c.l.b16 %v898
    %v3494 = vunpack.c.h.b16 %v898
    %v3495 = vunpack.c.l.b16 %v899
    %v3496 = vunpack.c.h.b16 %v899
    %v3497 = vunpack.c.l.b16 %v900
    %v3498 = vunpack.c.h.b16 %v900
    %v3499 = vunpack.c.l.b16 %v901
    %v3500 = vunpack.c.h.b16 %v901
    %v3501 = vunpack.c.l.b16 %v902
    %v3502 = vunpack.c.h.b16 %v902
    %v3503 = vunpack.c.l.b16 %v903
    %v3504 = vunpack.c.h.b16 %v903
    %v3505 = vunpack.c.l.b16 %v904
    %v3506 = vunpack.c.h.b16 %v904
    %v3507 = vunpack.c.l.b16 %v905
    %v3508 = vunpack.c.h.b16 %v905
    %v3509 = vunpack.c.l.b16 %v906
    %v3510 = vunpack.c.h.b16 %v906
    %v3511 = vunpack.c.l.b16 %v907
    %v3512 = vunpack.c.h.b16 %v907
    %v3513 = vunpack.c.l.b16 %v908
    %v3514 = vunpack.c.h.b16 %v908
    %v3515 = vunpack.c.l.b16 %v909
    %v3516 = vunpack.c.h.b16 %v909
    %v3517 = vunpack.c.l.b16 %v910
    %v3518 = vunpack.c.h.b16 %v910
    %v3519 = vunpack.c.l.b16 %v911
    %v3520 = vunpack.c.h.b16 %v911
    %v3521 = vunpack.c.l.b16 %v912
    %v3522 = vunpack.c.h.b16 %v912
    %v3523 = vunpack.c.l.b16 %v913
    %v3524 = vunpack.c.h.b16 %v913
    %v3525 = vunpack.c.l.b16 %v914
    %v3526 = vunpack.c.h.b16 %v914
    %v3527 = vunpack.c.l.b16 %v915
    %v3528 = vunpack.c.h.b16 %v915
    %v3529 = vunpack.c.l.b16 %v916
    %v3530 = vunpack.c.h.b16 %v916
    %v3531 = vunpack.c.l.b16 %v917
    %v3532 = vunpack.c.h.b16 %v917
    %v3533 = vunpack.c.l.b16 %v918
    %v3534 = vunpack.c.h.b16 %v918
    %v3535 = vunpack.c.l.b16 %v919
    %v3536 = vunpack.c.h.b16 %v919
    %v3537 = vunpack.c.l.b16 %v920
    %v3538 = vunpack.c.h.b16 %v920
    %v3539 = vunpack.c.l.b16 %v921
    %v3540 = vunpack.c.h.b16 %v921
    %v3541 = vunpack.c.l.b16 %v922
    %v3542 = vunpack.c.h.b16 %v922
    %v3543 = vunpack.c.l.b16 %v923
    %v3544 = vunpack.c.h.b16 %v923
    %v3545 = vunpack.c.l.b16 %v924
    %v3546 = vunpack.c.h.b16 %v924
    %v3547 = vunpack.c.l.b16 %v925
    %v3548 = vunpack.c.h.b16 %v925
    %v3549 = vunpack.c.l.b16 %v926
    %v3550 = vunpack.c.h.b16 %v926
    %v3551 = vunpack.c.l.b16 %v927
    %v3552 = vunpack.c.h.b16 %v927
    %v3553 = vunpack.c.l.b16 %v928
    %v3554 = vunpack.c.h.b16 %v928
    %v3555 = vunpack.c.l.b16 %v929
    %v3556 = vunpack.c.h.b16 %v929
    %v3557 = vunpack.c.l.b16 %v930
    %v3558 = vunpack.c.h.b16 %v930
    %v3559 = vunpack.c.l.b16 %v931
    %v3560 = vunpack.c.h.b16 %v931
    %v3561 = vunpack.c.l.b16 %v932
    %v3562 = vunpack.c.h.b16 %v932
    %v3563 = vunpack.c.l.b16 %v933
    %v3564 = vunpack.c.h.b16 %v933
    %v3565 = vunpack.c.l.b16 %v934
    %v3566 = vunpack.c.h.b16 %v934
    %v3567 = vunpack.c.l.b16 %v935
    %v3568 = vunpack.c.h.b16 %v935
    %v3569 = vunpack.c.l.b16 %v936
    %v3570 = vunpack.c.h.b16 %v936
    %v3571 = vunpack.c.l.b16 %v937
    %v3572 = vunpack.c.h.b16 %v937
    %v3573 = vunpack.c.l.b16 %v938
    %v3574 = vunpack.c.h.b16 %v938
    %v3575 = vunpack.c.l.b16 %v939
    %v3576 = vunpack.c.h.b16 %v939
    %v3577 = vunpack.c.l.b16 %v940
    %v3578 = vunpack.c.h.b16 %v940
    %v3579 = vunpack.c.l.b16 %v941
    %v3580 = vunpack.c.h.b16 %v941
    %v3581 = vunpack.c.l.b16 %v942
    %v3582 = vunpack.c.h.b16 %v942
    %v3583 = vunpack.c.l.b16 %v943
    %v3584 = vunpack.c.h.b16 %v943
    %v3585 = vunpack.c.l.b16 %v944
    %v3586 = vunpack.c.h.b16 %v944
    %v3587 = vunpack.c.l.b16 %v945
    %v3588 = vunpack.c.h.b16 %v945
    %v3589 = vunpack.c.l.b16 %v946
    %v3590 = vunpack.c.h.b16 %v946
    %v3591 = vunpack.c.l.b16 %v947
    %v3592 = vunpack.c.h.b16 %v947
    %v3593 = vunpack.c.l.b16 %v948
    %v3594 = vunpack.c.h.b16 %v948
    %v3595 = vunpack.c.l.b16 %v949
    %v3596 = vunpack.c.h.b16 %v949
    %v3597 = vunpack.c.l.b16 %v950
    %v3598 = vunpack.c.h.b16 %v950
    %v3599 = vunpack.c.l.b16 %v951
    %v3600 = vunpack.c.h.b16 %v951
    %v3601 = vunpack.c.l.b16 %v952
    %v3602 = vunpack.c.h.b16 %v952
    %v3603 = vpack.c.b16 %v1947, %v1939
    %v3604 = vpack.c.b16 %v1948, %v1940
    %v3605 = vpack.c.b16 %v1949, %v1941
    %v3606 = vpack.c.b16 %v1950, %v1942
    %v3607 = vpack.c.b16 %v1951, %v1943
    %v3608 = vpack.c.b16 %v1952, %v1944
    %v3609 = vpack.c.b16 %v1953, %v1945
    %v3610 = vpack.c.b16 %v1954, %v1946
    %v3611 = vpack.c.b16 %v1963, %v1955
    %v3612 = vpack.c.b16 %v1964, %v1956
    %v3613 = vpack.c.b16 %v1965, %v1957
    %v3614 = vpack.c.b16 %v1966, %v1958
    %v3615 = vpack.c.b16 %v1967, %v1959
    %v3616 = vpack.c.b16 %v1968, %v1960
    %v3617 = vpack.c.b16 %v1969, %v1961
    %v3618 = vpack.c.b16 %v1970, %v1962
    %v3619 = vpack.c.b16 %v1979, %v1971
    %v3620 = vpack.c.b16 %v1980, %v1972
    %v3621 = vpack.c.b16 %v1981, %v1973
    %v3622 = vpack.c.b16 %v1982, %v1974
    %v3623 = vpack.c.b16 %v1983, %v1975
    %v3624 = vpack.c.b16 %v1984, %v1976
    %v3625 = vpack.c.b16 %v1985, %v1977
    %v3626 = vpack.c.b16 %v1986, %v1978
    %v3627 = vpack.c.b16 %v1995, %v1987
    %v3628 = vpack.c.b16 %v1996, %v1988
    %v3629 = vpack.c.b16 %v1997, %v1989
    %v3630 = vpack.c.b16 %v1998, %v1990
    %v3631 = vpack.c.b16 %v1999, %v1991
    %v3632 = vpack.c.b16 %v2000, %v1992
    %v3633 = vpack.c.b16 %v2001, %v1993
    %v3634 = vpack.c.b16 %v2002, %v1994
    %v3635 = vpack.c.b16 %v2011, %v2003
    %v3636 = vpack.c.b16 %v2012, %v2004
    %v3637 = vpack.c.b16 %v2013, %v2005
    %v3638 = vpack.c.b16 %v2014, %v2006
    %v3639 = vpack.c.b16 %v2015, %v2007
    %v3640 = vpack.c.b16 %v2016, %v2008
    %v3641 = vpack.c.b16 %v2017, %v2009
    %v3642 = vpack.c.b16 %v2018, %v2010
    %v3643 = vpack.c.b16 %v2027, %v2019
    %v3644 = vpack.c.b16 %v2028, %v2020
    %v3645 = vpack.c.b16 %v2029, %v2021
    %v3646 = vpack.c.b16 %v2030, %v2022
    %v3647 = vpack.c.b16 %v2031, %v2023
    %v3648 = vpack.c.b16 %v2032, %v2024
    %v3649 = vpack.c.b16 %v2033, %v2025
    %v3650 = vpack.c.b16 %v2034, %v2026
    %v3651 = vpack.c.b16 %v2043, %v2035
    %v3652 = vpack.c.b16 %v2044, %v2036
    %v3653 = vpack.c.b16 %v2045, %v2037
    %v3654 = vpack.c.b16 %v2046, %v2038
    %v3655 = vpack.c.b16 %v2047, %v2039
    %v3656 = vpack.c.b16 %v2048, %v2040
    %v3657 = vpack.c.b16 %v2049, %v2041
    %v3658 = vpack.c.b16 %v2050, %v2042
    %v3659 = vpack.c.b16 %v2059, %v2051
    %v3660 = vpack.c.b16 %v2060, %v2052
    %v3661 = vpack.c.b16 %v2061, %v2053
    %v3662 = vpack.c.b16 %v2062, %v2054
    %v3663 = vpack.c.b16 %v2063, %v2055
    %v3664 = vpack.c.b16 %v2064, %v2056
    %v3665 = vpack.c.b16 %v2065, %v2057
    %v3666 = vpack.c.b16 %v2066, %v2058
    %v3667 = vpack.c.b16 %v2075, %v2067
    %v3668 = vpack.c.b16 %v2076, %v2068
    %v3669 = vpack.c.b16 %v2077, %v2069
    %v3670 = vpack.c.b16 %v2078, %v2070
    %v3671 = vpack.c.b16 %v2079, %v2071
    %v3672 = vpack.c.b16 %v2080, %v2072
    %v3673 = vpack.c.b16 %v2081, %v2073
    %v3674 = vpack.c.b16 %v2082, %v2074
    %v3675 = vpack.c.b16 %v2091, %v2083
    %v3676 = vpack.c.b16 %v2092, %v2084
    %v3677 = vpack.c.b16 %v2093, %v2085
    %v3678 = vpack.c.b16 %v2094, %v2086
    %v3679 = vpack.c.b16 %v2095, %v2087
    %v3680 = vpack.c.b16 %v2096, %v2088
    %v3681 = vpack.c.b16 %v2097, %v2089
    %v3682 = vpack.c.b16 %v2098, %v2090
    %v3683 = vpack.c.b16 %v2107, %v2099
    %v3684 = vpack.c.b16 %v2108, %v2100
    %v3685 = vpack.c.b16 %v2109, %v2101
    %v3686 = vpack.c.b16 %v2110, %v2102
    %v3687 = vpack.c.b16 %v2111, %v2103
    %v3688 = vpack.c.b16 %v2112, %v2104
    %v3689 = vpack.c.b16 %v2113, %v2105
    %v3690 = vpack.c.b16 %v2114, %v2106
    %v3691 = vpack.c.b16 %v2123, %v2115
    %v3692 = vpack.c.b16 %v2124, %v2116
    %v3693 = vpack.c.b16 %v2125, %v2117
    %v3694 = vpack.c.b16 %v2126, %v2118
    %v3695 = vpack.c.b16 %v2127, %v2119
    %v3696 = vpack.c.b16 %v2128, %v2120
    %v3697 = vpack.c.b16 %v2129, %v2121
    %v3698 = vpack.c.b16 %v2130, %v2122
    %v3699 = vpack.c.b16 %v2139, %v2131
    %v3700 = vpack.c.b16 %v2140, %v2132
    %v3701 = vpack.c.b16 %v2141, %v2133
    %v3702 = vpack.c.b16 %v2142, %v2134
    %v3703 = vpack.c.b16 %v2143, %v2135
    %v3704 = vpack.c.b16 %v2144, %v2136
    %v3705 = vpack.c.b16 %v2145, %v2137
    %v3706 = vpack.c.b16 %v2146, %v2138
    %v3707 = vpack.c.b16 %v2155, %v2147
    %v3708 = vpack.c.b16 %v2156, %v2148
    %v3709 = vpack.c.b16 %v2157, %v2149
    %v3710 = vpack.c.b16 %v2158, %v2150
    %v3711 = vpack.c.b16 %v2159, %v2151
    %v3712 = vpack.c.b16 %v2160, %v2152
    %v3713 = vpack.c.b16 %v2161, %v2153
    %v3714 = vpack.c.b16 %v2162, %v2154
    %v3715 = vpack.c.b16 %v2171, %v2163
    %v3716 = vpack.c.b16 %v2172, %v2164
    %v3717 = vpack.c.b16 %v2173, %v2165
    %v3718 = vpack.c.b16 %v2174, %v2166
    %v3719 = vpack.c.b16 %v2175, %v2167
    %v3720 = vpack.c.b16 %v2176, %v2168
    %v3721 = vpack.c.b16 %v2177, %v2169
    %v3722 = vpack.c.b16 %v2178, %v2170
    %v3723 = vpack.c.b16 %v2187, %v2179
    %v3724 = vpack.c.b16 %v2188, %v2180
    %v3725 = vpack.c.b16 %v2189, %v2181
    %v3726 = vpack.c.b16 %v2190, %v2182
    %v3727 = vpack.c.b16 %v2191, %v2183
    %v3728 = vpack.c.b16 %v2192, %v2184
    %v3729 = vpack.c.b16 %v2193, %v2185
    %v3730 = vpack.c.b16 %v2194, %v2186
    %v3731 = vpack.c.b16 %v2203, %v2195
    %v3732 = vpack.c.b16 %v2204, %v2196
    %v3733 = vpack.c.b16 %v2205, %v2197
    %v3734 = vpack.c.b16 %v2206, %v2198
    %v3735 = vpack.c.b16 %v2207, %v2199
    %v3736 = vpack.c.b16 %v2208, %v2200
    %v3737 = vpack.c.b16 %v2209, %v2201
    %v3738 = vpack.c.b16 %v2210, %v2202
    %v3739 = vpack.c.b16 %v2219, %v2211
    %v3740 = vpack.c.b16 %v2220, %v2212
    %v3741 = vpack.c.b16 %v2221, %v2213
    %v3742 = vpack.c.b16 %v2222, %v2214
    %v3743 = vpack.c.b16 %v2223, %v2215
    %v3744 = vpack.c.b16 %v2224, %v2216
    %v3745 = vpack.c.b16 %v2225, %v2217
    %v3746 = vpack.c.b16 %v2226, %v2218
    %v3747 = vpack.c.b16 %v2235, %v2227
    %v3748 = vpack.c.b16 %v2236, %v2228
    %v3749 = vpack.c.b16 %v2237, %v2229
    %v3750 = vpack.c.b16 %v2238, %v2230
    %v3751 = vpack.c.b16 %v2239, %v2231
    %v3752 = vpack.c.b16 %v2240, %v2232
    %v3753 = vpack.c.b16 %v2241, %v2233
    %v3754 = vpack.c.b16 %v2242, %v2234
    %v3755 = vpack.c.b16 %v2251, %v2243
    %v3756 = vpack.c.b16 %v2252, %v2244
    %v3757 = vpack.c.b16 %v2253, %v2245
    %v3758 = vpack.c.b16 %v2254, %v2246
    %v3759 = vpack.c.b16 %v2255, %v2247
    %v3760 = vpack.c.b16 %v2256, %v2248
    %v3761 = vpack.c.b16 %v2257, %v2249
    %v3762 = vpack.c.b16 %v2258, %v2250
    %v3763 = vpack.c.b16 %v2267, %v2259
    %v3764 = vpack.c.b16 %v2268, %v2260
    %v3765 = vpack.c.b16 %v2269, %v2261
    %v3766 = vpack.c.b16 %v2270, %v2262
    %v3767 = vpack.c.b16 %v2271, %v2263
    %v3768 = vpack.c.b16 %v2272, %v2264
    %v3769 = vpack.c.b16 %v2273, %v2265
    %v3770 = vpack.c.b16 %v2274, %v2266
    %v3771 = vpack.c.b16 %v2283, %v2275
    %v3772 = vpack.c.b16 %v2284, %v2276
    %v3773 = vpack.c.b16 %v2285, %v2277
    %v3774 = vpack.c.b16 %v2286, %v2278
    %v3775 = vpack.c.b16 %v2287, %v2279
    %v3776 = vpack.c.b16 %v2288, %v2280
    %v3777 = vpack.c.b16 %v2289, %v2281
    %v3778 = vpack.c.b16 %v2290, %v2282
    %v3779 = vpack.c.b16 %v2299, %v2291
    %v3780 = vpack.c.b16 %v2300, %v2292
    %v3781 = vpack.c.b16 %v2301, %v2293
    %v3782 = vpack.c.b16 %v2302, %v2294
    %v3783 = vpack.c.b16 %v2303, %v2295
    %v3784 = vpack.c.b16 %v2304, %v2296
    %v3785 = vpack.c.b16 %v2305, %v2297
    %v3786 = vpack.c.b16 %v2306, %v2298
    %v3787 = vpack.c.b16 %v2315, %v2307
    %v3788 = vpack.c.b16 %v2316, %v2308
    %v3789 = vpack.c.b16 %v2317, %v2309
    %v3790 = vpack.c.b16 %v2318, %v2310
    %v3791 = vpack.c.b16 %v2319, %v2311
    %v3792 = vpack.c.b16 %v2320, %v2312
    %v3793 = vpack.c.b16 %v2321, %v2313
    %v3794 = vpack.c.b16 %v2322, %v2314
    %v3795 = vpack.c.b16 %v2331, %v2323
    %v3796 = vpack.c.b16 %v2332, %v2324
    %v3797 = vpack.c.b16 %v2333, %v2325
    %v3798 = vpack.c.b16 %v2334, %v2326
    %v3799 = vpack.c.b16 %v2335, %v2327
    %v3800 = vpack.c.b16 %v2336, %v2328
    %v3801 = vpack.c.b16 %v2337, %v2329
    %v3802 = vpack.c.b16 %v2338, %v2330
    %v3803 = vpack.c.b16 %v2347, %v2339
    %v3804 = vpack.c.b16 %v2348, %v2340
    %v3805 = vpack.c.b16 %v2349, %v2341
    %v3806 = vpack.c.b16 %v2350, %v2342
    %v3807 = vpack.c.b16 %v2351, %v2343
    %v3808 = vpack.c.b16 %v2352, %v2344
    %v3809 = vpack.c.b16 %v2353, %v2345
    %v3810 = vpack.c.b16 %v2354, %v2346
    %v3811 = vpack.c.b16 %v2363, %v2355
    %v3812 = vpack.c.b16 %v2364, %v2356
    %v3813 = vpack.c.b16 %v2365, %v2357
    %v3814 = vpack.c.b16 %v2366, %v2358
    %v3815 = vpack.c.b16 %v2367, %v2359
    %v3816 = vpack.c.b16 %v2368, %v2360
    %v3817 = vpack.c.b16 %v2369, %v2361
    %v3818 = vpack.c.b16 %v2370, %v2362
    %v3819 = vpack.c.b16 %v2379, %v2371
    %v3820 = vpack.c.b16 %v2380, %v2372
    %v3821 = vpack.c.b16 %v2381, %v2373
    %v3822 = vpack.c.b16 %v2382, %v2374
    %v3823 = vpack.c.b16 %v2383, %v2375
    %v3824 = vpack.c.b16 %v2384, %v2376
    %v3825 = vpack.c.b16 %v2385, %v2377
    %v3826 = vpack.c.b16 %v2386, %v2378
    %v3827 = vpack.c.b16 %v2395, %v2387
    %v3828 = vpack.c.b16 %v2396, %v2388
    %v3829 = vpack.c.b16 %v2397, %v2389
    %v3830 = vpack.c.b16 %v2398, %v2390
    %v3831 = vpack.c.b16 %v2399, %v2391
    %v3832 = vpack.c.b16 %v2400, %v2392
    %v3833 = vpack.c.b16 %v2401, %v2393
    %v3834 = vpack.c.b16 %v2402, %v2394
    %v3835 = vpack.c.b16 %v2411, %v2403
    %v3836 = vpack.c.b16 %v2412, %v2404
    %v3837 = vpack.c.b16 %v2413, %v2405
    %v3838 = vpack.c.b16 %v2414, %v2406
    %v3839 = vpack.c.b16 %v2415, %v2407
    %v3840 = vpack.c.b16 %v2416, %v2408
    %v3841 = vpack.c.b16 %v2417, %v2409
    %v3842 = vpack.c.b16 %v2418, %v2410
    %v3843 = vpack.c.b16 %v2427, %v2419
    %v3844 = vpack.c.b16 %v2428, %v2420
    %v3845 = vpack.c.b16 %v2429, %v2421
    %v3846 = vpack.c.b16 %v2430, %v2422
    %v3847 = vpack.c.b16 %v2431, %v2423
    %v3848 = vpack.c.b16 %v2432, %v2424
    %v3849 = vpack.c.b16 %v2433, %v2425
    %v3850 = vpack.c.b16 %v2434, %v2426
    %v3851 = vpack.c.b16 %v2443, %v2435
    %v3852 = vpack.c.b16 %v2444, %v2436
    %v3853 = vpack.c.b16 %v2445, %v2437
    %v3854 = vpack.c.b16 %v2446, %v2438
    %v3855 = vpack.c.b16 %v2447, %v2439
    %v3856 = vpack.c.b16 %v2448, %v2440
    %v3857 = vpack.c.b16 %v2449, %v2441
    %v3858 = vpack.c.b16 %v2450, %v2442
    %v3859 = vpack.c.b16 %v2459, %v2451
    %v3860 = vpack.c.b16 %v2460, %v2452
    %v3861 = vpack.c.b16 %v2461, %v2453
    %v3862 = vpack.c.b16 %v2462, %v2454
    %v3863 = vpack.c.b16 %v2463, %v2455
    %v3864 = vpack.c.b16 %v2464, %v2456
    %v3865 = vpack.c.b16 %v2465, %v2457
    %v3866 = vpack.c.b16 %v2466, %v2458
    %v3867 = vpack.c.b16 %v2475, %v2467
    %v3868 = vpack.c.b16 %v2476, %v2468
    %v3869 = vpack.c.b16 %v2477, %v2469
    %v3870 = vpack.c.b16 %v2478, %v2470
    %v3871 = vpack.c.b16 %v2479, %v2471
    %v3872 = vpack.c.b16 %v2480, %v2472
    %v3873 = vpack.c.b16 %v2481, %v2473
    %v3874 = vpack.c.b16 %v2482, %v2474
    %v3875 = vpack.c.b16 %v2491, %v2483
    %v3876 = vpack.c.b16 %v2492, %v2484
    %v3877 = vpack.c.b16 %v2493, %v2485
    %v3878 = vpack.c.b16 %v2494, %v2486
    %v3879 = vpack.c.b16 %v2495, %v2487
    %v3880 = vpack.c.b16 %v2496, %v2488
    %v3881 = vpack.c.b16 %v2497, %v2489
    %v3882 = vpack.c.b16 %v2498, %v2490
    %v3883 = vpack.c.b16 %v2507, %v2499
    %v3884 = vpack.c.b16 %v2508, %v2500
    %v3885 = vpack.c.b16 %v2509, %v2501
    %v3886 = vpack.c.b16 %v2510, %v2502
    %v3887 = vpack.c.b16 %v2511, %v2503
    %v3888 = vpack.c.b16 %v2512, %v2504
    %v3889 = vpack.c.b16 %v2513, %v2505
    %v3890 = vpack.c.b16 %v2514, %v2506
    %v3891 = vpack.c.b16 %v2523, %v2515
    %v3892 = vpack.c.b16 %v2524, %v2516
    %v3893 = vpack.c.b16 %v2525, %v2517
    %v3894 = vpack.c.b16 %v2526, %v2518
    %v3895 = vpack.c.b16 %v2527, %v2519
    %v3896 = vpack.c.b16 %v2528, %v2520
    %v3897 = vpack.c.b16 %v2529, %v2521
    %v3898 = vpack.c.b16 %v2530, %v2522
    %v3899 = vpack.c.b16 %v2539, %v2531
    %v3900 = vpack.c.b16 %v2540, %v2532
    %v3901 = vpack.c.b16 %v2541, %v2533
    %v3902 = vpack.c.b16 %v2542, %v2534
    %v3903 = vpack.c.b16 %v2543, %v2535
    %v3904 = vpack.c.b16 %v2544, %v2536
    %v3905 = vpack.c.b16 %v2545, %v2537
    %v3906 = vpack.c.b16 %v2546, %v2538
    %v3907 = vpack.c.b16 %v2555, %v2547
    %v3908 = vpack.c.b16 %v2556, %v2548
    %v3909 = vpack.c.b16 %v2557, %v2549
    %v3910 = vpack.c.b16 %v2558, %v2550
    %v3911 = vpack.c.b16 %v2559, %v2551
    %v3912 = vpack.c.b16 %v2560, %v2552
    %v3913 = vpack.c.b16 %v2561, %v2553
    %v3914 = vpack.c.b16 %v2562, %v2554
    %v3915 = vpack.c.b16 %v2571, %v2563
    %v3916 = vpack.c.b16 %v2572, %v2564
    %v3917 = vpack.c.b16 %v2573, %v2565
    %v3918 = vpack.c.b16 %v2574, %v2566
    %v3919 = vpack.c.b16 %v2575, %v2567
    %v3920 = vpack.c.b16 %v2576, %v2568
    %v3921 = vpack.c.b16 %v2577, %v2569
    %v3922 = vpack.c.b16 %v2578, %v2570
    %v3923 = vpack.c.b16 %v2587, %v2579
    %v3924 = vpack.c.b16 %v2588, %v2580
    %v3925 = vpack.c.b16 %v2589, %v2581
    %v3926 = vpack.c.b16 %v2590, %v2582
    %v3927 = vpack.c.b16 %v2591, %v2583
    %v3928 = vpack.c.b16 %v2592, %v2584
    %v3929 = vpack.c.b16 %v2593, %v2585
    %v3930 = vpack.c.b16 %v2594, %v2586
    %v3931 = vpack.c.b16 %v2603, %v2595
    %v3932 = vpack.c.b16 %v2604, %v2596
    %v3933 = vpack.c.b16 %v2605, %v2597
    %v3934 = vpack.c.b16 %v2606, %v2598
    %v3935 = vpack.c.b16 %v2607, %v2599
    %v3936 = vpack.c.b16 %v2608, %v2600
    %v3937 = vpack.c.b16 %v2609, %v2601
    %v3938 = vpack.c.b16 %v2610, %v2602
    %v3939 = vpack.c.b16 %v2619, %v2611
    %v3940 = vpack.c.b16 %v2620, %v2612
    %v3941 = vpack.c.b16 %v2621, %v2613
    %v3942 = vpack.c.b16 %v2622, %v2614
    %v3943 = vpack.c.b16 %v2623, %v2615
    %v3944 = vpack.c.b16 %v2624, %v2616
    %v3945 = vpack.c.b16 %v2625, %v2617
    %v3946 = vpack.c.b16 %v2626, %v2618
    %v3947 = vpack.c.b16 %v2635, %v2627
    %v3948 = vpack.c.b16 %v2636, %v2628
    %v3949 = vpack.c.b16 %v2637, %v2629
    %v3950 = vpack.c.b16 %v2638, %v2630
    %v3951 = vpack.c.b16 %v2639, %v2631
    %v3952 = vpack.c.b16 %v2640, %v2632
    %v3953 = vpack.c.b16 %v2641, %v2633
    %v3954 = vpack.c.b16 %v2642, %v2634
    %v3955 = vpack.c.b16 %v2651, %v2643
    %v3956 = vpack.c.b16 %v2652, %v2644
    %v3957 = vpack.c.b16 %v2653, %v2645
    %v3958 = vpack.c.b16 %v2654, %v2646
    %v3959 = vpack.c.b16 %v2655, %v2647
    %v3960 = vpack.c.b16 %v2656, %v2648
    %v3961 = vpack.c.b16 %v2657, %v2649
    %v3962 = vpack.c.b16 %v2658, %v2650
    %v3963 = vpack.c.b16 %v2667, %v2659
    %v3964 = vpack.c.b16 %v2668, %v2660
    %v3965 = vpack.c.b16 %v2669, %v2661
    %v3966 = vpack.c.b16 %v2670, %v2662
    %v3967 = vpack.c.b16 %v2671, %v2663
    %v3968 = vpack.c.b16 %v2672, %v2664
    %v3969 = vpack.c.b16 %v2673, %v2665
    %v3970 = vpack.c.b16 %v2674, %v2666
    %v3971 = vpack.c.b16 %v2683, %v2675
    %v3972 = vpack.c.b16 %v2684, %v2676
    %v3973 = vpack.c.b16 %v2685, %v2677
    %v3974 = vpack.c.b16 %v2686, %v2678
    %v3975 = vpack.c.b16 %v2687, %v2679
    %v3976 = vpack.c.b16 %v2688, %v2680
    %v3977 = vpack.c.b16 %v2689, %v2681
    %v3978 = vpack.c.b16 %v2690, %v2682
    %v3979 = vpack.c.b16 %v2699, %v2691
    %v3980 = vpack.c.b16 %v2700, %v2692
    %v3981 = vpack.c.b16 %v2701, %v2693
    %v3982 = vpack.c.b16 %v2702, %v2694
    %v3983 = vpack.c.b16 %v2703, %v2695
    %v3984 = vpack.c.b16 %v2704, %v2696
    %v3985 = vpack.c.b16 %v2705, %v2697
    %v3986 = vpack.c.b16 %v2706, %v2698
    %v3987 = vpack.c.b16 %v2715, %v2707
    %v3988 = vpack.c.b16 %v2716, %v2708
    %v3989 = vpack.c.b16 %v2717, %v2709
    %v3990 = vpack.c.b16 %v2718, %v2710
    %v3991 = vpack.c.b16 %v2719, %v2711
    %v3992 = vpack.c.b16 %v2720, %v2712
    %v3993 = vpack.c.b16 %v2721, %v2713
    %v3994 = vpack.c.b16 %v2722, %v2714
    %v3995 = vpack.c.b16 %v2731, %v2723
    %v3996 = vpack.c.b16 %v2732, %v2724
    %v3997 = vpack.c.b16 %v2733, %v2725
    %v3998 = vpack.c.b16 %v2734, %v2726
    %v3999 = vpack.c.b16 %v2735, %v2727
    %v4000 = vpack.c.b16 %v2736, %v2728
    %v4001 = vpack.c.b16 %v2737, %v2729
    %v4002 = vpack.c.b16 %v2738, %v2730
    %v4003 = vpack.c.b16 %v2747, %v2739
    %v4004 = vpack.c.b16 %v2748, %v2740
    %v4005 = vpack.c.b16 %v2749, %v2741
    %v4006 = vpack.c.b16 %v2750, %v2742
    %v4007 = vpack.c.b16 %v2751, %v2743
    %v4008 = vpack.c.b16 %v2752, %v2744
    %v4009 = vpack.c.b16 %v2753, %v2745
    %v4010 = vpack.c.b16 %v2754, %v2746
    %v4011 = vpack.c.b16 %v2763, %v2755
    %v4012 = vpack.c.b16 %v2764, %v2756
    %v4013 = vpack.c.b16 %v2765, %v2757
    %v4014 = vpack.c.b16 %v2766, %v2758
    %v4015 = vpack.c.b16 %v2767, %v2759
    %v4016 = vpack.c.b16 %v2768, %v2760
    %v4017 = vpack.c.b16 %v2769, %v2761
    %v4018 = vpack.c.b16 %v2770, %v2762
    %v4019 = vpack.c.b16 %v2779, %v2771
    %v4020 = vpack.c.b16 %v2780, %v2772
    %v4021 = vpack.c.b16 %v2781, %v2773
    %v4022 = vpack.c.b16 %v2782, %v2774
    %v4023 = vpack.c.b16 %v2783, %v2775
    %v4024 = vpack.c.b16 %v2784, %v2776
    %v4025 = vpack.c.b16 %v2785, %v2777
    %v4026 = vpack.c.b16 %v2786, %v2778
    %v4027 = vpack.c.b16 %v2795, %v2787
    %v4028 = vpack.c.b16 %v2796, %v2788
    %v4029 = vpack.c.b16 %v2797, %v2789
    %v4030 = vpack.c.b16 %v2798, %v2790
    %v4031 = vpack.c.b16 %v2799, %v2791
    %v4032 = vpack.c.b16 %v2800, %v2792
    %v4033 = vpack.c.b16 %v2801, %v2793
    %v4034 = vpack.c.b16 %v2802, %v2794
    %v4035 = vpack.c.b16 %v2811, %v2803
    %v4036 = vpack.c.b16 %v2812, %v2804
    %v4037 = vpack.c.b16 %v2813, %v2805
    %v4038 = vpack.c.b16 %v2814, %v2806
    %v4039 = vpack.c.b16 %v2815, %v2807
    %v4040 = vpack.c.b16 %v2816, %v2808
    %v4041 = vpack.c.b16 %v2817, %v2809
    %v4042 = vpack.c.b16 %v2818, %v2810
    %v4043 = vpack.c.b16 %v2827, %v2819
    %v4044 = vpack.c.b16 %v2828, %v2820
    %v4045 = vpack.c.b16 %v2829, %v2821
    %v4046 = vpack.c.b16 %v2830, %v2822
    %v4047 = vpack.c.b16 %v2831, %v2823
    %v4048 = vpack.c.b16 %v2832, %v2824
    %v4049 = vpack.c.b16 %v2833, %v2825
    %v4050 = vpack.c.b16 %v2834, %v2826
    %v4051 = vpack.c.b16 %v2843, %v2835
    %v4052 = vpack.c.b16 %v2844, %v2836
    %v4053 = vpack.c.b16 %v2845, %v2837
    %v4054 = vpack.c.b16 %v2846, %v2838
    %v4055 = vpack.c.b16 %v2847, %v2839
    %v4056 = vpack.c.b16 %v2848, %v2840
    %v4057 = vpack.c.b16 %v2849, %v2841
    %v4058 = vpack.c.b16 %v2850, %v2842
    %v4059 = vpack.c.b16 %v2859, %v2851
    %v4060 = vpack.c.b16 %v2860, %v2852
    %v4061 = vpack.c.b16 %v2861, %v2853
    %v4062 = vpack.c.b16 %v2862, %v2854
    %v4063 = vpack.c.b16 %v2863, %v2855
    %v4064 = vpack.c.b16 %v2864, %v2856
    %v4065 = vpack.c.b16 %v2865, %v2857
    %v4066 = vpack.c.b16 %v2866, %v2858
    %v4067 = vpack.c.b16 %v2875, %v2867
    %v4068 = vpack.c.b16 %v2876, %v2868
    %v4069 = vpack.c.b16 %v2877, %v2869
    %v4070 = vpack.c.b16 %v2878, %v2870
    %v4071 = vpack.c.b16 %v2879, %v2871
    %v4072 = vpack.c.b16 %v2880, %v2872
    %v4073 = vpack.c.b16 %v2881, %v2873
    %v4074 = vpack.c.b16 %v2882, %v2874
    %v4075 = vpack.c.b16 %v2891, %v2883
    %v4076 = vpack.c.b16 %v2892, %v2884
    %v4077 = vpack.c.b16 %v2893, %v2885
    %v4078 = vpack.c.b16 %v2894, %v2886
    %v4079 = vpack.c.b16 %v2895, %v2887
    %v4080 = vpack.c.b16 %v2896, %v2888
    %v4081 = vpack.c.b16 %v2897, %v2889
    %v4082 = vpack.c.b16 %v2898, %v2890
    %v4083 = vpack.c.b16 %v2907, %v2899
    %v4084 = vpack.c.b16 %v2908, %v2900
    %v4085 = vpack.c.b16 %v2909, %v2901
    %v4086 = vpack.c.b16 %v2910, %v2902
    %v4087 = vpack.c.b16 %v2911, %v2903
    %v4088 = vpack.c.b16 %v2912, %v2904
    %v4089 = vpack.c.b16 %v2913, %v2905
    %v4090 = vpack.c.b16 %v2914, %v2906
    %v4091 = vpack.c.b16 %v2923, %v2915
    %v4092 = vpack.c.b16 %v2924, %v2916
    %v4093 = vpack.c.b16 %v2925, %v2917
    %v4094 = vpack.c.b16 %v2926, %v2918
    %v4095 = vpack.c.b16 %v2927, %v2919
    %v4096 = vpack.c.b16 %v2928, %v2920
    %v4097 = vpack.c.b16 %v2929, %v2921
    %v4098 = vpack.c.b16 %v2930, %v2922
    %v4099 = vpack.c.b16 %v2939, %v2931
    %v4100 = vpack.c.b16 %v2940, %v2932
    %v4101 = vpack.c.b16 %v2941, %v2933
    %v4102 = vpack.c.b16 %v2942, %v2934
    %v4103 = vpack.c.b16 %v2943, %v2935
    %v4104 = vpack.c.b16 %v2944, %v2936
    %v4105 = vpack.c.b16 %v2945, %v2937
    %v4106 = vpack.c.b16 %v2946, %v2938
    %v4107 = vpack.c.b16 %v2955, %v2947
    %v4108 = vpack.c.b16 %v2956, %v2948
    %v4109 = vpack.c.b16 %v2957, %v2949
    %v4110 = vpack.c.b16 %v2958, %v2950
    %v4111 = vpack.c.b16 %v2959, %v2951
    %v4112 = vpack.c.b16 %v2960, %v2952
    %v4113 = vpack.c.b16 %v2961, %v2953
    %v4114 = vpack.c.b16 %v2962, %v2954
    %v4115 = vpack.c.b16 %v2971, %v2963
    %v4116 = vpack.c.b16 %v2972, %v2964
    %v4117 = vpack.c.b16 %v2973, %v2965
    %v4118 = vpack.c.b16 %v2974, %v2966
    %v4119 = vpack.c.b16 %v2975, %v2967
    %v4120 = vpack.c.b16 %v2976, %v2968
    %v4121 = vpack.c.b16 %v2977, %v2969
    %v4122 = vpack.c.b16 %v2978, %v2970
    %v4123 = vpack.c.b16 %v2987, %v2979
    %v4124 = vpack.c.b16 %v2988, %v2980
    %v4125 = vpack.c.b16 %v2989, %v2981
    %v4126 = vpack.c.b16 %v2990, %v2982
    %v4127 = vpack.c.b16 %v2991, %v2983
    %v4128 = vpack.c.b16 %v2992, %v2984
    %v4129 = vpack.c.b16 %v2993, %v2985
    %v4130 = vpack.c.b16 %v2994, %v2986
    %v4131 = vpack.c.b16 %v3003, %v2995
    %v4132 = vpack.c.b16 %v3004, %v2996
    %v4133 = vpack.c.b16 %v3005, %v2997
    %v4134 = vpack.c.b16 %v3006, %v2998
    %v4135 = vpack.c.b16 %v3007, %v2999
    %v4136 = vpack.c.b16 %v3008, %v3000
    %v4137 = vpack.c.b16 %v3009, %v3001
    %v4138 = vpack.c.b16 %v3010, %v3002
    %v4139 = vpack.c.b16 %v3019, %v3011
    %v4140 = vpack.c.b16 %v3020, %v3012
    %v4141 = vpack.c.b16 %v3021, %v3013
    %v4142 = vpack.c.b16 %v3022, %v3014
    %v4143 = vpack.c.b16 %v3023, %v3015
    %v4144 = vpack.c.b16 %v3024, %v3016
    %v4145 = vpack.c.b16 %v3025, %v3017
    %v4146 = vpack.c.b16 %v3026, %v3018
    %v4147 = vpack.c.b16 %v3035, %v3027
    %v4148 = vpack.c.b16 %v3036, %v3028
    %v4149 = vpack.c.b16 %v3037, %v3029
    %v4150 = vpack.c.b16 %v3038, %v3030
    %v4151 = vpack.c.b16 %v3039, %v3031
    %v4152 = vpack.c.b16 %v3040, %v3032
    %v4153 = vpack.c.b16 %v3041, %v3033
    %v4154 = vpack.c.b16 %v3042, %v3034
    %v4155 = vpack.c.b16 %v3051, %v3043
    %v4156 = vpack.c.b16 %v3052, %v3044
    %v4157 = vpack.c.b16 %v3053, %v3045
    %v4158 = vpack.c.b16 %v3054, %v3046
    %v4159 = vpack.c.b16 %v3055, %v3047
    %v4160 = vpack.c.b16 %v3056, %v3048
    %v4161 = vpack.c.b16 %v3057, %v3049
    %v4162 = vpack.c.b16 %v3058, %v3050
    %v4163 = vpack.c.b16 %v3067, %v3059
    %v4164 = vpack.c.b16 %v3068, %v3060
    %v4165 = vpack.c.b16 %v3069, %v3061
    %v4166 = vpack.c.b16 %v3070, %v3062
    %v4167 = vpack.c.b16 %v3071, %v3063
    %v4168 = vpack.c.b16 %v3072, %v3064
    %v4169 = vpack.c.b16 %v3073, %v3065
    %v4170 = vpack.c.b16 %v3074, %v3066
    %v4171 = vpack.c.b16 %v3083, %v3075
    %v4172 = vpack.c.b16 %v3084, %v3076
    %v4173 = vpack.c.b16 %v3085, %v3077
    %v4174 = vpack.c.b16 %v3086, %v3078
    %v4175 = vpack.c.b16 %v3087, %v3079
    %v4176 = vpack.c.b16 %v3088, %v3080
    %v4177 = vpack.c.b16 %v3089, %v3081
    %v4178 = vpack.c.b16 %v3090, %v3082
    %v4179 = vpack.c.b16 %v3099, %v3091
    %v4180 = vpack.c.b16 %v3100, %v3092
    %v4181 = vpack.c.b16 %v3101, %v3093
    %v4182 = vpack.c.b16 %v3102, %v3094
    %v4183 = vpack.c.b16 %v3103, %v3095
    %v4184 = vpack.c.b16 %v3104, %v3096
    %v4185 = vpack.c.b16 %v3105, %v3097
    %v4186 = vpack.c.b16 %v3106, %v3098
    %v4187 = vpack.c.b16 %v3115, %v3107
    %v4188 = vpack.c.b16 %v3116, %v3108
    %v4189 = vpack.c.b16 %v3117, %v3109
    %v4190 = vpack.c.b16 %v3118, %v3110
    %v4191 = vpack.c.b16 %v3119, %v3111
    %v4192 = vpack.c.b16 %v3120, %v3112
    %v4193 = vpack.c.b16 %v3121, %v3113
    %v4194 = vpack.c.b16 %v3122, %v3114
    %v4195 = vpack.c.b16 %v3131, %v3123
    %v4196 = vpack.c.b16 %v3132, %v3124
    %v4197 = vpack.c.b16 %v3133, %v3125
    %v4198 = vpack.c.b16 %v3134, %v3126
    %v4199 = vpack.c.b16 %v3135, %v3127
    %v4200 = vpack.c.b16 %v3136, %v3128
    %v4201 = vpack.c.b16 %v3137, %v3129
    %v4202 = vpack.c.b16 %v3138, %v3130
    %v4203 = vpack.c.b16 %v3147, %v3139
    %v4204 = vpack.c.b16 %v3148, %v3140
    %v4205 = vpack.c.b16 %v3149, %v3141
    %v4206 = vpack.c.b16 %v3150, %v3142
    %v4207 = vpack.c.b16 %v3151, %v3143
    %v4208 = vpack.c.b16 %v3152, %v3144
    %v4209 = vpack.c.b16 %v3153, %v3145
    %v4210 = vpack.c.b16 %v3154, %v3146
    %v4211 = vpack.c.b16 %v3163, %v3155
    %v4212 = vpack.c.b16 %v3164, %v3156
    %v4213 = vpack.c.b16 %v3165, %v3157
    %v4214 = vpack.c.b16 %v3166, %v3158
    %v4215 = vpack.c.b16 %v3167, %v3159
    %v4216 = vpack.c.b16 %v3168, %v3160
    %v4217 = vpack.c.b16 %v3169, %v3161
    %v4218 = vpack.c.b16 %v3170, %v3162
    %v4219 = vpack.c.b16 %v3179, %v3171
    %v4220 = vpack.c.b16 %v3180, %v3172
    %v4221 = vpack.c.b16 %v3181, %v3173
    %v4222 = vpack.c.b16 %v3182, %v3174
    %v4223 = vpack.c.b16 %v3183, %v3175
    %v4224 = vpack.c.b16 %v3184, %v3176
    %v4225 = vpack.c.b16 %v3185, %v3177
    %v4226 = vpack.c.b16 %v3186, %v3178
    %v4227 = vpack.c.b16 %v3195, %v3187
    %v4228 = vpack.c.b16 %v3196, %v3188
    %v4229 = vpack.c.b16 %v3197, %v3189
    %v4230 = vpack.c.b16 %v3198, %v3190
    %v4231 = vpack.c.b16 %v3199, %v3191
    %v4232 = vpack.c.b16 %v3200, %v3192
    %v4233 = vpack.c.b16 %v3201, %v3193
    %v4234 = vpack.c.b16 %v3202, %v3194
    %v4235 = vpack.c.b16 %v3211, %v3203
    %v4236 = vpack.c.b16 %v3212, %v3204
    %v4237 = vpack.c.b16 %v3213, %v3205
    %v4238 = vpack.c.b16 %v3214, %v3206
    %v4239 = vpack.c.b16 %v3215, %v3207
    %v4240 = vpack.c.b16 %v3216, %v3208
    %v4241 = vpack.c.b16 %v3217, %v3209
    %v4242 = vpack.c.b16 %v3218, %v3210
    %v4243 = vpack.c.b16 %v3227, %v3219
    %v4244 = vpack.c.b16 %v3228, %v3220
    %v4245 = vpack.c.b16 %v3229, %v3221
    %v4246 = vpack.c.b16 %v3230, %v3222
    %v4247 = vpack.c.b16 %v3231, %v3223
    %v4248 = vpack.c.b16 %v3232, %v3224
    %v4249 = vpack.c.b16 %v3233, %v3225
    %v4250 = vpack.c.b16 %v3234, %v3226
    %v4251 = vpack.c.b16 %v3243, %v3235
    %v4252 = vpack.c.b16 %v3244, %v3236
    %v4253 = vpack.c.b16 %v3245, %v3237
    %v4254 = vpack.c.b16 %v3246, %v3238
    %v4255 = vpack.c.b16 %v3247, %v3239
    %v4256 = vpack.c.b16 %v3248, %v3240
    %v4257 = vpack.c.b16 %v3249, %v3241
    %v4258 = vpack.c.b16 %v3250, %v3242
    %v4259 = vpack.c.b16 %v3259, %v3251
    %v4260 = vpack.c.b16 %v3260, %v3252
    %v4261 = vpack.c.b16 %v3261, %v3253
    %v4262 = vpack.c.b16 %v3262, %v3254
    %v4263 = vpack.c.b16 %v3263, %v3255
    %v4264 = vpack.c.b16 %v3264, %v3256
    %v4265 = vpack.c.b16 %v3265, %v3257
    %v4266 = vpack.c.b16 %v3266, %v3258
    %v4267 = vpack.c.b16 %v3275, %v3267
    %v4268 = vpack.c.b16 %v3276, %v3268
    %v4269 = vpack.c.b16 %v3277, %v3269
    %v4270 = vpack.c.b16 %v3278, %v3270
    %v4271 = vpack.c.b16 %v3279, %v3271
    %v4272 = vpack.c.b16 %v3280, %v3272
    %v4273 = vpack.c.b16 %v3281, %v3273
    %v4274 = vpack.c.b16 %v3282, %v3274
    %v4275 = vpack.c.b16 %v3291, %v3283
    %v4276 = vpack.c.b16 %v3292, %v3284
    %v4277 = vpack.c.b16 %v3293, %v3285
    %v4278 = vpack.c.b16 %v3294, %v3286
    %v4279 = vpack.c.b16 %v3295, %v3287
    %v4280 = vpack.c.b16 %v3296, %v3288
    %v4281 = vpack.c.b16 %v3297, %v3289
    %v4282 = vpack.c.b16 %v3298, %v3290
    %v4283 = vpack.c.b16 %v3307, %v3299
    %v4284 = vpack.c.b16 %v3308, %v3300
    %v4285 = vpack.c.b16 %v3309, %v3301
    %v4286 = vpack.c.b16 %v3310, %v3302
    %v4287 = vpack.c.b16 %v3311, %v3303
    %v4288 = vpack.c.b16 %v3312, %v3304
    %v4289 = vpack.c.b16 %v3313, %v3305
    %v4290 = vpack.c.b16 %v3314, %v3306
    %v4291 = vpack.c.b16 %v3323, %v3315
    %v4292 = vpack.c.b16 %v3324, %v3316
    %v4293 = vpack.c.b16 %v3325, %v3317
    %v4294 = vpack.c.b16 %v3326, %v3318
    %v4295 = vpack.c.b16 %v3327, %v3319
    %v4296 = vpack.c.b16 %v3328, %v3320
    %v4297 = vpack.c.b16 %v3329, %v3321
    %v4298 = vpack.c.b16 %v3330, %v3322
    %v4299 = vpack.c.b16 %v3339, %v3331
    %v4300 = vpack.c.b16 %v3340, %v3332
    %v4301 = vpack.c.b16 %v3341, %v3333
    %v4302 = vpack.c.b16 %v3342, %v3334
    %v4303 = vpack.c.b16 %v3343, %v3335
    %v4304 = vpack.c.b16 %v3344, %v3336
    %v4305 = vpack.c.b16 %v3345, %v3337
    %v4306 = vpack.c.b16 %v3346, %v3338
    %v4307 = vpack.c.b16 %v3355, %v3347
    %v4308 = vpack.c.b16 %v3356, %v3348
    %v4309 = vpack.c.b16 %v3357, %v3349
    %v4310 = vpack.c.b16 %v3358, %v3350
    %v4311 = vpack.c.b16 %v3359, %v3351
    %v4312 = vpack.c.b16 %v3360, %v3352
    %v4313 = vpack.c.b16 %v3361, %v3353
    %v4314 = vpack.c.b16 %v3362, %v3354
    %v4315 = vpack.c.b16 %v3371, %v3363
    %v4316 = vpack.c.b16 %v3372, %v3364
    %v4317 = vpack.c.b16 %v3373, %v3365
    %v4318 = vpack.c.b16 %v3374, %v3366
    %v4319 = vpack.c.b16 %v3375, %v3367
    %v4320 = vpack.c.b16 %v3376, %v3368
    %v4321 = vpack.c.b16 %v3377, %v3369
    %v4322 = vpack.c.b16 %v3378, %v3370
    %v4323 = vpack.c.b16 %v3387, %v3379
    %v4324 = vpack.c.b16 %v3388, %v3380
    %v4325 = vpack.c.b16 %v3389, %v3381
    %v4326 = vpack.c.b16 %v3390, %v3382
    %v4327 = vpack.c.b16 %v3391, %v3383
    %v4328 = vpack.c.b16 %v3392, %v3384
    %v4329 = vpack.c.b16 %v3393, %v3385
    %v4330 = vpack.c.b16 %v3394, %v3386
    %v4331 = vpack.c.b16 %v3403, %v3395
    %v4332 = vpack.c.b16 %v3404, %v3396
    %v4333 = vpack.c.b16 %v3405, %v3397
    %v4334 = vpack.c.b16 %v3406, %v3398
    %v4335 = vpack.c.b16 %v3407, %v3399
    %v4336 = vpack.c.b16 %v3408, %v3400
    %v4337 = vpack.c.b16 %v3409, %v3401
    %v4338 = vpack.c.b16 %v3410, %v3402
    %v4339 = vpack.c.b16 %v3419, %v3411
    %v4340 = vpack.c.b16 %v3420, %v3412
    %v4341 = vpack.c.b16 %v3421, %v3413
    %v4342 = vpack.c.b16 %v3422, %v3414
    %v4343 = vpack.c.b16 %v3423, %v3415
    %v4344 = vpack.c.b16 %v3424, %v3416
    %v4345 = vpack.c.b16 %v3425, %v3417
    %v4346 = vpack.c.b16 %v3426, %v3418
    %v4347 = vpack.c.b16 %v3435, %v3427
    %v4348 = vpack.c.b16 %v3436, %v3428
    %v4349 = vpack.c.b16 %v3437, %v3429
    %v4350 = vpack.c.b16 %v3438, %v3430
    %v4351 = vpack.c.b16 %v3439, %v3431
    %v4352 = vpack.c.b16 %v3440, %v3432
    %v4353 = vpack.c.b16 %v3441, %v3433
    %v4354 = vpack.c.b16 %v3442, %v3434
    %v4355 = vpack.c.b16 %v3451, %v3443
    %v4356 = vpack.c.b16 %v3452, %v3444
    %v4357 = vpack.c.b16 %v3453, %v3445
    %v4358 = vpack.c.b16 %v3454, %v3446
    %v4359 = vpack.c.b16 %v3455, %v3447
    %v4360 = vpack.c.b16 %v3456, %v3448
    %v4361 = vpack.c.b16 %v3457, %v3449
    %v4362 = vpack.c.b16 %v3458, %v3450
    %v4363 = vpack.c.b16 %v3467, %v3459
    %v4364 = vpack.c.b16 %v3468, %v3460
    %v4365 = vpack.c.b16 %v3469, %v3461
    %v4366 = vpack.c.b16 %v3470, %v3462
    %v4367 = vpack.c.b16 %v3471, %v3463
    %v4368 = vpack.c.b16 %v3472, %v3464
    %v4369 = vpack.c.b16 %v3473, %v3465
    %v4370 = vpack.c.b16 %v3474, %v3466
    %v4371 = vpack.c.b16 %v3483, %v3475
    %v4372 = vpack.c.b16 %v3484, %v3476
    %v4373 = vpack.c.b16 %v3485, %v3477
    %v4374 = vpack.c.b16 %v3486, %v3478
    %v4375 = vpack.c.b16 %v3487, %v3479
    %v4376 = vpack.c.b16 %v3488, %v3480
    %v4377 = vpack.c.b16 %v3489, %v3481
    %v4378 = vpack.c.b16 %v3490, %v3482
    %v4379 = vpack.c.b16 %v3499, %v3491
    %v4380 = vpack.c.b16 %v3500, %v3492
    %v4381 = vpack.c.b16 %v3501, %v3493
    %v4382 = vpack.c.b16 %v3502, %v3494
    %v4383 = vpack.c.b16 %v3503, %v3495
    %v4384 = vpack.c.b16 %v3504, %v3496
    %v4385 = vpack.c.b16 %v3505, %v3497
    %v4386 = vpack.c.b16 %v3506, %v3498
    %v4387 = vpack.c.b16 %v3515, %v3507
    %v4388 = vpack.c.b16 %v3516, %v3508
    %v4389 = vpack.c.b16 %v3517, %v3509
    %v4390 = vpack.c.b16 %v3518, %v3510
    %v4391 = vpack.c.b16 %v3519, %v3511
    %v4392 = vpack.c.b16 %v3520, %v3512
    %v4393 = vpack.c.b16 %v3521, %v3513
    %v4394 = vpack.c.b16 %v3522, %v3514
    %v4395 = vpack.c.b16 %v3531, %v3523
    %v4396 = vpack.c.b16 %v3532, %v3524
    %v4397 = vpack.c.b16 %v3533, %v3525
    %v4398 = vpack.c.b16 %v3534, %v3526
    %v4399 = vpack.c.b16 %v3535, %v3527
    %v4400 = vpack.c.b16 %v3536, %v3528
    %v4401 = vpack.c.b16 %v3537, %v3529
    %v4402 = vpack.c.b16 %v3538, %v3530
    %v4403 = vpack.c.b16 %v3547, %v3539
    %v4404 = vpack.c.b16 %v3548, %v3540
    %v4405 = vpack.c.b16 %v3549, %v3541
    %v4406 = vpack.c.b16 %v3550, %v3542
    %v4407 = vpack.c.b16 %v3551, %v3543
    %v4408 = vpack.c.b16 %v3552, %v3544
    %v4409 = vpack.c.b16 %v3553, %v3545
    %v4410 = vpack.c.b16 %v3554, %v3546
    %v4411 = vpack.c.b16 %v3563, %v3555
    %v4412 = vpack.c.b16 %v3564, %v3556
    %v4413 = vpack.c.b16 %v3565, %v3557
    %v4414 = vpack.c.b16 %v3566, %v3558
    %v4415 = vpack.c.b16 %v3567, %v3559
    %v4416 = vpack.c.b16 %v3568, %v3560
    %v4417 = vpack.c.b16 %v3569, %v3561
    %v4418 = vpack.c.b16 %v3570, %v3562
    %v4419 = vpack.c.b16 %v3579, %v3571
    %v4420 = vpack.c.b16 %v3580, %v3572
    %v4421 = vpack.c.b16 %v3581, %v3573
    %v4422 = vpack.c.b16 %v3582, %v3574
    %v4423 = vpack.c.b16 %v3583, %v3575
    %v4424 = vpack.c.b16 %v3584, %v3576
    %v4425 = vpack.c.b16 %v3585, %v3577
    %v4426 = vpack.c.b16 %v3586, %v3578
    %v4427 = vpack.c.b16 %v3595, %v3587
    %v4428 = vpack.c.b16 %v3596, %v3588
    %v4429 = vpack.c.b16 %v3597, %v3589
    %v4430 = vpack.c.b16 %v3598, %v3590
    %v4431 = vpack.c.b16 %v3599, %v3591
    %v4432 = vpack.c.b16 %v3600, %v3592
    %v4433 = vpack.c.b16 %v3601, %v3593
    %v4434 = vpack.c.b16 %v3602, %v3594
    %5267 = vmatprep.subr.bf16.mxu0 %v3660
    %5268 = vmatpush1.bf16.msra.mxu0 %v3659
    %5269 = vmatprep.subr.bf16.mxu0 %v3652
    %5270 = vmatpush1.bf16.msra.mxu0 %v3651
    %5271 = vmatprep.subr.bf16.mxu0 %v3644
    %5272 = vmatpush1.bf16.msra.mxu0 %v3643
    %5273 = vmatprep.subr.bf16.mxu0 %v3636
    %5274 = vmatpush1.bf16.msra.mxu0 %v3635
    %5275 = vmatprep.subr.bf16.mxu0 %v3628
    %5276 = vmatpush1.bf16.msra.mxu0 %v3627
    %5277 = vmatprep.subr.bf16.mxu0 %v3620
    %5278 = vmatpush1.bf16.msra.mxu0 %v3619
    %5279 = vmatprep.subr.bf16.mxu0 %v3612
    %5280 = vmatpush1.bf16.msra.mxu0 %v3611
    %5281 = vmatprep.subr.bf16.mxu0 %v3604
    %5282 = vmatpush1.bf16.msra.mxu0 %v3603
    %5283 = vmatprep.subr.bf16.mxu0 %v3724
    %5284 = vmatpush2.bf16.msra.mxu0 %v3723
    %5285 = vmatprep.subr.bf16.mxu0 %v3716
    %5286 = vmatpush2.bf16.msra.mxu0 %v3715
    %5287 = vmatprep.subr.bf16.mxu0 %v3708
    %5288 = vmatpush2.bf16.msra.mxu0 %v3707
    %5289 = vmatprep.subr.bf16.mxu0 %v3700
    %5290 = vmatpush2.bf16.msra.mxu0 %v3699
    %5291 = vmatprep.subr.bf16.mxu0 %v3692
    %5292 = vmatpush2.bf16.msra.mxu0 %v3691
    %5293 = vmatprep.subr.bf16.mxu0 %v3684
    %5294 = vmatpush2.bf16.msra.mxu0 %v3683
    %5295 = vmatprep.subr.bf16.mxu0 %v3676
    %5296 = vmatpush2.bf16.msra.mxu0 %v3675
    %5297 = vmatprep.subr.bf16.mxu0 %v3668
    %5298 = vmatpush2.bf16.msra.mxu0 %v3667
    %5299 = vmatprep.mubr.bf16.mxu0 %v1056
    %5300 = vmatmul.mubr.bf16.gmra.mxu0 %v1055
    %v5301 = vpop.f32.mrf.mxu0
    %v5302 = vadd.f32 %v958, %v5301
    %v5303 = vpop.f32.mrf.mxu0
    %v5304 = vadd.f32 %v962, %v5303
    %v5305 = vpop.f32.mrf.mxu0
    %v5306 = vadd.f32 %v958, %v5305
    %v5307 = vpop.f32.mrf.mxu0
    %v5308 = vadd.f32 %v962, %v5307
    %5309 = vmatprep.mubr.bf16.mxu0 %v1069
    %5310 = vmatmul.mubr.bf16.gmra.mxu0 %v1068
    %v5311 = vpop.f32.mrf.mxu0
    %v5312 = vadd.f32 %v958, %v5311
    %v5313 = vpop.f32.mrf.mxu0
    %v5314 = vadd.f32 %v962, %v5313
    %v5315 = vpop.f32.mrf.mxu0
    %v5316 = vpop.f32.mrf.mxu0
    %5317 = vdwg.mxu0
    %5318 = vmatprep.subr.bf16.mxu0 %v3788
    %5319 = vmatpush1.bf16.msra.mxu0 %v3787
    %5320 = vmatprep.subr.bf16.mxu0 %v3780
    %5321 = vmatpush1.bf16.msra.mxu0 %v3779
    %5322 = vmatprep.subr.bf16.mxu0 %v3772
    %5323 = vmatpush1.bf16.msra.mxu0 %v3771
    %5324 = vmatprep.subr.bf16.mxu0 %v3764
    %5325 = vmatpush1.bf16.msra.mxu0 %v3763
    %5326 = vmatprep.subr.bf16.mxu0 %v3756
    %5327 = vmatpush1.bf16.msra.mxu0 %v3755
    %5328 = vmatprep.subr.bf16.mxu0 %v3748
    %5329 = vmatpush1.bf16.msra.mxu0 %v3747
    %5330 = vmatprep.subr.bf16.mxu0 %v3740
    %5331 = vmatpush1.bf16.msra.mxu0 %v3739
    %5332 = vmatprep.subr.bf16.mxu0 %v3732
    %5333 = vmatpush1.bf16.msra.mxu0 %v3731
    %5334 = vmatprep.subr.bf16.mxu0 %v3852
    %5335 = vmatpush2.bf16.msra.mxu0 %v3851
    %5336 = vmatprep.subr.bf16.mxu0 %v3844
    %5337 = vmatpush2.bf16.msra.mxu0 %v3843
    %5338 = vmatprep.subr.bf16.mxu0 %v3836
    %5339 = vmatpush2.bf16.msra.mxu0 %v3835
    %5340 = vmatprep.subr.bf16.mxu0 %v3828
    %5341 = vmatpush2.bf16.msra.mxu0 %v3827
    %5342 = vmatprep.subr.bf16.mxu0 %v3820
    %5343 = vmatpush2.bf16.msra.mxu0 %v3819
    %5344 = vmatprep.subr.bf16.mxu0 %v3812
    %5345 = vmatpush2.bf16.msra.mxu0 %v3811
    %5346 = vmatprep.subr.bf16.mxu0 %v3804
    %5347 = vmatpush2.bf16.msra.mxu0 %v3803
    %5348 = vmatprep.subr.bf16.mxu0 %v3796
    %5349 = vmatpush2.bf16.msra.mxu0 %v3795
    %5350 = vmatprep.mubr.bf16.mxu0 %v1058
    %5351 = vmatmul.mubr.bf16.gmra.mxu0 %v1057
    %v5352 = vpop.f32.mrf.mxu0
    %v5353 = vadd.f32 %v5302, %v5352
    %v5354 = vpop.f32.mrf.mxu0
    %v5355 = vadd.f32 %v5304, %v5354
    %v5356 = vpop.f32.mrf.mxu0
    %v5357 = vadd.f32 %v5306, %v5356
    %v5358 = vpop.f32.mrf.mxu0
    %v5359 = vadd.f32 %v5308, %v5358
    %5360 = vmatprep.mubr.bf16.mxu0 %v1071
    %5361 = vmatmul.mubr.bf16.gmra.mxu0 %v1070
    %v5362 = vpop.f32.mrf.mxu0
    %v5363 = vadd.f32 %v5312, %v5362
    %v5364 = vpop.f32.mrf.mxu0
    %v5365 = vadd.f32 %v5314, %v5364
    %v5366 = vpop.f32.mrf.mxu0
    %v5367 = vpop.f32.mrf.mxu0
    %5368 = vdwg.mxu0
    %5369 = vmatprep.subr.bf16.mxu0 %v3916
    %5370 = vmatpush1.bf16.msra.mxu0 %v3915
    %5371 = vmatprep.subr.bf16.mxu0 %v3908
    %5372 = vmatpush1.bf16.msra.mxu0 %v3907
    %5373 = vmatprep.subr.bf16.mxu0 %v3900
    %5374 = vmatpush1.bf16.msra.mxu0 %v3899
    %5375 = vmatprep.subr.bf16.mxu0 %v3892
    %5376 = vmatpush1.bf16.msra.mxu0 %v3891
    %5377 = vmatprep.subr.bf16.mxu0 %v3884
    %5378 = vmatpush1.bf16.msra.mxu0 %v3883
    %5379 = vmatprep.subr.bf16.mxu0 %v3876
    %5380 = vmatpush1.bf16.msra.mxu0 %v3875
    %5381 = vmatprep.subr.bf16.mxu0 %v3868
    %5382 = vmatpush1.bf16.msra.mxu0 %v3867
    %5383 = vmatprep.subr.bf16.mxu0 %v3860
    %5384 = vmatpush1.bf16.msra.mxu0 %v3859
    %5385 = vmatprep.subr.bf16.mxu0 %v3980
    %5386 = vmatpush2.bf16.msra.mxu0 %v3979
    %5387 = vmatprep.subr.bf16.mxu0 %v3972
    %5388 = vmatpush2.bf16.msra.mxu0 %v3971
    %5389 = vmatprep.subr.bf16.mxu0 %v3964
    %5390 = vmatpush2.bf16.msra.mxu0 %v3963
    %5391 = vmatprep.subr.bf16.mxu0 %v3956
    %5392 = vmatpush2.bf16.msra.mxu0 %v3955
    %5393 = vmatprep.subr.bf16.mxu0 %v3948
    %5394 = vmatpush2.bf16.msra.mxu0 %v3947
    %5395 = vmatprep.subr.bf16.mxu0 %v3940
    %5396 = vmatpush2.bf16.msra.mxu0 %v3939
    %5397 = vmatprep.subr.bf16.mxu0 %v3932
    %5398 = vmatpush2.bf16.msra.mxu0 %v3931
    %5399 = vmatprep.subr.bf16.mxu0 %v3924
    %5400 = vmatpush2.bf16.msra.mxu0 %v3923
    %5401 = vmatprep.mubr.bf16.mxu0 %v1060
    %5402 = vmatmul.mubr.bf16.gmra.mxu0 %v1059
    %v5403 = vpop.f32.mrf.mxu0
    %v5404 = vadd.f32 %v5353, %v5403
    %v5405 = vpop.f32.mrf.mxu0
    %v5406 = vadd.f32 %v5355, %v5405
    %v5407 = vpop.f32.mrf.mxu0
    %v5408 = vadd.f32 %v5357, %v5407
    %v5409 = vpop.f32.mrf.mxu0
    %v5410 = vadd.f32 %v5359, %v5409
    %5411 = vmatprep.mubr.bf16.mxu0 %v1073
    %5412 = vmatmul.mubr.bf16.gmra.mxu0 %v1072
    %v5413 = vpop.f32.mrf.mxu0
    %v5414 = vadd.f32 %v5363, %v5413
    %v5415 = vpop.f32.mrf.mxu0
    %v5416 = vadd.f32 %v5365, %v5415
    %v5417 = vpop.f32.mrf.mxu0
    %v5418 = vpop.f32.mrf.mxu0
    %5419 = vdwg.mxu0
    %5420 = vmatprep.subr.bf16.mxu0 %v4044
    %5421 = vmatpush1.bf16.msra.mxu0 %v4043
    %5422 = vmatprep.subr.bf16.mxu0 %v4036
    %5423 = vmatpush1.bf16.msra.mxu0 %v4035
    %5424 = vmatprep.subr.bf16.mxu0 %v4028
    %5425 = vmatpush1.bf16.msra.mxu0 %v4027
    %5426 = vmatprep.subr.bf16.mxu0 %v4020
    %5427 = vmatpush1.bf16.msra.mxu0 %v4019
    %5428 = vmatprep.subr.bf16.mxu0 %v4012
    %5429 = vmatpush1.bf16.msra.mxu0 %v4011
    %5430 = vmatprep.subr.bf16.mxu0 %v4004
    %5431 = vmatpush1.bf16.msra.mxu0 %v4003
    %5432 = vmatprep.subr.bf16.mxu0 %v3996
    %5433 = vmatpush1.bf16.msra.mxu0 %v3995
    %5434 = vmatprep.subr.bf16.mxu0 %v3988
    %5435 = vmatpush1.bf16.msra.mxu0 %v3987
    %5436 = vmatprep.subr.bf16.mxu0 %v4108
    %5437 = vmatpush2.bf16.msra.mxu0 %v4107
    %5438 = vmatprep.subr.bf16.mxu0 %v4100
    %5439 = vmatpush2.bf16.msra.mxu0 %v4099
    %5440 = vmatprep.subr.bf16.mxu0 %v4092
    %5441 = vmatpush2.bf16.msra.mxu0 %v4091
    %5442 = vmatprep.subr.bf16.mxu0 %v4084
    %5443 = vmatpush2.bf16.msra.mxu0 %v4083
    %5444 = vmatprep.subr.bf16.mxu0 %v4076
    %5445 = vmatpush2.bf16.msra.mxu0 %v4075
    %5446 = vmatprep.subr.bf16.mxu0 %v4068
    %5447 = vmatpush2.bf16.msra.mxu0 %v4067
    %5448 = vmatprep.subr.bf16.mxu0 %v4060
    %5449 = vmatpush2.bf16.msra.mxu0 %v4059
    %5450 = vmatprep.subr.bf16.mxu0 %v4052
    %5451 = vmatpush2.bf16.msra.mxu0 %v4051
    %5452 = vmatprep.mubr.bf16.mxu0 %v1062
    %5453 = vmatmul.mubr.bf16.gmra.mxu0 %v1061
    %v5454 = vpop.f32.mrf.mxu0
    %v5455 = vadd.f32 %v5404, %v5454
    %v5456 = vpop.f32.mrf.mxu0
    %v5457 = vadd.f32 %v5406, %v5456
    %v5458 = vpop.f32.mrf.mxu0
    %v5459 = vadd.f32 %v5408, %v5458
    %v5460 = vpop.f32.mrf.mxu0
    %v5461 = vadd.f32 %v5410, %v5460
    %5462 = vmatprep.mubr.bf16.mxu0 %v1075
    %5463 = vmatmul.mubr.bf16.gmra.mxu0 %v1074
    %v5464 = vpop.f32.mrf.mxu0
    %v5465 = vadd.f32 %v5414, %v5464
    %v5466 = vpop.f32.mrf.mxu0
    %v5467 = vadd.f32 %v5416, %v5466
    %v5468 = vpop.f32.mrf.mxu0
    %v5469 = vpop.f32.mrf.mxu0
    %5470 = vdwg.mxu0
    %5471 = vmatprep.subr.bf16.mxu0 %v4172
    %5472 = vmatpush1.bf16.msra.mxu0 %v4171
    %5473 = vmatprep.subr.bf16.mxu0 %v4164
    %5474 = vmatpush1.bf16.msra.mxu0 %v4163
    %5475 = vmatprep.subr.bf16.mxu0 %v4156
    %5476 = vmatpush1.bf16.msra.mxu0 %v4155
    %5477 = vmatprep.subr.bf16.mxu0 %v4148
    %5478 = vmatpush1.bf16.msra.mxu0 %v4147
    %5479 = vmatprep.subr.bf16.mxu0 %v4140
    %5480 = vmatpush1.bf16.msra.mxu0 %v4139
    %5481 = vmatprep.subr.bf16.mxu0 %v4132
    %5482 = vmatpush1.bf16.msra.mxu0 %v4131
    %5483 = vmatprep.subr.bf16.mxu0 %v4124
    %5484 = vmatpush1.bf16.msra.mxu0 %v4123
    %5485 = vmatprep.subr.bf16.mxu0 %v4116
    %5486 = vmatpush1.bf16.msra.mxu0 %v4115
    %5487 = vmatprep.subr.bf16.mxu0 %v4236
    %5488 = vmatpush2.bf16.msra.mxu0 %v4235
    %5489 = vmatprep.subr.bf16.mxu0 %v4228
    %5490 = vmatpush2.bf16.msra.mxu0 %v4227
    %5491 = vmatprep.subr.bf16.mxu0 %v4220
    %5492 = vmatpush2.bf16.msra.mxu0 %v4219
    %5493 = vmatprep.subr.bf16.mxu0 %v4212
    %5494 = vmatpush2.bf16.msra.mxu0 %v4211
    %5495 = vmatprep.subr.bf16.mxu0 %v4204
    %5496 = vmatpush2.bf16.msra.mxu0 %v4203
    %5497 = vmatprep.subr.bf16.mxu0 %v4196
    %5498 = vmatpush2.bf16.msra.mxu0 %v4195
    %5499 = vmatprep.subr.bf16.mxu0 %v4188
    %5500 = vmatpush2.bf16.msra.mxu0 %v4187
    %5501 = vmatprep.subr.bf16.mxu0 %v4180
    %5502 = vmatpush2.bf16.msra.mxu0 %v4179
    %5503 = vmatprep.mubr.bf16.mxu0 %v1064
    %5504 = vmatmul.mubr.bf16.gmra.mxu0 %v1063
    %v5505 = vpop.f32.mrf.mxu0
    %v5506 = vadd.f32 %v5455, %v5505
    %v5507 = vpop.f32.mrf.mxu0
    %v5508 = vadd.f32 %v5457, %v5507
    %v5509 = vpop.f32.mrf.mxu0
    %v5510 = vadd.f32 %v5459, %v5509
    %v5511 = vpop.f32.mrf.mxu0
    %v5512 = vadd.f32 %v5461, %v5511
    %5513 = vmatprep.mubr.bf16.mxu0 %v1077
    %5514 = vmatmul.mubr.bf16.gmra.mxu0 %v1076
    %v5515 = vpop.f32.mrf.mxu0
    %v5516 = vadd.f32 %v5465, %v5515
    %v5517 = vpop.f32.mrf.mxu0
    %v5518 = vadd.f32 %v5467, %v5517
    %v5519 = vpop.f32.mrf.mxu0
    %v5520 = vpop.f32.mrf.mxu0
    %5521 = vdwg.mxu0
    %5522 = vmatprep.subr.bf16.mxu0 %v4300
    %5523 = vmatpush1.bf16.msra.mxu0 %v4299
    %5524 = vmatprep.subr.bf16.mxu0 %v4292
    %5525 = vmatpush1.bf16.msra.mxu0 %v4291
    %5526 = vmatprep.subr.bf16.mxu0 %v4284
    %5527 = vmatpush1.bf16.msra.mxu0 %v4283
    %5528 = vmatprep.subr.bf16.mxu0 %v4276
    %5529 = vmatpush1.bf16.msra.mxu0 %v4275
    %5530 = vmatprep.subr.bf16.mxu0 %v4268
    %5531 = vmatpush1.bf16.msra.mxu0 %v4267
    %5532 = vmatprep.subr.bf16.mxu0 %v4260
    %5533 = vmatpush1.bf16.msra.mxu0 %v4259
    %5534 = vmatprep.subr.bf16.mxu0 %v4252
    %5535 = vmatpush1.bf16.msra.mxu0 %v4251
    %5536 = vmatprep.subr.bf16.mxu0 %v4244
    %5537 = vmatpush1.bf16.msra.mxu0 %v4243
    %5538 = vmatprep.subr.bf16.mxu0 %v4364
    %5539 = vmatpush2.bf16.msra.mxu0 %v4363
    %5540 = vmatprep.subr.bf16.mxu0 %v4356
    %5541 = vmatpush2.bf16.msra.mxu0 %v4355
    %5542 = vmatprep.subr.bf16.mxu0 %v4348
    %5543 = vmatpush2.bf16.msra.mxu0 %v4347
    %5544 = vmatprep.subr.bf16.mxu0 %v4340
    %5545 = vmatpush2.bf16.msra.mxu0 %v4339
    %5546 = vmatprep.subr.bf16.mxu0 %v4332
    %5547 = vmatpush2.bf16.msra.mxu0 %v4331
    %5548 = vmatprep.subr.bf16.mxu0 %v4324
    %5549 = vmatpush2.bf16.msra.mxu0 %v4323
    %5550 = vmatprep.subr.bf16.mxu0 %v4316
    %5551 = vmatpush2.bf16.msra.mxu0 %v4315
    %5552 = vmatprep.subr.bf16.mxu0 %v4308
    %5553 = vmatpush2.bf16.msra.mxu0 %v4307
    %5554 = vmatprep.mubr.bf16.mxu0 %v1066
    %5555 = vmatmul.mubr.bf16.gmra.mxu0 %v1065
    %v5556 = vpop.f32.mrf.mxu0
    %v5557 = vadd.f32 %v5506, %v5556
    %v5558 = vpop.f32.mrf.mxu0
    %v5559 = vadd.f32 %v5508, %v5558
    %v5560 = vpop.f32.mrf.mxu0
    %v5561 = vadd.f32 %v5510, %v5560
    %v5562 = vpop.f32.mrf.mxu0
    %v5563 = vadd.f32 %v5512, %v5562
    %5564 = vmatprep.mubr.bf16.mxu0 %v1079
    %5565 = vmatmul.mubr.bf16.gmra.mxu0 %v1078
    %v5566 = vpop.f32.mrf.mxu0
    %v5567 = vadd.f32 %v5516, %v5566
    %v5568 = vpop.f32.mrf.mxu0
    %v5569 = vadd.f32 %v5518, %v5568
    %v5570 = vpop.f32.mrf.mxu0
    %v5571 = vpop.f32.mrf.mxu0
    %5572 = vdwg.mxu0
    %5573 = vmatprep.subr.bf16.mxu0 %v4428
    %5574 = vmatpush1.bf16.msra.mxu0 %v4427
    %5575 = vmatprep.subr.bf16.mxu0 %v4420
    %5576 = vmatpush1.bf16.msra.mxu0 %v4419
    %5577 = vmatprep.subr.bf16.mxu0 %v4412
    %5578 = vmatpush1.bf16.msra.mxu0 %v4411
    %5579 = vmatprep.subr.bf16.mxu0 %v4404
    %5580 = vmatpush1.bf16.msra.mxu0 %v4403
    %5581 = vmatprep.subr.bf16.mxu0 %v4396
    %5582 = vmatpush1.bf16.msra.mxu0 %v4395
    %5583 = vmatprep.subr.bf16.mxu0 %v4388
    %5584 = vmatpush1.bf16.msra.mxu0 %v4387
    %5585 = vmatprep.subr.bf16.mxu0 %v4380
    %5586 = vmatpush1.bf16.msra.mxu0 %v4379
    %5587 = vmatprep.subr.bf16.mxu0 %v4372
    %5588 = vmatpush1.bf16.msra.mxu0 %v4371
    %5589 = vmatprep.subr.bf16.mxu0 0
    %5590 = vmatpush2.bf16.msra.mxu0 0
    %5591 = vmatprep.subr.bf16.mxu0 0
    %5592 = vmatpush2.bf16.msra.mxu0 0
    %5593 = vmatprep.subr.bf16.mxu0 0
    %5594 = vmatpush2.bf16.msra.mxu0 0
    %5595 = vmatprep.subr.bf16.mxu0 0
    %5596 = vmatpush2.bf16.msra.mxu0 0
    %5597 = vmatprep.subr.bf16.mxu0 0
    %5598 = vmatpush2.bf16.msra.mxu0 0
    %5599 = vmatprep.subr.bf16.mxu0 0
    %5600 = vmatpush2.bf16.msra.mxu0 0
    %5601 = vmatprep.subr.bf16.mxu0 0
    %5602 = vmatpush2.bf16.msra.mxu0 0
    %5603 = vmatprep.subr.bf16.mxu0 0
    %5604 = vmatpush2.bf16.msra.mxu0 0
    %5605 = vmatprep.mubr.bf16.mxu0 0
    %5606 = vmatmul.mubr.bf16.gmra.mxu0 %v1067
    %v5607 = vpop.f32.mrf.mxu0
    %v5608 = vadd.f32 %v5557, %v5607
    %v5609 = vpop.f32.mrf.mxu0
    %v5610 = vadd.f32 %v5559, %v5609
    %v5611 = vpop.f32.mrf.mxu0
    %v5612 = vadd.f32 %v5561, %v5611
    %v5613 = vpop.f32.mrf.mxu0
    %v5614 = vadd.f32 %v5563, %v5613
    %5615 = vmatprep.mubr.bf16.mxu0 0
    %5616 = vmatmul.mubr.bf16.gmra.mxu0 %v1080
    %v5617 = vpop.f32.mrf.mxu0
    %v5618 = vadd.f32 %v5567, %v5617
    %v5619 = vpop.f32.mrf.mxu0
    %v5620 = vadd.f32 %v5569, %v5619
    %v5621 = vpop.f32.mrf.mxu0
    %v5622 = vpop.f32.mrf.mxu0
    %5623 = vdwg.mxu0
    %5624 = vmatprep.subr.bf16.mxu0 %v3662
    %5625 = vmatpush1.bf16.msra.mxu0 %v3661
    %5626 = vmatprep.subr.bf16.mxu0 %v3654
    %5627 = vmatpush1.bf16.msra.mxu0 %v3653
    %5628 = vmatprep.subr.bf16.mxu0 %v3646
    %5629 = vmatpush1.bf16.msra.mxu0 %v3645
    %5630 = vmatprep.subr.bf16.mxu0 %v3638
    %5631 = vmatpush1.bf16.msra.mxu0 %v3637
    %5632 = vmatprep.subr.bf16.mxu0 %v3630
    %5633 = vmatpush1.bf16.msra.mxu0 %v3629
    %5634 = vmatprep.subr.bf16.mxu0 %v3622
    %5635 = vmatpush1.bf16.msra.mxu0 %v3621
    %5636 = vmatprep.subr.bf16.mxu0 %v3614
    %5637 = vmatpush1.bf16.msra.mxu0 %v3613
    %5638 = vmatprep.subr.bf16.mxu0 %v3606
    %5639 = vmatpush1.bf16.msra.mxu0 %v3605
    %5640 = vmatprep.subr.bf16.mxu0 %v3726
    %5641 = vmatpush2.bf16.msra.mxu0 %v3725
    %5642 = vmatprep.subr.bf16.mxu0 %v3718
    %5643 = vmatpush2.bf16.msra.mxu0 %v3717
    %5644 = vmatprep.subr.bf16.mxu0 %v3710
    %5645 = vmatpush2.bf16.msra.mxu0 %v3709
    %5646 = vmatprep.subr.bf16.mxu0 %v3702
    %5647 = vmatpush2.bf16.msra.mxu0 %v3701
    %5648 = vmatprep.subr.bf16.mxu0 %v3694
    %5649 = vmatpush2.bf16.msra.mxu0 %v3693
    %5650 = vmatprep.subr.bf16.mxu0 %v3686
    %5651 = vmatpush2.bf16.msra.mxu0 %v3685
    %5652 = vmatprep.subr.bf16.mxu0 %v3678
    %5653 = vmatpush2.bf16.msra.mxu0 %v3677
    %5654 = vmatprep.subr.bf16.mxu0 %v3670
    %5655 = vmatpush2.bf16.msra.mxu0 %v3669
    %5656 = vmatprep.mubr.bf16.mxu0 %v1056
    %5657 = vmatmul.mubr.bf16.gmra.mxu0 %v1055
    %v5658 = vpop.f32.mrf.mxu0
    %v5659 = vadd.f32 %v966, %v5658
    %v5660 = vpop.f32.mrf.mxu0
    %v5661 = vadd.f32 %v970, %v5660
    %v5662 = vpop.f32.mrf.mxu0
    %v5663 = vadd.f32 %v966, %v5662
    %v5664 = vpop.f32.mrf.mxu0
    %v5665 = vadd.f32 %v970, %v5664
    %5666 = vmatprep.mubr.bf16.mxu0 %v1069
    %5667 = vmatmul.mubr.bf16.gmra.mxu0 %v1068
    %v5668 = vpop.f32.mrf.mxu0
    %v5669 = vadd.f32 %v966, %v5668
    %v5670 = vpop.f32.mrf.mxu0
    %v5671 = vadd.f32 %v970, %v5670
    %v5672 = vpop.f32.mrf.mxu0
    %v5673 = vpop.f32.mrf.mxu0
    %5674 = vdwg.mxu0
    %5675 = vmatprep.subr.bf16.mxu0 %v3790
    %5676 = vmatpush1.bf16.msra.mxu0 %v3789
    %5677 = vmatprep.subr.bf16.mxu0 %v3782
    %5678 = vmatpush1.bf16.msra.mxu0 %v3781
    %5679 = vmatprep.subr.bf16.mxu0 %v3774
    %5680 = vmatpush1.bf16.msra.mxu0 %v3773
    %5681 = vmatprep.subr.bf16.mxu0 %v3766
    %5682 = vmatpush1.bf16.msra.mxu0 %v3765
    %5683 = vmatprep.subr.bf16.mxu0 %v3758
    %5684 = vmatpush1.bf16.msra.mxu0 %v3757
    %5685 = vmatprep.subr.bf16.mxu0 %v3750
    %5686 = vmatpush1.bf16.msra.mxu0 %v3749
    %5687 = vmatprep.subr.bf16.mxu0 %v3742
    %5688 = vmatpush1.bf16.msra.mxu0 %v3741
    %5689 = vmatprep.subr.bf16.mxu0 %v3734
    %5690 = vmatpush1.bf16.msra.mxu0 %v3733
    %5691 = vmatprep.subr.bf16.mxu0 %v3854
    %5692 = vmatpush2.bf16.msra.mxu0 %v3853
    %5693 = vmatprep.subr.bf16.mxu0 %v3846
    %5694 = vmatpush2.bf16.msra.mxu0 %v3845
    %5695 = vmatprep.subr.bf16.mxu0 %v3838
    %5696 = vmatpush2.bf16.msra.mxu0 %v3837
    %5697 = vmatprep.subr.bf16.mxu0 %v3830
    %5698 = vmatpush2.bf16.msra.mxu0 %v3829
    %5699 = vmatprep.subr.bf16.mxu0 %v3822
    %5700 = vmatpush2.bf16.msra.mxu0 %v3821
    %5701 = vmatprep.subr.bf16.mxu0 %v3814
    %5702 = vmatpush2.bf16.msra.mxu0 %v3813
    %5703 = vmatprep.subr.bf16.mxu0 %v3806
    %5704 = vmatpush2.bf16.msra.mxu0 %v3805
    %5705 = vmatprep.subr.bf16.mxu0 %v3798
    %5706 = vmatpush2.bf16.msra.mxu0 %v3797
    %5707 = vmatprep.mubr.bf16.mxu0 %v1058
    %5708 = vmatmul.mubr.bf16.gmra.mxu0 %v1057
    %v5709 = vpop.f32.mrf.mxu0
    %v5710 = vadd.f32 %v5659, %v5709
    %v5711 = vpop.f32.mrf.mxu0
    %v5712 = vadd.f32 %v5661, %v5711
    %v5713 = vpop.f32.mrf.mxu0
    %v5714 = vadd.f32 %v5663, %v5713
    %v5715 = vpop.f32.mrf.mxu0
    %v5716 = vadd.f32 %v5665, %v5715
    %5717 = vmatprep.mubr.bf16.mxu0 %v1071
    %5718 = vmatmul.mubr.bf16.gmra.mxu0 %v1070
    %v5719 = vpop.f32.mrf.mxu0
    %v5720 = vadd.f32 %v5669, %v5719
    %v5721 = vpop.f32.mrf.mxu0
    %v5722 = vadd.f32 %v5671, %v5721
    %v5723 = vpop.f32.mrf.mxu0
    %v5724 = vpop.f32.mrf.mxu0
    %5725 = vdwg.mxu0
    %5726 = vmatprep.subr.bf16.mxu0 %v3918
    %5727 = vmatpush1.bf16.msra.mxu0 %v3917
    %5728 = vmatprep.subr.bf16.mxu0 %v3910
    %5729 = vmatpush1.bf16.msra.mxu0 %v3909
    %5730 = vmatprep.subr.bf16.mxu0 %v3902
    %5731 = vmatpush1.bf16.msra.mxu0 %v3901
    %5732 = vmatprep.subr.bf16.mxu0 %v3894
    %5733 = vmatpush1.bf16.msra.mxu0 %v3893
    %5734 = vmatprep.subr.bf16.mxu0 %v3886
    %5735 = vmatpush1.bf16.msra.mxu0 %v3885
    %5736 = vmatprep.subr.bf16.mxu0 %v3878
    %5737 = vmatpush1.bf16.msra.mxu0 %v3877
    %5738 = vmatprep.subr.bf16.mxu0 %v3870
    %5739 = vmatpush1.bf16.msra.mxu0 %v3869
    %5740 = vmatprep.subr.bf16.mxu0 %v3862
    %5741 = vmatpush1.bf16.msra.mxu0 %v3861
    %5742 = vmatprep.subr.bf16.mxu0 %v3982
    %5743 = vmatpush2.bf16.msra.mxu0 %v3981
    %5744 = vmatprep.subr.bf16.mxu0 %v3974
    %5745 = vmatpush2.bf16.msra.mxu0 %v3973
    %5746 = vmatprep.subr.bf16.mxu0 %v3966
    %5747 = vmatpush2.bf16.msra.mxu0 %v3965
    %5748 = vmatprep.subr.bf16.mxu0 %v3958
    %5749 = vmatpush2.bf16.msra.mxu0 %v3957
    %5750 = vmatprep.subr.bf16.mxu0 %v3950
    %5751 = vmatpush2.bf16.msra.mxu0 %v3949
    %5752 = vmatprep.subr.bf16.mxu0 %v3942
    %5753 = vmatpush2.bf16.msra.mxu0 %v3941
    %5754 = vmatprep.subr.bf16.mxu0 %v3934
    %5755 = vmatpush2.bf16.msra.mxu0 %v3933
    %5756 = vmatprep.subr.bf16.mxu0 %v3926
    %5757 = vmatpush2.bf16.msra.mxu0 %v3925
    %5758 = vmatprep.mubr.bf16.mxu0 %v1060
    %5759 = vmatmul.mubr.bf16.gmra.mxu0 %v1059
    %v5760 = vpop.f32.mrf.mxu0
    %v5761 = vadd.f32 %v5710, %v5760
    %v5762 = vpop.f32.mrf.mxu0
    %v5763 = vadd.f32 %v5712, %v5762
    %v5764 = vpop.f32.mrf.mxu0
    %v5765 = vadd.f32 %v5714, %v5764
    %v5766 = vpop.f32.mrf.mxu0
    %v5767 = vadd.f32 %v5716, %v5766
    %5768 = vmatprep.mubr.bf16.mxu0 %v1073
    %5769 = vmatmul.mubr.bf16.gmra.mxu0 %v1072
    %v5770 = vpop.f32.mrf.mxu0
    %v5771 = vadd.f32 %v5720, %v5770
    %v5772 = vpop.f32.mrf.mxu0
    %v5773 = vadd.f32 %v5722, %v5772
    %v5774 = vpop.f32.mrf.mxu0
    %v5775 = vpop.f32.mrf.mxu0
    %5776 = vdwg.mxu0
    %5777 = vmatprep.subr.bf16.mxu0 %v4046
    %5778 = vmatpush1.bf16.msra.mxu0 %v4045
    %5779 = vmatprep.subr.bf16.mxu0 %v4038
    %5780 = vmatpush1.bf16.msra.mxu0 %v4037
    %5781 = vmatprep.subr.bf16.mxu0 %v4030
    %5782 = vmatpush1.bf16.msra.mxu0 %v4029
    %5783 = vmatprep.subr.bf16.mxu0 %v4022
    %5784 = vmatpush1.bf16.msra.mxu0 %v4021
    %5785 = vmatprep.subr.bf16.mxu0 %v4014
    %5786 = vmatpush1.bf16.msra.mxu0 %v4013
    %5787 = vmatprep.subr.bf16.mxu0 %v4006
    %5788 = vmatpush1.bf16.msra.mxu0 %v4005
    %5789 = vmatprep.subr.bf16.mxu0 %v3998
    %5790 = vmatpush1.bf16.msra.mxu0 %v3997
    %5791 = vmatprep.subr.bf16.mxu0 %v3990
    %5792 = vmatpush1.bf16.msra.mxu0 %v3989
    %5793 = vmatprep.subr.bf16.mxu0 %v4110
    %5794 = vmatpush2.bf16.msra.mxu0 %v4109
    %5795 = vmatprep.subr.bf16.mxu0 %v4102
    %5796 = vmatpush2.bf16.msra.mxu0 %v4101
    %5797 = vmatprep.subr.bf16.mxu0 %v4094
    %5798 = vmatpush2.bf16.msra.mxu0 %v4093
    %5799 = vmatprep.subr.bf16.mxu0 %v4086
    %5800 = vmatpush2.bf16.msra.mxu0 %v4085
    %5801 = vmatprep.subr.bf16.mxu0 %v4078
    %5802 = vmatpush2.bf16.msra.mxu0 %v4077
    %5803 = vmatprep.subr.bf16.mxu0 %v4070
    %5804 = vmatpush2.bf16.msra.mxu0 %v4069
    %5805 = vmatprep.subr.bf16.mxu0 %v4062
    %5806 = vmatpush2.bf16.msra.mxu0 %v4061
    %5807 = vmatprep.subr.bf16.mxu0 %v4054
    %5808 = vmatpush2.bf16.msra.mxu0 %v4053
    %5809 = vmatprep.mubr.bf16.mxu0 %v1062
    %5810 = vmatmul.mubr.bf16.gmra.mxu0 %v1061
    %v5811 = vpop.f32.mrf.mxu0
    %v5812 = vadd.f32 %v5761, %v5811
    %v5813 = vpop.f32.mrf.mxu0
    %v5814 = vadd.f32 %v5763, %v5813
    %v5815 = vpop.f32.mrf.mxu0
    %v5816 = vadd.f32 %v5765, %v5815
    %v5817 = vpop.f32.mrf.mxu0
    %v5818 = vadd.f32 %v5767, %v5817
    %5819 = vmatprep.mubr.bf16.mxu0 %v1075
    %5820 = vmatmul.mubr.bf16.gmra.mxu0 %v1074
    %v5821 = vpop.f32.mrf.mxu0
    %v5822 = vadd.f32 %v5771, %v5821
    %v5823 = vpop.f32.mrf.mxu0
    %v5824 = vadd.f32 %v5773, %v5823
    %v5825 = vpop.f32.mrf.mxu0
    %v5826 = vpop.f32.mrf.mxu0
    %5827 = vdwg.mxu0
    %5828 = vmatprep.subr.bf16.mxu0 %v4174
    %5829 = vmatpush1.bf16.msra.mxu0 %v4173
    %5830 = vmatprep.subr.bf16.mxu0 %v4166
    %5831 = vmatpush1.bf16.msra.mxu0 %v4165
    %5832 = vmatprep.subr.bf16.mxu0 %v4158
    %5833 = vmatpush1.bf16.msra.mxu0 %v4157
    %5834 = vmatprep.subr.bf16.mxu0 %v4150
    %5835 = vmatpush1.bf16.msra.mxu0 %v4149
    %5836 = vmatprep.subr.bf16.mxu0 %v4142
    %5837 = vmatpush1.bf16.msra.mxu0 %v4141
    %5838 = vmatprep.subr.bf16.mxu0 %v4134
    %5839 = vmatpush1.bf16.msra.mxu0 %v4133
    %5840 = vmatprep.subr.bf16.mxu0 %v4126
    %5841 = vmatpush1.bf16.msra.mxu0 %v4125
    %5842 = vmatprep.subr.bf16.mxu0 %v4118
    %5843 = vmatpush1.bf16.msra.mxu0 %v4117
    %5844 = vmatprep.subr.bf16.mxu0 %v4238
    %5845 = vmatpush2.bf16.msra.mxu0 %v4237
    %5846 = vmatprep.subr.bf16.mxu0 %v4230
    %5847 = vmatpush2.bf16.msra.mxu0 %v4229
    %5848 = vmatprep.subr.bf16.mxu0 %v4222
    %5849 = vmatpush2.bf16.msra.mxu0 %v4221
    %5850 = vmatprep.subr.bf16.mxu0 %v4214
    %5851 = vmatpush2.bf16.msra.mxu0 %v4213
    %5852 = vmatprep.subr.bf16.mxu0 %v4206
    %5853 = vmatpush2.bf16.msra.mxu0 %v4205
    %5854 = vmatprep.subr.bf16.mxu0 %v4198
    %5855 = vmatpush2.bf16.msra.mxu0 %v4197
    %5856 = vmatprep.subr.bf16.mxu0 %v4190
    %5857 = vmatpush2.bf16.msra.mxu0 %v4189
    %5858 = vmatprep.subr.bf16.mxu0 %v4182
    %5859 = vmatpush2.bf16.msra.mxu0 %v4181
    %5860 = vmatprep.mubr.bf16.mxu0 %v1064
    %5861 = vmatmul.mubr.bf16.gmra.mxu0 %v1063
    %v5862 = vpop.f32.mrf.mxu0
    %v5863 = vadd.f32 %v5812, %v5862
    %v5864 = vpop.f32.mrf.mxu0
    %v5865 = vadd.f32 %v5814, %v5864
    %v5866 = vpop.f32.mrf.mxu0
    %v5867 = vadd.f32 %v5816, %v5866
    %v5868 = vpop.f32.mrf.mxu0
    %v5869 = vadd.f32 %v5818, %v5868
    %5870 = vmatprep.mubr.bf16.mxu0 %v1077
    %5871 = vmatmul.mubr.bf16.gmra.mxu0 %v1076
    %v5872 = vpop.f32.mrf.mxu0
    %v5873 = vadd.f32 %v5822, %v5872
    %v5874 = vpop.f32.mrf.mxu0
    %v5875 = vadd.f32 %v5824, %v5874
    %v5876 = vpop.f32.mrf.mxu0
    %v5877 = vpop.f32.mrf.mxu0
    %5878 = vdwg.mxu0
    %5879 = vmatprep.subr.bf16.mxu0 %v4302
    %5880 = vmatpush1.bf16.msra.mxu0 %v4301
    %5881 = vmatprep.subr.bf16.mxu0 %v4294
    %5882 = vmatpush1.bf16.msra.mxu0 %v4293
    %5883 = vmatprep.subr.bf16.mxu0 %v4286
    %5884 = vmatpush1.bf16.msra.mxu0 %v4285
    %5885 = vmatprep.subr.bf16.mxu0 %v4278
    %5886 = vmatpush1.bf16.msra.mxu0 %v4277
    %5887 = vmatprep.subr.bf16.mxu0 %v4270
    %5888 = vmatpush1.bf16.msra.mxu0 %v4269
    %5889 = vmatprep.subr.bf16.mxu0 %v4262
    %5890 = vmatpush1.bf16.msra.mxu0 %v4261
    %5891 = vmatprep.subr.bf16.mxu0 %v4254
    %5892 = vmatpush1.bf16.msra.mxu0 %v4253
    %5893 = vmatprep.subr.bf16.mxu0 %v4246
    %5894 = vmatpush1.bf16.msra.mxu0 %v4245
    %5895 = vmatprep.subr.bf16.mxu0 %v4366
    %5896 = vmatpush2.bf16.msra.mxu0 %v4365
    %5897 = vmatprep.subr.bf16.mxu0 %v4358
    %5898 = vmatpush2.bf16.msra.mxu0 %v4357
    %5899 = vmatprep.subr.bf16.mxu0 %v4350
    %5900 = vmatpush2.bf16.msra.mxu0 %v4349
    %5901 = vmatprep.subr.bf16.mxu0 %v4342
    %5902 = vmatpush2.bf16.msra.mxu0 %v4341
    %5903 = vmatprep.subr.bf16.mxu0 %v4334
    %5904 = vmatpush2.bf16.msra.mxu0 %v4333
    %5905 = vmatprep.subr.bf16.mxu0 %v4326
    %5906 = vmatpush2.bf16.msra.mxu0 %v4325
    %5907 = vmatprep.subr.bf16.mxu0 %v4318
    %5908 = vmatpush2.bf16.msra.mxu0 %v4317
    %5909 = vmatprep.subr.bf16.mxu0 %v4310
    %5910 = vmatpush2.bf16.msra.mxu0 %v4309
    %5911 = vmatprep.mubr.bf16.mxu0 %v1066
    %5912 = vmatmul.mubr.bf16.gmra.mxu0 %v1065
    %v5913 = vpop.f32.mrf.mxu0
    %v5914 = vadd.f32 %v5863, %v5913
    %v5915 = vpop.f32.mrf.mxu0
    %v5916 = vadd.f32 %v5865, %v5915
    %v5917 = vpop.f32.mrf.mxu0
    %v5918 = vadd.f32 %v5867, %v5917
    %v5919 = vpop.f32.mrf.mxu0
    %v5920 = vadd.f32 %v5869, %v5919
    %5921 = vmatprep.mubr.bf16.mxu0 %v1079
    %5922 = vmatmul.mubr.bf16.gmra.mxu0 %v1078
    %v5923 = vpop.f32.mrf.mxu0
    %v5924 = vadd.f32 %v5873, %v5923
    %v5925 = vpop.f32.mrf.mxu0
    %v5926 = vadd.f32 %v5875, %v5925
    %v5927 = vpop.f32.mrf.mxu0
    %v5928 = vpop.f32.mrf.mxu0
    %5929 = vdwg.mxu0
    %5930 = vmatprep.subr.bf16.mxu0 %v4430
    %5931 = vmatpush1.bf16.msra.mxu0 %v4429
    %5932 = vmatprep.subr.bf16.mxu0 %v4422
    %5933 = vmatpush1.bf16.msra.mxu0 %v4421
    %5934 = vmatprep.subr.bf16.mxu0 %v4414
    %5935 = vmatpush1.bf16.msra.mxu0 %v4413
    %5936 = vmatprep.subr.bf16.mxu0 %v4406
    %5937 = vmatpush1.bf16.msra.mxu0 %v4405
    %5938 = vmatprep.subr.bf16.mxu0 %v4398
    %5939 = vmatpush1.bf16.msra.mxu0 %v4397
    %5940 = vmatprep.subr.bf16.mxu0 %v4390
    %5941 = vmatpush1.bf16.msra.mxu0 %v4389
    %5942 = vmatprep.subr.bf16.mxu0 %v4382
    %5943 = vmatpush1.bf16.msra.mxu0 %v4381
    %5944 = vmatprep.subr.bf16.mxu0 %v4374
    %5945 = vmatpush1.bf16.msra.mxu0 %v4373
    %5946 = vmatprep.subr.bf16.mxu0 0
    %5947 = vmatpush2.bf16.msra.mxu0 0
    %5948 = vmatprep.subr.bf16.mxu0 0
    %5949 = vmatpush2.bf16.msra.mxu0 0
    %5950 = vmatprep.subr.bf16.mxu0 0
    %5951 = vmatpush2.bf16.msra.mxu0 0
    %5952 = vmatprep.subr.bf16.mxu0 0
    %5953 = vmatpush2.bf16.msra.mxu0 0
    %5954 = vmatprep.subr.bf16.mxu0 0
    %5955 = vmatpush2.bf16.msra.mxu0 0
    %5956 = vmatprep.subr.bf16.mxu0 0
    %5957 = vmatpush2.bf16.msra.mxu0 0
    %5958 = vmatprep.subr.bf16.mxu0 0
    %5959 = vmatpush2.bf16.msra.mxu0 0
    %5960 = vmatprep.subr.bf16.mxu0 0
    %5961 = vmatpush2.bf16.msra.mxu0 0
    %5962 = vmatprep.mubr.bf16.mxu0 0
    %5963 = vmatmul.mubr.bf16.gmra.mxu0 %v1067
    %v5964 = vpop.f32.mrf.mxu0
    %v5965 = vadd.f32 %v5914, %v5964
    %v5966 = vpop.f32.mrf.mxu0
    %v5967 = vadd.f32 %v5916, %v5966
    %v5968 = vpop.f32.mrf.mxu0
    %v5969 = vadd.f32 %v5918, %v5968
    %v5970 = vpop.f32.mrf.mxu0
    %v5971 = vadd.f32 %v5920, %v5970
    %5972 = vmatprep.mubr.bf16.mxu0 0
    %5973 = vmatmul.mubr.bf16.gmra.mxu0 %v1080
    %v5974 = vpop.f32.mrf.mxu0
    %v5975 = vadd.f32 %v5924, %v5974
    %v5976 = vpop.f32.mrf.mxu0
    %v5977 = vadd.f32 %v5926, %v5976
    %v5978 = vpop.f32.mrf.mxu0
    %v5979 = vpop.f32.mrf.mxu0
    %5980 = vdwg.mxu0
    %5981 = vmatprep.subr.bf16.mxu0 %v3664
    %5982 = vmatpush1.bf16.msra.mxu0 %v3663
    %5983 = vmatprep.subr.bf16.mxu0 %v3656
    %5984 = vmatpush1.bf16.msra.mxu0 %v3655
    %5985 = vmatprep.subr.bf16.mxu0 %v3648
    %5986 = vmatpush1.bf16.msra.mxu0 %v3647
    %5987 = vmatprep.subr.bf16.mxu0 %v3640
    %5988 = vmatpush1.bf16.msra.mxu0 %v3639
    %5989 = vmatprep.subr.bf16.mxu0 %v3632
    %5990 = vmatpush1.bf16.msra.mxu0 %v3631
    %5991 = vmatprep.subr.bf16.mxu0 %v3624
    %5992 = vmatpush1.bf16.msra.mxu0 %v3623
    %5993 = vmatprep.subr.bf16.mxu0 %v3616
    %5994 = vmatpush1.bf16.msra.mxu0 %v3615
    %5995 = vmatprep.subr.bf16.mxu0 %v3608
    %5996 = vmatpush1.bf16.msra.mxu0 %v3607
    %5997 = vmatprep.subr.bf16.mxu0 %v3728
    %5998 = vmatpush2.bf16.msra.mxu0 %v3727
    %5999 = vmatprep.subr.bf16.mxu0 %v3720
    %6000 = vmatpush2.bf16.msra.mxu0 %v3719
    %6001 = vmatprep.subr.bf16.mxu0 %v3712
    %6002 = vmatpush2.bf16.msra.mxu0 %v3711
    %6003 = vmatprep.subr.bf16.mxu0 %v3704
    %6004 = vmatpush2.bf16.msra.mxu0 %v3703
    %6005 = vmatprep.subr.bf16.mxu0 %v3696
    %6006 = vmatpush2.bf16.msra.mxu0 %v3695
    %6007 = vmatprep.subr.bf16.mxu0 %v3688
    %6008 = vmatpush2.bf16.msra.mxu0 %v3687
    %6009 = vmatprep.subr.bf16.mxu0 %v3680
    %6010 = vmatpush2.bf16.msra.mxu0 %v3679
    %6011 = vmatprep.subr.bf16.mxu0 %v3672
    %6012 = vmatpush2.bf16.msra.mxu0 %v3671
    %6013 = vmatprep.mubr.bf16.mxu0 %v1056
    %6014 = vmatmul.mubr.bf16.gmra.mxu0 %v1055
    %v6015 = vpop.f32.mrf.mxu0
    %v6016 = vadd.f32 %v974, %v6015
    %v6017 = vpop.f32.mrf.mxu0
    %v6018 = vadd.f32 %v978, %v6017
    %v6019 = vpop.f32.mrf.mxu0
    %v6020 = vadd.f32 %v974, %v6019
    %v6021 = vpop.f32.mrf.mxu0
    %v6022 = vadd.f32 %v978, %v6021
    %6023 = vmatprep.mubr.bf16.mxu0 %v1069
    %6024 = vmatmul.mubr.bf16.gmra.mxu0 %v1068
    %v6025 = vpop.f32.mrf.mxu0
    %v6026 = vadd.f32 %v974, %v6025
    %v6027 = vpop.f32.mrf.mxu0
    %v6028 = vadd.f32 %v978, %v6027
    %v6029 = vpop.f32.mrf.mxu0
    %v6030 = vpop.f32.mrf.mxu0
    %6031 = vdwg.mxu0
    %6032 = vmatprep.subr.bf16.mxu0 %v3792
    %6033 = vmatpush1.bf16.msra.mxu0 %v3791
    %6034 = vmatprep.subr.bf16.mxu0 %v3784
    %6035 = vmatpush1.bf16.msra.mxu0 %v3783
    %6036 = vmatprep.subr.bf16.mxu0 %v3776
    %6037 = vmatpush1.bf16.msra.mxu0 %v3775
    %6038 = vmatprep.subr.bf16.mxu0 %v3768
    %6039 = vmatpush1.bf16.msra.mxu0 %v3767
    %6040 = vmatprep.subr.bf16.mxu0 %v3760
    %6041 = vmatpush1.bf16.msra.mxu0 %v3759
    %6042 = vmatprep.subr.bf16.mxu0 %v3752
    %6043 = vmatpush1.bf16.msra.mxu0 %v3751
    %6044 = vmatprep.subr.bf16.mxu0 %v3744
    %6045 = vmatpush1.bf16.msra.mxu0 %v3743
    %6046 = vmatprep.subr.bf16.mxu0 %v3736
    %6047 = vmatpush1.bf16.msra.mxu0 %v3735
    %6048 = vmatprep.subr.bf16.mxu0 %v3856
    %6049 = vmatpush2.bf16.msra.mxu0 %v3855
    %6050 = vmatprep.subr.bf16.mxu0 %v3848
    %6051 = vmatpush2.bf16.msra.mxu0 %v3847
    %6052 = vmatprep.subr.bf16.mxu0 %v3840
    %6053 = vmatpush2.bf16.msra.mxu0 %v3839
    %6054 = vmatprep.subr.bf16.mxu0 %v3832
    %6055 = vmatpush2.bf16.msra.mxu0 %v3831
    %6056 = vmatprep.subr.bf16.mxu0 %v3824
    %6057 = vmatpush2.bf16.msra.mxu0 %v3823
    %6058 = vmatprep.subr.bf16.mxu0 %v3816
    %6059 = vmatpush2.bf16.msra.mxu0 %v3815
    %6060 = vmatprep.subr.bf16.mxu0 %v3808
    %6061 = vmatpush2.bf16.msra.mxu0 %v3807
    %6062 = vmatprep.subr.bf16.mxu0 %v3800
    %6063 = vmatpush2.bf16.msra.mxu0 %v3799
    %6064 = vmatprep.mubr.bf16.mxu0 %v1058
    %6065 = vmatmul.mubr.bf16.gmra.mxu0 %v1057
    %v6066 = vpop.f32.mrf.mxu0
    %v6067 = vadd.f32 %v6016, %v6066
    %v6068 = vpop.f32.mrf.mxu0
    %v6069 = vadd.f32 %v6018, %v6068
    %v6070 = vpop.f32.mrf.mxu0
    %v6071 = vadd.f32 %v6020, %v6070
    %v6072 = vpop.f32.mrf.mxu0
    %v6073 = vadd.f32 %v6022, %v6072
    %6074 = vmatprep.mubr.bf16.mxu0 %v1071
    %6075 = vmatmul.mubr.bf16.gmra.mxu0 %v1070
    %v6076 = vpop.f32.mrf.mxu0
    %v6077 = vadd.f32 %v6026, %v6076
    %v6078 = vpop.f32.mrf.mxu0
    %v6079 = vadd.f32 %v6028, %v6078
    %v6080 = vpop.f32.mrf.mxu0
    %v6081 = vpop.f32.mrf.mxu0
    %6082 = vdwg.mxu0
    %6083 = vmatprep.subr.bf16.mxu0 %v3920
    %6084 = vmatpush1.bf16.msra.mxu0 %v3919
    %6085 = vmatprep.subr.bf16.mxu0 %v3912
    %6086 = vmatpush1.bf16.msra.mxu0 %v3911
    %6087 = vmatprep.subr.bf16.mxu0 %v3904
    %6088 = vmatpush1.bf16.msra.mxu0 %v3903
    %6089 = vmatprep.subr.bf16.mxu0 %v3896
    %6090 = vmatpush1.bf16.msra.mxu0 %v3895
    %6091 = vmatprep.subr.bf16.mxu0 %v3888
    %6092 = vmatpush1.bf16.msra.mxu0 %v3887
    %6093 = vmatprep.subr.bf16.mxu0 %v3880
    %6094 = vmatpush1.bf16.msra.mxu0 %v3879
    %6095 = vmatprep.subr.bf16.mxu0 %v3872
    %6096 = vmatpush1.bf16.msra.mxu0 %v3871
    %6097 = vmatprep.subr.bf16.mxu0 %v3864
    %6098 = vmatpush1.bf16.msra.mxu0 %v3863
    %6099 = vmatprep.subr.bf16.mxu0 %v3984
    %6100 = vmatpush2.bf16.msra.mxu0 %v3983
    %6101 = vmatprep.subr.bf16.mxu0 %v3976
    %6102 = vmatpush2.bf16.msra.mxu0 %v3975
    %6103 = vmatprep.subr.bf16.mxu0 %v3968
    %6104 = vmatpush2.bf16.msra.mxu0 %v3967
    %6105 = vmatprep.subr.bf16.mxu0 %v3960
    %6106 = vmatpush2.bf16.msra.mxu0 %v3959
    %6107 = vmatprep.subr.bf16.mxu0 %v3952
    %6108 = vmatpush2.bf16.msra.mxu0 %v3951
    %6109 = vmatprep.subr.bf16.mxu0 %v3944
    %6110 = vmatpush2.bf16.msra.mxu0 %v3943
    %6111 = vmatprep.subr.bf16.mxu0 %v3936
    %6112 = vmatpush2.bf16.msra.mxu0 %v3935
    %6113 = vmatprep.subr.bf16.mxu0 %v3928
    %6114 = vmatpush2.bf16.msra.mxu0 %v3927
    %6115 = vmatprep.mubr.bf16.mxu0 %v1060
    %6116 = vmatmul.mubr.bf16.gmra.mxu0 %v1059
    %v6117 = vpop.f32.mrf.mxu0
    %v6118 = vadd.f32 %v6067, %v6117
    %v6119 = vpop.f32.mrf.mxu0
    %v6120 = vadd.f32 %v6069, %v6119
    %v6121 = vpop.f32.mrf.mxu0
    %v6122 = vadd.f32 %v6071, %v6121
    %v6123 = vpop.f32.mrf.mxu0
    %v6124 = vadd.f32 %v6073, %v6123
    %6125 = vmatprep.mubr.bf16.mxu0 %v1073
    %6126 = vmatmul.mubr.bf16.gmra.mxu0 %v1072
    %v6127 = vpop.f32.mrf.mxu0
    %v6128 = vadd.f32 %v6077, %v6127
    %v6129 = vpop.f32.mrf.mxu0
    %v6130 = vadd.f32 %v6079, %v6129
    %v6131 = vpop.f32.mrf.mxu0
    %v6132 = vpop.f32.mrf.mxu0
    %6133 = vdwg.mxu0
    %6134 = vmatprep.subr.bf16.mxu0 %v4048
    %6135 = vmatpush1.bf16.msra.mxu0 %v4047
    %6136 = vmatprep.subr.bf16.mxu0 %v4040
    %6137 = vmatpush1.bf16.msra.mxu0 %v4039
    %6138 = vmatprep.subr.bf16.mxu0 %v4032
    %6139 = vmatpush1.bf16.msra.mxu0 %v4031
    %6140 = vmatprep.subr.bf16.mxu0 %v4024
    %6141 = vmatpush1.bf16.msra.mxu0 %v4023
    %6142 = vmatprep.subr.bf16.mxu0 %v4016
    %6143 = vmatpush1.bf16.msra.mxu0 %v4015
    %6144 = vmatprep.subr.bf16.mxu0 %v4008
    %6145 = vmatpush1.bf16.msra.mxu0 %v4007
    %6146 = vmatprep.subr.bf16.mxu0 %v4000
    %6147 = vmatpush1.bf16.msra.mxu0 %v3999
    %6148 = vmatprep.subr.bf16.mxu0 %v3992
    %6149 = vmatpush1.bf16.msra.mxu0 %v3991
    %6150 = vmatprep.subr.bf16.mxu0 %v4112
    %6151 = vmatpush2.bf16.msra.mxu0 %v4111
    %6152 = vmatprep.subr.bf16.mxu0 %v4104
    %6153 = vmatpush2.bf16.msra.mxu0 %v4103
    %6154 = vmatprep.subr.bf16.mxu0 %v4096
    %6155 = vmatpush2.bf16.msra.mxu0 %v4095
    %6156 = vmatprep.subr.bf16.mxu0 %v4088
    %6157 = vmatpush2.bf16.msra.mxu0 %v4087
    %6158 = vmatprep.subr.bf16.mxu0 %v4080
    %6159 = vmatpush2.bf16.msra.mxu0 %v4079
    %6160 = vmatprep.subr.bf16.mxu0 %v4072
    %6161 = vmatpush2.bf16.msra.mxu0 %v4071
    %6162 = vmatprep.subr.bf16.mxu0 %v4064
    %6163 = vmatpush2.bf16.msra.mxu0 %v4063
    %6164 = vmatprep.subr.bf16.mxu0 %v4056
    %6165 = vmatpush2.bf16.msra.mxu0 %v4055
    %6166 = vmatprep.mubr.bf16.mxu0 %v1062
    %6167 = vmatmul.mubr.bf16.gmra.mxu0 %v1061
    %v6168 = vpop.f32.mrf.mxu0
    %v6169 = vadd.f32 %v6118, %v6168
    %v6170 = vpop.f32.mrf.mxu0
    %v6171 = vadd.f32 %v6120, %v6170
    %v6172 = vpop.f32.mrf.mxu0
    %v6173 = vadd.f32 %v6122, %v6172
    %v6174 = vpop.f32.mrf.mxu0
    %v6175 = vadd.f32 %v6124, %v6174
    %6176 = vmatprep.mubr.bf16.mxu0 %v1075
    %6177 = vmatmul.mubr.bf16.gmra.mxu0 %v1074
    %v6178 = vpop.f32.mrf.mxu0
    %v6179 = vadd.f32 %v6128, %v6178
    %v6180 = vpop.f32.mrf.mxu0
    %v6181 = vadd.f32 %v6130, %v6180
    %v6182 = vpop.f32.mrf.mxu0
    %v6183 = vpop.f32.mrf.mxu0
    %6184 = vdwg.mxu0
    %6185 = vmatprep.subr.bf16.mxu0 %v4176
    %6186 = vmatpush1.bf16.msra.mxu0 %v4175
    %6187 = vmatprep.subr.bf16.mxu0 %v4168
    %6188 = vmatpush1.bf16.msra.mxu0 %v4167
    %6189 = vmatprep.subr.bf16.mxu0 %v4160
    %6190 = vmatpush1.bf16.msra.mxu0 %v4159
    %6191 = vmatprep.subr.bf16.mxu0 %v4152
    %6192 = vmatpush1.bf16.msra.mxu0 %v4151
    %6193 = vmatprep.subr.bf16.mxu0 %v4144
    %6194 = vmatpush1.bf16.msra.mxu0 %v4143
    %6195 = vmatprep.subr.bf16.mxu0 %v4136
    %6196 = vmatpush1.bf16.msra.mxu0 %v4135
    %6197 = vmatprep.subr.bf16.mxu0 %v4128
    %6198 = vmatpush1.bf16.msra.mxu0 %v4127
    %6199 = vmatprep.subr.bf16.mxu0 %v4120
    %6200 = vmatpush1.bf16.msra.mxu0 %v4119
    %6201 = vmatprep.subr.bf16.mxu0 %v4240
    %6202 = vmatpush2.bf16.msra.mxu0 %v4239
    %6203 = vmatprep.subr.bf16.mxu0 %v4232
    %6204 = vmatpush2.bf16.msra.mxu0 %v4231
    %6205 = vmatprep.subr.bf16.mxu0 %v4224
    %6206 = vmatpush2.bf16.msra.mxu0 %v4223
    %6207 = vmatprep.subr.bf16.mxu0 %v4216
    %6208 = vmatpush2.bf16.msra.mxu0 %v4215
    %6209 = vmatprep.subr.bf16.mxu0 %v4208
    %6210 = vmatpush2.bf16.msra.mxu0 %v4207
    %6211 = vmatprep.subr.bf16.mxu0 %v4200
    %6212 = vmatpush2.bf16.msra.mxu0 %v4199
    %6213 = vmatprep.subr.bf16.mxu0 %v4192
    %6214 = vmatpush2.bf16.msra.mxu0 %v4191
    %6215 = vmatprep.subr.bf16.mxu0 %v4184
    %6216 = vmatpush2.bf16.msra.mxu0 %v4183
    %6217 = vmatprep.mubr.bf16.mxu0 %v1064
    %6218 = vmatmul.mubr.bf16.gmra.mxu0 %v1063
    %v6219 = vpop.f32.mrf.mxu0
    %v6220 = vadd.f32 %v6169, %v6219
    %v6221 = vpop.f32.mrf.mxu0
    %v6222 = vadd.f32 %v6171, %v6221
    %v6223 = vpop.f32.mrf.mxu0
    %v6224 = vadd.f32 %v6173, %v6223
    %v6225 = vpop.f32.mrf.mxu0
    %v6226 = vadd.f32 %v6175, %v6225
    %6227 = vmatprep.mubr.bf16.mxu0 %v1077
    %6228 = vmatmul.mubr.bf16.gmra.mxu0 %v1076
    %v6229 = vpop.f32.mrf.mxu0
    %v6230 = vadd.f32 %v6179, %v6229
    %v6231 = vpop.f32.mrf.mxu0
    %v6232 = vadd.f32 %v6181, %v6231
    %v6233 = vpop.f32.mrf.mxu0
    %v6234 = vpop.f32.mrf.mxu0
    %6235 = vdwg.mxu0
    %6236 = vmatprep.subr.bf16.mxu0 %v4304
    %6237 = vmatpush1.bf16.msra.mxu0 %v4303
    %6238 = vmatprep.subr.bf16.mxu0 %v4296
    %6239 = vmatpush1.bf16.msra.mxu0 %v4295
    %6240 = vmatprep.subr.bf16.mxu0 %v4288
    %6241 = vmatpush1.bf16.msra.mxu0 %v4287
    %6242 = vmatprep.subr.bf16.mxu0 %v4280
    %6243 = vmatpush1.bf16.msra.mxu0 %v4279
    %6244 = vmatprep.subr.bf16.mxu0 %v4272
    %6245 = vmatpush1.bf16.msra.mxu0 %v4271
    %6246 = vmatprep.subr.bf16.mxu0 %v4264
    %6247 = vmatpush1.bf16.msra.mxu0 %v4263
    %6248 = vmatprep.subr.bf16.mxu0 %v4256
    %6249 = vmatpush1.bf16.msra.mxu0 %v4255
    %6250 = vmatprep.subr.bf16.mxu0 %v4248
    %6251 = vmatpush1.bf16.msra.mxu0 %v4247
    %6252 = vmatprep.subr.bf16.mxu0 %v4368
    %6253 = vmatpush2.bf16.msra.mxu0 %v4367
    %6254 = vmatprep.subr.bf16.mxu0 %v4360
    %6255 = vmatpush2.bf16.msra.mxu0 %v4359
    %6256 = vmatprep.subr.bf16.mxu0 %v4352
    %6257 = vmatpush2.bf16.msra.mxu0 %v4351
    %6258 = vmatprep.subr.bf16.mxu0 %v4344
    %6259 = vmatpush2.bf16.msra.mxu0 %v4343
    %6260 = vmatprep.subr.bf16.mxu0 %v4336
    %6261 = vmatpush2.bf16.msra.mxu0 %v4335
    %6262 = vmatprep.subr.bf16.mxu0 %v4328
    %6263 = vmatpush2.bf16.msra.mxu0 %v4327
    %6264 = vmatprep.subr.bf16.mxu0 %v4320
    %6265 = vmatpush2.bf16.msra.mxu0 %v4319
    %6266 = vmatprep.subr.bf16.mxu0 %v4312
    %6267 = vmatpush2.bf16.msra.mxu0 %v4311
    %6268 = vmatprep.mubr.bf16.mxu0 %v1066
    %6269 = vmatmul.mubr.bf16.gmra.mxu0 %v1065
    %v6270 = vpop.f32.mrf.mxu0
    %v6271 = vadd.f32 %v6220, %v6270
    %v6272 = vpop.f32.mrf.mxu0
    %v6273 = vadd.f32 %v6222, %v6272
    %v6274 = vpop.f32.mrf.mxu0
    %v6275 = vadd.f32 %v6224, %v6274
    %v6276 = vpop.f32.mrf.mxu0
    %v6277 = vadd.f32 %v6226, %v6276
    %6278 = vmatprep.mubr.bf16.mxu0 %v1079
    %6279 = vmatmul.mubr.bf16.gmra.mxu0 %v1078
    %v6280 = vpop.f32.mrf.mxu0
    %v6281 = vadd.f32 %v6230, %v6280
    %v6282 = vpop.f32.mrf.mxu0
    %v6283 = vadd.f32 %v6232, %v6282
    %v6284 = vpop.f32.mrf.mxu0
    %v6285 = vpop.f32.mrf.mxu0
    %6286 = vdwg.mxu0
    %6287 = vmatprep.subr.bf16.mxu0 %v4432
    %6288 = vmatpush1.bf16.msra.mxu0 %v4431
    %6289 = vmatprep.subr.bf16.mxu0 %v4424
    %6290 = vmatpush1.bf16.msra.mxu0 %v4423
    %6291 = vmatprep.subr.bf16.mxu0 %v4416
    %6292 = vmatpush1.bf16.msra.mxu0 %v4415
    %6293 = vmatprep.subr.bf16.mxu0 %v4408
    %6294 = vmatpush1.bf16.msra.mxu0 %v4407
    %6295 = vmatprep.subr.bf16.mxu0 %v4400
    %6296 = vmatpush1.bf16.msra.mxu0 %v4399
    %6297 = vmatprep.subr.bf16.mxu0 %v4392
    %6298 = vmatpush1.bf16.msra.mxu0 %v4391
    %6299 = vmatprep.subr.bf16.mxu0 %v4384
    %6300 = vmatpush1.bf16.msra.mxu0 %v4383
    %6301 = vmatprep.subr.bf16.mxu0 %v4376
    %6302 = vmatpush1.bf16.msra.mxu0 %v4375
    %6303 = vmatprep.subr.bf16.mxu0 0
    %6304 = vmatpush2.bf16.msra.mxu0 0
    %6305 = vmatprep.subr.bf16.mxu0 0
    %6306 = vmatpush2.bf16.msra.mxu0 0
    %6307 = vmatprep.subr.bf16.mxu0 0
    %6308 = vmatpush2.bf16.msra.mxu0 0
    %6309 = vmatprep.subr.bf16.mxu0 0
    %6310 = vmatpush2.bf16.msra.mxu0 0
    %6311 = vmatprep.subr.bf16.mxu0 0
    %6312 = vmatpush2.bf16.msra.mxu0 0
    %6313 = vmatprep.subr.bf16.mxu0 0
    %6314 = vmatpush2.bf16.msra.mxu0 0
    %6315 = vmatprep.subr.bf16.mxu0 0
    %6316 = vmatpush2.bf16.msra.mxu0 0
    %6317 = vmatprep.subr.bf16.mxu0 0
    %6318 = vmatpush2.bf16.msra.mxu0 0
    %6319 = vmatprep.mubr.bf16.mxu0 0
    %6320 = vmatmul.mubr.bf16.gmra.mxu0 %v1067
    %v6321 = vpop.f32.mrf.mxu0
    %v6322 = vadd.f32 %v6271, %v6321
    %v6323 = vpop.f32.mrf.mxu0
    %v6324 = vadd.f32 %v6273, %v6323
    %v6325 = vpop.f32.mrf.mxu0
    %v6326 = vadd.f32 %v6275, %v6325
    %v6327 = vpop.f32.mrf.mxu0
    %v6328 = vadd.f32 %v6277, %v6327
    %6329 = vmatprep.mubr.bf16.mxu0 0
    %6330 = vmatmul.mubr.bf16.gmra.mxu0 %v1080
    %v6331 = vpop.f32.mrf.mxu0
    %v6332 = vadd.f32 %v6281, %v6331
    %v6333 = vpop.f32.mrf.mxu0
    %v6334 = vadd.f32 %v6283, %v6333
    %v6335 = vpop.f32.mrf.mxu0
    %v6336 = vpop.f32.mrf.mxu0
    %6337 = vdwg.mxu0
    %6338 = vmatprep.subr.bf16.mxu0 %v3666
    %6339 = vmatpush1.bf16.msra.mxu0 %v3665
    %6340 = vmatprep.subr.bf16.mxu0 %v3658
    %6341 = vmatpush1.bf16.msra.mxu0 %v3657
    %6342 = vmatprep.subr.bf16.mxu0 %v3650
    %6343 = vmatpush1.bf16.msra.mxu0 %v3649
    %6344 = vmatprep.subr.bf16.mxu0 %v3642
    %6345 = vmatpush1.bf16.msra.mxu0 %v3641
    %6346 = vmatprep.subr.bf16.mxu0 %v3634
    %6347 = vmatpush1.bf16.msra.mxu0 %v3633
    %6348 = vmatprep.subr.bf16.mxu0 %v3626
    %6349 = vmatpush1.bf16.msra.mxu0 %v3625
    %6350 = vmatprep.subr.bf16.mxu0 %v3618
    %6351 = vmatpush1.bf16.msra.mxu0 %v3617
    %6352 = vmatprep.subr.bf16.mxu0 %v3610
    %6353 = vmatpush1.bf16.msra.mxu0 %v3609
    %6354 = vmatprep.subr.bf16.mxu0 %v3730
    %6355 = vmatpush2.bf16.msra.mxu0 %v3729
    %6356 = vmatprep.subr.bf16.mxu0 %v3722
    %6357 = vmatpush2.bf16.msra.mxu0 %v3721
    %6358 = vmatprep.subr.bf16.mxu0 %v3714
    %6359 = vmatpush2.bf16.msra.mxu0 %v3713
    %6360 = vmatprep.subr.bf16.mxu0 %v3706
    %6361 = vmatpush2.bf16.msra.mxu0 %v3705
    %6362 = vmatprep.subr.bf16.mxu0 %v3698
    %6363 = vmatpush2.bf16.msra.mxu0 %v3697
    %6364 = vmatprep.subr.bf16.mxu0 %v3690
    %6365 = vmatpush2.bf16.msra.mxu0 %v3689
    %6366 = vmatprep.subr.bf16.mxu0 %v3682
    %6367 = vmatpush2.bf16.msra.mxu0 %v3681
    %6368 = vmatprep.subr.bf16.mxu0 %v3674
    %6369 = vmatpush2.bf16.msra.mxu0 %v3673
    %6370 = vmatprep.mubr.bf16.mxu0 %v1056
    %6371 = vmatmul.mubr.bf16.gmra.mxu0 %v1055
    %v6372 = vpop.f32.mrf.mxu0
    %v6373 = vadd.f32 %v982, %v6372
    %v6374 = vpop.f32.mrf.mxu0
    %v6375 = vadd.f32 %v986, %v6374
    %v6376 = vpop.f32.mrf.mxu0
    %v6377 = vadd.f32 %v982, %v6376
    %v6378 = vpop.f32.mrf.mxu0
    %v6379 = vadd.f32 %v986, %v6378
    %6380 = vmatprep.mubr.bf16.mxu0 %v1069
    %6381 = vmatmul.mubr.bf16.gmra.mxu0 %v1068
    %v6382 = vpop.f32.mrf.mxu0
    %v6383 = vadd.f32 %v982, %v6382
    %v6384 = vpop.f32.mrf.mxu0
    %v6385 = vadd.f32 %v986, %v6384
    %v6386 = vpop.f32.mrf.mxu0
    %v6387 = vpop.f32.mrf.mxu0
    %6388 = vdwg.mxu0
    %6389 = vmatprep.subr.bf16.mxu0 %v3794
    %6390 = vmatpush1.bf16.msra.mxu0 %v3793
    %6391 = vmatprep.subr.bf16.mxu0 %v3786
    %6392 = vmatpush1.bf16.msra.mxu0 %v3785
    %6393 = vmatprep.subr.bf16.mxu0 %v3778
    %6394 = vmatpush1.bf16.msra.mxu0 %v3777
    %6395 = vmatprep.subr.bf16.mxu0 %v3770
    %6396 = vmatpush1.bf16.msra.mxu0 %v3769
    %6397 = vmatprep.subr.bf16.mxu0 %v3762
    %6398 = vmatpush1.bf16.msra.mxu0 %v3761
    %6399 = vmatprep.subr.bf16.mxu0 %v3754
    %6400 = vmatpush1.bf16.msra.mxu0 %v3753
    %6401 = vmatprep.subr.bf16.mxu0 %v3746
    %6402 = vmatpush1.bf16.msra.mxu0 %v3745
    %6403 = vmatprep.subr.bf16.mxu0 %v3738
    %6404 = vmatpush1.bf16.msra.mxu0 %v3737
    %6405 = vmatprep.subr.bf16.mxu0 %v3858
    %6406 = vmatpush2.bf16.msra.mxu0 %v3857
    %6407 = vmatprep.subr.bf16.mxu0 %v3850
    %6408 = vmatpush2.bf16.msra.mxu0 %v3849
    %6409 = vmatprep.subr.bf16.mxu0 %v3842
    %6410 = vmatpush2.bf16.msra.mxu0 %v3841
    %6411 = vmatprep.subr.bf16.mxu0 %v3834
    %6412 = vmatpush2.bf16.msra.mxu0 %v3833
    %6413 = vmatprep.subr.bf16.mxu0 %v3826
    %6414 = vmatpush2.bf16.msra.mxu0 %v3825
    %6415 = vmatprep.subr.bf16.mxu0 %v3818
    %6416 = vmatpush2.bf16.msra.mxu0 %v3817
    %6417 = vmatprep.subr.bf16.mxu0 %v3810
    %6418 = vmatpush2.bf16.msra.mxu0 %v3809
    %6419 = vmatprep.subr.bf16.mxu0 %v3802
    %6420 = vmatpush2.bf16.msra.mxu0 %v3801
    %6421 = vmatprep.mubr.bf16.mxu0 %v1058
    %6422 = vmatmul.mubr.bf16.gmra.mxu0 %v1057
    %v6423 = vpop.f32.mrf.mxu0
    %v6424 = vadd.f32 %v6373, %v6423
    %v6425 = vpop.f32.mrf.mxu0
    %v6426 = vadd.f32 %v6375, %v6425
    %v6427 = vpop.f32.mrf.mxu0
    %v6428 = vadd.f32 %v6377, %v6427
    %v6429 = vpop.f32.mrf.mxu0
    %v6430 = vadd.f32 %v6379, %v6429
    %6431 = vmatprep.mubr.bf16.mxu0 %v1071
    %6432 = vmatmul.mubr.bf16.gmra.mxu0 %v1070
    %v6433 = vpop.f32.mrf.mxu0
    %v6434 = vadd.f32 %v6383, %v6433
    %v6435 = vpop.f32.mrf.mxu0
    %v6436 = vadd.f32 %v6385, %v6435
    %v6437 = vpop.f32.mrf.mxu0
    %v6438 = vpop.f32.mrf.mxu0
    %6439 = vdwg.mxu0
    %6440 = vmatprep.subr.bf16.mxu0 %v3922
    %6441 = vmatpush1.bf16.msra.mxu0 %v3921
    %6442 = vmatprep.subr.bf16.mxu0 %v3914
    %6443 = vmatpush1.bf16.msra.mxu0 %v3913
    %6444 = vmatprep.subr.bf16.mxu0 %v3906
    %6445 = vmatpush1.bf16.msra.mxu0 %v3905
    %6446 = vmatprep.subr.bf16.mxu0 %v3898
    %6447 = vmatpush1.bf16.msra.mxu0 %v3897
    %6448 = vmatprep.subr.bf16.mxu0 %v3890
    %6449 = vmatpush1.bf16.msra.mxu0 %v3889
    %6450 = vmatprep.subr.bf16.mxu0 %v3882
    %6451 = vmatpush1.bf16.msra.mxu0 %v3881
    %6452 = vmatprep.subr.bf16.mxu0 %v3874
    %6453 = vmatpush1.bf16.msra.mxu0 %v3873
    %6454 = vmatprep.subr.bf16.mxu0 %v3866
    %6455 = vmatpush1.bf16.msra.mxu0 %v3865
    %6456 = vmatprep.subr.bf16.mxu0 %v3986
    %6457 = vmatpush2.bf16.msra.mxu0 %v3985
    %6458 = vmatprep.subr.bf16.mxu0 %v3978
    %6459 = vmatpush2.bf16.msra.mxu0 %v3977
    %6460 = vmatprep.subr.bf16.mxu0 %v3970
    %6461 = vmatpush2.bf16.msra.mxu0 %v3969
    %6462 = vmatprep.subr.bf16.mxu0 %v3962
    %6463 = vmatpush2.bf16.msra.mxu0 %v3961
    %6464 = vmatprep.subr.bf16.mxu0 %v3954
    %6465 = vmatpush2.bf16.msra.mxu0 %v3953
    %6466 = vmatprep.subr.bf16.mxu0 %v3946
    %6467 = vmatpush2.bf16.msra.mxu0 %v3945
    %6468 = vmatprep.subr.bf16.mxu0 %v3938
    %6469 = vmatpush2.bf16.msra.mxu0 %v3937
    %6470 = vmatprep.subr.bf16.mxu0 %v3930
    %6471 = vmatpush2.bf16.msra.mxu0 %v3929
    %6472 = vmatprep.mubr.bf16.mxu0 %v1060
    %6473 = vmatmul.mubr.bf16.gmra.mxu0 %v1059
    %v6474 = vpop.f32.mrf.mxu0
    %v6475 = vadd.f32 %v6424, %v6474
    %v6476 = vpop.f32.mrf.mxu0
    %v6477 = vadd.f32 %v6426, %v6476
    %v6478 = vpop.f32.mrf.mxu0
    %v6479 = vadd.f32 %v6428, %v6478
    %v6480 = vpop.f32.mrf.mxu0
    %v6481 = vadd.f32 %v6430, %v6480
    %6482 = vmatprep.mubr.bf16.mxu0 %v1073
    %6483 = vmatmul.mubr.bf16.gmra.mxu0 %v1072
    %v6484 = vpop.f32.mrf.mxu0
    %v6485 = vadd.f32 %v6434, %v6484
    %v6486 = vpop.f32.mrf.mxu0
    %v6487 = vadd.f32 %v6436, %v6486
    %v6488 = vpop.f32.mrf.mxu0
    %v6489 = vpop.f32.mrf.mxu0
    %6490 = vdwg.mxu0
    %6491 = vmatprep.subr.bf16.mxu0 %v4050
    %6492 = vmatpush1.bf16.msra.mxu0 %v4049
    %6493 = vmatprep.subr.bf16.mxu0 %v4042
    %6494 = vmatpush1.bf16.msra.mxu0 %v4041
    %6495 = vmatprep.subr.bf16.mxu0 %v4034
    %6496 = vmatpush1.bf16.msra.mxu0 %v4033
    %6497 = vmatprep.subr.bf16.mxu0 %v4026
    %6498 = vmatpush1.bf16.msra.mxu0 %v4025
    %6499 = vmatprep.subr.bf16.mxu0 %v4018
    %6500 = vmatpush1.bf16.msra.mxu0 %v4017
    %6501 = vmatprep.subr.bf16.mxu0 %v4010
    %6502 = vmatpush1.bf16.msra.mxu0 %v4009
    %6503 = vmatprep.subr.bf16.mxu0 %v4002
    %6504 = vmatpush1.bf16.msra.mxu0 %v4001
    %6505 = vmatprep.subr.bf16.mxu0 %v3994
    %6506 = vmatpush1.bf16.msra.mxu0 %v3993
    %6507 = vmatprep.subr.bf16.mxu0 %v4114
    %6508 = vmatpush2.bf16.msra.mxu0 %v4113
    %6509 = vmatprep.subr.bf16.mxu0 %v4106
    %6510 = vmatpush2.bf16.msra.mxu0 %v4105
    %6511 = vmatprep.subr.bf16.mxu0 %v4098
    %6512 = vmatpush2.bf16.msra.mxu0 %v4097
    %6513 = vmatprep.subr.bf16.mxu0 %v4090
    %6514 = vmatpush2.bf16.msra.mxu0 %v4089
    %6515 = vmatprep.subr.bf16.mxu0 %v4082
    %6516 = vmatpush2.bf16.msra.mxu0 %v4081
    %6517 = vmatprep.subr.bf16.mxu0 %v4074
    %6518 = vmatpush2.bf16.msra.mxu0 %v4073
    %6519 = vmatprep.subr.bf16.mxu0 %v4066
    %6520 = vmatpush2.bf16.msra.mxu0 %v4065
    %6521 = vmatprep.subr.bf16.mxu0 %v4058
    %6522 = vmatpush2.bf16.msra.mxu0 %v4057
    %6523 = vmatprep.mubr.bf16.mxu0 %v1062
    %6524 = vmatmul.mubr.bf16.gmra.mxu0 %v1061
    %v6525 = vpop.f32.mrf.mxu0
    %v6526 = vadd.f32 %v6475, %v6525
    %v6527 = vpop.f32.mrf.mxu0
    %v6528 = vadd.f32 %v6477, %v6527
    %v6529 = vpop.f32.mrf.mxu0
    %v6530 = vadd.f32 %v6479, %v6529
    %v6531 = vpop.f32.mrf.mxu0
    %v6532 = vadd.f32 %v6481, %v6531
    %6533 = vmatprep.mubr.bf16.mxu0 %v1075
    %6534 = vmatmul.mubr.bf16.gmra.mxu0 %v1074
    %v6535 = vpop.f32.mrf.mxu0
    %v6536 = vadd.f32 %v6485, %v6535
    %v6537 = vpop.f32.mrf.mxu0
    %v6538 = vadd.f32 %v6487, %v6537
    %v6539 = vpop.f32.mrf.mxu0
    %v6540 = vpop.f32.mrf.mxu0
    %6541 = vdwg.mxu0
    %6542 = vmatprep.subr.bf16.mxu0 %v4178
    %6543 = vmatpush1.bf16.msra.mxu0 %v4177
    %6544 = vmatprep.subr.bf16.mxu0 %v4170
    %6545 = vmatpush1.bf16.msra.mxu0 %v4169
    %6546 = vmatprep.subr.bf16.mxu0 %v4162
    %6547 = vmatpush1.bf16.msra.mxu0 %v4161
    %6548 = vmatprep.subr.bf16.mxu0 %v4154
    %6549 = vmatpush1.bf16.msra.mxu0 %v4153
    %6550 = vmatprep.subr.bf16.mxu0 %v4146
    %6551 = vmatpush1.bf16.msra.mxu0 %v4145
    %6552 = vmatprep.subr.bf16.mxu0 %v4138
    %6553 = vmatpush1.bf16.msra.mxu0 %v4137
    %6554 = vmatprep.subr.bf16.mxu0 %v4130
    %6555 = vmatpush1.bf16.msra.mxu0 %v4129
    %6556 = vmatprep.subr.bf16.mxu0 %v4122
    %6557 = vmatpush1.bf16.msra.mxu0 %v4121
    %6558 = vmatprep.subr.bf16.mxu0 %v4242
    %6559 = vmatpush2.bf16.msra.mxu0 %v4241
    %6560 = vmatprep.subr.bf16.mxu0 %v4234
    %6561 = vmatpush2.bf16.msra.mxu0 %v4233
    %6562 = vmatprep.subr.bf16.mxu0 %v4226
    %6563 = vmatpush2.bf16.msra.mxu0 %v4225
    %6564 = vmatprep.subr.bf16.mxu0 %v4218
    %6565 = vmatpush2.bf16.msra.mxu0 %v4217
    %6566 = vmatprep.subr.bf16.mxu0 %v4210
    %6567 = vmatpush2.bf16.msra.mxu0 %v4209
    %6568 = vmatprep.subr.bf16.mxu0 %v4202
    %6569 = vmatpush2.bf16.msra.mxu0 %v4201
    %6570 = vmatprep.subr.bf16.mxu0 %v4194
    %6571 = vmatpush2.bf16.msra.mxu0 %v4193
    %6572 = vmatprep.subr.bf16.mxu0 %v4186
    %6573 = vmatpush2.bf16.msra.mxu0 %v4185
    %6574 = vmatprep.mubr.bf16.mxu0 %v1064
    %6575 = vmatmul.mubr.bf16.gmra.mxu0 %v1063
    %v6576 = vpop.f32.mrf.mxu0
    %v6577 = vadd.f32 %v6526, %v6576
    %v6578 = vpop.f32.mrf.mxu0
    %v6579 = vadd.f32 %v6528, %v6578
    %v6580 = vpop.f32.mrf.mxu0
    %v6581 = vadd.f32 %v6530, %v6580
    %v6582 = vpop.f32.mrf.mxu0
    %v6583 = vadd.f32 %v6532, %v6582
    %6584 = vmatprep.mubr.bf16.mxu0 %v1077
    %6585 = vmatmul.mubr.bf16.gmra.mxu0 %v1076
    %v6586 = vpop.f32.mrf.mxu0
    %v6587 = vadd.f32 %v6536, %v6586
    %v6588 = vpop.f32.mrf.mxu0
    %v6589 = vadd.f32 %v6538, %v6588
    %v6590 = vpop.f32.mrf.mxu0
    %v6591 = vpop.f32.mrf.mxu0
    %6592 = vdwg.mxu0
    %6593 = vmatprep.subr.bf16.mxu0 %v4306
    %6594 = vmatpush1.bf16.msra.mxu0 %v4305
    %6595 = vmatprep.subr.bf16.mxu0 %v4298
    %6596 = vmatpush1.bf16.msra.mxu0 %v4297
    %6597 = vmatprep.subr.bf16.mxu0 %v4290
    %6598 = vmatpush1.bf16.msra.mxu0 %v4289
    %6599 = vmatprep.subr.bf16.mxu0 %v4282
    %6600 = vmatpush1.bf16.msra.mxu0 %v4281
    %6601 = vmatprep.subr.bf16.mxu0 %v4274
    %6602 = vmatpush1.bf16.msra.mxu0 %v4273
    %6603 = vmatprep.subr.bf16.mxu0 %v4266
    %6604 = vmatpush1.bf16.msra.mxu0 %v4265
    %6605 = vmatprep.subr.bf16.mxu0 %v4258
    %6606 = vmatpush1.bf16.msra.mxu0 %v4257
    %6607 = vmatprep.subr.bf16.mxu0 %v4250
    %6608 = vmatpush1.bf16.msra.mxu0 %v4249
    %6609 = vmatprep.subr.bf16.mxu0 %v4370
    %6610 = vmatpush2.bf16.msra.mxu0 %v4369
    %6611 = vmatprep.subr.bf16.mxu0 %v4362
    %6612 = vmatpush2.bf16.msra.mxu0 %v4361
    %6613 = vmatprep.subr.bf16.mxu0 %v4354
    %6614 = vmatpush2.bf16.msra.mxu0 %v4353
    %6615 = vmatprep.subr.bf16.mxu0 %v4346
    %6616 = vmatpush2.bf16.msra.mxu0 %v4345
    %6617 = vmatprep.subr.bf16.mxu0 %v4338
    %6618 = vmatpush2.bf16.msra.mxu0 %v4337
    %6619 = vmatprep.subr.bf16.mxu0 %v4330
    %6620 = vmatpush2.bf16.msra.mxu0 %v4329
    %6621 = vmatprep.subr.bf16.mxu0 %v4322
    %6622 = vmatpush2.bf16.msra.mxu0 %v4321
    %6623 = vmatprep.subr.bf16.mxu0 %v4314
    %6624 = vmatpush2.bf16.msra.mxu0 %v4313
    %6625 = vmatprep.mubr.bf16.mxu0 %v1066
    %6626 = vmatmul.mubr.bf16.gmra.mxu0 %v1065
    %v6627 = vpop.f32.mrf.mxu0
    %v6628 = vadd.f32 %v6577, %v6627
    %v6629 = vpop.f32.mrf.mxu0
    %v6630 = vadd.f32 %v6579, %v6629
    %v6631 = vpop.f32.mrf.mxu0
    %v6632 = vadd.f32 %v6581, %v6631
    %v6633 = vpop.f32.mrf.mxu0
    %v6634 = vadd.f32 %v6583, %v6633
    %6635 = vmatprep.mubr.bf16.mxu0 %v1079
    %6636 = vmatmul.mubr.bf16.gmra.mxu0 %v1078
    %v6637 = vpop.f32.mrf.mxu0
    %v6638 = vadd.f32 %v6587, %v6637
    %v6639 = vpop.f32.mrf.mxu0
    %v6640 = vadd.f32 %v6589, %v6639
    %v6641 = vpop.f32.mrf.mxu0
    %v6642 = vpop.f32.mrf.mxu0
    %6643 = vdwg.mxu0
    %6644 = vmatprep.subr.bf16.mxu0 %v4434
    %6645 = vmatpush1.bf16.msra.mxu0 %v4433
    %6646 = vmatprep.subr.bf16.mxu0 %v4426
    %6647 = vmatpush1.bf16.msra.mxu0 %v4425
    %6648 = vmatprep.subr.bf16.mxu0 %v4418
    %6649 = vmatpush1.bf16.msra.mxu0 %v4417
    %6650 = vmatprep.subr.bf16.mxu0 %v4410
    %6651 = vmatpush1.bf16.msra.mxu0 %v4409
    %6652 = vmatprep.subr.bf16.mxu0 %v4402
    %6653 = vmatpush1.bf16.msra.mxu0 %v4401
    %6654 = vmatprep.subr.bf16.mxu0 %v4394
    %6655 = vmatpush1.bf16.msra.mxu0 %v4393
    %6656 = vmatprep.subr.bf16.mxu0 %v4386
    %6657 = vmatpush1.bf16.msra.mxu0 %v4385
    %6658 = vmatprep.subr.bf16.mxu0 %v4378
    %6659 = vmatpush1.bf16.msra.mxu0 %v4377
    %6660 = vmatprep.subr.bf16.mxu0 0
    %6661 = vmatpush2.bf16.msra.mxu0 0
    %6662 = vmatprep.subr.bf16.mxu0 0
    %6663 = vmatpush2.bf16.msra.mxu0 0
    %6664 = vmatprep.subr.bf16.mxu0 0
    %6665 = vmatpush2.bf16.msra.mxu0 0
    %6666 = vmatprep.subr.bf16.mxu0 0
    %6667 = vmatpush2.bf16.msra.mxu0 0
    %6668 = vmatprep.subr.bf16.mxu0 0
    %6669 = vmatpush2.bf16.msra.mxu0 0
    %6670 = vmatprep.subr.bf16.mxu0 0
    %6671 = vmatpush2.bf16.msra.mxu0 0
    %6672 = vmatprep.subr.bf16.mxu0 0
    %6673 = vmatpush2.bf16.msra.mxu0 0
    %6674 = vmatprep.subr.bf16.mxu0 0
    %6675 = vmatpush2.bf16.msra.mxu0 0
    %6676 = vmatprep.mubr.bf16.mxu0 0
    %6677 = vmatmul.mubr.bf16.gmra.mxu0 %v1067
    %v6678 = vpop.f32.mrf.mxu0
    %v6679 = vadd.f32 %v6628, %v6678
    %v6680 = vpop.f32.mrf.mxu0
    %v6681 = vadd.f32 %v6630, %v6680
    %v6682 = vpop.f32.mrf.mxu0
    %v6683 = vadd.f32 %v6632, %v6682
    %v6684 = vpop.f32.mrf.mxu0
    %v6685 = vadd.f32 %v6634, %v6684
    %6686 = vmatprep.mubr.bf16.mxu0 0
    %6687 = vmatmul.mubr.bf16.gmra.mxu0 %v1080
    %v6688 = vpop.f32.mrf.mxu0
    %v6689 = vadd.f32 %v6638, %v6688
    %v6690 = vpop.f32.mrf.mxu0
    %v6691 = vadd.f32 %v6640, %v6690
    %v6692 = vpop.f32.mrf.mxu0
    %v6693 = vpop.f32.mrf.mxu0
    %6694 = vdwg.mxu0
    %v6695 = vmax.f32 %v5608, 0.0
    %v6696 = vmax.f32 %v5610, 0.0
    %v6697 = vmax.f32 %v5965, 0.0
    %v6698 = vmax.f32 %v5967, 0.0
    %v6699 = vmax.f32 %v6322, 0.0
    %v6700 = vmax.f32 %v6324, 0.0
    %v6701 = vmax.f32 %v6679, 0.0
    %v6702 = vmax.f32 %v6681, 0.0
    %v6703 = vmax.f32 %v5612, 0.0
    %v6704 = vmax.f32 %v5614, 0.0
    %v6705 = vmax.f32 %v5969, 0.0
    %v6706 = vmax.f32 %v5971, 0.0
    %v6707 = vmax.f32 %v6326, 0.0
    %v6708 = vmax.f32 %v6328, 0.0
    %v6709 = vmax.f32 %v6683, 0.0
    %v6710 = vmax.f32 %v6685, 0.0
    %v6711 = vmax.f32 %v5618, 0.0
    %v6712 = vmax.f32 %v5620, 0.0
    %v6713 = vmax.f32 %v5975, 0.0
    %v6714 = vmax.f32 %v5977, 0.0
    %v6715 = vmax.f32 %v6332, 0.0
    %v6716 = vmax.f32 %v6334, 0.0
    %v6717 = vmax.f32 %v6689, 0.0
    %v6718 = vmax.f32 %v6691, 0.0
    %v6719 = vpack.c.bf16 %v6703, %v6695
    %v6720 = vpack.c.bf16 %v6704, %v6696
    %v6721 = vpack.c.bf16 %v6705, %v6697
    %v6722 = vpack.c.bf16 %v6706, %v6698
    %v6723 = vpack.c.bf16 %v6707, %v6699
    %v6724 = vpack.c.bf16 %v6708, %v6700
    %v6725 = vpack.c.bf16 %v6709, %v6701
    %v6726 = vpack.c.bf16 %v6710, %v6702
    %v6727 = vpack.c.bf16 %v6711, %v6711
    %v6728 = vpack.c.bf16 %v6712, %v6712
    %v6729 = vpack.c.bf16 %v6713, %v6713
    %v6730 = vpack.c.bf16 %v6714, %v6714
    %v6731 = vpack.c.bf16 %v6715, %v6715
    %v6732 = vpack.c.bf16 %v6716, %v6716
    %v6733 = vpack.c.bf16 %v6717, %v6717
    %v6734 = vpack.c.bf16 %v6718, %v6718
    %v6735 = vld [vmem:[#allocation9] sm:$0xff]
    %v6736 = vld [vmem:[#allocation9 + $0x8] sm:$0xff]
    %v6737 = vld [vmem:[#allocation9 + $0x10] sm:$0xff]
    %v6738 = vld [vmem:[#allocation9 + $0x18] sm:$0xff]
    %v6739 = vld [vmem:[#allocation9 + $0x20] sm:$0xff]
    %v6740 = vld [vmem:[#allocation9 + $0x28] sm:$0xff]
    %v6741 = vld [vmem:[#allocation9 + $0x30] sm:$0xff]
    %v6742 = vld [vmem:[#allocation9 + $0x38] sm:$0xff]
    %v6743 = vld [vmem:[#allocation9 + $0x40] sm:$0xff]
    %v6744 = vld [vmem:[#allocation9 + $0x48] sm:$0xff]
    %v6745 = vld [vmem:[#allocation9 + $0x50] sm:$0xff]
    %v6746 = vld [vmem:[#allocation9 + $0x58] sm:$0xff]
    %v6747 = vld [vmem:[#allocation9 + $0x60] sm:$0xff]
    %v6748 = vld [vmem:[#allocation9 + $0x68] sm:$0xff]
    %v6749 = vld [vmem:[#allocation9 + $0x70] sm:$0xff]
    %v6750 = vld [vmem:[#allocation9 + $0x78] sm:$0xff]
    %v6751 = vld [vmem:[#allocation9 + $0x80] sm:$0xff]
    %v6752 = vld [vmem:[#allocation9 + $0x88] sm:$0xff]
    %v6753 = vld [vmem:[#allocation9 + $0x90] sm:$0xff]
    %v6754 = vld [vmem:[#allocation9 + $0x98] sm:$0xff]
    %v6755 = vld [vmem:[#allocation9 + $0xa0] sm:$0xff]
    %v6756 = vld [vmem:[#allocation9 + $0xa8] sm:$0xff]
    %v6757 = vld [vmem:[#allocation9 + $0xb0] sm:$0xff]
    %v6758 = vld [vmem:[#allocation9 + $0xb8] sm:$0xff]
    %v6759 = vld [vmem:[#allocation9 + $0xc0] sm:$0xff]
    %v6760 = vld [vmem:[#allocation9 + $0xc8] sm:$0xff]
    %v6761 = vld [vmem:[#allocation9 + $0xd0] sm:$0xff]
    %v6762 = vld [vmem:[#allocation9 + $0xd8] sm:$0xff]
    %v6763 = vld [vmem:[#allocation9 + $0xe0] sm:$0xff]
    %v6764 = vld [vmem:[#allocation9 + $0xe8] sm:$0xff]
    %v6765 = vld [vmem:[#allocation9 + $0xf0] sm:$0xff]
    %v6766 = vld [vmem:[#allocation9 + $0xf8] sm:$0xff]
    %v6767 = vld [vmem:[#allocation9 + $0x100] sm:$0xff]
    %v6768 = vld [vmem:[#allocation9 + $0x108] sm:$0xff]
    %v6769 = vld [vmem:[#allocation9 + $0x110] sm:$0xff]
    %v6770 = vld [vmem:[#allocation9 + $0x118] sm:$0xff]
    %v6771 = vld [vmem:[#allocation9 + $0x120] sm:$0xff]
    %v6772 = vld [vmem:[#allocation9 + $0x128] sm:$0xff]
    %v6773 = vld [vmem:[#allocation9 + $0x130] sm:$0xff]
    %v6774 = vld [vmem:[#allocation9 + $0x138] sm:$0xff]
    %v6775 = vld [vmem:[#allocation9 + $0x140] sm:$0xff]
    %v6776 = vld [vmem:[#allocation9 + $0x148] sm:$0xff]
    %v6777 = vld [vmem:[#allocation9 + $0x150] sm:$0xff]
    %v6778 = vld [vmem:[#allocation9 + $0x158] sm:$0xff]
    %v6779 = vld [vmem:[#allocation9 + $0x160] sm:$0xff]
    %v6780 = vld [vmem:[#allocation9 + $0x168] sm:$0xff]
    %v6781 = vld [vmem:[#allocation9 + $0x170] sm:$0xff]
    %v6782 = vld [vmem:[#allocation9 + $0x178] sm:$0xff]
    %v6783 = vld [vmem:[#allocation9 + $0x180] sm:$0xff]
    %v6784 = vld [vmem:[#allocation9 + $0x188] sm:$0xff]
    %v6785 = vld [vmem:[#allocation9 + $0x190] sm:$0xff]
    %v6786 = vld [vmem:[#allocation9 + $0x198] sm:$0xff]
    %v6787 = vld [vmem:[#allocation9 + $0x1a0] sm:$0xff]
    %v6788 = vld [vmem:[#allocation9 + $0x1a8] sm:$0xff]
    %v6789 = vld [vmem:[#allocation9 + $0x1b0] sm:$0xff]
    %v6790 = vld [vmem:[#allocation9 + $0x1b8] sm:$0xff]
    %v6791 = vld [vmem:[#allocation9 + $0x1c0] sm:$0xff]
    %v6792 = vld [vmem:[#allocation9 + $0x1c8] sm:$0xff]
    %v6793 = vld [vmem:[#allocation9 + $0x1d0] sm:$0xff]
    %v6794 = vld [vmem:[#allocation9 + $0x1d8] sm:$0xff]
    %v6795 = vld [vmem:[#allocation9 + $0x1e0] sm:$0xff]
    %v6796 = vld [vmem:[#allocation9 + $0x1e8] sm:$0xff]
    %v6797 = vld [vmem:[#allocation9 + $0x1f0] sm:$0xff]
    %v6798 = vld [vmem:[#allocation9 + $0x1f8] sm:$0xff]
    %v6799 = vld [vmem:[#allocation9 + $0x200] sm:$0xff]
    %v6800 = vld [vmem:[#allocation9 + $0x208] sm:$0xff]
    %v6801 = vld [vmem:[#allocation9 + $0x210] sm:$0xff]
    %v6802 = vld [vmem:[#allocation9 + $0x218] sm:$0xff]
    %v6803 = vld [vmem:[#allocation9 + $0x220] sm:$0xff]
    %v6804 = vld [vmem:[#allocation9 + $0x228] sm:$0xff]
    %v6805 = vld [vmem:[#allocation9 + $0x230] sm:$0xff]
    %v6806 = vld [vmem:[#allocation9 + $0x238] sm:$0xff]
    %v6807 = vld [vmem:[#allocation9 + $0x240] sm:$0xff]
    %v6808 = vld [vmem:[#allocation9 + $0x248] sm:$0xff]
    %v6809 = vld [vmem:[#allocation9 + $0x250] sm:$0xff]
    %v6810 = vld [vmem:[#allocation9 + $0x258] sm:$0xff]
    %v6811 = vld [vmem:[#allocation9 + $0x260] sm:$0xff]
    %v6812 = vld [vmem:[#allocation9 + $0x268] sm:$0xff]
    %v6813 = vld [vmem:[#allocation9 + $0x270] sm:$0xff]
    %v6814 = vld [vmem:[#allocation9 + $0x278] sm:$0xff]
    %v6815 = vld [vmem:[#allocation9 + $0x280] sm:$0xff]
    %v6816 = vld [vmem:[#allocation9 + $0x288] sm:$0xff]
    %v6817 = vld [vmem:[#allocation9 + $0x290] sm:$0xff]
    %v6818 = vld [vmem:[#allocation9 + $0x298] sm:$0xff]
    %v6819 = vld [vmem:[#allocation9 + $0x2a0] sm:$0xff]
    %v6820 = vld [vmem:[#allocation9 + $0x2a8] sm:$0xff]
    %v6821 = vld [vmem:[#allocation9 + $0x2b0] sm:$0xff]
    %v6822 = vld [vmem:[#allocation9 + $0x2b8] sm:$0xff]
    %v6823 = vld [vmem:[#allocation9 + $0x2c0] sm:$0xff]
    %v6824 = vld [vmem:[#allocation9 + $0x2c8] sm:$0xff]
    %v6825 = vld [vmem:[#allocation9 + $0x2d0] sm:$0xff]
    %v6826 = vld [vmem:[#allocation9 + $0x2d8] sm:$0xff]
    %v6827 = vld [vmem:[#allocation9 + $0x2e0] sm:$0xff]
    %v6828 = vld [vmem:[#allocation9 + $0x2e8] sm:$0xff]
    %v6829 = vld [vmem:[#allocation9 + $0x2f0] sm:$0xff]
    %v6830 = vld [vmem:[#allocation9 + $0x2f8] sm:$0xff]
    %v6831 = vld [vmem:[#allocation9 + $0x300] sm:$0xff]
    %v6832 = vld [vmem:[#allocation9 + $0x308] sm:$0xff]
    %v6833 = vld [vmem:[#allocation9 + $0x310] sm:$0xff]
    %v6834 = vld [vmem:[#allocation9 + $0x318] sm:$0xff]
    %v6835 = vld [vmem:[#allocation9 + $0x320] sm:$0xff]
    %v6836 = vld [vmem:[#allocation9 + $0x328] sm:$0xff]
    %v6837 = vld [vmem:[#allocation9 + $0x330] sm:$0xff]
    %v6838 = vld [vmem:[#allocation9 + $0x338] sm:$0xff]
    %v6839 = vld [vmem:[#allocation9 + $0x340] sm:$0xff]
    %v6840 = vld [vmem:[#allocation9 + $0x348] sm:$0xff]
    %v6841 = vld [vmem:[#allocation9 + $0x350] sm:$0xff]
    %v6842 = vld [vmem:[#allocation9 + $0x358] sm:$0xff]
    %v6843 = vld [vmem:[#allocation9 + $0x360] sm:$0xff]
    %v6844 = vld [vmem:[#allocation9 + $0x368] sm:$0xff]
    %v6845 = vld [vmem:[#allocation9 + $0x370] sm:$0xff]
    %v6846 = vld [vmem:[#allocation9 + $0x378] sm:$0xff]
    %v6847 = vld [vmem:[#allocation9 + $0x380] sm:$0xff]
    %v6848 = vld [vmem:[#allocation9 + $0x388] sm:$0xff]
    %v6849 = vld [vmem:[#allocation9 + $0x390] sm:$0xff]
    %v6850 = vld [vmem:[#allocation9 + $0x398] sm:$0xff]
    %v6851 = vld [vmem:[#allocation9 + $0x3a0] sm:$0xff]
    %v6852 = vld [vmem:[#allocation9 + $0x3a8] sm:$0xff]
    %v6853 = vld [vmem:[#allocation9 + $0x3b0] sm:$0xff]
    %v6854 = vld [vmem:[#allocation9 + $0x3b8] sm:$0xff]
    %v6855 = vld [vmem:[#allocation9 + $0x3c0] sm:$0xff]
    %v6856 = vld [vmem:[#allocation9 + $0x3c8] sm:$0xff]
    %v6857 = vld [vmem:[#allocation9 + $0x3d0] sm:$0xff]
    %v6858 = vld [vmem:[#allocation9 + $0x3d8] sm:$0xff]
    %v6859 = vld [vmem:[#allocation9 + $0x3e0] sm:$0xff]
    %v6860 = vld [vmem:[#allocation9 + $0x3e8] sm:$0xff]
    %v6861 = vld [vmem:[#allocation9 + $0x3f0] sm:$0xff]
    %v6862 = vld [vmem:[#allocation9 + $0x3f8] sm:$0xff]
    %v6863 = vld [vmem:[#allocation9 + $0x400] sm:$0xff]
    %v6864 = vld [vmem:[#allocation9 + $0x408] sm:$0xff]
    %v6865 = vld [vmem:[#allocation9 + $0x410] sm:$0xff]
    %v6866 = vld [vmem:[#allocation9 + $0x418] sm:$0xff]
    %v6867 = vld [vmem:[#allocation9 + $0x420] sm:$0xff]
    %v6868 = vld [vmem:[#allocation9 + $0x428] sm:$0xff]
    %v6869 = vld [vmem:[#allocation9 + $0x430] sm:$0xff]
    %v6870 = vld [vmem:[#allocation9 + $0x438] sm:$0xff]
    %v6871 = vld [vmem:[#allocation9 + $0x440] sm:$0xff]
    %v6872 = vld [vmem:[#allocation9 + $0x448] sm:$0xff]
    %v6873 = vld [vmem:[#allocation9 + $0x450] sm:$0xff]
    %v6874 = vld [vmem:[#allocation9 + $0x458] sm:$0xff]
    %v6875 = vld [vmem:[#allocation9 + $0x460] sm:$0xff]
    %v6876 = vld [vmem:[#allocation9 + $0x468] sm:$0xff]
    %v6877 = vld [vmem:[#allocation9 + $0x470] sm:$0xff]
    %v6878 = vld [vmem:[#allocation9 + $0x478] sm:$0xff]
    %v6879 = vld [vmem:[#allocation9 + $0x480] sm:$0xff]
    %v6880 = vld [vmem:[#allocation9 + $0x488] sm:$0xff]
    %v6881 = vld [vmem:[#allocation9 + $0x490] sm:$0xff]
    %v6882 = vld [vmem:[#allocation9 + $0x498] sm:$0xff]
    %v6883 = vld [vmem:[#allocation9 + $0x4a0] sm:$0xff]
    %v6884 = vld [vmem:[#allocation9 + $0x4a8] sm:$0xff]
    %v6885 = vld [vmem:[#allocation9 + $0x4b0] sm:$0xff]
    %v6886 = vld [vmem:[#allocation9 + $0x4b8] sm:$0xff]
    %v6887 = vld [vmem:[#allocation9 + $0x4c0] sm:$0xff]
    %v6888 = vld [vmem:[#allocation9 + $0x4c8] sm:$0xff]
    %v6889 = vld [vmem:[#allocation9 + $0x4d0] sm:$0xff]
    %v6890 = vld [vmem:[#allocation9 + $0x4d8] sm:$0xff]
    %v6891 = vld [vmem:[#allocation9 + $0x4e0] sm:$0xff]
    %v6892 = vld [vmem:[#allocation9 + $0x4e8] sm:$0xff]
    %v6893 = vld [vmem:[#allocation9 + $0x4f0] sm:$0xff]
    %v6894 = vld [vmem:[#allocation9 + $0x4f8] sm:$0xff]
    %v6895 = vld [vmem:[#allocation9 + $0x500] sm:$0xff]
    %v6896 = vld [vmem:[#allocation9 + $0x508] sm:$0xff]
    %v6897 = vld [vmem:[#allocation9 + $0x510] sm:$0xff]
    %v6898 = vld [vmem:[#allocation9 + $0x518] sm:$0xff]
    %v6899 = vld [vmem:[#allocation9 + $0x520] sm:$0xff]
    %v6900 = vld [vmem:[#allocation9 + $0x528] sm:$0xff]
    %v6901 = vld [vmem:[#allocation9 + $0x530] sm:$0xff]
    %v6902 = vld [vmem:[#allocation9 + $0x538] sm:$0xff]
    %v6903 = vld [vmem:[#allocation9 + $0x540] sm:$0xff]
    %v6904 = vld [vmem:[#allocation9 + $0x548] sm:$0xff]
    %v6905 = vld [vmem:[#allocation9 + $0x550] sm:$0xff]
    %v6906 = vld [vmem:[#allocation9 + $0x558] sm:$0xff]
    %v6907 = vld [vmem:[#allocation9 + $0x560] sm:$0xff]
    %v6908 = vld [vmem:[#allocation9 + $0x568] sm:$0xff]
    %v6909 = vld [vmem:[#allocation9 + $0x570] sm:$0xff]
    %v6910 = vld [vmem:[#allocation9 + $0x578] sm:$0xff]
    %v6911 = vld [vmem:[#allocation9 + $0x580] sm:$0xff]
    %v6912 = vld [vmem:[#allocation9 + $0x588] sm:$0xff]
    %v6913 = vld [vmem:[#allocation9 + $0x590] sm:$0xff]
    %v6914 = vld [vmem:[#allocation9 + $0x598] sm:$0xff]
    %v6915 = vld [vmem:[#allocation9 + $0x5a0] sm:$0xff]
    %v6916 = vld [vmem:[#allocation9 + $0x5a8] sm:$0xff]
    %v6917 = vld [vmem:[#allocation9 + $0x5b0] sm:$0xff]
    %v6918 = vld [vmem:[#allocation9 + $0x5b8] sm:$0xff]
    %v6919 = vld [vmem:[#allocation9 + $0x5c0] sm:$0xff]
    %v6920 = vld [vmem:[#allocation9 + $0x5c8] sm:$0xff]
    %v6921 = vld [vmem:[#allocation9 + $0x5d0] sm:$0xff]
    %v6922 = vld [vmem:[#allocation9 + $0x5d8] sm:$0xff]
    %v6923 = vld [vmem:[#allocation9 + $0x5e0] sm:$0xff]
    %v6924 = vld [vmem:[#allocation9 + $0x5e8] sm:$0xff]
    %v6925 = vld [vmem:[#allocation9 + $0x5f0] sm:$0xff]
    %v6926 = vld [vmem:[#allocation9 + $0x5f8] sm:$0xff]
    %v6927 = vld [vmem:[#allocation9 + $0x600] sm:$0xff]
    %v6928 = vld [vmem:[#allocation9 + $0x608] sm:$0xff]
    %v6929 = vld [vmem:[#allocation9 + $0x610] sm:$0xff]
    %v6930 = vld [vmem:[#allocation9 + $0x618] sm:$0xff]
    %v6931 = vld [vmem:[#allocation9 + $0x620] sm:$0xff]
    %v6932 = vld [vmem:[#allocation9 + $0x628] sm:$0xff]
    %v6933 = vld [vmem:[#allocation9 + $0x630] sm:$0xff]
    %v6934 = vld [vmem:[#allocation9 + $0x638] sm:$0xff]
    %v6935 = vld [vmem:[#allocation9 + $0x640] sm:$0xff]
    %v6936 = vld [vmem:[#allocation9 + $0x648] sm:$0xff]
    %v6937 = vld [vmem:[#allocation9 + $0x650] sm:$0xff]
    %v6938 = vld [vmem:[#allocation9 + $0x658] sm:$0xff]
    %v6939 = vld [vmem:[#allocation9 + $0x660] sm:$0xff]
    %v6940 = vld [vmem:[#allocation9 + $0x668] sm:$0xff]
    %v6941 = vld [vmem:[#allocation9 + $0x670] sm:$0xff]
    %v6942 = vld [vmem:[#allocation9 + $0x678] sm:$0xff]
    %v6943 = vld [vmem:[#allocation9 + $0x680] sm:$0xff]
    %v6944 = vld [vmem:[#allocation9 + $0x688] sm:$0xff]
    %v6945 = vld [vmem:[#allocation9 + $0x690] sm:$0xff]
    %v6946 = vld [vmem:[#allocation9 + $0x698] sm:$0xff]
    %v6947 = vld [vmem:[#allocation9 + $0x6a0] sm:$0xff]
    %v6948 = vld [vmem:[#allocation9 + $0x6a8] sm:$0xff]
    %v6949 = vld [vmem:[#allocation9 + $0x6b0] sm:$0xff]
    %v6950 = vld [vmem:[#allocation9 + $0x6b8] sm:$0xff]
    %v6951 = vld [vmem:[#allocation9 + $0x6c0] sm:$0xff]
    %v6952 = vld [vmem:[#allocation9 + $0x6c8] sm:$0xff]
    %v6953 = vld [vmem:[#allocation9 + $0x6d0] sm:$0xff]
    %v6954 = vld [vmem:[#allocation9 + $0x6d8] sm:$0xff]
    %v6955 = vld [vmem:[#allocation9 + $0x6e0] sm:$0xff]
    %v6956 = vld [vmem:[#allocation9 + $0x6e8] sm:$0xff]
    %v6957 = vld [vmem:[#allocation9 + $0x6f0] sm:$0xff]
    %v6958 = vld [vmem:[#allocation9 + $0x6f8] sm:$0xff]
    %v6959 = vld [vmem:[#allocation9 + $0x700] sm:$0xff]
    %v6960 = vld [vmem:[#allocation9 + $0x708] sm:$0xff]
    %v6961 = vld [vmem:[#allocation9 + $0x710] sm:$0xff]
    %v6962 = vld [vmem:[#allocation9 + $0x718] sm:$0xff]
    %v6963 = vld [vmem:[#allocation9 + $0x720] sm:$0xff]
    %v6964 = vld [vmem:[#allocation9 + $0x728] sm:$0xff]
    %v6965 = vld [vmem:[#allocation9 + $0x730] sm:$0xff]
    %v6966 = vld [vmem:[#allocation9 + $0x738] sm:$0xff]
    %v6967 = vld [vmem:[#allocation9 + $0x740] sm:$0xff]
    %v6968 = vld [vmem:[#allocation9 + $0x748] sm:$0xff]
    %v6969 = vld [vmem:[#allocation9 + $0x750] sm:$0xff]
    %v6970 = vld [vmem:[#allocation9 + $0x758] sm:$0xff]
    %v6971 = vld [vmem:[#allocation9 + $0x760] sm:$0xff]
    %v6972 = vld [vmem:[#allocation9 + $0x768] sm:$0xff]
    %v6973 = vld [vmem:[#allocation9 + $0x770] sm:$0xff]
    %v6974 = vld [vmem:[#allocation9 + $0x778] sm:$0xff]
    %v6975 = vld [vmem:[#allocation9 + $0x780] sm:$0xff]
    %v6976 = vld [vmem:[#allocation9 + $0x788] sm:$0xff]
    %v6977 = vld [vmem:[#allocation9 + $0x790] sm:$0xff]
    %v6978 = vld [vmem:[#allocation9 + $0x798] sm:$0xff]
    %v6979 = vld [vmem:[#allocation9 + $0x7a0] sm:$0xff]
    %v6980 = vld [vmem:[#allocation9 + $0x7a8] sm:$0xff]
    %v6981 = vld [vmem:[#allocation9 + $0x7b0] sm:$0xff]
    %v6982 = vld [vmem:[#allocation9 + $0x7b8] sm:$0xff]
    %v6983 = vld [vmem:[#allocation9 + $0x7c0] sm:$0xff]
    %v6984 = vld [vmem:[#allocation9 + $0x7c8] sm:$0xff]
    %v6985 = vld [vmem:[#allocation9 + $0x7d0] sm:$0xff]
    %v6986 = vld [vmem:[#allocation9 + $0x7d8] sm:$0xff]
    %v6987 = vld [vmem:[#allocation9 + $0x7e0] sm:$0xff]
    %v6988 = vld [vmem:[#allocation9 + $0x7e8] sm:$0xff]
    %v6989 = vld [vmem:[#allocation9 + $0x7f0] sm:$0xff]
    %v6990 = vld [vmem:[#allocation9 + $0x7f8] sm:$0xff]
    %v6991 = vld [vmem:[#allocation11] sm:$0xf]
    %v6993 = vlaneseq
    %v6994 = vshrl.u32 %v6993, 7
    %v6995 = vsub.s32 0, %v6994
    %v6996 = vrot.slane %v6991, %v6995
    %v6997 = vlaneseq
    %v6998 = vshrl.u32 %v6997, 7
    %v6999 = vsub.s32 1, %v6998
    %v7000 = vrot.slane %v6991, %v6999
    %v7001 = vlaneseq
    %v7002 = vshrl.u32 %v7001, 7
    %v7003 = vsub.s32 2, %v7002
    %v7004 = vrot.slane %v6991, %v7003
    %v7005 = vlaneseq
    %v7006 = vshrl.u32 %v7005, 7
    %v7007 = vsub.s32 3, %v7006
    %v7008 = vrot.slane %v6991, %v7007
    %v7269 = vunpack.c.l.b16 %v6735
    %v7270 = vunpack.c.h.b16 %v6735
    %v7271 = vunpack.c.l.b16 %v6736
    %v7272 = vunpack.c.h.b16 %v6736
    %v7273 = vunpack.c.l.b16 %v6737
    %v7274 = vunpack.c.h.b16 %v6737
    %v7275 = vunpack.c.l.b16 %v6738
    %v7276 = vunpack.c.h.b16 %v6738
    %v7277 = vunpack.c.l.b16 %v6739
    %v7278 = vunpack.c.h.b16 %v6739
    %v7279 = vunpack.c.l.b16 %v6740
    %v7280 = vunpack.c.h.b16 %v6740
    %v7281 = vunpack.c.l.b16 %v6741
    %v7282 = vunpack.c.h.b16 %v6741
    %v7283 = vunpack.c.l.b16 %v6742
    %v7284 = vunpack.c.h.b16 %v6742
    %v7285 = vunpack.c.l.b16 %v6743
    %v7286 = vunpack.c.h.b16 %v6743
    %v7287 = vunpack.c.l.b16 %v6744
    %v7288 = vunpack.c.h.b16 %v6744
    %v7289 = vunpack.c.l.b16 %v6745
    %v7290 = vunpack.c.h.b16 %v6745
    %v7291 = vunpack.c.l.b16 %v6746
    %v7292 = vunpack.c.h.b16 %v6746
    %v7293 = vunpack.c.l.b16 %v6747
    %v7294 = vunpack.c.h.b16 %v6747
    %v7295 = vunpack.c.l.b16 %v6748
    %v7296 = vunpack.c.h.b16 %v6748
    %v7297 = vunpack.c.l.b16 %v6749
    %v7298 = vunpack.c.h.b16 %v6749
    %v7299 = vunpack.c.l.b16 %v6750
    %v7300 = vunpack.c.h.b16 %v6750
    %v7301 = vunpack.c.l.b16 %v6751
    %v7302 = vunpack.c.h.b16 %v6751
    %v7303 = vunpack.c.l.b16 %v6752
    %v7304 = vunpack.c.h.b16 %v6752
    %v7305 = vunpack.c.l.b16 %v6753
    %v7306 = vunpack.c.h.b16 %v6753
    %v7307 = vunpack.c.l.b16 %v6754
    %v7308 = vunpack.c.h.b16 %v6754
    %v7309 = vunpack.c.l.b16 %v6755
    %v7310 = vunpack.c.h.b16 %v6755
    %v7311 = vunpack.c.l.b16 %v6756
    %v7312 = vunpack.c.h.b16 %v6756
    %v7313 = vunpack.c.l.b16 %v6757
    %v7314 = vunpack.c.h.b16 %v6757
    %v7315 = vunpack.c.l.b16 %v6758
    %v7316 = vunpack.c.h.b16 %v6758
    %v7317 = vunpack.c.l.b16 %v6759
    %v7318 = vunpack.c.h.b16 %v6759
    %v7319 = vunpack.c.l.b16 %v6760
    %v7320 = vunpack.c.h.b16 %v6760
    %v7321 = vunpack.c.l.b16 %v6761
    %v7322 = vunpack.c.h.b16 %v6761
    %v7323 = vunpack.c.l.b16 %v6762
    %v7324 = vunpack.c.h.b16 %v6762
    %v7325 = vunpack.c.l.b16 %v6763
    %v7326 = vunpack.c.h.b16 %v6763
    %v7327 = vunpack.c.l.b16 %v6764
    %v7328 = vunpack.c.h.b16 %v6764
    %v7329 = vunpack.c.l.b16 %v6765
    %v7330 = vunpack.c.h.b16 %v6765
    %v7331 = vunpack.c.l.b16 %v6766
    %v7332 = vunpack.c.h.b16 %v6766
    %v7333 = vunpack.c.l.b16 %v6767
    %v7334 = vunpack.c.h.b16 %v6767
    %v7335 = vunpack.c.l.b16 %v6768
    %v7336 = vunpack.c.h.b16 %v6768
    %v7337 = vunpack.c.l.b16 %v6769
    %v7338 = vunpack.c.h.b16 %v6769
    %v7339 = vunpack.c.l.b16 %v6770
    %v7340 = vunpack.c.h.b16 %v6770
    %v7341 = vunpack.c.l.b16 %v6771
    %v7342 = vunpack.c.h.b16 %v6771
    %v7343 = vunpack.c.l.b16 %v6772
    %v7344 = vunpack.c.h.b16 %v6772
    %v7345 = vunpack.c.l.b16 %v6773
    %v7346 = vunpack.c.h.b16 %v6773
    %v7347 = vunpack.c.l.b16 %v6774
    %v7348 = vunpack.c.h.b16 %v6774
    %v7349 = vunpack.c.l.b16 %v6775
    %v7350 = vunpack.c.h.b16 %v6775
    %v7351 = vunpack.c.l.b16 %v6776
    %v7352 = vunpack.c.h.b16 %v6776
    %v7353 = vunpack.c.l.b16 %v6777
    %v7354 = vunpack.c.h.b16 %v6777
    %v7355 = vunpack.c.l.b16 %v6778
    %v7356 = vunpack.c.h.b16 %v6778
    %v7357 = vunpack.c.l.b16 %v6779
    %v7358 = vunpack.c.h.b16 %v6779
    %v7359 = vunpack.c.l.b16 %v6780
    %v7360 = vunpack.c.h.b16 %v6780
    %v7361 = vunpack.c.l.b16 %v6781
    %v7362 = vunpack.c.h.b16 %v6781
    %v7363 = vunpack.c.l.b16 %v6782
    %v7364 = vunpack.c.h.b16 %v6782
    %v7365 = vunpack.c.l.b16 %v6783
    %v7366 = vunpack.c.h.b16 %v6783
    %v7367 = vunpack.c.l.b16 %v6784
    %v7368 = vunpack.c.h.b16 %v6784
    %v7369 = vunpack.c.l.b16 %v6785
    %v7370 = vunpack.c.h.b16 %v6785
    %v7371 = vunpack.c.l.b16 %v6786
    %v7372 = vunpack.c.h.b16 %v6786
    %v7373 = vunpack.c.l.b16 %v6787
    %v7374 = vunpack.c.h.b16 %v6787
    %v7375 = vunpack.c.l.b16 %v6788
    %v7376 = vunpack.c.h.b16 %v6788
    %v7377 = vunpack.c.l.b16 %v6789
    %v7378 = vunpack.c.h.b16 %v6789
    %v7379 = vunpack.c.l.b16 %v6790
    %v7380 = vunpack.c.h.b16 %v6790
    %v7381 = vunpack.c.l.b16 %v6791
    %v7382 = vunpack.c.h.b16 %v6791
    %v7383 = vunpack.c.l.b16 %v6792
    %v7384 = vunpack.c.h.b16 %v6792
    %v7385 = vunpack.c.l.b16 %v6793
    %v7386 = vunpack.c.h.b16 %v6793
    %v7387 = vunpack.c.l.b16 %v6794
    %v7388 = vunpack.c.h.b16 %v6794
    %v7389 = vunpack.c.l.b16 %v6795
    %v7390 = vunpack.c.h.b16 %v6795
    %v7391 = vunpack.c.l.b16 %v6796
    %v7392 = vunpack.c.h.b16 %v6796
    %v7393 = vunpack.c.l.b16 %v6797
    %v7394 = vunpack.c.h.b16 %v6797
    %v7395 = vunpack.c.l.b16 %v6798
    %v7396 = vunpack.c.h.b16 %v6798
    %v7397 = vunpack.c.l.b16 %v6799
    %v7398 = vunpack.c.h.b16 %v6799
    %v7399 = vunpack.c.l.b16 %v6800
    %v7400 = vunpack.c.h.b16 %v6800
    %v7401 = vunpack.c.l.b16 %v6801
    %v7402 = vunpack.c.h.b16 %v6801
    %v7403 = vunpack.c.l.b16 %v6802
    %v7404 = vunpack.c.h.b16 %v6802
    %v7405 = vunpack.c.l.b16 %v6803
    %v7406 = vunpack.c.h.b16 %v6803
    %v7407 = vunpack.c.l.b16 %v6804
    %v7408 = vunpack.c.h.b16 %v6804
    %v7409 = vunpack.c.l.b16 %v6805
    %v7410 = vunpack.c.h.b16 %v6805
    %v7411 = vunpack.c.l.b16 %v6806
    %v7412 = vunpack.c.h.b16 %v6806
    %v7413 = vunpack.c.l.b16 %v6807
    %v7414 = vunpack.c.h.b16 %v6807
    %v7415 = vunpack.c.l.b16 %v6808
    %v7416 = vunpack.c.h.b16 %v6808
    %v7417 = vunpack.c.l.b16 %v6809
    %v7418 = vunpack.c.h.b16 %v6809
    %v7419 = vunpack.c.l.b16 %v6810
    %v7420 = vunpack.c.h.b16 %v6810
    %v7421 = vunpack.c.l.b16 %v6811
    %v7422 = vunpack.c.h.b16 %v6811
    %v7423 = vunpack.c.l.b16 %v6812
    %v7424 = vunpack.c.h.b16 %v6812
    %v7425 = vunpack.c.l.b16 %v6813
    %v7426 = vunpack.c.h.b16 %v6813
    %v7427 = vunpack.c.l.b16 %v6814
    %v7428 = vunpack.c.h.b16 %v6814
    %v7429 = vunpack.c.l.b16 %v6815
    %v7430 = vunpack.c.h.b16 %v6815
    %v7431 = vunpack.c.l.b16 %v6816
    %v7432 = vunpack.c.h.b16 %v6816
    %v7433 = vunpack.c.l.b16 %v6817
    %v7434 = vunpack.c.h.b16 %v6817
    %v7435 = vunpack.c.l.b16 %v6818
    %v7436 = vunpack.c.h.b16 %v6818
    %v7437 = vunpack.c.l.b16 %v6819
    %v7438 = vunpack.c.h.b16 %v6819
    %v7439 = vunpack.c.l.b16 %v6820
    %v7440 = vunpack.c.h.b16 %v6820
    %v7441 = vunpack.c.l.b16 %v6821
    %v7442 = vunpack.c.h.b16 %v6821
    %v7443 = vunpack.c.l.b16 %v6822
    %v7444 = vunpack.c.h.b16 %v6822
    %v7445 = vunpack.c.l.b16 %v6823
    %v7446 = vunpack.c.h.b16 %v6823
    %v7447 = vunpack.c.l.b16 %v6824
    %v7448 = vunpack.c.h.b16 %v6824
    %v7449 = vunpack.c.l.b16 %v6825
    %v7450 = vunpack.c.h.b16 %v6825
    %v7451 = vunpack.c.l.b16 %v6826
    %v7452 = vunpack.c.h.b16 %v6826
    %v7453 = vunpack.c.l.b16 %v6827
    %v7454 = vunpack.c.h.b16 %v6827
    %v7455 = vunpack.c.l.b16 %v6828
    %v7456 = vunpack.c.h.b16 %v6828
    %v7457 = vunpack.c.l.b16 %v6829
    %v7458 = vunpack.c.h.b16 %v6829
    %v7459 = vunpack.c.l.b16 %v6830
    %v7460 = vunpack.c.h.b16 %v6830
    %v7461 = vunpack.c.l.b16 %v6831
    %v7462 = vunpack.c.h.b16 %v6831
    %v7463 = vunpack.c.l.b16 %v6832
    %v7464 = vunpack.c.h.b16 %v6832
    %v7465 = vunpack.c.l.b16 %v6833
    %v7466 = vunpack.c.h.b16 %v6833
    %v7467 = vunpack.c.l.b16 %v6834
    %v7468 = vunpack.c.h.b16 %v6834
    %v7469 = vunpack.c.l.b16 %v6835
    %v7470 = vunpack.c.h.b16 %v6835
    %v7471 = vunpack.c.l.b16 %v6836
    %v7472 = vunpack.c.h.b16 %v6836
    %v7473 = vunpack.c.l.b16 %v6837
    %v7474 = vunpack.c.h.b16 %v6837
    %v7475 = vunpack.c.l.b16 %v6838
    %v7476 = vunpack.c.h.b16 %v6838
    %v7477 = vunpack.c.l.b16 %v6839
    %v7478 = vunpack.c.h.b16 %v6839
    %v7479 = vunpack.c.l.b16 %v6840
    %v7480 = vunpack.c.h.b16 %v6840
    %v7481 = vunpack.c.l.b16 %v6841
    %v7482 = vunpack.c.h.b16 %v6841
    %v7483 = vunpack.c.l.b16 %v6842
    %v7484 = vunpack.c.h.b16 %v6842
    %v7485 = vunpack.c.l.b16 %v6843
    %v7486 = vunpack.c.h.b16 %v6843
    %v7487 = vunpack.c.l.b16 %v6844
    %v7488 = vunpack.c.h.b16 %v6844
    %v7489 = vunpack.c.l.b16 %v6845
    %v7490 = vunpack.c.h.b16 %v6845
    %v7491 = vunpack.c.l.b16 %v6846
    %v7492 = vunpack.c.h.b16 %v6846
    %v7493 = vunpack.c.l.b16 %v6847
    %v7494 = vunpack.c.h.b16 %v6847
    %v7495 = vunpack.c.l.b16 %v6848
    %v7496 = vunpack.c.h.b16 %v6848
    %v7497 = vunpack.c.l.b16 %v6849
    %v7498 = vunpack.c.h.b16 %v6849
    %v7499 = vunpack.c.l.b16 %v6850
    %v7500 = vunpack.c.h.b16 %v6850
    %v7501 = vunpack.c.l.b16 %v6851
    %v7502 = vunpack.c.h.b16 %v6851
    %v7503 = vunpack.c.l.b16 %v6852
    %v7504 = vunpack.c.h.b16 %v6852
    %v7505 = vunpack.c.l.b16 %v6853
    %v7506 = vunpack.c.h.b16 %v6853
    %v7507 = vunpack.c.l.b16 %v6854
    %v7508 = vunpack.c.h.b16 %v6854
    %v7509 = vunpack.c.l.b16 %v6855
    %v7510 = vunpack.c.h.b16 %v6855
    %v7511 = vunpack.c.l.b16 %v6856
    %v7512 = vunpack.c.h.b16 %v6856
    %v7513 = vunpack.c.l.b16 %v6857
    %v7514 = vunpack.c.h.b16 %v6857
    %v7515 = vunpack.c.l.b16 %v6858
    %v7516 = vunpack.c.h.b16 %v6858
    %v7517 = vunpack.c.l.b16 %v6859
    %v7518 = vunpack.c.h.b16 %v6859
    %v7519 = vunpack.c.l.b16 %v6860
    %v7520 = vunpack.c.h.b16 %v6860
    %v7521 = vunpack.c.l.b16 %v6861
    %v7522 = vunpack.c.h.b16 %v6861
    %v7523 = vunpack.c.l.b16 %v6862
    %v7524 = vunpack.c.h.b16 %v6862
    %v7525 = vunpack.c.l.b16 %v6863
    %v7526 = vunpack.c.h.b16 %v6863
    %v7527 = vunpack.c.l.b16 %v6864
    %v7528 = vunpack.c.h.b16 %v6864
    %v7529 = vunpack.c.l.b16 %v6865
    %v7530 = vunpack.c.h.b16 %v6865
    %v7531 = vunpack.c.l.b16 %v6866
    %v7532 = vunpack.c.h.b16 %v6866
    %v7533 = vunpack.c.l.b16 %v6867
    %v7534 = vunpack.c.h.b16 %v6867
    %v7535 = vunpack.c.l.b16 %v6868
    %v7536 = vunpack.c.h.b16 %v6868
    %v7537 = vunpack.c.l.b16 %v6869
    %v7538 = vunpack.c.h.b16 %v6869
    %v7539 = vunpack.c.l.b16 %v6870
    %v7540 = vunpack.c.h.b16 %v6870
    %v7541 = vunpack.c.l.b16 %v6871
    %v7542 = vunpack.c.h.b16 %v6871
    %v7543 = vunpack.c.l.b16 %v6872
    %v7544 = vunpack.c.h.b16 %v6872
    %v7545 = vunpack.c.l.b16 %v6873
    %v7546 = vunpack.c.h.b16 %v6873
    %v7547 = vunpack.c.l.b16 %v6874
    %v7548 = vunpack.c.h.b16 %v6874
    %v7549 = vunpack.c.l.b16 %v6875
    %v7550 = vunpack.c.h.b16 %v6875
    %v7551 = vunpack.c.l.b16 %v6876
    %v7552 = vunpack.c.h.b16 %v6876
    %v7553 = vunpack.c.l.b16 %v6877
    %v7554 = vunpack.c.h.b16 %v6877
    %v7555 = vunpack.c.l.b16 %v6878
    %v7556 = vunpack.c.h.b16 %v6878
    %v7557 = vunpack.c.l.b16 %v6879
    %v7558 = vunpack.c.h.b16 %v6879
    %v7559 = vunpack.c.l.b16 %v6880
    %v7560 = vunpack.c.h.b16 %v6880
    %v7561 = vunpack.c.l.b16 %v6881
    %v7562 = vunpack.c.h.b16 %v6881
    %v7563 = vunpack.c.l.b16 %v6882
    %v7564 = vunpack.c.h.b16 %v6882
    %v7565 = vunpack.c.l.b16 %v6883
    %v7566 = vunpack.c.h.b16 %v6883
    %v7567 = vunpack.c.l.b16 %v6884
    %v7568 = vunpack.c.h.b16 %v6884
    %v7569 = vunpack.c.l.b16 %v6885
    %v7570 = vunpack.c.h.b16 %v6885
    %v7571 = vunpack.c.l.b16 %v6886
    %v7572 = vunpack.c.h.b16 %v6886
    %v7573 = vunpack.c.l.b16 %v6887
    %v7574 = vunpack.c.h.b16 %v6887
    %v7575 = vunpack.c.l.b16 %v6888
    %v7576 = vunpack.c.h.b16 %v6888
    %v7577 = vunpack.c.l.b16 %v6889
    %v7578 = vunpack.c.h.b16 %v6889
    %v7579 = vunpack.c.l.b16 %v6890
    %v7580 = vunpack.c.h.b16 %v6890
    %v7581 = vunpack.c.l.b16 %v6891
    %v7582 = vunpack.c.h.b16 %v6891
    %v7583 = vunpack.c.l.b16 %v6892
    %v7584 = vunpack.c.h.b16 %v6892
    %v7585 = vunpack.c.l.b16 %v6893
    %v7586 = vunpack.c.h.b16 %v6893
    %v7587 = vunpack.c.l.b16 %v6894
    %v7588 = vunpack.c.h.b16 %v6894
    %v7589 = vunpack.c.l.b16 %v6895
    %v7590 = vunpack.c.h.b16 %v6895
    %v7591 = vunpack.c.l.b16 %v6896
    %v7592 = vunpack.c.h.b16 %v6896
    %v7593 = vunpack.c.l.b16 %v6897
    %v7594 = vunpack.c.h.b16 %v6897
    %v7595 = vunpack.c.l.b16 %v6898
    %v7596 = vunpack.c.h.b16 %v6898
    %v7597 = vunpack.c.l.b16 %v6899
    %v7598 = vunpack.c.h.b16 %v6899
    %v7599 = vunpack.c.l.b16 %v6900
    %v7600 = vunpack.c.h.b16 %v6900
    %v7601 = vunpack.c.l.b16 %v6901
    %v7602 = vunpack.c.h.b16 %v6901
    %v7603 = vunpack.c.l.b16 %v6902
    %v7604 = vunpack.c.h.b16 %v6902
    %v7605 = vunpack.c.l.b16 %v6903
    %v7606 = vunpack.c.h.b16 %v6903
    %v7607 = vunpack.c.l.b16 %v6904
    %v7608 = vunpack.c.h.b16 %v6904
    %v7609 = vunpack.c.l.b16 %v6905
    %v7610 = vunpack.c.h.b16 %v6905
    %v7611 = vunpack.c.l.b16 %v6906
    %v7612 = vunpack.c.h.b16 %v6906
    %v7613 = vunpack.c.l.b16 %v6907
    %v7614 = vunpack.c.h.b16 %v6907
    %v7615 = vunpack.c.l.b16 %v6908
    %v7616 = vunpack.c.h.b16 %v6908
    %v7617 = vunpack.c.l.b16 %v6909
    %v7618 = vunpack.c.h.b16 %v6909
    %v7619 = vunpack.c.l.b16 %v6910
    %v7620 = vunpack.c.h.b16 %v6910
    %v7621 = vunpack.c.l.b16 %v6911
    %v7622 = vunpack.c.h.b16 %v6911
    %v7623 = vunpack.c.l.b16 %v6912
    %v7624 = vunpack.c.h.b16 %v6912
    %v7625 = vunpack.c.l.b16 %v6913
    %v7626 = vunpack.c.h.b16 %v6913
    %v7627 = vunpack.c.l.b16 %v6914
    %v7628 = vunpack.c.h.b16 %v6914
    %v7629 = vunpack.c.l.b16 %v6915
    %v7630 = vunpack.c.h.b16 %v6915
    %v7631 = vunpack.c.l.b16 %v6916
    %v7632 = vunpack.c.h.b16 %v6916
    %v7633 = vunpack.c.l.b16 %v6917
    %v7634 = vunpack.c.h.b16 %v6917
    %v7635 = vunpack.c.l.b16 %v6918
    %v7636 = vunpack.c.h.b16 %v6918
    %v7637 = vunpack.c.l.b16 %v6919
    %v7638 = vunpack.c.h.b16 %v6919
    %v7639 = vunpack.c.l.b16 %v6920
    %v7640 = vunpack.c.h.b16 %v6920
    %v7641 = vunpack.c.l.b16 %v6921
    %v7642 = vunpack.c.h.b16 %v6921
    %v7643 = vunpack.c.l.b16 %v6922
    %v7644 = vunpack.c.h.b16 %v6922
    %v7645 = vunpack.c.l.b16 %v6923
    %v7646 = vunpack.c.h.b16 %v6923
    %v7647 = vunpack.c.l.b16 %v6924
    %v7648 = vunpack.c.h.b16 %v6924
    %v7649 = vunpack.c.l.b16 %v6925
    %v7650 = vunpack.c.h.b16 %v6925
    %v7651 = vunpack.c.l.b16 %v6926
    %v7652 = vunpack.c.h.b16 %v6926
    %v7653 = vunpack.c.l.b16 %v6927
    %v7654 = vunpack.c.h.b16 %v6927
    %v7655 = vunpack.c.l.b16 %v6928
    %v7656 = vunpack.c.h.b16 %v6928
    %v7657 = vunpack.c.l.b16 %v6929
    %v7658 = vunpack.c.h.b16 %v6929
    %v7659 = vunpack.c.l.b16 %v6930
    %v7660 = vunpack.c.h.b16 %v6930
    %v7661 = vunpack.c.l.b16 %v6931
    %v7662 = vunpack.c.h.b16 %v6931
    %v7663 = vunpack.c.l.b16 %v6932
    %v7664 = vunpack.c.h.b16 %v6932
    %v7665 = vunpack.c.l.b16 %v6933
    %v7666 = vunpack.c.h.b16 %v6933
    %v7667 = vunpack.c.l.b16 %v6934
    %v7668 = vunpack.c.h.b16 %v6934
    %v7669 = vunpack.c.l.b16 %v6935
    %v7670 = vunpack.c.h.b16 %v6935
    %v7671 = vunpack.c.l.b16 %v6936
    %v7672 = vunpack.c.h.b16 %v6936
    %v7673 = vunpack.c.l.b16 %v6937
    %v7674 = vunpack.c.h.b16 %v6937
    %v7675 = vunpack.c.l.b16 %v6938
    %v7676 = vunpack.c.h.b16 %v6938
    %v7677 = vunpack.c.l.b16 %v6939
    %v7678 = vunpack.c.h.b16 %v6939
    %v7679 = vunpack.c.l.b16 %v6940
    %v7680 = vunpack.c.h.b16 %v6940
    %v7681 = vunpack.c.l.b16 %v6941
    %v7682 = vunpack.c.h.b16 %v6941
    %v7683 = vunpack.c.l.b16 %v6942
    %v7684 = vunpack.c.h.b16 %v6942
    %v7685 = vunpack.c.l.b16 %v6943
    %v7686 = vunpack.c.h.b16 %v6943
    %v7687 = vunpack.c.l.b16 %v6944
    %v7688 = vunpack.c.h.b16 %v6944
    %v7689 = vunpack.c.l.b16 %v6945
    %v7690 = vunpack.c.h.b16 %v6945
    %v7691 = vunpack.c.l.b16 %v6946
    %v7692 = vunpack.c.h.b16 %v6946
    %v7693 = vunpack.c.l.b16 %v6947
    %v7694 = vunpack.c.h.b16 %v6947
    %v7695 = vunpack.c.l.b16 %v6948
    %v7696 = vunpack.c.h.b16 %v6948
    %v7697 = vunpack.c.l.b16 %v6949
    %v7698 = vunpack.c.h.b16 %v6949
    %v7699 = vunpack.c.l.b16 %v6950
    %v7700 = vunpack.c.h.b16 %v6950
    %v7701 = vunpack.c.l.b16 %v6951
    %v7702 = vunpack.c.h.b16 %v6951
    %v7703 = vunpack.c.l.b16 %v6952
    %v7704 = vunpack.c.h.b16 %v6952
    %v7705 = vunpack.c.l.b16 %v6953
    %v7706 = vunpack.c.h.b16 %v6953
    %v7707 = vunpack.c.l.b16 %v6954
    %v7708 = vunpack.c.h.b16 %v6954
    %v7709 = vunpack.c.l.b16 %v6955
    %v7710 = vunpack.c.h.b16 %v6955
    %v7711 = vunpack.c.l.b16 %v6956
    %v7712 = vunpack.c.h.b16 %v6956
    %v7713 = vunpack.c.l.b16 %v6957
    %v7714 = vunpack.c.h.b16 %v6957
    %v7715 = vunpack.c.l.b16 %v6958
    %v7716 = vunpack.c.h.b16 %v6958
    %v7717 = vunpack.c.l.b16 %v6959
    %v7718 = vunpack.c.h.b16 %v6959
    %v7719 = vunpack.c.l.b16 %v6960
    %v7720 = vunpack.c.h.b16 %v6960
    %v7721 = vunpack.c.l.b16 %v6961
    %v7722 = vunpack.c.h.b16 %v6961
    %v7723 = vunpack.c.l.b16 %v6962
    %v7724 = vunpack.c.h.b16 %v6962
    %v7725 = vunpack.c.l.b16 %v6963
    %v7726 = vunpack.c.h.b16 %v6963
    %v7727 = vunpack.c.l.b16 %v6964
    %v7728 = vunpack.c.h.b16 %v6964
    %v7729 = vunpack.c.l.b16 %v6965
    %v7730 = vunpack.c.h.b16 %v6965
    %v7731 = vunpack.c.l.b16 %v6966
    %v7732 = vunpack.c.h.b16 %v6966
    %v7733 = vunpack.c.l.b16 %v6967
    %v7734 = vunpack.c.h.b16 %v6967
    %v7735 = vunpack.c.l.b16 %v6968
    %v7736 = vunpack.c.h.b16 %v6968
    %v7737 = vunpack.c.l.b16 %v6969
    %v7738 = vunpack.c.h.b16 %v6969
    %v7739 = vunpack.c.l.b16 %v6970
    %v7740 = vunpack.c.h.b16 %v6970
    %v7741 = vunpack.c.l.b16 %v6971
    %v7742 = vunpack.c.h.b16 %v6971
    %v7743 = vunpack.c.l.b16 %v6972
    %v7744 = vunpack.c.h.b16 %v6972
    %v7745 = vunpack.c.l.b16 %v6973
    %v7746 = vunpack.c.h.b16 %v6973
    %v7747 = vunpack.c.l.b16 %v6974
    %v7748 = vunpack.c.h.b16 %v6974
    %v7749 = vunpack.c.l.b16 %v6975
    %v7750 = vunpack.c.h.b16 %v6975
    %v7751 = vunpack.c.l.b16 %v6976
    %v7752 = vunpack.c.h.b16 %v6976
    %v7753 = vunpack.c.l.b16 %v6977
    %v7754 = vunpack.c.h.b16 %v6977
    %v7755 = vunpack.c.l.b16 %v6978
    %v7756 = vunpack.c.h.b16 %v6978
    %v7757 = vunpack.c.l.b16 %v6979
    %v7758 = vunpack.c.h.b16 %v6979
    %v7759 = vunpack.c.l.b16 %v6980
    %v7760 = vunpack.c.h.b16 %v6980
    %v7761 = vunpack.c.l.b16 %v6981
    %v7762 = vunpack.c.h.b16 %v6981
    %v7763 = vunpack.c.l.b16 %v6982
    %v7764 = vunpack.c.h.b16 %v6982
    %v7765 = vunpack.c.l.b16 %v6983
    %v7766 = vunpack.c.h.b16 %v6983
    %v7767 = vunpack.c.l.b16 %v6984
    %v7768 = vunpack.c.h.b16 %v6984
    %v7769 = vunpack.c.l.b16 %v6985
    %v7770 = vunpack.c.h.b16 %v6985
    %v7771 = vunpack.c.l.b16 %v6986
    %v7772 = vunpack.c.h.b16 %v6986
    %v7773 = vunpack.c.l.b16 %v6987
    %v7774 = vunpack.c.h.b16 %v6987
    %v7775 = vunpack.c.l.b16 %v6988
    %v7776 = vunpack.c.h.b16 %v6988
    %v7777 = vunpack.c.l.b16 %v6989
    %v7778 = vunpack.c.h.b16 %v6989
    %v7779 = vunpack.c.l.b16 %v6990
    %v7780 = vunpack.c.h.b16 %v6990
    %v7781 = vpack.c.b16 %v7273, %v7269
    %v7782 = vpack.c.b16 %v7274, %v7270
    %v7783 = vpack.c.b16 %v7275, %v7271
    %v7784 = vpack.c.b16 %v7276, %v7272
    %v7785 = vpack.c.b16 %v7281, %v7277
    %v7786 = vpack.c.b16 %v7282, %v7278
    %v7787 = vpack.c.b16 %v7283, %v7279
    %v7788 = vpack.c.b16 %v7284, %v7280
    %v7789 = vpack.c.b16 %v7289, %v7285
    %v7790 = vpack.c.b16 %v7290, %v7286
    %v7791 = vpack.c.b16 %v7291, %v7287
    %v7792 = vpack.c.b16 %v7292, %v7288
    %v7793 = vpack.c.b16 %v7297, %v7293
    %v7794 = vpack.c.b16 %v7298, %v7294
    %v7795 = vpack.c.b16 %v7299, %v7295
    %v7796 = vpack.c.b16 %v7300, %v7296
    %v7797 = vpack.c.b16 %v7305, %v7301
    %v7798 = vpack.c.b16 %v7306, %v7302
    %v7799 = vpack.c.b16 %v7307, %v7303
    %v7800 = vpack.c.b16 %v7308, %v7304
    %v7801 = vpack.c.b16 %v7313, %v7309
    %v7802 = vpack.c.b16 %v7314, %v7310
    %v7803 = vpack.c.b16 %v7315, %v7311
    %v7804 = vpack.c.b16 %v7316, %v7312
    %v7805 = vpack.c.b16 %v7321, %v7317
    %v7806 = vpack.c.b16 %v7322, %v7318
    %v7807 = vpack.c.b16 %v7323, %v7319
    %v7808 = vpack.c.b16 %v7324, %v7320
    %v7809 = vpack.c.b16 %v7329, %v7325
    %v7810 = vpack.c.b16 %v7330, %v7326
    %v7811 = vpack.c.b16 %v7331, %v7327
    %v7812 = vpack.c.b16 %v7332, %v7328
    %v7813 = vpack.c.b16 %v7337, %v7333
    %v7814 = vpack.c.b16 %v7338, %v7334
    %v7815 = vpack.c.b16 %v7339, %v7335
    %v7816 = vpack.c.b16 %v7340, %v7336
    %v7817 = vpack.c.b16 %v7345, %v7341
    %v7818 = vpack.c.b16 %v7346, %v7342
    %v7819 = vpack.c.b16 %v7347, %v7343
    %v7820 = vpack.c.b16 %v7348, %v7344
    %v7821 = vpack.c.b16 %v7353, %v7349
    %v7822 = vpack.c.b16 %v7354, %v7350
    %v7823 = vpack.c.b16 %v7355, %v7351
    %v7824 = vpack.c.b16 %v7356, %v7352
    %v7825 = vpack.c.b16 %v7361, %v7357
    %v7826 = vpack.c.b16 %v7362, %v7358
    %v7827 = vpack.c.b16 %v7363, %v7359
    %v7828 = vpack.c.b16 %v7364, %v7360
    %v7829 = vpack.c.b16 %v7369, %v7365
    %v7830 = vpack.c.b16 %v7370, %v7366
    %v7831 = vpack.c.b16 %v7371, %v7367
    %v7832 = vpack.c.b16 %v7372, %v7368
    %v7833 = vpack.c.b16 %v7377, %v7373
    %v7834 = vpack.c.b16 %v7378, %v7374
    %v7835 = vpack.c.b16 %v7379, %v7375
    %v7836 = vpack.c.b16 %v7380, %v7376
    %v7837 = vpack.c.b16 %v7385, %v7381
    %v7838 = vpack.c.b16 %v7386, %v7382
    %v7839 = vpack.c.b16 %v7387, %v7383
    %v7840 = vpack.c.b16 %v7388, %v7384
    %v7841 = vpack.c.b16 %v7393, %v7389
    %v7842 = vpack.c.b16 %v7394, %v7390
    %v7843 = vpack.c.b16 %v7395, %v7391
    %v7844 = vpack.c.b16 %v7396, %v7392
    %v7845 = vpack.c.b16 %v7401, %v7397
    %v7846 = vpack.c.b16 %v7402, %v7398
    %v7847 = vpack.c.b16 %v7403, %v7399
    %v7848 = vpack.c.b16 %v7404, %v7400
    %v7849 = vpack.c.b16 %v7409, %v7405
    %v7850 = vpack.c.b16 %v7410, %v7406
    %v7851 = vpack.c.b16 %v7411, %v7407
    %v7852 = vpack.c.b16 %v7412, %v7408
    %v7853 = vpack.c.b16 %v7417, %v7413
    %v7854 = vpack.c.b16 %v7418, %v7414
    %v7855 = vpack.c.b16 %v7419, %v7415
    %v7856 = vpack.c.b16 %v7420, %v7416
    %v7857 = vpack.c.b16 %v7425, %v7421
    %v7858 = vpack.c.b16 %v7426, %v7422
    %v7859 = vpack.c.b16 %v7427, %v7423
    %v7860 = vpack.c.b16 %v7428, %v7424
    %v7861 = vpack.c.b16 %v7433, %v7429
    %v7862 = vpack.c.b16 %v7434, %v7430
    %v7863 = vpack.c.b16 %v7435, %v7431
    %v7864 = vpack.c.b16 %v7436, %v7432
    %v7865 = vpack.c.b16 %v7441, %v7437
    %v7866 = vpack.c.b16 %v7442, %v7438
    %v7867 = vpack.c.b16 %v7443, %v7439
    %v7868 = vpack.c.b16 %v7444, %v7440
    %v7869 = vpack.c.b16 %v7449, %v7445
    %v7870 = vpack.c.b16 %v7450, %v7446
    %v7871 = vpack.c.b16 %v7451, %v7447
    %v7872 = vpack.c.b16 %v7452, %v7448
    %v7873 = vpack.c.b16 %v7457, %v7453
    %v7874 = vpack.c.b16 %v7458, %v7454
    %v7875 = vpack.c.b16 %v7459, %v7455
    %v7876 = vpack.c.b16 %v7460, %v7456
    %v7877 = vpack.c.b16 %v7465, %v7461
    %v7878 = vpack.c.b16 %v7466, %v7462
    %v7879 = vpack.c.b16 %v7467, %v7463
    %v7880 = vpack.c.b16 %v7468, %v7464
    %v7881 = vpack.c.b16 %v7473, %v7469
    %v7882 = vpack.c.b16 %v7474, %v7470
    %v7883 = vpack.c.b16 %v7475, %v7471
    %v7884 = vpack.c.b16 %v7476, %v7472
    %v7885 = vpack.c.b16 %v7481, %v7477
    %v7886 = vpack.c.b16 %v7482, %v7478
    %v7887 = vpack.c.b16 %v7483, %v7479
    %v7888 = vpack.c.b16 %v7484, %v7480
    %v7889 = vpack.c.b16 %v7489, %v7485
    %v7890 = vpack.c.b16 %v7490, %v7486
    %v7891 = vpack.c.b16 %v7491, %v7487
    %v7892 = vpack.c.b16 %v7492, %v7488
    %v7893 = vpack.c.b16 %v7497, %v7493
    %v7894 = vpack.c.b16 %v7498, %v7494
    %v7895 = vpack.c.b16 %v7499, %v7495
    %v7896 = vpack.c.b16 %v7500, %v7496
    %v7897 = vpack.c.b16 %v7505, %v7501
    %v7898 = vpack.c.b16 %v7506, %v7502
    %v7899 = vpack.c.b16 %v7507, %v7503
    %v7900 = vpack.c.b16 %v7508, %v7504
    %v7901 = vpack.c.b16 %v7513, %v7509
    %v7902 = vpack.c.b16 %v7514, %v7510
    %v7903 = vpack.c.b16 %v7515, %v7511
    %v7904 = vpack.c.b16 %v7516, %v7512
    %v7905 = vpack.c.b16 %v7521, %v7517
    %v7906 = vpack.c.b16 %v7522, %v7518
    %v7907 = vpack.c.b16 %v7523, %v7519
    %v7908 = vpack.c.b16 %v7524, %v7520
    %v7909 = vpack.c.b16 %v7529, %v7525
    %v7910 = vpack.c.b16 %v7530, %v7526
    %v7911 = vpack.c.b16 %v7531, %v7527
    %v7912 = vpack.c.b16 %v7532, %v7528
    %v7913 = vpack.c.b16 %v7537, %v7533
    %v7914 = vpack.c.b16 %v7538, %v7534
    %v7915 = vpack.c.b16 %v7539, %v7535
    %v7916 = vpack.c.b16 %v7540, %v7536
    %v7917 = vpack.c.b16 %v7545, %v7541
    %v7918 = vpack.c.b16 %v7546, %v7542
    %v7919 = vpack.c.b16 %v7547, %v7543
    %v7920 = vpack.c.b16 %v7548, %v7544
    %v7921 = vpack.c.b16 %v7553, %v7549
    %v7922 = vpack.c.b16 %v7554, %v7550
    %v7923 = vpack.c.b16 %v7555, %v7551
    %v7924 = vpack.c.b16 %v7556, %v7552
    %v7925 = vpack.c.b16 %v7561, %v7557
    %v7926 = vpack.c.b16 %v7562, %v7558
    %v7927 = vpack.c.b16 %v7563, %v7559
    %v7928 = vpack.c.b16 %v7564, %v7560
    %v7929 = vpack.c.b16 %v7569, %v7565
    %v7930 = vpack.c.b16 %v7570, %v7566
    %v7931 = vpack.c.b16 %v7571, %v7567
    %v7932 = vpack.c.b16 %v7572, %v7568
    %v7933 = vpack.c.b16 %v7577, %v7573
    %v7934 = vpack.c.b16 %v7578, %v7574
    %v7935 = vpack.c.b16 %v7579, %v7575
    %v7936 = vpack.c.b16 %v7580, %v7576
    %v7937 = vpack.c.b16 %v7585, %v7581
    %v7938 = vpack.c.b16 %v7586, %v7582
    %v7939 = vpack.c.b16 %v7587, %v7583
    %v7940 = vpack.c.b16 %v7588, %v7584
    %v7941 = vpack.c.b16 %v7593, %v7589
    %v7942 = vpack.c.b16 %v7594, %v7590
    %v7943 = vpack.c.b16 %v7595, %v7591
    %v7944 = vpack.c.b16 %v7596, %v7592
    %v7945 = vpack.c.b16 %v7601, %v7597
    %v7946 = vpack.c.b16 %v7602, %v7598
    %v7947 = vpack.c.b16 %v7603, %v7599
    %v7948 = vpack.c.b16 %v7604, %v7600
    %v7949 = vpack.c.b16 %v7609, %v7605
    %v7950 = vpack.c.b16 %v7610, %v7606
    %v7951 = vpack.c.b16 %v7611, %v7607
    %v7952 = vpack.c.b16 %v7612, %v7608
    %v7953 = vpack.c.b16 %v7617, %v7613
    %v7954 = vpack.c.b16 %v7618, %v7614
    %v7955 = vpack.c.b16 %v7619, %v7615
    %v7956 = vpack.c.b16 %v7620, %v7616
    %v7957 = vpack.c.b16 %v7625, %v7621
    %v7958 = vpack.c.b16 %v7626, %v7622
    %v7959 = vpack.c.b16 %v7627, %v7623
    %v7960 = vpack.c.b16 %v7628, %v7624
    %v7961 = vpack.c.b16 %v7633, %v7629
    %v7962 = vpack.c.b16 %v7634, %v7630
    %v7963 = vpack.c.b16 %v7635, %v7631
    %v7964 = vpack.c.b16 %v7636, %v7632
    %v7965 = vpack.c.b16 %v7641, %v7637
    %v7966 = vpack.c.b16 %v7642, %v7638
    %v7967 = vpack.c.b16 %v7643, %v7639
    %v7968 = vpack.c.b16 %v7644, %v7640
    %v7969 = vpack.c.b16 %v7649, %v7645
    %v7970 = vpack.c.b16 %v7650, %v7646
    %v7971 = vpack.c.b16 %v7651, %v7647
    %v7972 = vpack.c.b16 %v7652, %v7648
    %v7973 = vpack.c.b16 %v7657, %v7653
    %v7974 = vpack.c.b16 %v7658, %v7654
    %v7975 = vpack.c.b16 %v7659, %v7655
    %v7976 = vpack.c.b16 %v7660, %v7656
    %v7977 = vpack.c.b16 %v7665, %v7661
    %v7978 = vpack.c.b16 %v7666, %v7662
    %v7979 = vpack.c.b16 %v7667, %v7663
    %v7980 = vpack.c.b16 %v7668, %v7664
    %v7981 = vpack.c.b16 %v7673, %v7669
    %v7982 = vpack.c.b16 %v7674, %v7670
    %v7983 = vpack.c.b16 %v7675, %v7671
    %v7984 = vpack.c.b16 %v7676, %v7672
    %v7985 = vpack.c.b16 %v7681, %v7677
    %v7986 = vpack.c.b16 %v7682, %v7678
    %v7987 = vpack.c.b16 %v7683, %v7679
    %v7988 = vpack.c.b16 %v7684, %v7680
    %v7989 = vpack.c.b16 %v7689, %v7685
    %v7990 = vpack.c.b16 %v7690, %v7686
    %v7991 = vpack.c.b16 %v7691, %v7687
    %v7992 = vpack.c.b16 %v7692, %v7688
    %v7993 = vpack.c.b16 %v7697, %v7693
    %v7994 = vpack.c.b16 %v7698, %v7694
    %v7995 = vpack.c.b16 %v7699, %v7695
    %v7996 = vpack.c.b16 %v7700, %v7696
    %v7997 = vpack.c.b16 %v7705, %v7701
    %v7998 = vpack.c.b16 %v7706, %v7702
    %v7999 = vpack.c.b16 %v7707, %v7703
    %v8000 = vpack.c.b16 %v7708, %v7704
    %v8001 = vpack.c.b16 %v7713, %v7709
    %v8002 = vpack.c.b16 %v7714, %v7710
    %v8003 = vpack.c.b16 %v7715, %v7711
    %v8004 = vpack.c.b16 %v7716, %v7712
    %v8005 = vpack.c.b16 %v7721, %v7717
    %v8006 = vpack.c.b16 %v7722, %v7718
    %v8007 = vpack.c.b16 %v7723, %v7719
    %v8008 = vpack.c.b16 %v7724, %v7720
    %v8009 = vpack.c.b16 %v7729, %v7725
    %v8010 = vpack.c.b16 %v7730, %v7726
    %v8011 = vpack.c.b16 %v7731, %v7727
    %v8012 = vpack.c.b16 %v7732, %v7728
    %v8013 = vpack.c.b16 %v7737, %v7733
    %v8014 = vpack.c.b16 %v7738, %v7734
    %v8015 = vpack.c.b16 %v7739, %v7735
    %v8016 = vpack.c.b16 %v7740, %v7736
    %v8017 = vpack.c.b16 %v7745, %v7741
    %v8018 = vpack.c.b16 %v7746, %v7742
    %v8019 = vpack.c.b16 %v7747, %v7743
    %v8020 = vpack.c.b16 %v7748, %v7744
    %v8021 = vpack.c.b16 %v7753, %v7749
    %v8022 = vpack.c.b16 %v7754, %v7750
    %v8023 = vpack.c.b16 %v7755, %v7751
    %v8024 = vpack.c.b16 %v7756, %v7752
    %v8025 = vpack.c.b16 %v7761, %v7757
    %v8026 = vpack.c.b16 %v7762, %v7758
    %v8027 = vpack.c.b16 %v7763, %v7759
    %v8028 = vpack.c.b16 %v7764, %v7760
    %v8029 = vpack.c.b16 %v7769, %v7765
    %v8030 = vpack.c.b16 %v7770, %v7766
    %v8031 = vpack.c.b16 %v7771, %v7767
    %v8032 = vpack.c.b16 %v7772, %v7768
    %v8033 = vpack.c.b16 %v7777, %v7773
    %v8034 = vpack.c.b16 %v7778, %v7774
    %v8035 = vpack.c.b16 %v7779, %v7775
    %v8036 = vpack.c.b16 %v7780, %v7776
    %8293 = vmatprep.subr.bf16.mxu0 %v7810
    %8294 = vmatpush1.bf16.msra.mxu0 %v7809
    %8295 = vmatprep.subr.bf16.mxu0 %v7806
    %8296 = vmatpush1.bf16.msra.mxu0 %v7805
    %8297 = vmatprep.subr.bf16.mxu0 %v7802
    %8298 = vmatpush1.bf16.msra.mxu0 %v7801
    %8299 = vmatprep.subr.bf16.mxu0 %v7798
    %8300 = vmatpush1.bf16.msra.mxu0 %v7797
    %8301 = vmatprep.subr.bf16.mxu0 %v7794
    %8302 = vmatpush1.bf16.msra.mxu0 %v7793
    %8303 = vmatprep.subr.bf16.mxu0 %v7790
    %8304 = vmatpush1.bf16.msra.mxu0 %v7789
    %8305 = vmatprep.subr.bf16.mxu0 %v7786
    %8306 = vmatpush1.bf16.msra.mxu0 %v7785
    %8307 = vmatprep.subr.bf16.mxu0 %v7782
    %8308 = vmatpush1.bf16.msra.mxu0 %v7781
    %8309 = vmatprep.subr.bf16.mxu0 %v7842
    %8310 = vmatpush2.bf16.msra.mxu0 %v7841
    %8311 = vmatprep.subr.bf16.mxu0 %v7838
    %8312 = vmatpush2.bf16.msra.mxu0 %v7837
    %8313 = vmatprep.subr.bf16.mxu0 %v7834
    %8314 = vmatpush2.bf16.msra.mxu0 %v7833
    %8315 = vmatprep.subr.bf16.mxu0 %v7830
    %8316 = vmatpush2.bf16.msra.mxu0 %v7829
    %8317 = vmatprep.subr.bf16.mxu0 %v7826
    %8318 = vmatpush2.bf16.msra.mxu0 %v7825
    %8319 = vmatprep.subr.bf16.mxu0 %v7822
    %8320 = vmatpush2.bf16.msra.mxu0 %v7821
    %8321 = vmatprep.subr.bf16.mxu0 %v7818
    %8322 = vmatpush2.bf16.msra.mxu0 %v7817
    %8323 = vmatprep.subr.bf16.mxu0 %v7814
    %8324 = vmatpush2.bf16.msra.mxu0 %v7813
    %8325 = vmatprep.mubr.bf16.mxu0 %v6720
    %8326 = vmatmul.mubr.bf16.gmra.mxu0 %v6719
    %v8327 = vpop.f32.mrf.mxu0
    %v8328 = vadd.f32 %v6996, %v8327
    %v8329 = vpop.f32.mrf.mxu0
    %v8330 = vadd.f32 %v7000, %v8329
    %v8331 = vpop.f32.mrf.mxu0
    %v8332 = vadd.f32 %v6996, %v8331
    %v8333 = vpop.f32.mrf.mxu0
    %v8334 = vadd.f32 %v7000, %v8333
    %8335 = vmatprep.mubr.bf16.mxu0 %v6728
    %8336 = vmatmul.mubr.bf16.gmra.mxu0 %v6727
    %v8337 = vpop.f32.mrf.mxu0
    %v8338 = vadd.f32 %v6996, %v8337
    %v8339 = vpop.f32.mrf.mxu0
    %v8340 = vadd.f32 %v7000, %v8339
    %v8341 = vpop.f32.mrf.mxu0
    %v8342 = vpop.f32.mrf.mxu0
    %8343 = vdwg.mxu0
    %8344 = vmatprep.subr.bf16.mxu0 %v7874
    %8345 = vmatpush1.bf16.msra.mxu0 %v7873
    %8346 = vmatprep.subr.bf16.mxu0 %v7870
    %8347 = vmatpush1.bf16.msra.mxu0 %v7869
    %8348 = vmatprep.subr.bf16.mxu0 %v7866
    %8349 = vmatpush1.bf16.msra.mxu0 %v7865
    %8350 = vmatprep.subr.bf16.mxu0 %v7862
    %8351 = vmatpush1.bf16.msra.mxu0 %v7861
    %8352 = vmatprep.subr.bf16.mxu0 %v7858
    %8353 = vmatpush1.bf16.msra.mxu0 %v7857
    %8354 = vmatprep.subr.bf16.mxu0 %v7854
    %8355 = vmatpush1.bf16.msra.mxu0 %v7853
    %8356 = vmatprep.subr.bf16.mxu0 %v7850
    %8357 = vmatpush1.bf16.msra.mxu0 %v7849
    %8358 = vmatprep.subr.bf16.mxu0 %v7846
    %8359 = vmatpush1.bf16.msra.mxu0 %v7845
    %8360 = vmatprep.subr.bf16.mxu0 %v7906
    %8361 = vmatpush2.bf16.msra.mxu0 %v7905
    %8362 = vmatprep.subr.bf16.mxu0 %v7902
    %8363 = vmatpush2.bf16.msra.mxu0 %v7901
    %8364 = vmatprep.subr.bf16.mxu0 %v7898
    %8365 = vmatpush2.bf16.msra.mxu0 %v7897
    %8366 = vmatprep.subr.bf16.mxu0 %v7894
    %8367 = vmatpush2.bf16.msra.mxu0 %v7893
    %8368 = vmatprep.subr.bf16.mxu0 %v7890
    %8369 = vmatpush2.bf16.msra.mxu0 %v7889
    %8370 = vmatprep.subr.bf16.mxu0 %v7886
    %8371 = vmatpush2.bf16.msra.mxu0 %v7885
    %8372 = vmatprep.subr.bf16.mxu0 %v7882
    %8373 = vmatpush2.bf16.msra.mxu0 %v7881
    %8374 = vmatprep.subr.bf16.mxu0 %v7878
    %8375 = vmatpush2.bf16.msra.mxu0 %v7877
    %8376 = vmatprep.mubr.bf16.mxu0 %v6722
    %8377 = vmatmul.mubr.bf16.gmra.mxu0 %v6721
    %v8378 = vpop.f32.mrf.mxu0
    %v8379 = vadd.f32 %v8328, %v8378
    %v8380 = vpop.f32.mrf.mxu0
    %v8381 = vadd.f32 %v8330, %v8380
    %v8382 = vpop.f32.mrf.mxu0
    %v8383 = vadd.f32 %v8332, %v8382
    %v8384 = vpop.f32.mrf.mxu0
    %v8385 = vadd.f32 %v8334, %v8384
    %8386 = vmatprep.mubr.bf16.mxu0 %v6730
    %8387 = vmatmul.mubr.bf16.gmra.mxu0 %v6729
    %v8388 = vpop.f32.mrf.mxu0
    %v8389 = vadd.f32 %v8338, %v8388
    %v8390 = vpop.f32.mrf.mxu0
    %v8391 = vadd.f32 %v8340, %v8390
    %v8392 = vpop.f32.mrf.mxu0
    %v8393 = vpop.f32.mrf.mxu0
    %8394 = vdwg.mxu0
    %8395 = vmatprep.subr.bf16.mxu0 %v7938
    %8396 = vmatpush1.bf16.msra.mxu0 %v7937
    %8397 = vmatprep.subr.bf16.mxu0 %v7934
    %8398 = vmatpush1.bf16.msra.mxu0 %v7933
    %8399 = vmatprep.subr.bf16.mxu0 %v7930
    %8400 = vmatpush1.bf16.msra.mxu0 %v7929
    %8401 = vmatprep.subr.bf16.mxu0 %v7926
    %8402 = vmatpush1.bf16.msra.mxu0 %v7925
    %8403 = vmatprep.subr.bf16.mxu0 %v7922
    %8404 = vmatpush1.bf16.msra.mxu0 %v7921
    %8405 = vmatprep.subr.bf16.mxu0 %v7918
    %8406 = vmatpush1.bf16.msra.mxu0 %v7917
    %8407 = vmatprep.subr.bf16.mxu0 %v7914
    %8408 = vmatpush1.bf16.msra.mxu0 %v7913
    %8409 = vmatprep.subr.bf16.mxu0 %v7910
    %8410 = vmatpush1.bf16.msra.mxu0 %v7909
    %8411 = vmatprep.subr.bf16.mxu0 %v7970
    %8412 = vmatpush2.bf16.msra.mxu0 %v7969
    %8413 = vmatprep.subr.bf16.mxu0 %v7966
    %8414 = vmatpush2.bf16.msra.mxu0 %v7965
    %8415 = vmatprep.subr.bf16.mxu0 %v7962
    %8416 = vmatpush2.bf16.msra.mxu0 %v7961
    %8417 = vmatprep.subr.bf16.mxu0 %v7958
    %8418 = vmatpush2.bf16.msra.mxu0 %v7957
    %8419 = vmatprep.subr.bf16.mxu0 %v7954
    %8420 = vmatpush2.bf16.msra.mxu0 %v7953
    %8421 = vmatprep.subr.bf16.mxu0 %v7950
    %8422 = vmatpush2.bf16.msra.mxu0 %v7949
    %8423 = vmatprep.subr.bf16.mxu0 %v7946
    %8424 = vmatpush2.bf16.msra.mxu0 %v7945
    %8425 = vmatprep.subr.bf16.mxu0 %v7942
    %8426 = vmatpush2.bf16.msra.mxu0 %v7941
    %8427 = vmatprep.mubr.bf16.mxu0 %v6724
    %8428 = vmatmul.mubr.bf16.gmra.mxu0 %v6723
    %v8429 = vpop.f32.mrf.mxu0
    %v8430 = vadd.f32 %v8379, %v8429
    %v8431 = vpop.f32.mrf.mxu0
    %v8432 = vadd.f32 %v8381, %v8431
    %v8433 = vpop.f32.mrf.mxu0
    %v8434 = vadd.f32 %v8383, %v8433
    %v8435 = vpop.f32.mrf.mxu0
    %v8436 = vadd.f32 %v8385, %v8435
    %8437 = vmatprep.mubr.bf16.mxu0 %v6732
    %8438 = vmatmul.mubr.bf16.gmra.mxu0 %v6731
    %v8439 = vpop.f32.mrf.mxu0
    %v8440 = vadd.f32 %v8389, %v8439
    %v8441 = vpop.f32.mrf.mxu0
    %v8442 = vadd.f32 %v8391, %v8441
    %v8443 = vpop.f32.mrf.mxu0
    %v8444 = vpop.f32.mrf.mxu0
    %8445 = vdwg.mxu0
    %8446 = vmatprep.subr.bf16.mxu0 %v8002
    %8447 = vmatpush1.bf16.msra.mxu0 %v8001
    %8448 = vmatprep.subr.bf16.mxu0 %v7998
    %8449 = vmatpush1.bf16.msra.mxu0 %v7997
    %8450 = vmatprep.subr.bf16.mxu0 %v7994
    %8451 = vmatpush1.bf16.msra.mxu0 %v7993
    %8452 = vmatprep.subr.bf16.mxu0 %v7990
    %8453 = vmatpush1.bf16.msra.mxu0 %v7989
    %8454 = vmatprep.subr.bf16.mxu0 %v7986
    %8455 = vmatpush1.bf16.msra.mxu0 %v7985
    %8456 = vmatprep.subr.bf16.mxu0 %v7982
    %8457 = vmatpush1.bf16.msra.mxu0 %v7981
    %8458 = vmatprep.subr.bf16.mxu0 %v7978
    %8459 = vmatpush1.bf16.msra.mxu0 %v7977
    %8460 = vmatprep.subr.bf16.mxu0 %v7974
    %8461 = vmatpush1.bf16.msra.mxu0 %v7973
    %8462 = vmatprep.subr.bf16.mxu0 %v8034
    %8463 = vmatpush2.bf16.msra.mxu0 %v8033
    %8464 = vmatprep.subr.bf16.mxu0 %v8030
    %8465 = vmatpush2.bf16.msra.mxu0 %v8029
    %8466 = vmatprep.subr.bf16.mxu0 %v8026
    %8467 = vmatpush2.bf16.msra.mxu0 %v8025
    %8468 = vmatprep.subr.bf16.mxu0 %v8022
    %8469 = vmatpush2.bf16.msra.mxu0 %v8021
    %8470 = vmatprep.subr.bf16.mxu0 %v8018
    %8471 = vmatpush2.bf16.msra.mxu0 %v8017
    %8472 = vmatprep.subr.bf16.mxu0 %v8014
    %8473 = vmatpush2.bf16.msra.mxu0 %v8013
    %8474 = vmatprep.subr.bf16.mxu0 %v8010
    %8475 = vmatpush2.bf16.msra.mxu0 %v8009
    %8476 = vmatprep.subr.bf16.mxu0 %v8006
    %8477 = vmatpush2.bf16.msra.mxu0 %v8005
    %8478 = vmatprep.mubr.bf16.mxu0 %v6726
    %8479 = vmatmul.mubr.bf16.gmra.mxu0 %v6725
    %v8480 = vpop.f32.mrf.mxu0
    %v8481 = vadd.f32 %v8430, %v8480
    %v8482 = vpop.f32.mrf.mxu0
    %v8483 = vadd.f32 %v8432, %v8482
    %v8484 = vpop.f32.mrf.mxu0
    %v8485 = vadd.f32 %v8434, %v8484
    %v8486 = vpop.f32.mrf.mxu0
    %v8487 = vadd.f32 %v8436, %v8486
    %8488 = vmatprep.mubr.bf16.mxu0 %v6734
    %8489 = vmatmul.mubr.bf16.gmra.mxu0 %v6733
    %v8490 = vpop.f32.mrf.mxu0
    %v8491 = vadd.f32 %v8440, %v8490
    %v8492 = vpop.f32.mrf.mxu0
    %v8493 = vadd.f32 %v8442, %v8492
    %v8494 = vpop.f32.mrf.mxu0
    %v8495 = vpop.f32.mrf.mxu0
    %8496 = vdwg.mxu0
    %8497 = vmatprep.subr.bf16.mxu0 %v7812
    %8498 = vmatpush1.bf16.msra.mxu0 %v7811
    %8499 = vmatprep.subr.bf16.mxu0 %v7808
    %8500 = vmatpush1.bf16.msra.mxu0 %v7807
    %8501 = vmatprep.subr.bf16.mxu0 %v7804
    %8502 = vmatpush1.bf16.msra.mxu0 %v7803
    %8503 = vmatprep.subr.bf16.mxu0 %v7800
    %8504 = vmatpush1.bf16.msra.mxu0 %v7799
    %8505 = vmatprep.subr.bf16.mxu0 %v7796
    %8506 = vmatpush1.bf16.msra.mxu0 %v7795
    %8507 = vmatprep.subr.bf16.mxu0 %v7792
    %8508 = vmatpush1.bf16.msra.mxu0 %v7791
    %8509 = vmatprep.subr.bf16.mxu0 %v7788
    %8510 = vmatpush1.bf16.msra.mxu0 %v7787
    %8511 = vmatprep.subr.bf16.mxu0 %v7784
    %8512 = vmatpush1.bf16.msra.mxu0 %v7783
    %8513 = vmatprep.subr.bf16.mxu0 %v7844
    %8514 = vmatpush2.bf16.msra.mxu0 %v7843
    %8515 = vmatprep.subr.bf16.mxu0 %v7840
    %8516 = vmatpush2.bf16.msra.mxu0 %v7839
    %8517 = vmatprep.subr.bf16.mxu0 %v7836
    %8518 = vmatpush2.bf16.msra.mxu0 %v7835
    %8519 = vmatprep.subr.bf16.mxu0 %v7832
    %8520 = vmatpush2.bf16.msra.mxu0 %v7831
    %8521 = vmatprep.subr.bf16.mxu0 %v7828
    %8522 = vmatpush2.bf16.msra.mxu0 %v7827
    %8523 = vmatprep.subr.bf16.mxu0 %v7824
    %8524 = vmatpush2.bf16.msra.mxu0 %v7823
    %8525 = vmatprep.subr.bf16.mxu0 %v7820
    %8526 = vmatpush2.bf16.msra.mxu0 %v7819
    %8527 = vmatprep.subr.bf16.mxu0 %v7816
    %8528 = vmatpush2.bf16.msra.mxu0 %v7815
    %8529 = vmatprep.mubr.bf16.mxu0 %v6720
    %8530 = vmatmul.mubr.bf16.gmra.mxu0 %v6719
    %v8531 = vpop.f32.mrf.mxu0
    %v8532 = vadd.f32 %v7004, %v8531
    %v8533 = vpop.f32.mrf.mxu0
    %v8534 = vadd.f32 %v7008, %v8533
    %v8535 = vpop.f32.mrf.mxu0
    %v8536 = vadd.f32 %v7004, %v8535
    %v8537 = vpop.f32.mrf.mxu0
    %v8538 = vadd.f32 %v7008, %v8537
    %8539 = vmatprep.mubr.bf16.mxu0 %v6728
    %8540 = vmatmul.mubr.bf16.gmra.mxu0 %v6727
    %v8541 = vpop.f32.mrf.mxu0
    %v8542 = vadd.f32 %v7004, %v8541
    %v8543 = vpop.f32.mrf.mxu0
    %v8544 = vadd.f32 %v7008, %v8543
    %v8545 = vpop.f32.mrf.mxu0
    %v8546 = vpop.f32.mrf.mxu0
    %8547 = vdwg.mxu0
    %8548 = vmatprep.subr.bf16.mxu0 %v7876
    %8549 = vmatpush1.bf16.msra.mxu0 %v7875
    %8550 = vmatprep.subr.bf16.mxu0 %v7872
    %8551 = vmatpush1.bf16.msra.mxu0 %v7871
    %8552 = vmatprep.subr.bf16.mxu0 %v7868
    %8553 = vmatpush1.bf16.msra.mxu0 %v7867
    %8554 = vmatprep.subr.bf16.mxu0 %v7864
    %8555 = vmatpush1.bf16.msra.mxu0 %v7863
    %8556 = vmatprep.subr.bf16.mxu0 %v7860
    %8557 = vmatpush1.bf16.msra.mxu0 %v7859
    %8558 = vmatprep.subr.bf16.mxu0 %v7856
    %8559 = vmatpush1.bf16.msra.mxu0 %v7855
    %8560 = vmatprep.subr.bf16.mxu0 %v7852
    %8561 = vmatpush1.bf16.msra.mxu0 %v7851
    %8562 = vmatprep.subr.bf16.mxu0 %v7848
    %8563 = vmatpush1.bf16.msra.mxu0 %v7847
    %8564 = vmatprep.subr.bf16.mxu0 %v7908
    %8565 = vmatpush2.bf16.msra.mxu0 %v7907
    %8566 = vmatprep.subr.bf16.mxu0 %v7904
    %8567 = vmatpush2.bf16.msra.mxu0 %v7903
    %8568 = vmatprep.subr.bf16.mxu0 %v7900
    %8569 = vmatpush2.bf16.msra.mxu0 %v7899
    %8570 = vmatprep.subr.bf16.mxu0 %v7896
    %8571 = vmatpush2.bf16.msra.mxu0 %v7895
    %8572 = vmatprep.subr.bf16.mxu0 %v7892
    %8573 = vmatpush2.bf16.msra.mxu0 %v7891
    %8574 = vmatprep.subr.bf16.mxu0 %v7888
    %8575 = vmatpush2.bf16.msra.mxu0 %v7887
    %8576 = vmatprep.subr.bf16.mxu0 %v7884
    %8577 = vmatpush2.bf16.msra.mxu0 %v7883
    %8578 = vmatprep.subr.bf16.mxu0 %v7880
    %8579 = vmatpush2.bf16.msra.mxu0 %v7879
    %8580 = vmatprep.mubr.bf16.mxu0 %v6722
    %8581 = vmatmul.mubr.bf16.gmra.mxu0 %v6721
    %v8582 = vpop.f32.mrf.mxu0
    %v8583 = vadd.f32 %v8532, %v8582
    %v8584 = vpop.f32.mrf.mxu0
    %v8585 = vadd.f32 %v8534, %v8584
    %v8586 = vpop.f32.mrf.mxu0
    %v8587 = vadd.f32 %v8536, %v8586
    %v8588 = vpop.f32.mrf.mxu0
    %v8589 = vadd.f32 %v8538, %v8588
    %8590 = vmatprep.mubr.bf16.mxu0 %v6730
    %8591 = vmatmul.mubr.bf16.gmra.mxu0 %v6729
    %v8592 = vpop.f32.mrf.mxu0
    %v8593 = vadd.f32 %v8542, %v8592
    %v8594 = vpop.f32.mrf.mxu0
    %v8595 = vadd.f32 %v8544, %v8594
    %v8596 = vpop.f32.mrf.mxu0
    %v8597 = vpop.f32.mrf.mxu0
    %8598 = vdwg.mxu0
    %8599 = vmatprep.subr.bf16.mxu0 %v7940
    %8600 = vmatpush1.bf16.msra.mxu0 %v7939
    %8601 = vmatprep.subr.bf16.mxu0 %v7936
    %8602 = vmatpush1.bf16.msra.mxu0 %v7935
    %8603 = vmatprep.subr.bf16.mxu0 %v7932
    %8604 = vmatpush1.bf16.msra.mxu0 %v7931
    %8605 = vmatprep.subr.bf16.mxu0 %v7928
    %8606 = vmatpush1.bf16.msra.mxu0 %v7927
    %8607 = vmatprep.subr.bf16.mxu0 %v7924
    %8608 = vmatpush1.bf16.msra.mxu0 %v7923
    %8609 = vmatprep.subr.bf16.mxu0 %v7920
    %8610 = vmatpush1.bf16.msra.mxu0 %v7919
    %8611 = vmatprep.subr.bf16.mxu0 %v7916
    %8612 = vmatpush1.bf16.msra.mxu0 %v7915
    %8613 = vmatprep.subr.bf16.mxu0 %v7912
    %8614 = vmatpush1.bf16.msra.mxu0 %v7911
    %8615 = vmatprep.subr.bf16.mxu0 %v7972
    %8616 = vmatpush2.bf16.msra.mxu0 %v7971
    %8617 = vmatprep.subr.bf16.mxu0 %v7968
    %8618 = vmatpush2.bf16.msra.mxu0 %v7967
    %8619 = vmatprep.subr.bf16.mxu0 %v7964
    %8620 = vmatpush2.bf16.msra.mxu0 %v7963
    %8621 = vmatprep.subr.bf16.mxu0 %v7960
    %8622 = vmatpush2.bf16.msra.mxu0 %v7959
    %8623 = vmatprep.subr.bf16.mxu0 %v7956
    %8624 = vmatpush2.bf16.msra.mxu0 %v7955
    %8625 = vmatprep.subr.bf16.mxu0 %v7952
    %8626 = vmatpush2.bf16.msra.mxu0 %v7951
    %8627 = vmatprep.subr.bf16.mxu0 %v7948
    %8628 = vmatpush2.bf16.msra.mxu0 %v7947
    %8629 = vmatprep.subr.bf16.mxu0 %v7944
    %8630 = vmatpush2.bf16.msra.mxu0 %v7943
    %8631 = vmatprep.mubr.bf16.mxu0 %v6724
    %8632 = vmatmul.mubr.bf16.gmra.mxu0 %v6723
    %v8633 = vpop.f32.mrf.mxu0
    %v8634 = vadd.f32 %v8583, %v8633
    %v8635 = vpop.f32.mrf.mxu0
    %v8636 = vadd.f32 %v8585, %v8635
    %v8637 = vpop.f32.mrf.mxu0
    %v8638 = vadd.f32 %v8587, %v8637
    %v8639 = vpop.f32.mrf.mxu0
    %v8640 = vadd.f32 %v8589, %v8639
    %8641 = vmatprep.mubr.bf16.mxu0 %v6732
    %8642 = vmatmul.mubr.bf16.gmra.mxu0 %v6731
    %v8643 = vpop.f32.mrf.mxu0
    %v8644 = vadd.f32 %v8593, %v8643
    %v8645 = vpop.f32.mrf.mxu0
    %v8646 = vadd.f32 %v8595, %v8645
    %v8647 = vpop.f32.mrf.mxu0
    %v8648 = vpop.f32.mrf.mxu0
    %8649 = vdwg.mxu0
    %8650 = vmatprep.subr.bf16.mxu0 %v8004
    %8651 = vmatpush1.bf16.msra.mxu0 %v8003
    %8652 = vmatprep.subr.bf16.mxu0 %v8000
    %8653 = vmatpush1.bf16.msra.mxu0 %v7999
    %8654 = vmatprep.subr.bf16.mxu0 %v7996
    %8655 = vmatpush1.bf16.msra.mxu0 %v7995
    %8656 = vmatprep.subr.bf16.mxu0 %v7992
    %8657 = vmatpush1.bf16.msra.mxu0 %v7991
    %8658 = vmatprep.subr.bf16.mxu0 %v7988
    %8659 = vmatpush1.bf16.msra.mxu0 %v7987
    %8660 = vmatprep.subr.bf16.mxu0 %v7984
    %8661 = vmatpush1.bf16.msra.mxu0 %v7983
    %8662 = vmatprep.subr.bf16.mxu0 %v7980
    %8663 = vmatpush1.bf16.msra.mxu0 %v7979
    %8664 = vmatprep.subr.bf16.mxu0 %v7976
    %8665 = vmatpush1.bf16.msra.mxu0 %v7975
    %8666 = vmatprep.subr.bf16.mxu0 %v8036
    %8667 = vmatpush2.bf16.msra.mxu0 %v8035
    %8668 = vmatprep.subr.bf16.mxu0 %v8032
    %8669 = vmatpush2.bf16.msra.mxu0 %v8031
    %8670 = vmatprep.subr.bf16.mxu0 %v8028
    %8671 = vmatpush2.bf16.msra.mxu0 %v8027
    %8672 = vmatprep.subr.bf16.mxu0 %v8024
    %8673 = vmatpush2.bf16.msra.mxu0 %v8023
    %8674 = vmatprep.subr.bf16.mxu0 %v8020
    %8675 = vmatpush2.bf16.msra.mxu0 %v8019
    %8676 = vmatprep.subr.bf16.mxu0 %v8016
    %8677 = vmatpush2.bf16.msra.mxu0 %v8015
    %8678 = vmatprep.subr.bf16.mxu0 %v8012
    %8679 = vmatpush2.bf16.msra.mxu0 %v8011
    %8680 = vmatprep.subr.bf16.mxu0 %v8008
    %8681 = vmatpush2.bf16.msra.mxu0 %v8007
    %8682 = vmatprep.mubr.bf16.mxu0 %v6726
    %8683 = vmatmul.mubr.bf16.gmra.mxu0 %v6725
    %v8684 = vpop.f32.mrf.mxu0
    %v8685 = vadd.f32 %v8634, %v8684
    %v8686 = vpop.f32.mrf.mxu0
    %v8687 = vadd.f32 %v8636, %v8686
    %v8688 = vpop.f32.mrf.mxu0
    %v8689 = vadd.f32 %v8638, %v8688
    %v8690 = vpop.f32.mrf.mxu0
    %v8691 = vadd.f32 %v8640, %v8690
    %8692 = vmatprep.mubr.bf16.mxu0 %v6734
    %8693 = vmatmul.mubr.bf16.gmra.mxu0 %v6733
    %v8694 = vpop.f32.mrf.mxu0
    %v8695 = vadd.f32 %v8644, %v8694
    %v8696 = vpop.f32.mrf.mxu0
    %v8697 = vadd.f32 %v8646, %v8696
    %v8698 = vpop.f32.mrf.mxu0
    %v8699 = vpop.f32.mrf.mxu0
    %8700 = vdwg.mxu0
    %s8701 = sld [smem:[#allocation12]]
    %v8702 = vstv %s8701
    %v8703 = vrcp.pop %v8702
    %s8704 = vtos %v8703
    %s8705 = sld [smem:[#allocation12 + $0x1]]
    %v8706 = vstv %s8704
    %v8707 = vmul.f32 %v8481, %v8706
    %v8708 = vmul.f32 %v8483, %v8706
    %v8709 = vmul.f32 %v8685, %v8706
    %v8710 = vmul.f32 %v8687, %v8706
    %v8711 = vmul.f32 %v8485, %v8706
    %v8712 = vmul.f32 %v8487, %v8706
    %v8713 = vmul.f32 %v8689, %v8706
    %v8714 = vmul.f32 %v8691, %v8706
    %v8715 = vmul.f32 %v8491, %v8706
    %v8716 = vmul.f32 %v8493, %v8706
    %v8717 = vmul.f32 %v8695, %v8706
    %v8718 = vmul.f32 %v8697, %v8706
    %8719 = vmatprep.subr.mxu0 0.0
    %8720 = vmatpush1.xpose.msra.mxu0 0.0
    %8721 = vmatprep.subr.mxu0 0.0
    %8722 = vmatpush1.xpose.msra.mxu0 0.0
    %8723 = vmatprep.subr.mxu0 0.0
    %8724 = vmatpush1.xpose.msra.mxu0 0.0
    %8725 = vmatprep.subr.mxu0 0.0
    %8726 = vmatpush1.xpose.msra.mxu0 0.0
    %8727 = vmatprep.subr.mxu0 0.0
    %8728 = vmatpush1.xpose.msra.mxu0 0.0
    %8729 = vmatprep.subr.mxu0 0.0
    %8730 = vmatpush1.xpose.msra.mxu0 0.0
    %8731 = vmatprep.subr.mxu0 0.0
    %8732 = vmatpush1.xpose.msra.mxu0 0.0
    %8733 = vmatprep.subr.mxu0 0.0
    %8734 = vmatpush1.xpose.msra.mxu0 0.0
    %8735 = vmatprep.subr.mxu0 0.0
    %8736 = vmatpush1.xpose.msra.mxu0 0.0
    %8737 = vmatprep.subr.mxu0 0.0
    %8738 = vmatpush1.xpose.msra.mxu0 0.0
    %8739 = vmatprep.subr.mxu0 0.0
    %8740 = vmatpush1.xpose.msra.mxu0 0.0
    %8741 = vmatprep.subr.mxu0 0.0
    %8742 = vmatpush1.xpose.msra.mxu0 0.0
    %8743 = vmatprep.subr.mxu0 0.0
    %8744 = vmatpush1.xpose.msra.mxu0 0.0
    %8745 = vmatprep.subr.mxu0 %v8716
    %8746 = vmatpush1.xpose.msra.mxu0 %v8715
    %8747 = vmatprep.subr.mxu0 %v8712
    %8748 = vmatpush1.xpose.msra.mxu0 %v8711
    %8749 = vmatprep.subr.mxu0 %v8708
    %8750 = vmatpush1.xpose.msra.mxu0 %v8707
    %8751 = vmatprep.subr.mxu0 0.0
    %8752 = vmatpush2.xpose.msra.mxu0 0.0
    %8753 = vmatprep.subr.mxu0 0.0
    %8754 = vmatpush2.xpose.msra.mxu0 0.0
    %8755 = vmatprep.subr.mxu0 0.0
    %8756 = vmatpush2.xpose.msra.mxu0 0.0
    %8757 = vmatprep.subr.mxu0 0.0
    %8758 = vmatpush2.xpose.msra.mxu0 0.0
    %8759 = vmatprep.subr.mxu0 0.0
    %8760 = vmatpush2.xpose.msra.mxu0 0.0
    %8761 = vmatprep.subr.mxu0 0.0
    %8762 = vmatpush2.xpose.msra.mxu0 0.0
    %8763 = vmatprep.subr.mxu0 0.0
    %8764 = vmatpush2.xpose.msra.mxu0 0.0
    %8765 = vmatprep.subr.mxu0 0.0
    %8766 = vmatpush2.xpose.msra.mxu0 0.0
    %8767 = vmatprep.subr.mxu0 0.0
    %8768 = vmatpush2.xpose.msra.mxu0 0.0
    %8769 = vmatprep.subr.mxu0 0.0
    %8770 = vmatpush2.xpose.msra.mxu0 0.0
    %8771 = vmatprep.subr.mxu0 0.0
    %8772 = vmatpush2.xpose.msra.mxu0 0.0
    %8773 = vmatprep.subr.mxu0 0.0
    %8774 = vmatpush2.xpose.msra.mxu0 0.0
    %8775 = vmatprep.subr.mxu0 0.0
    %8776 = vmatpush2.xpose.msra.mxu0 0.0
    %8777 = vmatprep.subr.mxu0 0.0
    %8778 = vmatpush2.xpose.msra.mxu0 0.0
    %8779 = vmatprep.subr.mxu0 0.0
    %8780 = vmatpush2.xpose.msra.mxu0 0.0
    %8781 = vmatprep.subr.mxu0 0.0
    %8782 = vmatpush2.xpose.msra.mxu0 0.0
    %8783 = vmatprep.mubr.f32.mxu0 %v8708
    %8784 = vmatmul.mubr.f32.gmra.mxu0 %v8707
    %v8785 = vpop.f32.mrf.mxu0
    %v8786 = vadd.f32 0.0, %v8785
    %v8787 = vpop.f32.mrf.mxu0
    %8788 = vmatprep.mubr.f32.mxu0 %v8712
    %8789 = vmatmul.mubr.f32.gmra.mxu0 %v8711
    %v8790 = vpop.f32.mrf.mxu0
    %v8791 = vadd.f32 0.0, %v8790
    %v8792 = vpop.f32.mrf.mxu0
    %8793 = vmatprep.mubr.f32.mxu0 %v8716
    %8794 = vmatmul.mubr.f32.gmra.mxu0 %v8715
    %v8795 = vpop.f32.mrf.mxu0
    %v8796 = vadd.f32 0.0, %v8795
    %v8797 = vpop.f32.mrf.mxu0
    %8798 = vdwg.mxu0
    %8799 = vmatprep.subr.mxu0 0.0
    %8800 = vmatpush1.xpose.msra.mxu0 0.0
    %8801 = vmatprep.subr.mxu0 0.0
    %8802 = vmatpush1.xpose.msra.mxu0 0.0
    %8803 = vmatprep.subr.mxu0 0.0
    %8804 = vmatpush1.xpose.msra.mxu0 0.0
    %8805 = vmatprep.subr.mxu0 0.0
    %8806 = vmatpush1.xpose.msra.mxu0 0.0
    %8807 = vmatprep.subr.mxu0 0.0
    %8808 = vmatpush1.xpose.msra.mxu0 0.0
    %8809 = vmatprep.subr.mxu0 0.0
    %8810 = vmatpush1.xpose.msra.mxu0 0.0
    %8811 = vmatprep.subr.mxu0 0.0
    %8812 = vmatpush1.xpose.msra.mxu0 0.0
    %8813 = vmatprep.subr.mxu0 0.0
    %8814 = vmatpush1.xpose.msra.mxu0 0.0
    %8815 = vmatprep.subr.mxu0 0.0
    %8816 = vmatpush1.xpose.msra.mxu0 0.0
    %8817 = vmatprep.subr.mxu0 0.0
    %8818 = vmatpush1.xpose.msra.mxu0 0.0
    %8819 = vmatprep.subr.mxu0 0.0
    %8820 = vmatpush1.xpose.msra.mxu0 0.0
    %8821 = vmatprep.subr.mxu0 0.0
    %8822 = vmatpush1.xpose.msra.mxu0 0.0
    %8823 = vmatprep.subr.mxu0 0.0
    %8824 = vmatpush1.xpose.msra.mxu0 0.0
    %8825 = vmatprep.subr.mxu0 %v8718
    %8826 = vmatpush1.xpose.msra.mxu0 %v8717
    %8827 = vmatprep.subr.mxu0 %v8714
    %8828 = vmatpush1.xpose.msra.mxu0 %v8713
    %8829 = vmatprep.subr.mxu0 %v8710
    %8830 = vmatpush1.xpose.msra.mxu0 %v8709
    %8831 = vmatprep.subr.mxu0 0.0
    %8832 = vmatpush2.xpose.msra.mxu0 0.0
    %8833 = vmatprep.subr.mxu0 0.0
    %8834 = vmatpush2.xpose.msra.mxu0 0.0
    %8835 = vmatprep.subr.mxu0 0.0
    %8836 = vmatpush2.xpose.msra.mxu0 0.0
    %8837 = vmatprep.subr.mxu0 0.0
    %8838 = vmatpush2.xpose.msra.mxu0 0.0
    %8839 = vmatprep.subr.mxu0 0.0
    %8840 = vmatpush2.xpose.msra.mxu0 0.0
    %8841 = vmatprep.subr.mxu0 0.0
    %8842 = vmatpush2.xpose.msra.mxu0 0.0
    %8843 = vmatprep.subr.mxu0 0.0
    %8844 = vmatpush2.xpose.msra.mxu0 0.0
    %8845 = vmatprep.subr.mxu0 0.0
    %8846 = vmatpush2.xpose.msra.mxu0 0.0
    %8847 = vmatprep.subr.mxu0 0.0
    %8848 = vmatpush2.xpose.msra.mxu0 0.0
    %8849 = vmatprep.subr.mxu0 0.0
    %8850 = vmatpush2.xpose.msra.mxu0 0.0
    %8851 = vmatprep.subr.mxu0 0.0
    %8852 = vmatpush2.xpose.msra.mxu0 0.0
    %8853 = vmatprep.subr.mxu0 0.0
    %8854 = vmatpush2.xpose.msra.mxu0 0.0
    %8855 = vmatprep.subr.mxu0 0.0
    %8856 = vmatpush2.xpose.msra.mxu0 0.0
    %8857 = vmatprep.subr.mxu0 0.0
    %8858 = vmatpush2.xpose.msra.mxu0 0.0
    %8859 = vmatprep.subr.mxu0 0.0
    %8860 = vmatpush2.xpose.msra.mxu0 0.0
    %8861 = vmatprep.subr.mxu0 0.0
    %8862 = vmatpush2.xpose.msra.mxu0 0.0
    %8863 = vmatprep.mubr.f32.mxu0 %v8710
    %8864 = vmatmul.mubr.f32.gmra.mxu0 %v8709
    %v8865 = vpop.f32.mrf.mxu0
    %v8866 = vadd.f32 %v8786, %v8865
    %v8867 = vpop.f32.mrf.mxu0
    %8868 = vmatprep.mubr.f32.mxu0 %v8714
    %8869 = vmatmul.mubr.f32.gmra.mxu0 %v8713
    %v8870 = vpop.f32.mrf.mxu0
    %v8871 = vadd.f32 %v8791, %v8870
    %v8872 = vpop.f32.mrf.mxu0
    %8873 = vmatprep.mubr.f32.mxu0 %v8718
    %8874 = vmatmul.mubr.f32.gmra.mxu0 %v8717
    %v8875 = vpop.f32.mrf.mxu0
    %v8876 = vadd.f32 %v8796, %v8875
    %v8877 = vpop.f32.mrf.mxu0
    %8878 = vdwg.mxu0
    %v8879 = vmul.f32 %v8707, %v8707
    %v8880 = vmul.f32 %v8708, %v8708
    %v8881 = vmul.f32 %v8709, %v8709
    %v8882 = vmul.f32 %v8710, %v8710
    %v8883 = vmul.f32 %v8711, %v8711
    %v8884 = vmul.f32 %v8712, %v8712
    %v8885 = vmul.f32 %v8713, %v8713
    %v8886 = vmul.f32 %v8714, %v8714
    %v8887 = vmul.f32 %v8715, %v8715
    %v8888 = vmul.f32 %v8716, %v8716
    %v8889 = vmul.f32 %v8717, %v8717
    %v8890 = vmul.f32 %v8718, %v8718
    %v8891 = vadd.f32 %v8879, %v8880
    %v8892 = vadd.f32 %v8891, %v8881
    %v8893 = vadd.f32 %v8892, %v8882
    %8894 = vadd.xlane.f32.xlu0 %v8893
    %v8895 = vpop.xlane.xlu0 %8894
    %v8896 = vadd.f32 %v8883, %v8884
    %v8897 = vadd.f32 %v8896, %v8885
    %v8898 = vadd.f32 %v8897, %v8886
    %8899 = vadd.xlane.f32.xlu0 %v8898
    %v8900 = vpop.xlane.xlu0 %8899
    %v8901 = vadd.f32 %v8887, %v8888
    %v8902 = vadd.f32 %v8901, %v8889
    %v8903 = vadd.f32 %v8902, %v8890
    %8904 = vadd.xlane.f32.xlu0 %v8903
    %v8905 = vpop.xlane.xlu0 %8904
    %v8906 = vlaneseq
    %v8907 = vshrl.u32 %v8906, 7
    %v8908 = vadd.s32 %v8907, 8
    %v8909 = vadd.s32 %v8907, 16
    %v8910 = vlaneseq
    %v8911 = vand.u32 %v8910, 127
    %vm8912 = vcmp.eq.s32.totalorder %v8907, %v8911
    %vm8913 = vcmp.eq.s32.totalorder %v8908, %v8911
    %vm8914 = vcmp.eq.s32.totalorder %v8909, %v8911
    %v8915 = vsel %vm8912, %v8866, 0.0
    %v8916 = vsel %vm8913, %v8871, 0.0
    %v8917 = vsel %vm8914, %v8876, 0.0
    %vm8918 = vcmask 195584
    %v8919 = vsel %vm8918, %v8915, 0.0
    %v8920 = vsel %vm8918, %v8916, 0.0
    %v8921 = vadd.f32 %v8919, %v8920
    %v8922 = vsel %vm8918, %v8917, 0.0
    %v8923 = vadd.f32 %v8921, %v8922
    %v8924 = vrot.slane %v8923, 4
    %v8925 = vadd.f32 %v8923, %v8924
    %v8926 = vrot.slane %v8925, 2
    %v8927 = vadd.f32 %v8925, %v8926
    %v8928 = vrot.slane %v8927, 1
    %v8929 = vadd.f32 %v8927, %v8928
    %v8930 = vmul.f32 %v8866, 2.0
    %v8931 = vmul.f32 %v8871, 2.0
    %v8932 = vmul.f32 %v8876, 2.0
    %v8933 = vsub.f32 %v8895, %v8930
    %v8934 = vsub.f32 %v8900, %v8931
    %v8935 = vsub.f32 %v8905, %v8932
    %v8936 = vadd.f32 %v8933, %v8929
    %v8937 = vadd.f32 %v8934, %v8929
    %v8938 = vadd.f32 %v8935, %v8929
    %v8939 = vmax.f32 %v8936, 0.0
    %v8940 = vmax.f32 %v8937, 0.0
    %v8941 = vmax.f32 %v8938, 0.0
    %v8942 = vmul.f32 %v8939, -0.5
    %v8943 = vmul.f32 %v8940, -0.5
    %v8944 = vmul.f32 %v8941, -0.5
    %v8945 = vmul.f32 %v8942, 1.442695
    %v8946 = vpow.pop %v8945
    %v8947 = vmul.f32 %v8943, 1.442695
    %v8948 = vpow.pop %v8947
    %v8949 = vmul.f32 %v8944, 1.442695
    %v8950 = vpow.pop %v8949
    %v8951 = vstv %s8705
    %v8952 = vmul.f32 %v8951, %v8946
    %v8953 = vmul.f32 %v8951, %v8948
    %v8954 = vmul.f32 %v8951, %v8950
    %8955 = vst.msk [vmem:[#allocation13] sm:$0xff] %vm8918, %v8952
    %8956 = vst.msk [vmem:[#allocation13 + $0x8] sm:$0xff] %vm8918, %v8953
    %8957 = vst.msk [vmem:[#allocation13 + $0x10] sm:$0xff] %vm8918, %v8954
    // Predicated region
    $region50: #{tpu_custom_call.1} parent=1 // pred_check
      _
    $region51: #{tpu_custom_call.1} parent=1 // pred_check_branch
      %8959 = sbr.rel (0) target = $region53
    $region52: #{tpu_custom_call.1} parent=1 // pred_region
      %s8961 = ssub.s32 384, 384
      %8962 = vsyncadd [#allocation4], %s8961
      %s8963 = sshll.u32 [#allocation13], 4
      %s8964 = int_to_ptr.vmem [resolvable:$true] %s8963
      %8969 = dma.vmem_to_hbm [thread:$0]  %s8964, 384, %s6, [#allocation4], 128, 128, 8
    $region53: #{tpu_custom_call.1} parent=1 // pred_fallthru
      _
    // Predicated region
    $region54: #{tpu_custom_call.1} parent=1 // pred_check
      _
    $region55: #{tpu_custom_call.1} parent=1 // pred_check_branch
      %8971 = sbr.rel (0) target = $region57
    $region56: #{tpu_custom_call.1} parent=1 // pred_region
      %8972 = dma.done [#allocation4], 384
    $region57: #{tpu_custom_call.1} parent=1 // pred_fallthru
      _
    %8973 = vsyncpa [#allocation3], 1
    %8974 = vsyncpa [#allocation7], 1
    %8975 = vsyncpa [#allocation10], 1
    %8976 = vsyncpa [#allocation4], 1
    %8977 = vsyncpa [#allocation5], 1

</llo_original>
